<compile_context>
chip_gen: v5e
topology: v5e:2x2
jax: 0.10.0
libtpu: 0.0.40
codegen_flags: <defaults>
</compile_context>

<pallas_src>
import jax
import jax.numpy as jnp
from jax import lax
from jax.experimental import pallas as pl
from jax.experimental.pallas import tpu as pltpu


LANE = 128  # TPU lane width; channel dim is padded up to a multiple of this.


def _basic_block_kernel(x_ref, w1_ref, w2_ref, bias_ref, o_ref, pad_sc):
    # x_ref:   (Nb, H, W, Cp)   bf16 input block (channels lane-dense)
    # w1_ref:  (9, Cp, Cp)      bf16 conv1 weights (per-tap), BN1 scale folded
    # w2_ref:  (9, Cp, Cp)      bf16 conv2 weights (per-tap), BN2 scale folded
    # bias_ref:(2, Cp)          f32  row 0: BN1 bias, row 1: BN2 bias
    # o_ref:   (Nb, H, W, Cp)   bf16 output block
    # pad_sc:  (Nb, H+2, W+2, Cp) bf16 padded scratch, reused for both convs
    Nb, H, W, Cp = x_ref.shape
    M = Nb * H * W

    # Zero only the 1-pixel halo border, EVERY grid step (tiny, O(border)),
    # so correctness does not depend on scratch state from other iterations
    # -> safe with dimension_semantics=("parallel",) / v7x megacore sharding.
    zrow = jnp.zeros((Nb, 1, W + 2, Cp), pad_sc.dtype)
    zcol = jnp.zeros((Nb, H, 1, Cp), pad_sc.dtype)
    pad_sc[:, 0:1, :, :] = zrow
    pad_sc[:, H + 1:H + 2, :, :] = zrow
    pad_sc[:, 1:H + 1, 0:1, :] = zcol
    pad_sc[:, 1:H + 1, W + 1:W + 2, :] = zcol

    x = x_ref[...]                                   # (Nb, H, W, Cp) bf16
    pad_sc[:, 1:H + 1, 1:W + 1, :] = x

    def conv3x3(w_ref):
        # 9 accumulated MXU matmuls straight from the padded scratch:
        # no per-tap slab list, no concatenate, no (M, 9*Cp) im2col buffer.
        acc = jnp.zeros((M, Cp), jnp.float32)
        for k in range(9):
            kh, kw = k // 3, k % 3
            slab = pad_sc[:, kh:kh + H, kw:kw + W, :].reshape(M, Cp)
            acc += jnp.dot(slab, w_ref[k], preferred_element_type=jnp.float32)
        return acc

    # ---- conv1 (3x3, pad=1, stride=1, BN1 scale folded) + bias + ReLU ----
    out1 = jnp.maximum(conv3x3(w1_ref) + bias_ref[0], 0.0)
    # xpad content is fully consumed; reuse the SAME scratch as conv2's padded
    # input (the halo border stays zero, only the interior is overwritten).
    pad_sc[:, 1:H + 1, 1:W + 1, :] = out1.reshape(Nb, H, W, Cp).astype(pad_sc.dtype)

    # ---- conv2 (3x3, pad=1, stride=1, BN2 scale folded) + bias + residual + ReLU
    out2 = conv3x3(w2_ref) + bias_ref[1] + x.reshape(M, Cp).astype(jnp.float32)
    o_ref[...] = jnp.maximum(out2, 0.0).reshape(Nb, H, W, Cp).astype(o_ref.dtype)


def _round_up(x, m):
    return ((x + m - 1) // m) * m


def _vmem_bytes_estimate(nb, H, W, Cp):
    """Rough per-step VMEM footprint (bytes) used to size the batch block."""
    act = nb * H * _round_up(W, 8) * Cp * 2             # one bf16 activation block
    pad = nb * (H + 2) * _round_up(W + 2, 8) * Cp * 2   # padded scratch (bf16)
    acc = nb * H * _round_up(W, 8) * Cp * 4             # f32 matmul accumulator
    slab = act                                           # one materialized tap slab
    weights = 2 * 9 * Cp * Cp * 2 * 2                    # two weights, double-buffered
    bias = 2 * _round_up(Cp, 128) * 4 * 2
    # input + output blocks are double-buffered by the pipeline.
    return 2 * act + 2 * act + pad + acc + slab + weights + bias + (2 << 20)


def _pick_batch_block(N, H, W, Cp, vmem_budget):
    best = 1
    for nb in range(1, min(N, 8) + 1):
        if N % nb != 0:
            continue
        if N >= 2 and N // nb < 2:
            continue  # keep >= 2 "parallel" grid steps so both v7x TCs get work
        if _vmem_bytes_estimate(nb, H, W, Cp) <= vmem_budget:
            best = nb
    return best


def basic_block_pallas(x_nchw, w1_oihw, w2_oihw,
                       g1, beta1, rm1, rv1, g2, beta2, rm2, rv2,
                       eps=1e-5, batch_block=None):
    """BasicBlock forward. x_nchw: (N, C, H, W) float32 (PyTorch layout)."""
    N, C, H, W = x_nchw.shape
    Cout = w1_oihw.shape[0]
    assert Cout == C, "stride=1 / downsample=None requires inplanes == planes"

    Cp = _round_up(C, LANE)                    # lane-dense channel dim

    # Fold inference-mode BatchNorm: y = conv(x) * s + b = conv(x, w*s) + b.
    inv1 = (g1 / jnp.sqrt(rv1 + eps)).astype(jnp.float32)
    inv2 = (g2 / jnp.sqrt(rv2 + eps)).astype(jnp.float32)
    b1 = (beta1 - rm1 * inv1).astype(jnp.float32)
    b2 = (beta2 - rm2 * inv2).astype(jnp.float32)

    # OIHW -> per-tap (Cin, Cout) matrices, fold BN scale along out-channels,
    # pad channels to Cp, cast to bf16.  Shape: (9, Cp, Cp).
    def prep_w(w_oihw, scale):
        w = jnp.transpose(w_oihw, (2, 3, 1, 0)).astype(jnp.float32)  # (3,3,Cin,Cout)
        w = w * scale[None, None, None, :]
        wp = jnp.zeros((3, 3, Cp, Cp), jnp.float32).at[:, :, :C, :C].set(w)
        return wp.reshape(9, Cp, Cp).astype(jnp.bfloat16)

    w1m = prep_w(w1_oihw, inv1)
    w2m = prep_w(w2_oihw, inv2)

    bias = jnp.zeros((2, Cp), jnp.float32)
    bias = bias.at[0, :C].set(b1)
    bias = bias.at[1, :C].set(b2)

    # NCHW -> NHWC (lane-dense channels), bf16 activations.  No spatial
    # pre-pad in HBM: halo padding happens in the VMEM scratch in-kernel.
    x = jnp.transpose(x_nchw, (0, 2, 3, 1)).astype(jnp.bfloat16)
    x = jnp.pad(x, ((0, 0), (0, 0), (0, 0), (0, Cp - C)))

    # Per-generation VMEM budget: ~75% of physical (~96 MiB on 128 MiB v5e/v6e,
    # ~48 MiB on 64 MiB-per-TC v7x).
    try:
        phys = int(pltpu.get_tpu_info().vmem_capacity_bytes)
    except Exception:
        phys = 64 * 1024 * 1024
    vmem_limit = max(32 * 1024 * 1024, min((phys * 3) // 4, 100 * 1024 * 1024))

    if batch_block is None:
        batch_block = _pick_batch_block(N, H, W, Cp, vmem_limit)
    Nb = batch_block
    assert N % Nb == 0, "batch_block must divide N"

    out_nhwc = pl.pallas_call(
        _basic_block_kernel,
        out_shape=jax.ShapeDtypeStruct((N, H, W, Cp), jnp.bfloat16),
        grid_spec=pltpu.PrefetchScalarGridSpec(
            num_scalar_prefetch=0,
            grid=(N // Nb,),
            in_specs=[
                pl.BlockSpec((Nb, H, W, Cp), lambda b: (b, 0, 0, 0)),
                # Constant index maps -> weights / bias are fetched only once.
                pl.BlockSpec((9, Cp, Cp), lambda b: (0, 0, 0)),
                pl.BlockSpec((9, Cp, Cp), lambda b: (0, 0, 0)),
                pl.BlockSpec((2, Cp), lambda b: (0, 0)),
            ],
            out_specs=pl.BlockSpec((Nb, H, W, Cp), lambda b: (b, 0, 0, 0)),
            scratch_shapes=[
                pltpu.VMEM((Nb, H + 2, W + 2, Cp), jnp.bfloat16),
            ],
        ),
        compiler_params=pltpu.CompilerParams(
            dimension_semantics=("parallel",),
            vmem_limit_bytes=vmem_limit,
        ),
    )(x, w1m, w2m, bias)

    # Drop channel padding, NHWC -> NCHW to match the PyTorch output layout.
    return jnp.transpose(out_nhwc[..., :C].astype(jnp.float32), (0, 3, 1, 2))


def _reference(x_nchw, w1_oihw, w2_oihw,
               g1, beta1, rm1, rv1, g2, beta2, rm2, rv2, eps=1e-5):
    dn = ("NCHW", "OIHW", "NCHW")

    def bn(x, g, b, rm, rv):
        g = g.reshape(1, -1, 1, 1); b = b.reshape(1, -1, 1, 1)
        rm = rm.reshape(1, -1, 1, 1); rv = rv.reshape(1, -1, 1, 1)
        return (x - rm) / jnp.sqrt(rv + eps) * g + b

    out = lax.conv_general_dilated(x_nchw, w1_oihw, (1, 1), ((1, 1), (1, 1)),
                                   dimension_numbers=dn)
    out = jnp.maximum(bn(out, g1, beta1, rm1, rv1), 0.0)
    out = lax.conv_general_dilated(out, w2_oihw, (1, 1), ((1, 1), (1, 1)),
                                   dimension_numbers=dn)
    out = bn(out, g2, beta2, rm2, rv2) + x_nchw
    return jnp.maximum(out, 0.0)


if __name__ == "__main__":
    N, C, H, W = 2, 8, 16, 16   # inplanes = planes = 8, stride = 1, downsample = None
    key = jax.random.PRNGKey(0)
    ks = jax.random.split(key, 9)

    x = jax.random.normal(ks[0], (N, C, H, W), jnp.float32)
    w1 = jax.random.normal(ks[1], (C, C, 3, 3), jnp.float32) * 0.1   # OIHW
    w2 = jax.random.normal(ks[2], (C, C, 3, 3), jnp.float32) * 0.1   # OIHW
    g1 = 1.0 + 0.1 * jax.random.normal(ks[3], (C,), jnp.float32)
    beta1 = 0.1 * jax.random.normal(ks[4], (C,), jnp.float32)
    rm1 = 0.1 * jax.random.normal(ks[5], (C,), jnp.float32)
    rv1 = jnp.abs(1.0 + 0.1 * jax.random.normal(ks[6], (C,), jnp.float32))
    g2 = 1.0 + 0.1 * jax.random.normal(ks[7], (C,), jnp.float32)
    beta2 = 0.1 * jax.random.normal(ks[8], (C,), jnp.float32)
    rm2 = jnp.zeros((C,), jnp.float32)
    rv2 = jnp.ones((C,), jnp.float32)

    out = basic_block_pallas(x, w1, w2, g1, beta1, rm1, rv1, g2, beta2, rm2, rv2)
    out = jax.block_until_ready(out)

    ref = _reference(x, w1, w2, g1, beta1, rm1, rv1, g2, beta2, rm2, rv2)
    assert out.shape == (N, C, H, W)
    # bf16 operands (f32 accumulation) -> loosened tolerance per perf review.
    assert jnp.allclose(out, ref, atol=5e-2, rtol=5e-2), \
        f"mismatch: max abs diff = {jnp.max(jnp.abs(out - ref))}"
    print("KERNEL_OK")
</pallas_src>

<mosaic_0001>
module attributes {stable_mosaic.version = 11 : i64} {
  func.func @_basic_block_kernel(%arg0: i32, %arg1: memref<1x16x16x128xbf16, #tpu.memory_space<vmem>>, %arg2: memref<9x128x128xbf16, #tpu.memory_space<vmem>>, %arg3: memref<9x128x128xbf16, #tpu.memory_space<vmem>>, %arg4: memref<2x128xf32, #tpu.memory_space<vmem>>, %arg5: memref<1x16x16x128xbf16, #tpu.memory_space<vmem>>, %arg6: memref<1x18x18x128xbf16, #tpu.memory_space<vmem>>) attributes {dimension_semantics = [#tpu.dimension_semantics<parallel>], iteration_bounds = array<i64: 2>, scalar_prefetch = 0 : i64, scratch_operands = 1 : i64, tpu.core_type = #tpu.core_type<tc>, window_params = [{transform_indices = @transform_0, window_bounds = array<i64: 1, 16, 16, 128>}, {pipeline_mode = #tpu.pipeline_mode<synchronous>, transform_indices = @transform_1, window_bounds = array<i64: 9, 128, 128>}, {pipeline_mode = #tpu.pipeline_mode<synchronous>, transform_indices = @transform_2, window_bounds = array<i64: 9, 128, 128>}, {pipeline_mode = #tpu.pipeline_mode<synchronous>, transform_indices = @transform_3, window_bounds = array<i64: 2, 128>}, {transform_indices = @transform_4, window_bounds = array<i64: 1, 16, 16, 128>}]} {
    %cst = arith.constant 0.000000e+00 : bf16
    %0 = vector.broadcast %cst : bf16 to vector<1x1x18x128xbf16>
    %cst_0 = arith.constant 0.000000e+00 : bf16
    %1 = vector.broadcast %cst_0 : bf16 to vector<1x16x1x128xbf16>
    %c0 = arith.constant 0 : index
    %c0_1 = arith.constant 0 : index
    %c0_2 = arith.constant 0 : index
    %c0_3 = arith.constant 0 : index
    %2 = vector.load %arg6[%c0, %c0_1, %c0_2, %c0_3] : memref<1x18x18x128xbf16, #tpu.memory_space<vmem>>, vector<1x1x18x128xbf16>
    tpu.vector_store %arg6[%c0, %c0_1, %c0_2, %c0_3], %0 {strides = array<i32>} : memref<1x18x18x128xbf16, #tpu.memory_space<vmem>>, vector<1x1x18x128xbf16>,
    %c0_4 = arith.constant 0 : index
    %c17 = arith.constant 17 : index
    %c0_5 = arith.constant 0 : index
    %c0_6 = arith.constant 0 : index
    %3 = vector.load %arg6[%c0_4, %c17, %c0_5, %c0_6] : memref<1x18x18x128xbf16, #tpu.memory_space<vmem>>, vector<1x1x18x128xbf16>
    tpu.vector_store %arg6[%c0_4, %c17, %c0_5, %c0_6], %0 {strides = array<i32>} : memref<1x18x18x128xbf16, #tpu.memory_space<vmem>>, vector<1x1x18x128xbf16>,
    %c0_7 = arith.constant 0 : index
    %c1 = arith.constant 1 : index
    %c0_8 = arith.constant 0 : index
    %c0_9 = arith.constant 0 : index
    %4 = vector.load %arg6[%c0_7, %c1, %c0_8, %c0_9] : memref<1x18x18x128xbf16, #tpu.memory_space<vmem>>, vector<1x16x1x128xbf16>
    tpu.vector_store %arg6[%c0_7, %c1, %c0_8, %c0_9], %1 {strides = array<i32>} : memref<1x18x18x128xbf16, #tpu.memory_space<vmem>>, vector<1x16x1x128xbf16>,
    %c0_10 = arith.constant 0 : index
    %c1_11 = arith.constant 1 : index
    %c17_12 = arith.constant 17 : index
    %c0_13 = arith.constant 0 : index
    %5 = vector.load %arg6[%c0_10, %c1_11, %c17_12, %c0_13] : memref<1x18x18x128xbf16, #tpu.memory_space<vmem>>, vector<1x16x1x128xbf16>
    tpu.vector_store %arg6[%c0_10, %c1_11, %c17_12, %c0_13], %1 {strides = array<i32>} : memref<1x18x18x128xbf16, #tpu.memory_space<vmem>>, vector<1x16x1x128xbf16>,
    %c0_14 = arith.constant 0 : index
    %c0_15 = arith.constant 0 : index
    %c0_16 = arith.constant 0 : index
    %c0_17 = arith.constant 0 : index
    %6 = vector.load %arg1[%c0_14, %c0_15, %c0_16, %c0_17] : memref<1x16x16x128xbf16, #tpu.memory_space<vmem>>, vector<1x16x16x128xbf16>
    %c0_18 = arith.constant 0 : index
    %c1_19 = arith.constant 1 : index
    %c1_20 = arith.constant 1 : index
    %c0_21 = arith.constant 0 : index
    %7 = vector.load %arg6[%c0_18, %c1_19, %c1_20, %c0_21] : memref<1x18x18x128xbf16, #tpu.memory_space<vmem>>, vector<1x16x16x128xbf16>
    tpu.vector_store %arg6[%c0_18, %c1_19, %c1_20, %c0_21], %6 {strides = array<i32>} : memref<1x18x18x128xbf16, #tpu.memory_space<vmem>>, vector<1x16x16x128xbf16>,
    %cst_22 = arith.constant 0.000000e+00 : f32
    %8 = vector.broadcast %cst_22 : f32 to vector<256x128xf32>
    %c0_23 = arith.constant 0 : index
    %c0_24 = arith.constant 0 : index
    %c0_25 = arith.constant 0 : index
    %c0_26 = arith.constant 0 : index
    %9 = vector.load %arg6[%c0_23, %c0_24, %c0_25, %c0_26] : memref<1x18x18x128xbf16, #tpu.memory_space<vmem>>, vector<1x16x16x128xbf16>
    %10 = vector.shape_cast %9 : vector<1x16x16x128xbf16> to vector<256x128xbf16>
    %c0_27 = arith.constant 0 : index
    %c0_28 = arith.constant 0 : index
    %c0_29 = arith.constant 0 : index
    %11 = vector.load %arg2[%c0_27, %c0_28, %c0_29] : memref<9x128x128xbf16, #tpu.memory_space<vmem>>, vector<1x128x128xbf16>
    %12 = vector.shape_cast %11 : vector<1x128x128xbf16> to vector<128x128xbf16>
    %cst_30 = arith.constant dense<0.000000e+00> : vector<256x128xf32>
    %13 = tpu.matmul %10, %12, %cst_30 {dimension_numbers = #tpu.dot_dimension_numbers<[1], [0], [0], [1], [0, 0, 1, 1], [], []>} : vector<256x128xbf16>, vector<128x128xbf16>, vector<256x128xf32> -> vector<256x128xf32>
    %14 = arith.addf %8, %13 : vector<256x128xf32>
    %c0_31 = arith.constant 0 : index
    %c0_32 = arith.constant 0 : index
    %c1_33 = arith.constant 1 : index
    %c0_34 = arith.constant 0 : index
    %15 = vector.load %arg6[%c0_31, %c0_32, %c1_33, %c0_34] : memref<1x18x18x128xbf16, #tpu.memory_space<vmem>>, vector<1x16x16x128xbf16>
    %16 = vector.shape_cast %15 : vector<1x16x16x128xbf16> to vector<256x128xbf16>
    %c1_35 = arith.constant 1 : index
    %c0_36 = arith.constant 0 : index
    %c0_37 = arith.constant 0 : index
    %17 = vector.load %arg2[%c1_35, %c0_36, %c0_37] : memref<9x128x128xbf16, #tpu.memory_space<vmem>>, vector<1x128x128xbf16>
    %18 = vector.shape_cast %17 : vector<1x128x128xbf16> to vector<128x128xbf16>
    %cst_38 = arith.constant dense<0.000000e+00> : vector<256x128xf32>
    %19 = tpu.matmul %16, %18, %cst_38 {dimension_numbers = #tpu.dot_dimension_numbers<[1], [0], [0], [1], [0, 0, 1, 1], [], []>} : vector<256x128xbf16>, vector<128x128xbf16>, vector<256x128xf32> -> vector<256x128xf32>
    %20 = arith.addf %14, %19 : vector<256x128xf32>
    %c0_39 = arith.constant 0 : index
    %c0_40 = arith.constant 0 : index
    %c2 = arith.constant 2 : index
    %c0_41 = arith.constant 0 : index
    %21 = vector.load %arg6[%c0_39, %c0_40, %c2, %c0_41] : memref<1x18x18x128xbf16, #tpu.memory_space<vmem>>, vector<1x16x16x128xbf16>
    %22 = vector.shape_cast %21 : vector<1x16x16x128xbf16> to vector<256x128xbf16>
    %c2_42 = arith.constant 2 : index
    %c0_43 = arith.constant 0 : index
    %c0_44 = arith.constant 0 : index
    %23 = vector.load %arg2[%c2_42, %c0_43, %c0_44] : memref<9x128x128xbf16, #tpu.memory_space<vmem>>, vector<1x128x128xbf16>
    %24 = vector.shape_cast %23 : vector<1x128x128xbf16> to vector<128x128xbf16>
    %cst_45 = arith.constant dense<0.000000e+00> : vector<256x128xf32>
    %25 = tpu.matmul %22, %24, %cst_45 {dimension_numbers = #tpu.dot_dimension_numbers<[1], [0], [0], [1], [0, 0, 1, 1], [], []>} : vector<256x128xbf16>, vector<128x128xbf16>, vector<256x128xf32> -> vector<256x128xf32>
    %26 = arith.addf %20, %25 : vector<256x128xf32>
    %c0_46 = arith.constant 0 : index
    %c1_47 = arith.constant 1 : index
    %c0_48 = arith.constant 0 : index
    %c0_49 = arith.constant 0 : index
    %27 = vector.load %arg6[%c0_46, %c1_47, %c0_48, %c0_49] : memref<1x18x18x128xbf16, #tpu.memory_space<vmem>>, vector<1x16x16x128xbf16>
    %28 = vector.shape_cast %27 : vector<1x16x16x128xbf16> to vector<256x128xbf16>
    %c3 = arith.constant 3 : index
    %c0_50 = arith.constant 0 : index
    %c0_51 = arith.constant 0 : index
    %29 = vector.load %arg2[%c3, %c0_50, %c0_51] : memref<9x128x128xbf16, #tpu.memory_space<vmem>>, vector<1x128x128xbf16>
    %30 = vector.shape_cast %29 : vector<1x128x128xbf16> to vector<128x128xbf16>
    %cst_52 = arith.constant dense<0.000000e+00> : vector<256x128xf32>
    %31 = tpu.matmul %28, %30, %cst_52 {dimension_numbers = #tpu.dot_dimension_numbers<[1], [0], [0], [1], [0, 0, 1, 1], [], []>} : vector<256x128xbf16>, vector<128x128xbf16>, vector<256x128xf32> -> vector<256x128xf32>
    %32 = arith.addf %26, %31 : vector<256x128xf32>
    %c0_53 = arith.constant 0 : index
    %c1_54 = arith.constant 1 : index
    %c1_55 = arith.constant 1 : index
    %c0_56 = arith.constant 0 : index
    %33 = vector.load %arg6[%c0_53, %c1_54, %c1_55, %c0_56] : memref<1x18x18x128xbf16, #tpu.memory_space<vmem>>, vector<1x16x16x128xbf16>
    %34 = vector.shape_cast %33 : vector<1x16x16x128xbf16> to vector<256x128xbf16>
    %c4 = arith.constant 4 : index
    %c0_57 = arith.constant 0 : index
    %c0_58 = arith.constant 0 : index
    %35 = vector.load %arg2[%c4, %c0_57, %c0_58] : memref<9x128x128xbf16, #tpu.memory_space<vmem>>, vector<1x128x128xbf16>
    %36 = vector.shape_cast %35 : vector<1x128x128xbf16> to vector<128x128xbf16>
    %cst_59 = arith.constant dense<0.000000e+00> : vector<256x128xf32>
    %37 = tpu.matmul %34, %36, %cst_59 {dimension_numbers = #tpu.dot_dimension_numbers<[1], [0], [0], [1], [0, 0, 1, 1], [], []>} : vector<256x128xbf16>, vector<128x128xbf16>, vector<256x128xf32> -> vector<256x128xf32>
    %38 = arith.addf %32, %37 : vector<256x128xf32>
    %c0_60 = arith.constant 0 : index
    %c1_61 = arith.constant 1 : index
    %c2_62 = arith.constant 2 : index
    %c0_63 = arith.constant 0 : index
    %39 = vector.load %arg6[%c0_60, %c1_61, %c2_62, %c0_63] : memref<1x18x18x128xbf16, #tpu.memory_space<vmem>>, vector<1x16x16x128xbf16>
    %40 = vector.shape_cast %39 : vector<1x16x16x128xbf16> to vector<256x128xbf16>
    %c5 = arith.constant 5 : index
    %c0_64 = arith.constant 0 : index
    %c0_65 = arith.constant 0 : index
    %41 = vector.load %arg2[%c5, %c0_64, %c0_65] : memref<9x128x128xbf16, #tpu.memory_space<vmem>>, vector<1x128x128xbf16>
    %42 = vector.shape_cast %41 : vector<1x128x128xbf16> to vector<128x128xbf16>
    %cst_66 = arith.constant dense<0.000000e+00> : vector<256x128xf32>
    %43 = tpu.matmul %40, %42, %cst_66 {dimension_numbers = #tpu.dot_dimension_numbers<[1], [0], [0], [1], [0, 0, 1, 1], [], []>} : vector<256x128xbf16>, vector<128x128xbf16>, vector<256x128xf32> -> vector<256x128xf32>
    %44 = arith.addf %38, %43 : vector<256x128xf32>
    %c0_67 = arith.constant 0 : index
    %c2_68 = arith.constant 2 : index
    %c0_69 = arith.constant 0 : index
    %c0_70 = arith.constant 0 : index
    %45 = vector.load %arg6[%c0_67, %c2_68, %c0_69, %c0_70] : memref<1x18x18x128xbf16, #tpu.memory_space<vmem>>, vector<1x16x16x128xbf16>
    %46 = vector.shape_cast %45 : vector<1x16x16x128xbf16> to vector<256x128xbf16>
    %c6 = arith.constant 6 : index
    %c0_71 = arith.constant 0 : index
    %c0_72 = arith.constant 0 : index
    %47 = vector.load %arg2[%c6, %c0_71, %c0_72] : memref<9x128x128xbf16, #tpu.memory_space<vmem>>, vector<1x128x128xbf16>
    %48 = vector.shape_cast %47 : vector<1x128x128xbf16> to vector<128x128xbf16>
    %cst_73 = arith.constant dense<0.000000e+00> : vector<256x128xf32>
    %49 = tpu.matmul %46, %48, %cst_73 {dimension_numbers = #tpu.dot_dimension_numbers<[1], [0], [0], [1], [0, 0, 1, 1], [], []>} : vector<256x128xbf16>, vector<128x128xbf16>, vector<256x128xf32> -> vector<256x128xf32>
    %50 = arith.addf %44, %49 : vector<256x128xf32>
    %c0_74 = arith.constant 0 : index
    %c2_75 = arith.constant 2 : index
    %c1_76 = arith.constant 1 : index
    %c0_77 = arith.constant 0 : index
    %51 = vector.load %arg6[%c0_74, %c2_75, %c1_76, %c0_77] : memref<1x18x18x128xbf16, #tpu.memory_space<vmem>>, vector<1x16x16x128xbf16>
    %52 = vector.shape_cast %51 : vector<1x16x16x128xbf16> to vector<256x128xbf16>
    %c7 = arith.constant 7 : index
    %c0_78 = arith.constant 0 : index
    %c0_79 = arith.constant 0 : index
    %53 = vector.load %arg2[%c7, %c0_78, %c0_79] : memref<9x128x128xbf16, #tpu.memory_space<vmem>>, vector<1x128x128xbf16>
    %54 = vector.shape_cast %53 : vector<1x128x128xbf16> to vector<128x128xbf16>
    %cst_80 = arith.constant dense<0.000000e+00> : vector<256x128xf32>
    %55 = tpu.matmul %52, %54, %cst_80 {dimension_numbers = #tpu.dot_dimension_numbers<[1], [0], [0], [1], [0, 0, 1, 1], [], []>} : vector<256x128xbf16>, vector<128x128xbf16>, vector<256x128xf32> -> vector<256x128xf32>
    %56 = arith.addf %50, %55 : vector<256x128xf32>
    %c0_81 = arith.constant 0 : index
    %c2_82 = arith.constant 2 : index
    %c2_83 = arith.constant 2 : index
    %c0_84 = arith.constant 0 : index
    %57 = vector.load %arg6[%c0_81, %c2_82, %c2_83, %c0_84] : memref<1x18x18x128xbf16, #tpu.memory_space<vmem>>, vector<1x16x16x128xbf16>
    %58 = vector.shape_cast %57 : vector<1x16x16x128xbf16> to vector<256x128xbf16>
    %c8 = arith.constant 8 : index
    %c0_85 = arith.constant 0 : index
    %c0_86 = arith.constant 0 : index
    %59 = vector.load %arg2[%c8, %c0_85, %c0_86] : memref<9x128x128xbf16, #tpu.memory_space<vmem>>, vector<1x128x128xbf16>
    %60 = vector.shape_cast %59 : vector<1x128x128xbf16> to vector<128x128xbf16>
    %cst_87 = arith.constant dense<0.000000e+00> : vector<256x128xf32>
    %61 = tpu.matmul %58, %60, %cst_87 {dimension_numbers = #tpu.dot_dimension_numbers<[1], [0], [0], [1], [0, 0, 1, 1], [], []>} : vector<256x128xbf16>, vector<128x128xbf16>, vector<256x128xf32> -> vector<256x128xf32>
    %62 = arith.addf %56, %61 : vector<256x128xf32>
    %c0_88 = arith.constant 0 : index
    %c0_89 = arith.constant 0 : index
    %63 = vector.load %arg4[%c0_88, %c0_89] : memref<2x128xf32, #tpu.memory_space<vmem>>, vector<1x128xf32>
    %64 = vector.shape_cast %63 : vector<1x128xf32> to vector<128xf32>
    %65 = vector.shape_cast %64 : vector<128xf32> to vector<1x128xf32>
    %66 = vector.broadcast %65 : vector<1x128xf32> to vector<256x128xf32>
    %67 = arith.addf %62, %66 : vector<256x128xf32>
    %cst_90 = arith.constant 0.000000e+00 : f32
    %68 = vector.broadcast %cst_90 : f32 to vector<256x128xf32>
    %69 = arith.maximumf %67, %68 : vector<256x128xf32>
    %70 = vector.shape_cast %69 : vector<256x128xf32> to vector<1x16x16x128xf32>
    %71 = arith.truncf %70 : vector<1x16x16x128xf32> to vector<1x16x16x128xbf16>
    %c0_91 = arith.constant 0 : index
    %c1_92 = arith.constant 1 : index
    %c1_93 = arith.constant 1 : index
    %c0_94 = arith.constant 0 : index
    %72 = vector.load %arg6[%c0_91, %c1_92, %c1_93, %c0_94] : memref<1x18x18x128xbf16, #tpu.memory_space<vmem>>, vector<1x16x16x128xbf16>
    tpu.vector_store %arg6[%c0_91, %c1_92, %c1_93, %c0_94], %71 {strides = array<i32>} : memref<1x18x18x128xbf16, #tpu.memory_space<vmem>>, vector<1x16x16x128xbf16>,
    %cst_95 = arith.constant 0.000000e+00 : f32
    %73 = vector.broadcast %cst_95 : f32 to vector<256x128xf32>
    %c0_96 = arith.constant 0 : index
    %c0_97 = arith.constant 0 : index
    %c0_98 = arith.constant 0 : index
    %c0_99 = arith.constant 0 : index
    %74 = vector.load %arg6[%c0_96, %c0_97, %c0_98, %c0_99] : memref<1x18x18x128xbf16, #tpu.memory_space<vmem>>, vector<1x16x16x128xbf16>
    %75 = vector.shape_cast %74 : vector<1x16x16x128xbf16> to vector<256x128xbf16>
    %c0_100 = arith.constant 0 : index
    %c0_101 = arith.constant 0 : index
    %c0_102 = arith.constant 0 : index
    %76 = vector.load %arg3[%c0_100, %c0_101, %c0_102] : memref<9x128x128xbf16, #tpu.memory_space<vmem>>, vector<1x128x128xbf16>
    %77 = vector.shape_cast %76 : vector<1x128x128xbf16> to vector<128x128xbf16>
    %cst_103 = arith.constant dense<0.000000e+00> : vector<256x128xf32>
    %78 = tpu.matmul %75, %77, %cst_103 {dimension_numbers = #tpu.dot_dimension_numbers<[1], [0], [0], [1], [0, 0, 1, 1], [], []>} : vector<256x128xbf16>, vector<128x128xbf16>, vector<256x128xf32> -> vector<256x128xf32>
    %79 = arith.addf %73, %78 : vector<256x128xf32>
    %c0_104 = arith.constant 0 : index
    %c0_105 = arith.constant 0 : index
    %c1_106 = arith.constant 1 : index
    %c0_107 = arith.constant 0 : index
    %80 = vector.load %arg6[%c0_104, %c0_105, %c1_106, %c0_107] : memref<1x18x18x128xbf16, #tpu.memory_space<vmem>>, vector<1x16x16x128xbf16>
    %81 = vector.shape_cast %80 : vector<1x16x16x128xbf16> to vector<256x128xbf16>
    %c1_108 = arith.constant 1 : index
    %c0_109 = arith.constant 0 : index
    %c0_110 = arith.constant 0 : index
    %82 = vector.load %arg3[%c1_108, %c0_109, %c0_110] : memref<9x128x128xbf16, #tpu.memory_space<vmem>>, vector<1x128x128xbf16>
    %83 = vector.shape_cast %82 : vector<1x128x128xbf16> to vector<128x128xbf16>
    %cst_111 = arith.constant dense<0.000000e+00> : vector<256x128xf32>
    %84 = tpu.matmul %81, %83, %cst_111 {dimension_numbers = #tpu.dot_dimension_numbers<[1], [0], [0], [1], [0, 0, 1, 1], [], []>} : vector<256x128xbf16>, vector<128x128xbf16>, vector<256x128xf32> -> vector<256x128xf32>
    %85 = arith.addf %79, %84 : vector<256x128xf32>
    %c0_112 = arith.constant 0 : index
    %c0_113 = arith.constant 0 : index
    %c2_114 = arith.constant 2 : index
    %c0_115 = arith.constant 0 : index
    %86 = vector.load %arg6[%c0_112, %c0_113, %c2_114, %c0_115] : memref<1x18x18x128xbf16, #tpu.memory_space<vmem>>, vector<1x16x16x128xbf16>
    %87 = vector.shape_cast %86 : vector<1x16x16x128xbf16> to vector<256x128xbf16>
    %c2_116 = arith.constant 2 : index
    %c0_117 = arith.constant 0 : index
    %c0_118 = arith.constant 0 : index
    %88 = vector.load %arg3[%c2_116, %c0_117, %c0_118] : memref<9x128x128xbf16, #tpu.memory_space<vmem>>, vector<1x128x128xbf16>
    %89 = vector.shape_cast %88 : vector<1x128x128xbf16> to vector<128x128xbf16>
    %cst_119 = arith.constant dense<0.000000e+00> : vector<256x128xf32>
    %90 = tpu.matmul %87, %89, %cst_119 {dimension_numbers = #tpu.dot_dimension_numbers<[1], [0], [0], [1], [0, 0, 1, 1], [], []>} : vector<256x128xbf16>, vector<128x128xbf16>, vector<256x128xf32> -> vector<256x128xf32>
    %91 = arith.addf %85, %90 : vector<256x128xf32>
    %c0_120 = arith.constant 0 : index
    %c1_121 = arith.constant 1 : index
    %c0_122 = arith.constant 0 : index
    %c0_123 = arith.constant 0 : index
    %92 = vector.load %arg6[%c0_120, %c1_121, %c0_122, %c0_123] : memref<1x18x18x128xbf16, #tpu.memory_space<vmem>>, vector<1x16x16x128xbf16>
    %93 = vector.shape_cast %92 : vector<1x16x16x128xbf16> to vector<256x128xbf16>
    %c3_124 = arith.constant 3 : index
    %c0_125 = arith.constant 0 : index
    %c0_126 = arith.constant 0 : index
    %94 = vector.load %arg3[%c3_124, %c0_125, %c0_126] : memref<9x128x128xbf16, #tpu.memory_space<vmem>>, vector<1x128x128xbf16>
    %95 = vector.shape_cast %94 : vector<1x128x128xbf16> to vector<128x128xbf16>
    %cst_127 = arith.constant dense<0.000000e+00> : vector<256x128xf32>
    %96 = tpu.matmul %93, %95, %cst_127 {dimension_numbers = #tpu.dot_dimension_numbers<[1], [0], [0], [1], [0, 0, 1, 1], [], []>} : vector<256x128xbf16>, vector<128x128xbf16>, vector<256x128xf32> -> vector<256x128xf32>
    %97 = arith.addf %91, %96 : vector<256x128xf32>
    %c0_128 = arith.constant 0 : index
    %c1_129 = arith.constant 1 : index
    %c1_130 = arith.constant 1 : index
    %c0_131 = arith.constant 0 : index
    %98 = vector.load %arg6[%c0_128, %c1_129, %c1_130, %c0_131] : memref<1x18x18x128xbf16, #tpu.memory_space<vmem>>, vector<1x16x16x128xbf16>
    %99 = vector.shape_cast %98 : vector<1x16x16x128xbf16> to vector<256x128xbf16>
    %c4_132 = arith.constant 4 : index
    %c0_133 = arith.constant 0 : index
    %c0_134 = arith.constant 0 : index
    %100 = vector.load %arg3[%c4_132, %c0_133, %c0_134] : memref<9x128x128xbf16, #tpu.memory_space<vmem>>, vector<1x128x128xbf16>
    %101 = vector.shape_cast %100 : vector<1x128x128xbf16> to vector<128x128xbf16>
    %cst_135 = arith.constant dense<0.000000e+00> : vector<256x128xf32>
    %102 = tpu.matmul %99, %101, %cst_135 {dimension_numbers = #tpu.dot_dimension_numbers<[1], [0], [0], [1], [0, 0, 1, 1], [], []>} : vector<256x128xbf16>, vector<128x128xbf16>, vector<256x128xf32> -> vector<256x128xf32>
    %103 = arith.addf %97, %102 : vector<256x128xf32>
    %c0_136 = arith.constant 0 : index
    %c1_137 = arith.constant 1 : index
    %c2_138 = arith.constant 2 : index
    %c0_139 = arith.constant 0 : index
    %104 = vector.load %arg6[%c0_136, %c1_137, %c2_138, %c0_139] : memref<1x18x18x128xbf16, #tpu.memory_space<vmem>>, vector<1x16x16x128xbf16>
    %105 = vector.shape_cast %104 : vector<1x16x16x128xbf16> to vector<256x128xbf16>
    %c5_140 = arith.constant 5 : index
    %c0_141 = arith.constant 0 : index
    %c0_142 = arith.constant 0 : index
    %106 = vector.load %arg3[%c5_140, %c0_141, %c0_142] : memref<9x128x128xbf16, #tpu.memory_space<vmem>>, vector<1x128x128xbf16>
    %107 = vector.shape_cast %106 : vector<1x128x128xbf16> to vector<128x128xbf16>
    %cst_143 = arith.constant dense<0.000000e+00> : vector<256x128xf32>
    %108 = tpu.matmul %105, %107, %cst_143 {dimension_numbers = #tpu.dot_dimension_numbers<[1], [0], [0], [1], [0, 0, 1, 1], [], []>} : vector<256x128xbf16>, vector<128x128xbf16>, vector<256x128xf32> -> vector<256x128xf32>
    %109 = arith.addf %103, %108 : vector<256x128xf32>
    %c0_144 = arith.constant 0 : index
    %c2_145 = arith.constant 2 : index
    %c0_146 = arith.constant 0 : index
    %c0_147 = arith.constant 0 : index
    %110 = vector.load %arg6[%c0_144, %c2_145, %c0_146, %c0_147] : memref<1x18x18x128xbf16, #tpu.memory_space<vmem>>, vector<1x16x16x128xbf16>
    %111 = vector.shape_cast %110 : vector<1x16x16x128xbf16> to vector<256x128xbf16>
    %c6_148 = arith.constant 6 : index
    %c0_149 = arith.constant 0 : index
    %c0_150 = arith.constant 0 : index
    %112 = vector.load %arg3[%c6_148, %c0_149, %c0_150] : memref<9x128x128xbf16, #tpu.memory_space<vmem>>, vector<1x128x128xbf16>
    %113 = vector.shape_cast %112 : vector<1x128x128xbf16> to vector<128x128xbf16>
    %cst_151 = arith.constant dense<0.000000e+00> : vector<256x128xf32>
    %114 = tpu.matmul %111, %113, %cst_151 {dimension_numbers = #tpu.dot_dimension_numbers<[1], [0], [0], [1], [0, 0, 1, 1], [], []>} : vector<256x128xbf16>, vector<128x128xbf16>, vector<256x128xf32> -> vector<256x128xf32>
    %115 = arith.addf %109, %114 : vector<256x128xf32>
    %c0_152 = arith.constant 0 : index
    %c2_153 = arith.constant 2 : index
    %c1_154 = arith.constant 1 : index
    %c0_155 = arith.constant 0 : index
    %116 = vector.load %arg6[%c0_152, %c2_153, %c1_154, %c0_155] : memref<1x18x18x128xbf16, #tpu.memory_space<vmem>>, vector<1x16x16x128xbf16>
    %117 = vector.shape_cast %116 : vector<1x16x16x128xbf16> to vector<256x128xbf16>
    %c7_156 = arith.constant 7 : index
    %c0_157 = arith.constant 0 : index
    %c0_158 = arith.constant 0 : index
    %118 = vector.load %arg3[%c7_156, %c0_157, %c0_158] : memref<9x128x128xbf16, #tpu.memory_space<vmem>>, vector<1x128x128xbf16>
    %119 = vector.shape_cast %118 : vector<1x128x128xbf16> to vector<128x128xbf16>
    %cst_159 = arith.constant dense<0.000000e+00> : vector<256x128xf32>
    %120 = tpu.matmul %117, %119, %cst_159 {dimension_numbers = #tpu.dot_dimension_numbers<[1], [0], [0], [1], [0, 0, 1, 1], [], []>} : vector<256x128xbf16>, vector<128x128xbf16>, vector<256x128xf32> -> vector<256x128xf32>
    %121 = arith.addf %115, %120 : vector<256x128xf32>
    %c0_160 = arith.constant 0 : index
    %c2_161 = arith.constant 2 : index
    %c2_162 = arith.constant 2 : index
    %c0_163 = arith.constant 0 : index
    %122 = vector.load %arg6[%c0_160, %c2_161, %c2_162, %c0_163] : memref<1x18x18x128xbf16, #tpu.memory_space<vmem>>, vector<1x16x16x128xbf16>
    %123 = vector.shape_cast %122 : vector<1x16x16x128xbf16> to vector<256x128xbf16>
    %c8_164 = arith.constant 8 : index
    %c0_165 = arith.constant 0 : index
    %c0_166 = arith.constant 0 : index
    %124 = vector.load %arg3[%c8_164, %c0_165, %c0_166] : memref<9x128x128xbf16, #tpu.memory_space<vmem>>, vector<1x128x128xbf16>
    %125 = vector.shape_cast %124 : vector<1x128x128xbf16> to vector<128x128xbf16>
    %cst_167 = arith.constant dense<0.000000e+00> : vector<256x128xf32>
    %126 = tpu.matmul %123, %125, %cst_167 {dimension_numbers = #tpu.dot_dimension_numbers<[1], [0], [0], [1], [0, 0, 1, 1], [], []>} : vector<256x128xbf16>, vector<128x128xbf16>, vector<256x128xf32> -> vector<256x128xf32>
    %127 = arith.addf %121, %126 : vector<256x128xf32>
    %c1_168 = arith.constant 1 : index
    %c0_169 = arith.constant 0 : index
    %128 = vector.load %arg4[%c1_168, %c0_169] : memref<2x128xf32, #tpu.memory_space<vmem>>, vector<1x128xf32>
    %129 = vector.shape_cast %128 : vector<1x128xf32> to vector<128xf32>
    %130 = vector.shape_cast %129 : vector<128xf32> to vector<1x128xf32>
    %131 = vector.broadcast %130 : vector<1x128xf32> to vector<256x128xf32>
    %132 = arith.addf %127, %131 : vector<256x128xf32>
    %133 = vector.shape_cast %6 : vector<1x16x16x128xbf16> to vector<256x128xbf16>
    %134 = arith.extf %133 : vector<256x128xbf16> to vector<256x128xf32>
    %135 = arith.addf %132, %134 : vector<256x128xf32>
    %cst_170 = arith.constant 0.000000e+00 : f32
    %136 = vector.broadcast %cst_170 : f32 to vector<256x128xf32>
    %137 = arith.maximumf %135, %136 : vector<256x128xf32>
    %138 = vector.shape_cast %137 : vector<256x128xf32> to vector<1x16x16x128xf32>
    %139 = arith.truncf %138 : vector<1x16x16x128xf32> to vector<1x16x16x128xbf16>
    %c0_171 = arith.constant 0 : index
    %c0_172 = arith.constant 0 : index
    %c0_173 = arith.constant 0 : index
    %c0_174 = arith.constant 0 : index
    %140 = vector.load %arg5[%c0_171, %c0_172, %c0_173, %c0_174] : memref<1x16x16x128xbf16, #tpu.memory_space<vmem>>, vector<1x16x16x128xbf16>
    tpu.vector_store %arg5[%c0_171, %c0_172, %c0_173, %c0_174], %139 {strides = array<i32>} : memref<1x16x16x128xbf16, #tpu.memory_space<vmem>>, vector<1x16x16x128xbf16>,
    return
  }
  func.func @transform_0(%arg0: i32) -> (i32, i32, i32, i32) {
    %c0_i32 = arith.constant 0 : i32
    %c0_i32_0 = arith.constant 0 : i32
    %c0_i32_1 = arith.constant 0 : i32
    %c0_i32_2 = arith.constant 0 : i32
    return %arg0, %c0_i32, %c0_i32_0, %c0_i32_1 : i32, i32, i32, i32
  }
  func.func @transform_1(%arg0: i32) -> (i32, i32, i32) {
    %c0_i32 = arith.constant 0 : i32
    %c0_i32_0 = arith.constant 0 : i32
    %c0_i32_1 = arith.constant 0 : i32
    %c0_i32_2 = arith.constant 0 : i32
    return %c0_i32, %c0_i32_0, %c0_i32_1 : i32, i32, i32
  }
  func.func @transform_2(%arg0: i32) -> (i32, i32, i32) {
    %c0_i32 = arith.constant 0 : i32
    %c0_i32_0 = arith.constant 0 : i32
    %c0_i32_1 = arith.constant 0 : i32
    %c0_i32_2 = arith.constant 0 : i32
    return %c0_i32, %c0_i32_0, %c0_i32_1 : i32, i32, i32
  }
  func.func @transform_3(%arg0: i32) -> (i32, i32) {
    %c0_i32 = arith.constant 0 : i32
    %c0_i32_0 = arith.constant 0 : i32
    %c0_i32_1 = arith.constant 0 : i32
    return %c0_i32, %c0_i32_0 : i32, i32
  }
  func.func @transform_4(%arg0: i32) -> (i32, i32, i32, i32) {
    %c0_i32 = arith.constant 0 : i32
    %c0_i32_0 = arith.constant 0 : i32
    %c0_i32_1 = arith.constant 0 : i32
    %c0_i32_2 = arith.constant 0 : i32
    return %arg0, %c0_i32, %c0_i32_0, %c0_i32_1 : i32, i32, i32, i32
  }
}

</mosaic_0001>

<llo_original>
// kernel: tpu_custom_call.1
$region0: #{tpu_custom_call.1}
  #allocation0 [shape = 'u32[]', space=smem, size = 0x4, offset = 0x4, fixed_abs, tag = 'smem constant byte address 0x4 - core index']
  #allocation1 [shape = 'u32[72,128]{1,0:T(1,128)}', space=vmem, size = 0x9000, scoped, tag = 'internal scratch']
  #allocation2 [shape = 'bf16[1,18,18,128]{3,2,1,0:T(8,128)(2,1)}', space=vmem, size = 0x1b000, scoped, tag = 'scratch operand']
  %s0 = inlined_call_operand.hbm [shape: bf16[2,16,16,128], index: 0, kind: input, shape index: {}]
  %s1 = inlined_call_operand.hbm [shape: bf16[9,128,128], index: 1, kind: input, shape index: {}]
  %s2 = inlined_call_operand.hbm [shape: bf16[9,128,128], index: 2, kind: input, shape index: {}]
  %s3 = inlined_call_operand.vmem [shape: f32[2,128], index: 3, kind: input, shape index: {}]
  %s4 = inlined_call_operand.hbm [shape: bf16[2,16,16,128], index: 4, kind: output, shape index: {}]
  %s5 = sld [smem:[#allocation0]]
  $region61: #{tpu_custom_call.1} parent=0
    _
  %s7 = ssub.s32 1, %s5
  %s8 = scalar_select 0, %s7, %s5
  $region1: #{tpu_custom_call.1} parent=0
    #allocation3 [shape = 'u8[131072]{0}', space=vmem, size = 0x20000, scoped, tag = 'input window, operand 0']
    #allocation4 [shape = 's32[2]{0}', space=sflag, size = 0x8, scoped, tag = 'scoped memory for tpu_custom_call.1']
    #allocation5 [shape = 's32[2]{0}', space=sflag, size = 0x8, scoped, tag = 'scoped memory for tpu_custom_call.1']
    #allocation6 [shape = 'u8[294912]{0}', space=vmem, size = 0x48000, scoped, tag = 'input window, operand 1, single buffered']
    #allocation7 [shape = 's32[1]{0}', space=sflag, size = 0x4, scoped, tag = 'scoped memory for tpu_custom_call.1']
    #allocation8 [shape = 'u8[294912]{0}', space=vmem, size = 0x48000, scoped, tag = 'input window, operand 2, single buffered']
    #allocation9 [shape = 'u8[131072]{0}', space=vmem, size = 0x20000, scoped, tag = 'output window, operand 0']
    %9 = vsyncpa [#allocation4], 0
    %s10 = scalar_lea.sflag [#allocation4], 1
    %11 = vsyncpa %s10, 0
    %12 = vsyncpa [#allocation7], 0
    %13 = vsyncpa [#allocation5], 0
    %s14 = scalar_lea.sflag [#allocation5], 1
    %15 = vsyncpa %s14, 0
    loop: start=0, step=1, limit=4
    $region2: #{tpu_custom_call.1} parent=1 // loop_pre_header
      _
    $region3: #{tpu_custom_call.1} parent=1 // loop_header
      %s17 = sphi 0, %s21
      %p18 = scmp.ge.s32.totalorder %s17, 4
      %s27 = sphi 0, %s29
      %s30 = sphi 0, %s27
      %s31 = sphi 0, %s30
      %s47 = sphi 0, %s31
      %s51 = sphi 0, %s51
      %s53 = sphi 0, %s51
      %s54 = sphi 0, %s53
      %s68 = sphi 0, %s54
      %s72 = sphi 0, %s72
      %s74 = sphi 0, %s72
      %s75 = sphi 0, %s74
      %s89 = sphi 0, %s75
      %s93 = sphi 0, %s93
      %s95 = sphi 0, %s93
      %s96 = sphi 0, %s95
      %s110 = sphi 0, %s96
      %s116 = sphi 0, %s118
      %s119 = sphi 0, %s116
      %s120 = sphi 0, %s119
      %s136 = sphi 0, %s120
    $region4: #{tpu_custom_call.1} parent=1 // loop_header_branch
      %20 = sbr.rel (%p18) target = $region8
    $region5: #{tpu_custom_call.1} parent=1 // loop_body
      %s22 = ssub.s32 %s17, 1
      %s23 = ssub.s32 %s17, 2
      %s24 = sadd.s32 %s17, 1
      %s25 = ssub.s32 %s17, %s24
      %p26 = scmp.eq.s32.totalorder %s25, 0
      %s28 = sadd.s32 %s27, 1
      %s29 = scalar_select %p26, %s27, %s28
      %p32 = pneg %p26
      %p33 = scmp.eq.s32.totalorder %s17, 1
      %p34 = por %p32, %p33
      %p35 = scmp.ne.s32.totalorder %s27, %s30
      %p36 = scmp.eq.s32.totalorder %s17, 0
      %p37 = por %p35, %p36
      %p38 = scmp.ne.s32.totalorder %s27, %s30
      %p39 = scmp.eq.s32.totalorder %s22, 1
      %p40 = por %p38, %p39
      %p41 = scmp.ne.s32.totalorder %s30, %s31
      %p42 = scmp.eq.s32.totalorder %s22, 0
      %p43 = por %p41, %p42
      %p44 = scmp.ne.s32.totalorder %s30, %s31
      %p45 = scmp.eq.s32.totalorder %s23, 1
      %p46 = por %p44, %p45
      %p48 = scmp.ne.s32.totalorder %s31, %s47
      %p49 = scmp.eq.s32.totalorder %s23, 0
      %p50 = por %p48, %p49
      %s52 = sadd.s32 %s51, 1
      %p55 = scmp.eq.s32.totalorder %s17, 1
      %p56 = scmp.ne.s32.totalorder %s51, %s53
      %p57 = scmp.eq.s32.totalorder %s17, 0
      %p58 = por %p56, %p57
      %p59 = scmp.ne.s32.totalorder %s51, %s53
      %p60 = scmp.eq.s32.totalorder %s22, 1
      %p61 = por %p59, %p60
      %p62 = scmp.ne.s32.totalorder %s53, %s54
      %p63 = scmp.eq.s32.totalorder %s22, 0
      %p64 = por %p62, %p63
      %p65 = scmp.ne.s32.totalorder %s53, %s54
      %p66 = scmp.eq.s32.totalorder %s23, 1
      %p67 = por %p65, %p66
      %p69 = scmp.ne.s32.totalorder %s54, %s68
      %p70 = scmp.eq.s32.totalorder %s23, 0
      %p71 = por %p69, %p70
      %s73 = sadd.s32 %s72, 1
      %p76 = scmp.eq.s32.totalorder %s17, 1
      %p77 = scmp.ne.s32.totalorder %s72, %s74
      %p78 = scmp.eq.s32.totalorder %s17, 0
      %p79 = por %p77, %p78
      %p80 = scmp.ne.s32.totalorder %s72, %s74
      %p81 = scmp.eq.s32.totalorder %s22, 1
      %p82 = por %p80, %p81
      %p83 = scmp.ne.s32.totalorder %s74, %s75
      %p84 = scmp.eq.s32.totalorder %s22, 0
      %p85 = por %p83, %p84
      %p86 = scmp.ne.s32.totalorder %s74, %s75
      %p87 = scmp.eq.s32.totalorder %s23, 1
      %p88 = por %p86, %p87
      %p90 = scmp.ne.s32.totalorder %s75, %s89
      %p91 = scmp.eq.s32.totalorder %s23, 0
      %p92 = por %p90, %p91
      %s94 = sadd.s32 %s93, 1
      %p97 = scmp.eq.s32.totalorder %s17, 1
      %p98 = scmp.ne.s32.totalorder %s93, %s95
      %p99 = scmp.eq.s32.totalorder %s17, 0
      %p100 = por %p98, %p99
      %p101 = scmp.ne.s32.totalorder %s93, %s95
      %p102 = scmp.eq.s32.totalorder %s22, 1
      %p103 = por %p101, %p102
      %p104 = scmp.ne.s32.totalorder %s95, %s96
      %p105 = scmp.eq.s32.totalorder %s22, 0
      %p106 = por %p104, %p105
      %p107 = scmp.ne.s32.totalorder %s95, %s96
      %p108 = scmp.eq.s32.totalorder %s23, 1
      %p109 = por %p107, %p108
      %p111 = scmp.ne.s32.totalorder %s96, %s110
      %p112 = scmp.eq.s32.totalorder %s23, 0
      %p113 = por %p111, %p112
      %s114 = ssub.s32 %s17, %s24
      %p115 = scmp.eq.s32.totalorder %s114, 0
      %s117 = sadd.s32 %s116, 1
      %s118 = scalar_select %p115, %s116, %s117
      %p121 = pneg %p115
      %p122 = scmp.eq.s32.totalorder %s17, 1
      %p123 = por %p121, %p122
      %p124 = scmp.ne.s32.totalorder %s116, %s119
      %p125 = scmp.eq.s32.totalorder %s17, 0
      %p126 = por %p124, %p125
      %p127 = scmp.ne.s32.totalorder %s116, %s119
      %p128 = scmp.eq.s32.totalorder %s22, 1
      %p129 = por %p127, %p128
      %p130 = scmp.ne.s32.totalorder %s119, %s120
      %p131 = scmp.eq.s32.totalorder %s22, 0
      %p132 = por %p130, %p131
      %p133 = scmp.ne.s32.totalorder %s119, %s120
      %p134 = scmp.eq.s32.totalorder %s23, 1
      %p135 = por %p133, %p134
      %p137 = scmp.ne.s32.totalorder %s120, %s136
      %p138 = scmp.eq.s32.totalorder %s23, 0
      %p139 = por %p137, %p138
      %p140 = scmp.le.s32.totalorder 1, %s17
      %p141 = scmp.lt.s32.totalorder %s17, 3
      %p142 = pnand %p140, %p141
      %p143 = pneg %p142
      // Predicated region
      $region9: #{tpu_custom_call.1} parent=5 // pred_check
        _
      $region10: #{tpu_custom_call.1} parent=5 // pred_check_branch
        %145 = sbr.rel (%p142) target = $region12
      $region11: #{tpu_custom_call.1} parent=5 // pred_region
        %s146 = ssub.s32 %s17, 1
        // Predicated region
        $region13: #{tpu_custom_call.1} parent=11 // pred_check
          %p147 = pneg %p64
        $region14: #{tpu_custom_call.1} parent=11 // pred_check_branch
          %149 = sbr.rel (%p147) target = $region16
        $region15: #{tpu_custom_call.1} parent=11 // pred_region
          %151 = vsyncadd [#allocation7], 0
          %s152 = sshll.u32 %s1, 4
          %s153 = int_to_ptr.hbm [resolvable:$true] %s152
          %s154 = sshll.u32 [#allocation6], 4
          %s155 = int_to_ptr.vmem [resolvable:$true] %s154
          %160 = dma.hbm_to_vmem [thread:$0]  %s153, 9216, %s155, [#allocation7], 64, 64, 4
        $region16: #{tpu_custom_call.1} parent=11 // pred_fallthru
          _
        // Predicated region
        $region17: #{tpu_custom_call.1} parent=11 // pred_check
          %p161 = pneg %p85
        $region18: #{tpu_custom_call.1} parent=11 // pred_check_branch
          %163 = sbr.rel (%p161) target = $region20
        $region19: #{tpu_custom_call.1} parent=11 // pred_region
          %165 = vsyncadd [#allocation7], 0
          %s166 = sshll.u32 %s2, 4
          %s167 = int_to_ptr.hbm [resolvable:$true] %s166
          %s168 = sshll.u32 [#allocation8], 4
          %s169 = int_to_ptr.vmem [resolvable:$true] %s168
          %174 = dma.hbm_to_vmem [thread:$0]  %s167, 9216, %s169, [#allocation7], 64, 64, 4
        $region20: #{tpu_custom_call.1} parent=11 // pred_fallthru
          _
        // Predicated region
        $region21: #{tpu_custom_call.1} parent=11 // pred_check
          %p175 = pneg %p106
        $region22: #{tpu_custom_call.1} parent=11 // pred_check_branch
          %177 = sbr.rel (%p175) target = $region24
        $region23: #{tpu_custom_call.1} parent=11 // pred_region
          _
        $region24: #{tpu_custom_call.1} parent=11 // pred_fallthru
          _
      $region12: #{tpu_custom_call.1} parent=5 // pred_fallthru
        _
      %p178 = scmp.lt.s32.totalorder %s17, 2
      // Predicated region
      $region25: #{tpu_custom_call.1} parent=5 // pred_check
        %p179 = pneg %p178
      $region26: #{tpu_custom_call.1} parent=5 // pred_check_branch
        %181 = sbr.rel (%p179) target = $region28
      $region27: #{tpu_custom_call.1} parent=5 // pred_region
        // Predicated region
        $region29: #{tpu_custom_call.1} parent=27 // pred_check
          %p182 = pneg %p37
        $region30: #{tpu_custom_call.1} parent=27 // pred_check_branch
          %184 = sbr.rel (%p182) target = $region32
        $region31: #{tpu_custom_call.1} parent=27 // pred_region
          %s185 = sand.u32 %s27, 1
          %s186 = scalar_lea.sflag [#allocation4], %s185
          %s187 = sand.u32 %s27, 1
          %s188 = smul.addr %s187, 128
          %s189 = scalar_lea.vmem [#allocation3], %s188
          %191 = vsyncadd %s186, 0
          %s192 = smul.addr %s17, 32
          %s193 = smul.addr %s192, 4
          %s194 = scalar_lea.hbm %s0, %s193
          %s195 = sshll.u32 %s194, 4
          %s196 = int_to_ptr.hbm [resolvable:$true] %s195
          %s197 = sshll.u32 %s189, 4
          %s198 = int_to_ptr.vmem [resolvable:$true] %s197
          %203 = dma.hbm_to_vmem [thread:$0]  %s196, 2048, %s198, %s186, 64, 64, 4
        $region32: #{tpu_custom_call.1} parent=27 // pred_fallthru
          _
      $region28: #{tpu_custom_call.1} parent=5 // pred_fallthru
        _
      %p204 = scmp.le.s32.totalorder 1, %s17
      %p205 = scmp.lt.s32.totalorder %s17, 3
      %p206 = pnand %p204, %p205
      %p207 = pneg %p206
      // Predicated region
      $region33: #{tpu_custom_call.1} parent=5 // pred_check
        _
      $region34: #{tpu_custom_call.1} parent=5 // pred_check_branch
        %209 = sbr.rel (%p206) target = $region36
      $region35: #{tpu_custom_call.1} parent=5 // pred_region
        %s210 = ssub.s32 %s17, 1
        %s211 = sand.u32 %s30, 1
        %s212 = scalar_lea.sflag [#allocation4], %s211
        %s213 = sand.u32 %s30, 1
        %s214 = smul.addr %s213, 128
        %s215 = scalar_lea.vmem [#allocation3], %s214
        // Predicated region
        $region37: #{tpu_custom_call.1} parent=35 // pred_check
          %p216 = pneg %p43
        $region38: #{tpu_custom_call.1} parent=35 // pred_check_branch
          %218 = sbr.rel (%p216) target = $region40
        $region39: #{tpu_custom_call.1} parent=35 // pred_region
          %220 = dma.done %s212, 2048
        $region40: #{tpu_custom_call.1} parent=35 // pred_fallthru
          _
        // Predicated region
        $region41: #{tpu_custom_call.1} parent=35 // pred_check
          %p221 = pneg %p64
        $region42: #{tpu_custom_call.1} parent=35 // pred_check_branch
          %223 = sbr.rel (%p221) target = $region44
        $region43: #{tpu_custom_call.1} parent=35 // pred_region
          %225 = dma.done [#allocation7], 9216
        $region44: #{tpu_custom_call.1} parent=35 // pred_fallthru
          _
        // Predicated region
        $region45: #{tpu_custom_call.1} parent=35 // pred_check
          %p226 = pneg %p85
        $region46: #{tpu_custom_call.1} parent=35 // pred_check_branch
          %228 = sbr.rel (%p226) target = $region48
        $region47: #{tpu_custom_call.1} parent=35 // pred_region
          %230 = dma.done [#allocation7], 9216
        $region48: #{tpu_custom_call.1} parent=35 // pred_fallthru
          _
        %s231 = sand.u32 %s30, 1
        %s232 = scalar_lea.sflag [#allocation4], %s231
        %s233 = sand.u32 %s30, 1
        %s234 = smul.addr %s233, 128
        %s235 = scalar_lea.vmem [#allocation3], %s234
        %p236 = pneg %p43
        %p237 = pneg %p40
        %p238 = pneg %p64
        %p239 = pneg %p61
        %p240 = pneg %p85
        %p241 = pneg %p82
        %p242 = pneg %p106
        %p243 = pneg %p103
        %p244 = pneg %p132
        %p245 = pneg %p129
        %s246 = sand.u32 %s119, 1
        %s247 = scalar_lea.sflag [#allocation5], %s246
        %s248 = sand.u32 %s119, 1
        %s249 = smul.addr %s248, 128
        %s250 = scalar_lea.vmem [#allocation9], %s249
        %252 = vst [vmem:[#allocation2] sm:$0xf] 0
        %253 = vst [vmem:[#allocation2 + $0x4] sm:$0xf] 0
        %254 = vst [vmem:[#allocation2 + $0x8] sm:$0x1] 0
        %s255 = scalar_lea.vmem [#allocation2], 204
        %256 = vst [vmem:[%s255] sm:$0xf] 0
        %257 = vst [vmem:[%s255 + $0x4] sm:$0xf] 0
        %258 = vst [vmem:[%s255 + $0x8] sm:$0x1] 0
        %s259 = scalar_lea.vmem [#allocation2], 12
        %vm260 = vcmask 1040384
        %vm261 = vsmask.f32 256
        %vm262 = vmand %vm260, %vm261
        %v263 = vld [vmem:[%s259] sm:$0x1]
        %v264 = vsel %vm262, 0, %v263
        %265 = vst [vmem:[%s259] sm:$0x1] %v264
        %v266 = vld [vmem:[%s259 + $0xc] sm:$0x1]
        %v267 = vsel %vm262, 0, %v266
        %268 = vst [vmem:[%s259 + $0xc] sm:$0x1] %v267
        %v269 = vld [vmem:[%s259 + $0x18] sm:$0x1]
        %v270 = vsel %vm262, 0, %v269
        %271 = vst [vmem:[%s259 + $0x18] sm:$0x1] %v270
        %v272 = vld [vmem:[%s259 + $0x24] sm:$0x1]
        %v273 = vsel %vm262, 0, %v272
        %274 = vst [vmem:[%s259 + $0x24] sm:$0x1] %v273
        %v275 = vld [vmem:[%s259 + $0x30] sm:$0x1]
        %v276 = vsel %vm262, 0, %v275
        %277 = vst [vmem:[%s259 + $0x30] sm:$0x1] %v276
        %v278 = vld [vmem:[%s259 + $0x3c] sm:$0x1]
        %v279 = vsel %vm262, 0, %v278
        %280 = vst [vmem:[%s259 + $0x3c] sm:$0x1] %v279
        %v281 = vld [vmem:[%s259 + $0x48] sm:$0x1]
        %v282 = vsel %vm262, 0, %v281
        %283 = vst [vmem:[%s259 + $0x48] sm:$0x1] %v282
        %v284 = vld [vmem:[%s259 + $0x54] sm:$0x1]
        %v285 = vsel %vm262, 0, %v284
        %286 = vst [vmem:[%s259 + $0x54] sm:$0x1] %v285
        %v287 = vld [vmem:[%s259 + $0x60] sm:$0x1]
        %v288 = vsel %vm262, 0, %v287
        %289 = vst [vmem:[%s259 + $0x60] sm:$0x1] %v288
        %v290 = vld [vmem:[%s259 + $0x6c] sm:$0x1]
        %v291 = vsel %vm262, 0, %v290
        %292 = vst [vmem:[%s259 + $0x6c] sm:$0x1] %v291
        %v293 = vld [vmem:[%s259 + $0x78] sm:$0x1]
        %v294 = vsel %vm262, 0, %v293
        %295 = vst [vmem:[%s259 + $0x78] sm:$0x1] %v294
        %v296 = vld [vmem:[%s259 + $0x84] sm:$0x1]
        %v297 = vsel %vm262, 0, %v296
        %298 = vst [vmem:[%s259 + $0x84] sm:$0x1] %v297
        %v299 = vld [vmem:[%s259 + $0x90] sm:$0x1]
        %v300 = vsel %vm262, 0, %v299
        %301 = vst [vmem:[%s259 + $0x90] sm:$0x1] %v300
        %v302 = vld [vmem:[%s259 + $0x9c] sm:$0x1]
        %v303 = vsel %vm262, 0, %v302
        %304 = vst [vmem:[%s259 + $0x9c] sm:$0x1] %v303
        %v305 = vld [vmem:[%s259 + $0xa8] sm:$0x1]
        %v306 = vsel %vm262, 0, %v305
        %307 = vst [vmem:[%s259 + $0xa8] sm:$0x1] %v306
        %v308 = vld [vmem:[%s259 + $0xb4] sm:$0x1]
        %v309 = vsel %vm262, 0, %v308
        %310 = vst [vmem:[%s259 + $0xb4] sm:$0x1] %v309
        %vm311 = vsmask.f32 7938
        %vm312 = vmand %vm260, %vm311
        %v313 = vld [vmem:[%s259 + $0x8] sm:$0x1]
        %v314 = vsel %vm312, 0, %v313
        %315 = vst [vmem:[%s259 + $0x8] sm:$0x1] %v314
        %v316 = vld [vmem:[%s259 + $0x14] sm:$0x1]
        %v317 = vsel %vm312, 0, %v316
        %318 = vst [vmem:[%s259 + $0x14] sm:$0x1] %v317
        %v319 = vld [vmem:[%s259 + $0x20] sm:$0x1]
        %v320 = vsel %vm312, 0, %v319
        %321 = vst [vmem:[%s259 + $0x20] sm:$0x1] %v320
        %v322 = vld [vmem:[%s259 + $0x2c] sm:$0x1]
        %v323 = vsel %vm312, 0, %v322
        %324 = vst [vmem:[%s259 + $0x2c] sm:$0x1] %v323
        %v325 = vld [vmem:[%s259 + $0x38] sm:$0x1]
        %v326 = vsel %vm312, 0, %v325
        %327 = vst [vmem:[%s259 + $0x38] sm:$0x1] %v326
        %v328 = vld [vmem:[%s259 + $0x44] sm:$0x1]
        %v329 = vsel %vm312, 0, %v328
        %330 = vst [vmem:[%s259 + $0x44] sm:$0x1] %v329
        %v331 = vld [vmem:[%s259 + $0x50] sm:$0x1]
        %v332 = vsel %vm312, 0, %v331
        %333 = vst [vmem:[%s259 + $0x50] sm:$0x1] %v332
        %v334 = vld [vmem:[%s259 + $0x5c] sm:$0x1]
        %v335 = vsel %vm312, 0, %v334
        %336 = vst [vmem:[%s259 + $0x5c] sm:$0x1] %v335
        %v337 = vld [vmem:[%s259 + $0x68] sm:$0x1]
        %v338 = vsel %vm312, 0, %v337
        %339 = vst [vmem:[%s259 + $0x68] sm:$0x1] %v338
        %v340 = vld [vmem:[%s259 + $0x74] sm:$0x1]
        %v341 = vsel %vm312, 0, %v340
        %342 = vst [vmem:[%s259 + $0x74] sm:$0x1] %v341
        %v343 = vld [vmem:[%s259 + $0x80] sm:$0x1]
        %v344 = vsel %vm312, 0, %v343
        %345 = vst [vmem:[%s259 + $0x80] sm:$0x1] %v344
        %v346 = vld [vmem:[%s259 + $0x8c] sm:$0x1]
        %v347 = vsel %vm312, 0, %v346
        %348 = vst [vmem:[%s259 + $0x8c] sm:$0x1] %v347
        %v349 = vld [vmem:[%s259 + $0x98] sm:$0x1]
        %v350 = vsel %vm312, 0, %v349
        %351 = vst [vmem:[%s259 + $0x98] sm:$0x1] %v350
        %v352 = vld [vmem:[%s259 + $0xa4] sm:$0x1]
        %v353 = vsel %vm312, 0, %v352
        %354 = vst [vmem:[%s259 + $0xa4] sm:$0x1] %v353
        %v355 = vld [vmem:[%s259 + $0xb0] sm:$0x1]
        %v356 = vsel %vm312, 0, %v355
        %357 = vst [vmem:[%s259 + $0xb0] sm:$0x1] %v356
        %v358 = vld [vmem:[%s259 + $0xbc] sm:$0x1]
        %v359 = vsel %vm312, 0, %v358
        %360 = vst [vmem:[%s259 + $0xbc] sm:$0x1] %v359
        %v361 = vld [vmem:[%s215] sm:$0xf]
        %v362 = vld [vmem:[%s215 + $0x4] sm:$0xf]
        %v363 = vld [vmem:[%s215 + $0x8] sm:$0xf]
        %v364 = vld [vmem:[%s215 + $0xc] sm:$0xf]
        %v365 = vld [vmem:[%s215 + $0x10] sm:$0xf]
        %v366 = vld [vmem:[%s215 + $0x14] sm:$0xf]
        %v367 = vld [vmem:[%s215 + $0x18] sm:$0xf]
        %v368 = vld [vmem:[%s215 + $0x1c] sm:$0xf]
        %v369 = vld [vmem:[%s215 + $0x20] sm:$0xf]
        %v370 = vld [vmem:[%s215 + $0x24] sm:$0xf]
        %v371 = vld [vmem:[%s215 + $0x28] sm:$0xf]
        %v372 = vld [vmem:[%s215 + $0x2c] sm:$0xf]
        %v373 = vld [vmem:[%s215 + $0x30] sm:$0xf]
        %v374 = vld [vmem:[%s215 + $0x34] sm:$0xf]
        %v375 = vld [vmem:[%s215 + $0x38] sm:$0xf]
        %v376 = vld [vmem:[%s215 + $0x3c] sm:$0xf]
        %v377 = vld [vmem:[%s215 + $0x40] sm:$0xf]
        %v378 = vld [vmem:[%s215 + $0x44] sm:$0xf]
        %v379 = vld [vmem:[%s215 + $0x48] sm:$0xf]
        %v380 = vld [vmem:[%s215 + $0x4c] sm:$0xf]
        %v381 = vld [vmem:[%s215 + $0x50] sm:$0xf]
        %v382 = vld [vmem:[%s215 + $0x54] sm:$0xf]
        %v383 = vld [vmem:[%s215 + $0x58] sm:$0xf]
        %v384 = vld [vmem:[%s215 + $0x5c] sm:$0xf]
        %v385 = vld [vmem:[%s215 + $0x60] sm:$0xf]
        %v386 = vld [vmem:[%s215 + $0x64] sm:$0xf]
        %v387 = vld [vmem:[%s215 + $0x68] sm:$0xf]
        %v388 = vld [vmem:[%s215 + $0x6c] sm:$0xf]
        %v389 = vld [vmem:[%s215 + $0x70] sm:$0xf]
        %v390 = vld [vmem:[%s215 + $0x74] sm:$0xf]
        %v391 = vld [vmem:[%s215 + $0x78] sm:$0xf]
        %v392 = vld [vmem:[%s215 + $0x7c] sm:$0xf]
        %vm393 = vsmask.f32 4368
        %vm394 = vmor %vm261, %vm393
        %v396 = vshrl.u32 %v361, 16
        %v398 = vrot.slane %v396, 7
        %v399 = vshll.u32 %v361, 16
        %v401 = vor.u32 %v398, %v399
        %v402 = vrot.slane %v398, 4
        %v404 = vshrl.u32 %v362, 16
        %v406 = vrot.slane %v404, 7
        %v407 = vshll.u32 %v362, 16
        %v409 = vor.u32 %v406, %v407
        %v410 = vsel %vm394, %v402, %v409
        %v411 = vrot.slane %v406, 4
        %v413 = vshrl.u32 %v363, 16
        %v415 = vrot.slane %v413, 7
        %v416 = vshll.u32 %v363, 16
        %v418 = vor.u32 %v415, %v416
        %v419 = vrot.slane %v415, 4
        %v421 = vshrl.u32 %v364, 16
        %v423 = vrot.slane %v421, 7
        %v424 = vshll.u32 %v364, 16
        %v426 = vor.u32 %v423, %v424
        %v427 = vsel %vm394, %v419, %v426
        %v428 = vrot.slane %v423, 4
        %v430 = vshrl.u32 %v365, 16
        %v432 = vrot.slane %v430, 7
        %v433 = vshll.u32 %v365, 16
        %v435 = vor.u32 %v432, %v433
        %v436 = vrot.slane %v432, 4
        %v438 = vshrl.u32 %v366, 16
        %v440 = vrot.slane %v438, 7
        %v441 = vshll.u32 %v366, 16
        %v443 = vor.u32 %v440, %v441
        %v444 = vsel %vm394, %v436, %v443
        %v445 = vrot.slane %v440, 4
        %v447 = vshrl.u32 %v367, 16
        %v449 = vrot.slane %v447, 7
        %v450 = vshll.u32 %v367, 16
        %v452 = vor.u32 %v449, %v450
        %v453 = vrot.slane %v449, 4
        %v455 = vshrl.u32 %v368, 16
        %v457 = vrot.slane %v455, 7
        %v458 = vshll.u32 %v368, 16
        %v460 = vor.u32 %v457, %v458
        %v461 = vsel %vm394, %v453, %v460
        %v462 = vrot.slane %v457, 4
        %v464 = vshrl.u32 %v369, 16
        %v466 = vrot.slane %v464, 7
        %v467 = vshll.u32 %v369, 16
        %v469 = vor.u32 %v466, %v467
        %v470 = vrot.slane %v466, 4
        %v472 = vshrl.u32 %v370, 16
        %v474 = vrot.slane %v472, 7
        %v475 = vshll.u32 %v370, 16
        %v477 = vor.u32 %v474, %v475
        %v478 = vsel %vm394, %v470, %v477
        %v479 = vrot.slane %v474, 4
        %v481 = vshrl.u32 %v371, 16
        %v483 = vrot.slane %v481, 7
        %v484 = vshll.u32 %v371, 16
        %v486 = vor.u32 %v483, %v484
        %v487 = vrot.slane %v483, 4
        %v489 = vshrl.u32 %v372, 16
        %v491 = vrot.slane %v489, 7
        %v492 = vshll.u32 %v372, 16
        %v494 = vor.u32 %v491, %v492
        %v495 = vsel %vm394, %v487, %v494
        %v496 = vrot.slane %v491, 4
        %v498 = vshrl.u32 %v373, 16
        %v500 = vrot.slane %v498, 7
        %v501 = vshll.u32 %v373, 16
        %v503 = vor.u32 %v500, %v501
        %v504 = vrot.slane %v500, 4
        %v506 = vshrl.u32 %v374, 16
        %v508 = vrot.slane %v506, 7
        %v509 = vshll.u32 %v374, 16
        %v511 = vor.u32 %v508, %v509
        %v512 = vsel %vm394, %v504, %v511
        %v513 = vrot.slane %v508, 4
        %v515 = vshrl.u32 %v375, 16
        %v517 = vrot.slane %v515, 7
        %v518 = vshll.u32 %v375, 16
        %v520 = vor.u32 %v517, %v518
        %v521 = vrot.slane %v517, 4
        %v523 = vshrl.u32 %v376, 16
        %v525 = vrot.slane %v523, 7
        %v526 = vshll.u32 %v376, 16
        %v528 = vor.u32 %v525, %v526
        %v529 = vsel %vm394, %v521, %v528
        %v530 = vrot.slane %v525, 4
        %v532 = vshrl.u32 %v377, 16
        %v534 = vrot.slane %v532, 7
        %v535 = vshll.u32 %v377, 16
        %v537 = vor.u32 %v534, %v535
        %v538 = vrot.slane %v534, 4
        %v540 = vshrl.u32 %v378, 16
        %v542 = vrot.slane %v540, 7
        %v543 = vshll.u32 %v378, 16
        %v545 = vor.u32 %v542, %v543
        %v546 = vsel %vm394, %v538, %v545
        %v547 = vrot.slane %v542, 4
        %v549 = vshrl.u32 %v379, 16
        %v551 = vrot.slane %v549, 7
        %v552 = vshll.u32 %v379, 16
        %v554 = vor.u32 %v551, %v552
        %v555 = vrot.slane %v551, 4
        %v557 = vshrl.u32 %v380, 16
        %v559 = vrot.slane %v557, 7
        %v560 = vshll.u32 %v380, 16
        %v562 = vor.u32 %v559, %v560
        %v563 = vsel %vm394, %v555, %v562
        %v564 = vrot.slane %v559, 4
        %v566 = vshrl.u32 %v381, 16
        %v568 = vrot.slane %v566, 7
        %v569 = vshll.u32 %v381, 16
        %v571 = vor.u32 %v568, %v569
        %v572 = vrot.slane %v568, 4
        %v574 = vshrl.u32 %v382, 16
        %v576 = vrot.slane %v574, 7
        %v577 = vshll.u32 %v382, 16
        %v579 = vor.u32 %v576, %v577
        %v580 = vsel %vm394, %v572, %v579
        %v581 = vrot.slane %v576, 4
        %v583 = vshrl.u32 %v383, 16
        %v585 = vrot.slane %v583, 7
        %v586 = vshll.u32 %v383, 16
        %v588 = vor.u32 %v585, %v586
        %v589 = vrot.slane %v585, 4
        %v591 = vshrl.u32 %v384, 16
        %v593 = vrot.slane %v591, 7
        %v594 = vshll.u32 %v384, 16
        %v596 = vor.u32 %v593, %v594
        %v597 = vsel %vm394, %v589, %v596
        %v598 = vrot.slane %v593, 4
        %v600 = vshrl.u32 %v385, 16
        %v602 = vrot.slane %v600, 7
        %v603 = vshll.u32 %v385, 16
        %v605 = vor.u32 %v602, %v603
        %v606 = vrot.slane %v602, 4
        %v608 = vshrl.u32 %v386, 16
        %v610 = vrot.slane %v608, 7
        %v611 = vshll.u32 %v386, 16
        %v613 = vor.u32 %v610, %v611
        %v614 = vsel %vm394, %v606, %v613
        %v615 = vrot.slane %v610, 4
        %v617 = vshrl.u32 %v387, 16
        %v619 = vrot.slane %v617, 7
        %v620 = vshll.u32 %v387, 16
        %v622 = vor.u32 %v619, %v620
        %v623 = vrot.slane %v619, 4
        %v625 = vshrl.u32 %v388, 16
        %v627 = vrot.slane %v625, 7
        %v628 = vshll.u32 %v388, 16
        %v630 = vor.u32 %v627, %v628
        %v631 = vsel %vm394, %v623, %v630
        %v632 = vrot.slane %v627, 4
        %v634 = vshrl.u32 %v389, 16
        %v636 = vrot.slane %v634, 7
        %v637 = vshll.u32 %v389, 16
        %v639 = vor.u32 %v636, %v637
        %v640 = vrot.slane %v636, 4
        %v642 = vshrl.u32 %v390, 16
        %v644 = vrot.slane %v642, 7
        %v645 = vshll.u32 %v390, 16
        %v647 = vor.u32 %v644, %v645
        %v648 = vsel %vm394, %v640, %v647
        %v649 = vrot.slane %v644, 4
        %v651 = vshrl.u32 %v391, 16
        %v653 = vrot.slane %v651, 7
        %v654 = vshll.u32 %v391, 16
        %v656 = vor.u32 %v653, %v654
        %v657 = vrot.slane %v653, 4
        %v659 = vshrl.u32 %v392, 16
        %v661 = vrot.slane %v659, 7
        %v662 = vshll.u32 %v392, 16
        %v664 = vor.u32 %v661, %v662
        %v665 = vsel %vm394, %v657, %v664
        %v666 = vrot.slane %v661, 4
        %vm715 = vcmask 1043456
        %vm716 = vmand %vm715, %vm311
        %v717 = vld [vmem:[%s259] sm:$0xf]
        %v718 = vsel %vm716, %v401, %v717
        %719 = vst [vmem:[%s259] sm:$0xf] %v718
        %720 = vst [vmem:[%s259 + $0x4] sm:$0xf] %v410
        %v721 = vld [vmem:[%s259 + $0x8] sm:$0x1]
        %v722 = vsel %vm262, %v411, %v721
        %723 = vst [vmem:[%s259 + $0x8] sm:$0x1] %v722
        %v724 = vld [vmem:[%s259 + $0xc] sm:$0xf]
        %v725 = vsel %vm716, %v418, %v724
        %726 = vst [vmem:[%s259 + $0xc] sm:$0xf] %v725
        %727 = vst [vmem:[%s259 + $0x10] sm:$0xf] %v427
        %v728 = vld [vmem:[%s259 + $0x14] sm:$0x1]
        %v729 = vsel %vm262, %v428, %v728
        %730 = vst [vmem:[%s259 + $0x14] sm:$0x1] %v729
        %v731 = vld [vmem:[%s259 + $0x18] sm:$0xf]
        %v732 = vsel %vm716, %v435, %v731
        %733 = vst [vmem:[%s259 + $0x18] sm:$0xf] %v732
        %734 = vst [vmem:[%s259 + $0x1c] sm:$0xf] %v444
        %v735 = vld [vmem:[%s259 + $0x20] sm:$0x1]
        %v736 = vsel %vm262, %v445, %v735
        %737 = vst [vmem:[%s259 + $0x20] sm:$0x1] %v736
        %v738 = vld [vmem:[%s259 + $0x24] sm:$0xf]
        %v739 = vsel %vm716, %v452, %v738
        %740 = vst [vmem:[%s259 + $0x24] sm:$0xf] %v739
        %741 = vst [vmem:[%s259 + $0x28] sm:$0xf] %v461
        %v742 = vld [vmem:[%s259 + $0x2c] sm:$0x1]
        %v743 = vsel %vm262, %v462, %v742
        %744 = vst [vmem:[%s259 + $0x2c] sm:$0x1] %v743
        %v745 = vld [vmem:[%s259 + $0x30] sm:$0xf]
        %v746 = vsel %vm716, %v469, %v745
        %747 = vst [vmem:[%s259 + $0x30] sm:$0xf] %v746
        %748 = vst [vmem:[%s259 + $0x34] sm:$0xf] %v478
        %v749 = vld [vmem:[%s259 + $0x38] sm:$0x1]
        %v750 = vsel %vm262, %v479, %v749
        %751 = vst [vmem:[%s259 + $0x38] sm:$0x1] %v750
        %v752 = vld [vmem:[%s259 + $0x3c] sm:$0xf]
        %v753 = vsel %vm716, %v486, %v752
        %754 = vst [vmem:[%s259 + $0x3c] sm:$0xf] %v753
        %755 = vst [vmem:[%s259 + $0x40] sm:$0xf] %v495
        %v756 = vld [vmem:[%s259 + $0x44] sm:$0x1]
        %v757 = vsel %vm262, %v496, %v756
        %758 = vst [vmem:[%s259 + $0x44] sm:$0x1] %v757
        %v759 = vld [vmem:[%s259 + $0x48] sm:$0xf]
        %v760 = vsel %vm716, %v503, %v759
        %761 = vst [vmem:[%s259 + $0x48] sm:$0xf] %v760
        %762 = vst [vmem:[%s259 + $0x4c] sm:$0xf] %v512
        %v763 = vld [vmem:[%s259 + $0x50] sm:$0x1]
        %v764 = vsel %vm262, %v513, %v763
        %765 = vst [vmem:[%s259 + $0x50] sm:$0x1] %v764
        %v766 = vld [vmem:[%s259 + $0x54] sm:$0xf]
        %v767 = vsel %vm716, %v520, %v766
        %768 = vst [vmem:[%s259 + $0x54] sm:$0xf] %v767
        %769 = vst [vmem:[%s259 + $0x58] sm:$0xf] %v529
        %v770 = vld [vmem:[%s259 + $0x5c] sm:$0x1]
        %v771 = vsel %vm262, %v530, %v770
        %772 = vst [vmem:[%s259 + $0x5c] sm:$0x1] %v771
        %v773 = vld [vmem:[%s259 + $0x60] sm:$0xf]
        %v774 = vsel %vm716, %v537, %v773
        %775 = vst [vmem:[%s259 + $0x60] sm:$0xf] %v774
        %776 = vst [vmem:[%s259 + $0x64] sm:$0xf] %v546
        %v777 = vld [vmem:[%s259 + $0x68] sm:$0x1]
        %v778 = vsel %vm262, %v547, %v777
        %779 = vst [vmem:[%s259 + $0x68] sm:$0x1] %v778
        %v780 = vld [vmem:[%s259 + $0x6c] sm:$0xf]
        %v781 = vsel %vm716, %v554, %v780
        %782 = vst [vmem:[%s259 + $0x6c] sm:$0xf] %v781
        %783 = vst [vmem:[%s259 + $0x70] sm:$0xf] %v563
        %v784 = vld [vmem:[%s259 + $0x74] sm:$0x1]
        %v785 = vsel %vm262, %v564, %v784
        %786 = vst [vmem:[%s259 + $0x74] sm:$0x1] %v785
        %v787 = vld [vmem:[%s259 + $0x78] sm:$0xf]
        %v788 = vsel %vm716, %v571, %v787
        %789 = vst [vmem:[%s259 + $0x78] sm:$0xf] %v788
        %790 = vst [vmem:[%s259 + $0x7c] sm:$0xf] %v580
        %v791 = vld [vmem:[%s259 + $0x80] sm:$0x1]
        %v792 = vsel %vm262, %v581, %v791
        %793 = vst [vmem:[%s259 + $0x80] sm:$0x1] %v792
        %v794 = vld [vmem:[%s259 + $0x84] sm:$0xf]
        %v795 = vsel %vm716, %v588, %v794
        %796 = vst [vmem:[%s259 + $0x84] sm:$0xf] %v795
        %797 = vst [vmem:[%s259 + $0x88] sm:$0xf] %v597
        %v798 = vld [vmem:[%s259 + $0x8c] sm:$0x1]
        %v799 = vsel %vm262, %v598, %v798
        %800 = vst [vmem:[%s259 + $0x8c] sm:$0x1] %v799
        %v801 = vld [vmem:[%s259 + $0x90] sm:$0xf]
        %v802 = vsel %vm716, %v605, %v801
        %803 = vst [vmem:[%s259 + $0x90] sm:$0xf] %v802
        %804 = vst [vmem:[%s259 + $0x94] sm:$0xf] %v614
        %v805 = vld [vmem:[%s259 + $0x98] sm:$0x1]
        %v806 = vsel %vm262, %v615, %v805
        %807 = vst [vmem:[%s259 + $0x98] sm:$0x1] %v806
        %v808 = vld [vmem:[%s259 + $0x9c] sm:$0xf]
        %v809 = vsel %vm716, %v622, %v808
        %810 = vst [vmem:[%s259 + $0x9c] sm:$0xf] %v809
        %811 = vst [vmem:[%s259 + $0xa0] sm:$0xf] %v631
        %v812 = vld [vmem:[%s259 + $0xa4] sm:$0x1]
        %v813 = vsel %vm262, %v632, %v812
        %814 = vst [vmem:[%s259 + $0xa4] sm:$0x1] %v813
        %v815 = vld [vmem:[%s259 + $0xa8] sm:$0xf]
        %v816 = vsel %vm716, %v639, %v815
        %817 = vst [vmem:[%s259 + $0xa8] sm:$0xf] %v816
        %818 = vst [vmem:[%s259 + $0xac] sm:$0xf] %v648
        %v819 = vld [vmem:[%s259 + $0xb0] sm:$0x1]
        %v820 = vsel %vm262, %v649, %v819
        %821 = vst [vmem:[%s259 + $0xb0] sm:$0x1] %v820
        %v822 = vld [vmem:[%s259 + $0xb4] sm:$0xf]
        %v823 = vsel %vm716, %v656, %v822
        %824 = vst [vmem:[%s259 + $0xb4] sm:$0xf] %v823
        %825 = vst [vmem:[%s259 + $0xb8] sm:$0xf] %v665
        %v826 = vld [vmem:[%s259 + $0xbc] sm:$0x1]
        %v827 = vsel %vm262, %v666, %v826
        %828 = vst [vmem:[%s259 + $0xbc] sm:$0x1] %v827
        %v829 = vld [vmem:[#allocation2] sm:$0xf]
        %v830 = vld [vmem:[#allocation2 + $0x4] sm:$0xf]
        %v831 = vld [vmem:[#allocation2 + $0xc] sm:$0xf]
        %v832 = vld [vmem:[#allocation2 + $0x10] sm:$0xf]
        %v833 = vld [vmem:[#allocation2 + $0x18] sm:$0xf]
        %v834 = vld [vmem:[#allocation2 + $0x1c] sm:$0xf]
        %v835 = vld [vmem:[#allocation2 + $0x24] sm:$0xf]
        %v836 = vld [vmem:[#allocation2 + $0x28] sm:$0xf]
        %v837 = vld [vmem:[#allocation2 + $0x30] sm:$0xf]
        %v838 = vld [vmem:[#allocation2 + $0x34] sm:$0xf]
        %v839 = vld [vmem:[#allocation2 + $0x3c] sm:$0xf]
        %v840 = vld [vmem:[#allocation2 + $0x40] sm:$0xf]
        %v841 = vld [vmem:[#allocation2 + $0x48] sm:$0xf]
        %v842 = vld [vmem:[#allocation2 + $0x4c] sm:$0xf]
        %v843 = vld [vmem:[#allocation2 + $0x54] sm:$0xf]
        %v844 = vld [vmem:[#allocation2 + $0x58] sm:$0xf]
        %v845 = vld [vmem:[#allocation2 + $0x60] sm:$0xf]
        %v846 = vld [vmem:[#allocation2 + $0x64] sm:$0xf]
        %v847 = vld [vmem:[#allocation2 + $0x6c] sm:$0xf]
        %v848 = vld [vmem:[#allocation2 + $0x70] sm:$0xf]
        %v849 = vld [vmem:[#allocation2 + $0x78] sm:$0xf]
        %v850 = vld [vmem:[#allocation2 + $0x7c] sm:$0xf]
        %v851 = vld [vmem:[#allocation2 + $0x84] sm:$0xf]
        %v852 = vld [vmem:[#allocation2 + $0x88] sm:$0xf]
        %v853 = vld [vmem:[#allocation2 + $0x90] sm:$0xf]
        %v854 = vld [vmem:[#allocation2 + $0x94] sm:$0xf]
        %v855 = vld [vmem:[#allocation2 + $0x9c] sm:$0xf]
        %v856 = vld [vmem:[#allocation2 + $0xa0] sm:$0xf]
        %v857 = vld [vmem:[#allocation2 + $0xa8] sm:$0xf]
        %v858 = vld [vmem:[#allocation2 + $0xac] sm:$0xf]
        %v859 = vld [vmem:[#allocation2 + $0xb4] sm:$0xf]
        %v860 = vld [vmem:[#allocation2 + $0xb8] sm:$0xf]
        %v861 = vld [vmem:[#allocation6] sm:$0xf]
        %v862 = vld [vmem:[#allocation6 + $0x4] sm:$0xf]
        %v863 = vld [vmem:[#allocation6 + $0x8] sm:$0xf]
        %v864 = vld [vmem:[#allocation6 + $0xc] sm:$0xf]
        %v865 = vld [vmem:[#allocation6 + $0x10] sm:$0xf]
        %v866 = vld [vmem:[#allocation6 + $0x14] sm:$0xf]
        %v867 = vld [vmem:[#allocation6 + $0x18] sm:$0xf]
        %v868 = vld [vmem:[#allocation6 + $0x1c] sm:$0xf]
        %v869 = vld [vmem:[#allocation6 + $0x20] sm:$0xf]
        %v870 = vld [vmem:[#allocation6 + $0x24] sm:$0xf]
        %v871 = vld [vmem:[#allocation6 + $0x28] sm:$0xf]
        %v872 = vld [vmem:[#allocation6 + $0x2c] sm:$0xf]
        %v873 = vld [vmem:[#allocation6 + $0x30] sm:$0xf]
        %v874 = vld [vmem:[#allocation6 + $0x34] sm:$0xf]
        %v875 = vld [vmem:[#allocation6 + $0x38] sm:$0xf]
        %v876 = vld [vmem:[#allocation6 + $0x3c] sm:$0xf]
        %v877 = vld [vmem:[#allocation2 + $0x8] sm:$0x1]
        %v878 = vld [vmem:[#allocation2 + $0x14] sm:$0x1]
        %v879 = vld [vmem:[#allocation2 + $0x20] sm:$0x1]
        %v880 = vld [vmem:[#allocation2 + $0x2c] sm:$0x1]
        %v881 = vld [vmem:[#allocation2 + $0x38] sm:$0x1]
        %v882 = vld [vmem:[#allocation2 + $0x44] sm:$0x1]
        %v883 = vld [vmem:[#allocation2 + $0x50] sm:$0x1]
        %v884 = vld [vmem:[#allocation2 + $0x5c] sm:$0x1]
        %v885 = vld [vmem:[#allocation2 + $0x68] sm:$0x1]
        %v886 = vld [vmem:[#allocation2 + $0x74] sm:$0x1]
        %v887 = vld [vmem:[#allocation2 + $0x80] sm:$0x1]
        %v888 = vld [vmem:[#allocation2 + $0x8c] sm:$0x1]
        %v889 = vld [vmem:[#allocation2 + $0x98] sm:$0x1]
        %v890 = vld [vmem:[#allocation2 + $0xa4] sm:$0x1]
        %v891 = vld [vmem:[#allocation2 + $0xb0] sm:$0x1]
        %v892 = vld [vmem:[#allocation2 + $0xbc] sm:$0x1]
        %vm893 = vsmask.f32 3328
        %vm894 = vsmask.f32 7440
        %vm895 = vmor %vm893, %vm894
        %v897 = vshrl.u32 %v829, 16
        %v899 = vrot.slane %v897, 4
        %v900 = vshll.u32 %v829, 16
        %v902 = vrot.slane %v900, 5
        %v903 = vor.u32 %v899, %v902
        %v904 = vrot.slane %v903, 4
        %v906 = vshll.u32 %v830, 16
        %v908 = vrot.slane %v906, 5
        %v909 = vsel %vm895, %v904, %v908
        %v910 = vshrl.u32 %v830, 16
        %v912 = vrot.slane %v910, 4
        %v913 = vor.u32 %v912, %v908
        %v914 = vrot.slane %v913, 4
        %v916 = vshll.u32 %v877, 16
        %v918 = vrot.slane %v916, 5
        %v919 = vsel %vm895, %v914, %v918
        %v921 = vshrl.u32 %v831, 16
        %v923 = vrot.slane %v921, 4
        %v924 = vshll.u32 %v831, 16
        %v926 = vrot.slane %v924, 5
        %v927 = vor.u32 %v923, %v926
        %v928 = vrot.slane %v927, 4
        %v930 = vshll.u32 %v832, 16
        %v932 = vrot.slane %v930, 5
        %v933 = vsel %vm895, %v928, %v932
        %v934 = vshrl.u32 %v832, 16
        %v936 = vrot.slane %v934, 4
        %v937 = vor.u32 %v936, %v932
        %v938 = vrot.slane %v937, 4
        %v940 = vshll.u32 %v878, 16
        %v942 = vrot.slane %v940, 5
        %v943 = vsel %vm895, %v938, %v942
        %v945 = vshrl.u32 %v833, 16
        %v947 = vrot.slane %v945, 4
        %v948 = vshll.u32 %v833, 16
        %v950 = vrot.slane %v948, 5
        %v951 = vor.u32 %v947, %v950
        %v952 = vrot.slane %v951, 4
        %v954 = vshll.u32 %v834, 16
        %v956 = vrot.slane %v954, 5
        %v957 = vsel %vm895, %v952, %v956
        %v958 = vshrl.u32 %v834, 16
        %v960 = vrot.slane %v958, 4
        %v961 = vor.u32 %v960, %v956
        %v962 = vrot.slane %v961, 4
        %v964 = vshll.u32 %v879, 16
        %v966 = vrot.slane %v964, 5
        %v967 = vsel %vm895, %v962, %v966
        %v969 = vshrl.u32 %v835, 16
        %v971 = vrot.slane %v969, 4
        %v972 = vshll.u32 %v835, 16
        %v974 = vrot.slane %v972, 5
        %v975 = vor.u32 %v971, %v974
        %v976 = vrot.slane %v975, 4
        %v978 = vshll.u32 %v836, 16
        %v980 = vrot.slane %v978, 5
        %v981 = vsel %vm895, %v976, %v980
        %v982 = vshrl.u32 %v836, 16
        %v984 = vrot.slane %v982, 4
        %v985 = vor.u32 %v984, %v980
        %v986 = vrot.slane %v985, 4
        %v988 = vshll.u32 %v880, 16
        %v990 = vrot.slane %v988, 5
        %v991 = vsel %vm895, %v986, %v990
        %v993 = vshrl.u32 %v837, 16
        %v995 = vrot.slane %v993, 4
        %v996 = vshll.u32 %v837, 16
        %v998 = vrot.slane %v996, 5
        %v999 = vor.u32 %v995, %v998
        %v1000 = vrot.slane %v999, 4
        %v1002 = vshll.u32 %v838, 16
        %v1004 = vrot.slane %v1002, 5
        %v1005 = vsel %vm895, %v1000, %v1004
        %v1006 = vshrl.u32 %v838, 16
        %v1008 = vrot.slane %v1006, 4
        %v1009 = vor.u32 %v1008, %v1004
        %v1010 = vrot.slane %v1009, 4
        %v1012 = vshll.u32 %v881, 16
        %v1014 = vrot.slane %v1012, 5
        %v1015 = vsel %vm895, %v1010, %v1014
        %v1017 = vshrl.u32 %v839, 16
        %v1019 = vrot.slane %v1017, 4
        %v1020 = vshll.u32 %v839, 16
        %v1022 = vrot.slane %v1020, 5
        %v1023 = vor.u32 %v1019, %v1022
        %v1024 = vrot.slane %v1023, 4
        %v1026 = vshll.u32 %v840, 16
        %v1028 = vrot.slane %v1026, 5
        %v1029 = vsel %vm895, %v1024, %v1028
        %v1030 = vshrl.u32 %v840, 16
        %v1032 = vrot.slane %v1030, 4
        %v1033 = vor.u32 %v1032, %v1028
        %v1034 = vrot.slane %v1033, 4
        %v1036 = vshll.u32 %v882, 16
        %v1038 = vrot.slane %v1036, 5
        %v1039 = vsel %vm895, %v1034, %v1038
        %v1041 = vshrl.u32 %v841, 16
        %v1043 = vrot.slane %v1041, 4
        %v1044 = vshll.u32 %v841, 16
        %v1046 = vrot.slane %v1044, 5
        %v1047 = vor.u32 %v1043, %v1046
        %v1048 = vrot.slane %v1047, 4
        %v1050 = vshll.u32 %v842, 16
        %v1052 = vrot.slane %v1050, 5
        %v1053 = vsel %vm895, %v1048, %v1052
        %v1054 = vshrl.u32 %v842, 16
        %v1056 = vrot.slane %v1054, 4
        %v1057 = vor.u32 %v1056, %v1052
        %v1058 = vrot.slane %v1057, 4
        %v1060 = vshll.u32 %v883, 16
        %v1062 = vrot.slane %v1060, 5
        %v1063 = vsel %vm895, %v1058, %v1062
        %v1065 = vshrl.u32 %v843, 16
        %v1067 = vrot.slane %v1065, 4
        %v1068 = vshll.u32 %v843, 16
        %v1070 = vrot.slane %v1068, 5
        %v1071 = vor.u32 %v1067, %v1070
        %v1072 = vrot.slane %v1071, 4
        %v1074 = vshll.u32 %v844, 16
        %v1076 = vrot.slane %v1074, 5
        %v1077 = vsel %vm895, %v1072, %v1076
        %v1078 = vshrl.u32 %v844, 16
        %v1080 = vrot.slane %v1078, 4
        %v1081 = vor.u32 %v1080, %v1076
        %v1082 = vrot.slane %v1081, 4
        %v1084 = vshll.u32 %v884, 16
        %v1086 = vrot.slane %v1084, 5
        %v1087 = vsel %vm895, %v1082, %v1086
        %v1089 = vshrl.u32 %v845, 16
        %v1091 = vrot.slane %v1089, 4
        %v1092 = vshll.u32 %v845, 16
        %v1094 = vrot.slane %v1092, 5
        %v1095 = vor.u32 %v1091, %v1094
        %v1096 = vrot.slane %v1095, 4
        %v1098 = vshll.u32 %v846, 16
        %v1100 = vrot.slane %v1098, 5
        %v1101 = vsel %vm895, %v1096, %v1100
        %v1102 = vshrl.u32 %v846, 16
        %v1104 = vrot.slane %v1102, 4
        %v1105 = vor.u32 %v1104, %v1100
        %v1106 = vrot.slane %v1105, 4
        %v1108 = vshll.u32 %v885, 16
        %v1110 = vrot.slane %v1108, 5
        %v1111 = vsel %vm895, %v1106, %v1110
        %v1113 = vshrl.u32 %v847, 16
        %v1115 = vrot.slane %v1113, 4
        %v1116 = vshll.u32 %v847, 16
        %v1118 = vrot.slane %v1116, 5
        %v1119 = vor.u32 %v1115, %v1118
        %v1120 = vrot.slane %v1119, 4
        %v1122 = vshll.u32 %v848, 16
        %v1124 = vrot.slane %v1122, 5
        %v1125 = vsel %vm895, %v1120, %v1124
        %v1126 = vshrl.u32 %v848, 16
        %v1128 = vrot.slane %v1126, 4
        %v1129 = vor.u32 %v1128, %v1124
        %v1130 = vrot.slane %v1129, 4
        %v1132 = vshll.u32 %v886, 16
        %v1134 = vrot.slane %v1132, 5
        %v1135 = vsel %vm895, %v1130, %v1134
        %v1137 = vshrl.u32 %v849, 16
        %v1139 = vrot.slane %v1137, 4
        %v1140 = vshll.u32 %v849, 16
        %v1142 = vrot.slane %v1140, 5
        %v1143 = vor.u32 %v1139, %v1142
        %v1144 = vrot.slane %v1143, 4
        %v1146 = vshll.u32 %v850, 16
        %v1148 = vrot.slane %v1146, 5
        %v1149 = vsel %vm895, %v1144, %v1148
        %v1150 = vshrl.u32 %v850, 16
        %v1152 = vrot.slane %v1150, 4
        %v1153 = vor.u32 %v1152, %v1148
        %v1154 = vrot.slane %v1153, 4
        %v1156 = vshll.u32 %v887, 16
        %v1158 = vrot.slane %v1156, 5
        %v1159 = vsel %vm895, %v1154, %v1158
        %v1161 = vshrl.u32 %v851, 16
        %v1163 = vrot.slane %v1161, 4
        %v1164 = vshll.u32 %v851, 16
        %v1166 = vrot.slane %v1164, 5
        %v1167 = vor.u32 %v1163, %v1166
        %v1168 = vrot.slane %v1167, 4
        %v1170 = vshll.u32 %v852, 16
        %v1172 = vrot.slane %v1170, 5
        %v1173 = vsel %vm895, %v1168, %v1172
        %v1174 = vshrl.u32 %v852, 16
        %v1176 = vrot.slane %v1174, 4
        %v1177 = vor.u32 %v1176, %v1172
        %v1178 = vrot.slane %v1177, 4
        %v1180 = vshll.u32 %v888, 16
        %v1182 = vrot.slane %v1180, 5
        %v1183 = vsel %vm895, %v1178, %v1182
        %v1185 = vshrl.u32 %v853, 16
        %v1187 = vrot.slane %v1185, 4
        %v1188 = vshll.u32 %v853, 16
        %v1190 = vrot.slane %v1188, 5
        %v1191 = vor.u32 %v1187, %v1190
        %v1192 = vrot.slane %v1191, 4
        %v1194 = vshll.u32 %v854, 16
        %v1196 = vrot.slane %v1194, 5
        %v1197 = vsel %vm895, %v1192, %v1196
        %v1198 = vshrl.u32 %v854, 16
        %v1200 = vrot.slane %v1198, 4
        %v1201 = vor.u32 %v1200, %v1196
        %v1202 = vrot.slane %v1201, 4
        %v1204 = vshll.u32 %v889, 16
        %v1206 = vrot.slane %v1204, 5
        %v1207 = vsel %vm895, %v1202, %v1206
        %v1209 = vshrl.u32 %v855, 16
        %v1211 = vrot.slane %v1209, 4
        %v1212 = vshll.u32 %v855, 16
        %v1214 = vrot.slane %v1212, 5
        %v1215 = vor.u32 %v1211, %v1214
        %v1216 = vrot.slane %v1215, 4
        %v1218 = vshll.u32 %v856, 16
        %v1220 = vrot.slane %v1218, 5
        %v1221 = vsel %vm895, %v1216, %v1220
        %v1222 = vshrl.u32 %v856, 16
        %v1224 = vrot.slane %v1222, 4
        %v1225 = vor.u32 %v1224, %v1220
        %v1226 = vrot.slane %v1225, 4
        %v1228 = vshll.u32 %v890, 16
        %v1230 = vrot.slane %v1228, 5
        %v1231 = vsel %vm895, %v1226, %v1230
        %v1233 = vshrl.u32 %v857, 16
        %v1235 = vrot.slane %v1233, 4
        %v1236 = vshll.u32 %v857, 16
        %v1238 = vrot.slane %v1236, 5
        %v1239 = vor.u32 %v1235, %v1238
        %v1240 = vrot.slane %v1239, 4
        %v1242 = vshll.u32 %v858, 16
        %v1244 = vrot.slane %v1242, 5
        %v1245 = vsel %vm895, %v1240, %v1244
        %v1246 = vshrl.u32 %v858, 16
        %v1248 = vrot.slane %v1246, 4
        %v1249 = vor.u32 %v1248, %v1244
        %v1250 = vrot.slane %v1249, 4
        %v1252 = vshll.u32 %v891, 16
        %v1254 = vrot.slane %v1252, 5
        %v1255 = vsel %vm895, %v1250, %v1254
        %v1257 = vshrl.u32 %v859, 16
        %v1259 = vrot.slane %v1257, 4
        %v1260 = vshll.u32 %v859, 16
        %v1262 = vrot.slane %v1260, 5
        %v1263 = vor.u32 %v1259, %v1262
        %v1264 = vrot.slane %v1263, 4
        %v1266 = vshll.u32 %v860, 16
        %v1268 = vrot.slane %v1266, 5
        %v1269 = vsel %vm895, %v1264, %v1268
        %v1270 = vshrl.u32 %v860, 16
        %v1272 = vrot.slane %v1270, 4
        %v1273 = vor.u32 %v1272, %v1268
        %v1274 = vrot.slane %v1273, 4
        %v1276 = vshll.u32 %v892, 16
        %v1278 = vrot.slane %v1276, 5
        %v1279 = vsel %vm895, %v1274, %v1278
        %s1280 = scalar_lea.vmem [#allocation6], 64
        %v1281 = vld [vmem:[%s1280] sm:$0xf]
        %v1282 = vld [vmem:[%s1280 + $0x4] sm:$0xf]
        %v1283 = vld [vmem:[%s1280 + $0x8] sm:$0xf]
        %v1284 = vld [vmem:[%s1280 + $0xc] sm:$0xf]
        %v1285 = vld [vmem:[%s1280 + $0x10] sm:$0xf]
        %v1286 = vld [vmem:[%s1280 + $0x14] sm:$0xf]
        %v1287 = vld [vmem:[%s1280 + $0x18] sm:$0xf]
        %v1288 = vld [vmem:[%s1280 + $0x1c] sm:$0xf]
        %v1289 = vld [vmem:[%s1280 + $0x20] sm:$0xf]
        %v1290 = vld [vmem:[%s1280 + $0x24] sm:$0xf]
        %v1291 = vld [vmem:[%s1280 + $0x28] sm:$0xf]
        %v1292 = vld [vmem:[%s1280 + $0x2c] sm:$0xf]
        %v1293 = vld [vmem:[%s1280 + $0x30] sm:$0xf]
        %v1294 = vld [vmem:[%s1280 + $0x34] sm:$0xf]
        %v1295 = vld [vmem:[%s1280 + $0x38] sm:$0xf]
        %v1296 = vld [vmem:[%s1280 + $0x3c] sm:$0xf]
        %v1297 = vunpack.c.l.b16 %v909
        %v1298 = vunpack.c.l.b16 %v919
        %v1299 = vunpack.c.l.b16 %v933
        %v1300 = vunpack.c.l.b16 %v943
        %v1301 = vunpack.c.l.b16 %v957
        %v1302 = vunpack.c.l.b16 %v967
        %v1303 = vunpack.c.l.b16 %v981
        %v1304 = vunpack.c.l.b16 %v991
        %v1305 = vunpack.c.l.b16 %v1005
        %v1306 = vunpack.c.l.b16 %v1015
        %v1307 = vunpack.c.l.b16 %v1029
        %v1308 = vunpack.c.l.b16 %v1039
        %v1309 = vunpack.c.l.b16 %v1053
        %v1310 = vunpack.c.l.b16 %v1063
        %v1311 = vunpack.c.l.b16 %v1077
        %v1312 = vunpack.c.l.b16 %v1087
        %v1313 = vunpack.c.l.b16 %v1101
        %v1314 = vunpack.c.l.b16 %v1111
        %v1315 = vunpack.c.l.b16 %v1125
        %v1316 = vunpack.c.l.b16 %v1135
        %v1317 = vunpack.c.l.b16 %v1149
        %v1318 = vunpack.c.l.b16 %v1159
        %v1319 = vunpack.c.l.b16 %v1173
        %v1320 = vunpack.c.l.b16 %v1183
        %v1321 = vunpack.c.l.b16 %v1197
        %v1322 = vunpack.c.l.b16 %v1207
        %v1323 = vunpack.c.l.b16 %v1221
        %v1324 = vunpack.c.l.b16 %v1231
        %v1325 = vunpack.c.l.b16 %v1245
        %v1326 = vunpack.c.l.b16 %v1255
        %v1327 = vunpack.c.l.b16 %v1269
        %v1328 = vunpack.c.l.b16 %v1279
        %v1329 = vpack.c.b16 %v1298, %v1297
        %v1330 = vpack.c.b16 %v1300, %v1299
        %v1331 = vpack.c.b16 %v1302, %v1301
        %v1332 = vpack.c.b16 %v1304, %v1303
        %v1333 = vpack.c.b16 %v1306, %v1305
        %v1334 = vpack.c.b16 %v1308, %v1307
        %v1335 = vpack.c.b16 %v1310, %v1309
        %v1336 = vpack.c.b16 %v1312, %v1311
        %v1337 = vpack.c.b16 %v1314, %v1313
        %v1338 = vpack.c.b16 %v1316, %v1315
        %v1339 = vpack.c.b16 %v1318, %v1317
        %v1340 = vpack.c.b16 %v1320, %v1319
        %v1341 = vpack.c.b16 %v1322, %v1321
        %v1342 = vpack.c.b16 %v1324, %v1323
        %v1343 = vpack.c.b16 %v1326, %v1325
        %v1344 = vpack.c.b16 %v1328, %v1327
        %v1377 = vunpack.c.l.b16 %v1281
        %v1378 = vunpack.c.l.b16 %v1282
        %v1379 = vunpack.c.l.b16 %v1283
        %v1380 = vunpack.c.l.b16 %v1284
        %v1381 = vunpack.c.l.b16 %v1285
        %v1382 = vunpack.c.l.b16 %v1286
        %v1383 = vunpack.c.l.b16 %v1287
        %v1384 = vunpack.c.l.b16 %v1288
        %v1385 = vunpack.c.l.b16 %v1289
        %v1386 = vunpack.c.l.b16 %v1290
        %v1387 = vunpack.c.l.b16 %v1291
        %v1388 = vunpack.c.l.b16 %v1292
        %v1389 = vunpack.c.l.b16 %v1293
        %v1390 = vunpack.c.l.b16 %v1294
        %v1391 = vunpack.c.l.b16 %v1295
        %v1392 = vunpack.c.l.b16 %v1296
        %v1393 = vpack.c.b16 %v1378, %v1377
        %v1394 = vpack.c.b16 %v1380, %v1379
        %v1395 = vpack.c.b16 %v1382, %v1381
        %v1396 = vpack.c.b16 %v1384, %v1383
        %v1397 = vpack.c.b16 %v1386, %v1385
        %v1398 = vpack.c.b16 %v1388, %v1387
        %v1399 = vpack.c.b16 %v1390, %v1389
        %v1400 = vpack.c.b16 %v1392, %v1391
        %1409 = vmatpush.bf16.msra.mxu0 %v1400
        %1410 = vmatpush.bf16.msra.mxu0 %v1399
        %1411 = vmatpush.bf16.msra.mxu0 %v1398
        %1412 = vmatpush.bf16.msra.mxu0 %v1397
        %1413 = vmatpush.bf16.msra.mxu0 %v1396
        %1414 = vmatpush.bf16.msra.mxu0 %v1395
        %1415 = vmatpush.bf16.msra.mxu0 %v1394
        %1416 = vmatpush.bf16.msra.mxu0 %v1393
        %1417 = vmatmul.bf16.gmra.mxu0 %v1329
        %v1418 = vpop.f32.mrf.mxu0
        %v1419 = vadd.f32 0.0, %v1418
        %v1420 = vpop.f32.mrf.mxu0
        %v1421 = vadd.f32 0.0, %v1420
        %1422 = vmatmul.bf16.gmra.mxu0 %v1330
        %v1423 = vpop.f32.mrf.mxu0
        %v1424 = vadd.f32 0.0, %v1423
        %v1425 = vpop.f32.mrf.mxu0
        %v1426 = vadd.f32 0.0, %v1425
        %1427 = vmatmul.bf16.gmra.mxu0 %v1331
        %v1428 = vpop.f32.mrf.mxu0
        %v1429 = vadd.f32 0.0, %v1428
        %v1430 = vpop.f32.mrf.mxu0
        %v1431 = vadd.f32 0.0, %v1430
        %1432 = vmatmul.bf16.gmra.mxu0 %v1332
        %v1433 = vpop.f32.mrf.mxu0
        %v1434 = vadd.f32 0.0, %v1433
        %v1435 = vpop.f32.mrf.mxu0
        %v1436 = vadd.f32 0.0, %v1435
        %1437 = vmatmul.bf16.gmra.mxu0 %v1333
        %v1438 = vpop.f32.mrf.mxu0
        %v1439 = vadd.f32 0.0, %v1438
        %v1440 = vpop.f32.mrf.mxu0
        %v1441 = vadd.f32 0.0, %v1440
        %1442 = vmatmul.bf16.gmra.mxu0 %v1334
        %v1443 = vpop.f32.mrf.mxu0
        %v1444 = vadd.f32 0.0, %v1443
        %v1445 = vpop.f32.mrf.mxu0
        %v1446 = vadd.f32 0.0, %v1445
        %1447 = vmatmul.bf16.gmra.mxu0 %v1335
        %v1448 = vpop.f32.mrf.mxu0
        %v1449 = vadd.f32 0.0, %v1448
        %v1450 = vpop.f32.mrf.mxu0
        %v1451 = vadd.f32 0.0, %v1450
        %1452 = vmatmul.bf16.gmra.mxu0 %v1336
        %v1453 = vpop.f32.mrf.mxu0
        %v1454 = vadd.f32 0.0, %v1453
        %v1455 = vpop.f32.mrf.mxu0
        %v1456 = vadd.f32 0.0, %v1455
        %1457 = vmatmul.bf16.gmra.mxu0 %v1337
        %v1458 = vpop.f32.mrf.mxu0
        %v1459 = vadd.f32 0.0, %v1458
        %v1460 = vpop.f32.mrf.mxu0
        %v1461 = vadd.f32 0.0, %v1460
        %1462 = vmatmul.bf16.gmra.mxu0 %v1338
        %v1463 = vpop.f32.mrf.mxu0
        %v1464 = vadd.f32 0.0, %v1463
        %v1465 = vpop.f32.mrf.mxu0
        %v1466 = vadd.f32 0.0, %v1465
        %1467 = vmatmul.bf16.gmra.mxu0 %v1339
        %v1468 = vpop.f32.mrf.mxu0
        %v1469 = vadd.f32 0.0, %v1468
        %v1470 = vpop.f32.mrf.mxu0
        %v1471 = vadd.f32 0.0, %v1470
        %1472 = vmatmul.bf16.gmra.mxu0 %v1340
        %v1473 = vpop.f32.mrf.mxu0
        %v1474 = vadd.f32 0.0, %v1473
        %v1475 = vpop.f32.mrf.mxu0
        %v1476 = vadd.f32 0.0, %v1475
        %1477 = vmatmul.bf16.gmra.mxu0 %v1341
        %v1478 = vpop.f32.mrf.mxu0
        %v1479 = vadd.f32 0.0, %v1478
        %v1480 = vpop.f32.mrf.mxu0
        %v1481 = vadd.f32 0.0, %v1480
        %1482 = vmatmul.bf16.gmra.mxu0 %v1342
        %v1483 = vpop.f32.mrf.mxu0
        %v1484 = vadd.f32 0.0, %v1483
        %v1485 = vpop.f32.mrf.mxu0
        %v1486 = vadd.f32 0.0, %v1485
        %1487 = vmatmul.bf16.gmra.mxu0 %v1343
        %v1488 = vpop.f32.mrf.mxu0
        %v1489 = vadd.f32 0.0, %v1488
        %v1490 = vpop.f32.mrf.mxu0
        %v1491 = vadd.f32 0.0, %v1490
        %1492 = vmatmul.bf16.gmra.mxu0 %v1344
        %v1493 = vpop.f32.mrf.mxu0
        %v1494 = vadd.f32 0.0, %v1493
        %v1495 = vpop.f32.mrf.mxu0
        %v1496 = vadd.f32 0.0, %v1495
        %1497 = vdwg.mxu0
        %v1530 = vunpack.c.l.b16 %v829
        %v1531 = vunpack.c.l.b16 %v830
        %v1532 = vunpack.c.l.b16 %v831
        %v1533 = vunpack.c.l.b16 %v832
        %v1534 = vunpack.c.l.b16 %v833
        %v1535 = vunpack.c.l.b16 %v834
        %v1536 = vunpack.c.l.b16 %v835
        %v1537 = vunpack.c.l.b16 %v836
        %v1538 = vunpack.c.l.b16 %v837
        %v1539 = vunpack.c.l.b16 %v838
        %v1540 = vunpack.c.l.b16 %v839
        %v1541 = vunpack.c.l.b16 %v840
        %v1542 = vunpack.c.l.b16 %v841
        %v1543 = vunpack.c.l.b16 %v842
        %v1544 = vunpack.c.l.b16 %v843
        %v1545 = vunpack.c.l.b16 %v844
        %v1546 = vunpack.c.l.b16 %v845
        %v1547 = vunpack.c.l.b16 %v846
        %v1548 = vunpack.c.l.b16 %v847
        %v1549 = vunpack.c.l.b16 %v848
        %v1550 = vunpack.c.l.b16 %v849
        %v1551 = vunpack.c.l.b16 %v850
        %v1552 = vunpack.c.l.b16 %v851
        %v1553 = vunpack.c.l.b16 %v852
        %v1554 = vunpack.c.l.b16 %v853
        %v1555 = vunpack.c.l.b16 %v854
        %v1556 = vunpack.c.l.b16 %v855
        %v1557 = vunpack.c.l.b16 %v856
        %v1558 = vunpack.c.l.b16 %v857
        %v1559 = vunpack.c.l.b16 %v858
        %v1560 = vunpack.c.l.b16 %v859
        %v1561 = vunpack.c.l.b16 %v860
        %v1562 = vpack.c.b16 %v1531, %v1530
        %v1563 = vpack.c.b16 %v1533, %v1532
        %v1564 = vpack.c.b16 %v1535, %v1534
        %v1565 = vpack.c.b16 %v1537, %v1536
        %v1566 = vpack.c.b16 %v1539, %v1538
        %v1567 = vpack.c.b16 %v1541, %v1540
        %v1568 = vpack.c.b16 %v1543, %v1542
        %v1569 = vpack.c.b16 %v1545, %v1544
        %v1570 = vpack.c.b16 %v1547, %v1546
        %v1571 = vpack.c.b16 %v1549, %v1548
        %v1572 = vpack.c.b16 %v1551, %v1550
        %v1573 = vpack.c.b16 %v1553, %v1552
        %v1574 = vpack.c.b16 %v1555, %v1554
        %v1575 = vpack.c.b16 %v1557, %v1556
        %v1576 = vpack.c.b16 %v1559, %v1558
        %v1577 = vpack.c.b16 %v1561, %v1560
        %v1610 = vunpack.c.l.b16 %v861
        %v1611 = vunpack.c.l.b16 %v862
        %v1612 = vunpack.c.l.b16 %v863
        %v1613 = vunpack.c.l.b16 %v864
        %v1614 = vunpack.c.l.b16 %v865
        %v1615 = vunpack.c.l.b16 %v866
        %v1616 = vunpack.c.l.b16 %v867
        %v1617 = vunpack.c.l.b16 %v868
        %v1618 = vunpack.c.l.b16 %v869
        %v1619 = vunpack.c.l.b16 %v870
        %v1620 = vunpack.c.l.b16 %v871
        %v1621 = vunpack.c.l.b16 %v872
        %v1622 = vunpack.c.l.b16 %v873
        %v1623 = vunpack.c.l.b16 %v874
        %v1624 = vunpack.c.l.b16 %v875
        %v1625 = vunpack.c.l.b16 %v876
        %v1626 = vpack.c.b16 %v1611, %v1610
        %v1627 = vpack.c.b16 %v1613, %v1612
        %v1628 = vpack.c.b16 %v1615, %v1614
        %v1629 = vpack.c.b16 %v1617, %v1616
        %v1630 = vpack.c.b16 %v1619, %v1618
        %v1631 = vpack.c.b16 %v1621, %v1620
        %v1632 = vpack.c.b16 %v1623, %v1622
        %v1633 = vpack.c.b16 %v1625, %v1624
        %1642 = vmatpush.bf16.msra.mxu0 %v1633
        %1643 = vmatpush.bf16.msra.mxu0 %v1632
        %1644 = vmatpush.bf16.msra.mxu0 %v1631
        %1645 = vmatpush.bf16.msra.mxu0 %v1630
        %1646 = vmatpush.bf16.msra.mxu0 %v1629
        %1647 = vmatpush.bf16.msra.mxu0 %v1628
        %1648 = vmatpush.bf16.msra.mxu0 %v1627
        %1649 = vmatpush.bf16.msra.mxu0 %v1626
        %1650 = vmatmul.bf16.gmra.mxu0 %v1562
        %v1651 = vpop.f32.mrf.mxu0
        %v1652 = vadd.f32 %v1419, %v1651
        %v1653 = vpop.f32.mrf.mxu0
        %v1654 = vadd.f32 %v1421, %v1653
        %1655 = vmatmul.bf16.gmra.mxu0 %v1563
        %v1656 = vpop.f32.mrf.mxu0
        %v1657 = vadd.f32 %v1424, %v1656
        %v1658 = vpop.f32.mrf.mxu0
        %v1659 = vadd.f32 %v1426, %v1658
        %1660 = vmatmul.bf16.gmra.mxu0 %v1564
        %v1661 = vpop.f32.mrf.mxu0
        %v1662 = vadd.f32 %v1429, %v1661
        %v1663 = vpop.f32.mrf.mxu0
        %v1664 = vadd.f32 %v1431, %v1663
        %1665 = vmatmul.bf16.gmra.mxu0 %v1565
        %v1666 = vpop.f32.mrf.mxu0
        %v1667 = vadd.f32 %v1434, %v1666
        %v1668 = vpop.f32.mrf.mxu0
        %v1669 = vadd.f32 %v1436, %v1668
        %1670 = vmatmul.bf16.gmra.mxu0 %v1566
        %v1671 = vpop.f32.mrf.mxu0
        %v1672 = vadd.f32 %v1439, %v1671
        %v1673 = vpop.f32.mrf.mxu0
        %v1674 = vadd.f32 %v1441, %v1673
        %1675 = vmatmul.bf16.gmra.mxu0 %v1567
        %v1676 = vpop.f32.mrf.mxu0
        %v1677 = vadd.f32 %v1444, %v1676
        %v1678 = vpop.f32.mrf.mxu0
        %v1679 = vadd.f32 %v1446, %v1678
        %1680 = vmatmul.bf16.gmra.mxu0 %v1568
        %v1681 = vpop.f32.mrf.mxu0
        %v1682 = vadd.f32 %v1449, %v1681
        %v1683 = vpop.f32.mrf.mxu0
        %v1684 = vadd.f32 %v1451, %v1683
        %1685 = vmatmul.bf16.gmra.mxu0 %v1569
        %v1686 = vpop.f32.mrf.mxu0
        %v1687 = vadd.f32 %v1454, %v1686
        %v1688 = vpop.f32.mrf.mxu0
        %v1689 = vadd.f32 %v1456, %v1688
        %1690 = vmatmul.bf16.gmra.mxu0 %v1570
        %v1691 = vpop.f32.mrf.mxu0
        %v1692 = vadd.f32 %v1459, %v1691
        %v1693 = vpop.f32.mrf.mxu0
        %v1694 = vadd.f32 %v1461, %v1693
        %1695 = vmatmul.bf16.gmra.mxu0 %v1571
        %v1696 = vpop.f32.mrf.mxu0
        %v1697 = vadd.f32 %v1464, %v1696
        %v1698 = vpop.f32.mrf.mxu0
        %v1699 = vadd.f32 %v1466, %v1698
        %1700 = vmatmul.bf16.gmra.mxu0 %v1572
        %v1701 = vpop.f32.mrf.mxu0
        %v1702 = vadd.f32 %v1469, %v1701
        %v1703 = vpop.f32.mrf.mxu0
        %v1704 = vadd.f32 %v1471, %v1703
        %1705 = vmatmul.bf16.gmra.mxu0 %v1573
        %v1706 = vpop.f32.mrf.mxu0
        %v1707 = vadd.f32 %v1474, %v1706
        %v1708 = vpop.f32.mrf.mxu0
        %v1709 = vadd.f32 %v1476, %v1708
        %1710 = vmatmul.bf16.gmra.mxu0 %v1574
        %v1711 = vpop.f32.mrf.mxu0
        %v1712 = vadd.f32 %v1479, %v1711
        %v1713 = vpop.f32.mrf.mxu0
        %v1714 = vadd.f32 %v1481, %v1713
        %1715 = vmatmul.bf16.gmra.mxu0 %v1575
        %v1716 = vpop.f32.mrf.mxu0
        %v1717 = vadd.f32 %v1484, %v1716
        %v1718 = vpop.f32.mrf.mxu0
        %v1719 = vadd.f32 %v1486, %v1718
        %1720 = vmatmul.bf16.gmra.mxu0 %v1576
        %v1721 = vpop.f32.mrf.mxu0
        %v1722 = vadd.f32 %v1489, %v1721
        %v1723 = vpop.f32.mrf.mxu0
        %v1724 = vadd.f32 %v1491, %v1723
        %1725 = vmatmul.bf16.gmra.mxu0 %v1577
        %v1726 = vpop.f32.mrf.mxu0
        %v1727 = vadd.f32 %v1494, %v1726
        %v1728 = vpop.f32.mrf.mxu0
        %v1729 = vadd.f32 %v1496, %v1728
        %1730 = vdwg.mxu0
        %v1731 = vld [vmem:[#allocation2] sm:$0xe]
        %v1732 = vld [vmem:[#allocation2 + $0xc] sm:$0xe]
        %v1733 = vld [vmem:[#allocation2 + $0x18] sm:$0xe]
        %v1734 = vld [vmem:[#allocation2 + $0x24] sm:$0xe]
        %v1735 = vld [vmem:[#allocation2 + $0x30] sm:$0xe]
        %v1736 = vld [vmem:[#allocation2 + $0x3c] sm:$0xe]
        %v1737 = vld [vmem:[#allocation2 + $0x48] sm:$0xe]
        %v1738 = vld [vmem:[#allocation2 + $0x54] sm:$0xe]
        %v1739 = vld [vmem:[#allocation2 + $0x60] sm:$0xe]
        %v1740 = vld [vmem:[#allocation2 + $0x6c] sm:$0xe]
        %v1741 = vld [vmem:[#allocation2 + $0x78] sm:$0xe]
        %v1742 = vld [vmem:[#allocation2 + $0x84] sm:$0xe]
        %v1743 = vld [vmem:[#allocation2 + $0x90] sm:$0xe]
        %v1744 = vld [vmem:[#allocation2 + $0x9c] sm:$0xe]
        %v1745 = vld [vmem:[#allocation2 + $0xa8] sm:$0xe]
        %v1746 = vld [vmem:[#allocation2 + $0xb4] sm:$0xe]
        %vm1779 = vcmask 1042432
        %vm1780 = vcmask 1046532
        %vm1781 = vmor %vm1779, %vm1780
        %v1782 = vrot.slane %v1731, 5
        %v1783 = vrot.slane %v1782, 4
        %v1784 = vrot.slane %v830, 5
        %v1785 = vsel %vm1781, %v1783, %v1784
        %v1786 = vrot.slane %v1784, 4
        %v1787 = vrot.slane %v877, 5
        %v1788 = vsel %vm1781, %v1786, %v1787
        %v1789 = vrot.slane %v1732, 5
        %v1790 = vrot.slane %v1789, 4
        %v1791 = vrot.slane %v832, 5
        %v1792 = vsel %vm1781, %v1790, %v1791
        %v1793 = vrot.slane %v1791, 4
        %v1794 = vrot.slane %v878, 5
        %v1795 = vsel %vm1781, %v1793, %v1794
        %v1796 = vrot.slane %v1733, 5
        %v1797 = vrot.slane %v1796, 4
        %v1798 = vrot.slane %v834, 5
        %v1799 = vsel %vm1781, %v1797, %v1798
        %v1800 = vrot.slane %v1798, 4
        %v1801 = vrot.slane %v879, 5
        %v1802 = vsel %vm1781, %v1800, %v1801
        %v1803 = vrot.slane %v1734, 5
        %v1804 = vrot.slane %v1803, 4
        %v1805 = vrot.slane %v836, 5
        %v1806 = vsel %vm1781, %v1804, %v1805
        %v1807 = vrot.slane %v1805, 4
        %v1808 = vrot.slane %v880, 5
        %v1809 = vsel %vm1781, %v1807, %v1808
        %v1810 = vrot.slane %v1735, 5
        %v1811 = vrot.slane %v1810, 4
        %v1812 = vrot.slane %v838, 5
        %v1813 = vsel %vm1781, %v1811, %v1812
        %v1814 = vrot.slane %v1812, 4
        %v1815 = vrot.slane %v881, 5
        %v1816 = vsel %vm1781, %v1814, %v1815
        %v1817 = vrot.slane %v1736, 5
        %v1818 = vrot.slane %v1817, 4
        %v1819 = vrot.slane %v840, 5
        %v1820 = vsel %vm1781, %v1818, %v1819
        %v1821 = vrot.slane %v1819, 4
        %v1822 = vrot.slane %v882, 5
        %v1823 = vsel %vm1781, %v1821, %v1822
        %v1824 = vrot.slane %v1737, 5
        %v1825 = vrot.slane %v1824, 4
        %v1826 = vrot.slane %v842, 5
        %v1827 = vsel %vm1781, %v1825, %v1826
        %v1828 = vrot.slane %v1826, 4
        %v1829 = vrot.slane %v883, 5
        %v1830 = vsel %vm1781, %v1828, %v1829
        %v1831 = vrot.slane %v1738, 5
        %v1832 = vrot.slane %v1831, 4
        %v1833 = vrot.slane %v844, 5
        %v1834 = vsel %vm1781, %v1832, %v1833
        %v1835 = vrot.slane %v1833, 4
        %v1836 = vrot.slane %v884, 5
        %v1837 = vsel %vm1781, %v1835, %v1836
        %v1838 = vrot.slane %v1739, 5
        %v1839 = vrot.slane %v1838, 4
        %v1840 = vrot.slane %v846, 5
        %v1841 = vsel %vm1781, %v1839, %v1840
        %v1842 = vrot.slane %v1840, 4
        %v1843 = vrot.slane %v885, 5
        %v1844 = vsel %vm1781, %v1842, %v1843
        %v1845 = vrot.slane %v1740, 5
        %v1846 = vrot.slane %v1845, 4
        %v1847 = vrot.slane %v848, 5
        %v1848 = vsel %vm1781, %v1846, %v1847
        %v1849 = vrot.slane %v1847, 4
        %v1850 = vrot.slane %v886, 5
        %v1851 = vsel %vm1781, %v1849, %v1850
        %v1852 = vrot.slane %v1741, 5
        %v1853 = vrot.slane %v1852, 4
        %v1854 = vrot.slane %v850, 5
        %v1855 = vsel %vm1781, %v1853, %v1854
        %v1856 = vrot.slane %v1854, 4
        %v1857 = vrot.slane %v887, 5
        %v1858 = vsel %vm1781, %v1856, %v1857
        %v1859 = vrot.slane %v1742, 5
        %v1860 = vrot.slane %v1859, 4
        %v1861 = vrot.slane %v852, 5
        %v1862 = vsel %vm1781, %v1860, %v1861
        %v1863 = vrot.slane %v1861, 4
        %v1864 = vrot.slane %v888, 5
        %v1865 = vsel %vm1781, %v1863, %v1864
        %v1866 = vrot.slane %v1743, 5
        %v1867 = vrot.slane %v1866, 4
        %v1868 = vrot.slane %v854, 5
        %v1869 = vsel %vm1781, %v1867, %v1868
        %v1870 = vrot.slane %v1868, 4
        %v1871 = vrot.slane %v889, 5
        %v1872 = vsel %vm1781, %v1870, %v1871
        %v1873 = vrot.slane %v1744, 5
        %v1874 = vrot.slane %v1873, 4
        %v1875 = vrot.slane %v856, 5
        %v1876 = vsel %vm1781, %v1874, %v1875
        %v1877 = vrot.slane %v1875, 4
        %v1878 = vrot.slane %v890, 5
        %v1879 = vsel %vm1781, %v1877, %v1878
        %v1880 = vrot.slane %v1745, 5
        %v1881 = vrot.slane %v1880, 4
        %v1882 = vrot.slane %v858, 5
        %v1883 = vsel %vm1781, %v1881, %v1882
        %v1884 = vrot.slane %v1882, 4
        %v1885 = vrot.slane %v891, 5
        %v1886 = vsel %vm1781, %v1884, %v1885
        %v1887 = vrot.slane %v1746, 5
        %v1888 = vrot.slane %v1887, 4
        %v1889 = vrot.slane %v860, 5
        %v1890 = vsel %vm1781, %v1888, %v1889
        %v1891 = vrot.slane %v1889, 4
        %v1892 = vrot.slane %v892, 5
        %v1893 = vsel %vm1781, %v1891, %v1892
        %s1894 = scalar_lea.vmem [#allocation6], 128
        %v1895 = vld [vmem:[%s1894] sm:$0xf]
        %v1896 = vld [vmem:[%s1894 + $0x4] sm:$0xf]
        %v1897 = vld [vmem:[%s1894 + $0x8] sm:$0xf]
        %v1898 = vld [vmem:[%s1894 + $0xc] sm:$0xf]
        %v1899 = vld [vmem:[%s1894 + $0x10] sm:$0xf]
        %v1900 = vld [vmem:[%s1894 + $0x14] sm:$0xf]
        %v1901 = vld [vmem:[%s1894 + $0x18] sm:$0xf]
        %v1902 = vld [vmem:[%s1894 + $0x1c] sm:$0xf]
        %v1903 = vld [vmem:[%s1894 + $0x20] sm:$0xf]
        %v1904 = vld [vmem:[%s1894 + $0x24] sm:$0xf]
        %v1905 = vld [vmem:[%s1894 + $0x28] sm:$0xf]
        %v1906 = vld [vmem:[%s1894 + $0x2c] sm:$0xf]
        %v1907 = vld [vmem:[%s1894 + $0x30] sm:$0xf]
        %v1908 = vld [vmem:[%s1894 + $0x34] sm:$0xf]
        %v1909 = vld [vmem:[%s1894 + $0x38] sm:$0xf]
        %v1910 = vld [vmem:[%s1894 + $0x3c] sm:$0xf]
        %v1911 = vunpack.c.l.b16 %v1785
        %v1912 = vunpack.c.l.b16 %v1788
        %v1913 = vunpack.c.l.b16 %v1792
        %v1914 = vunpack.c.l.b16 %v1795
        %v1915 = vunpack.c.l.b16 %v1799
        %v1916 = vunpack.c.l.b16 %v1802
        %v1917 = vunpack.c.l.b16 %v1806
        %v1918 = vunpack.c.l.b16 %v1809
        %v1919 = vunpack.c.l.b16 %v1813
        %v1920 = vunpack.c.l.b16 %v1816
        %v1921 = vunpack.c.l.b16 %v1820
        %v1922 = vunpack.c.l.b16 %v1823
        %v1923 = vunpack.c.l.b16 %v1827
        %v1924 = vunpack.c.l.b16 %v1830
        %v1925 = vunpack.c.l.b16 %v1834
        %v1926 = vunpack.c.l.b16 %v1837
        %v1927 = vunpack.c.l.b16 %v1841
        %v1928 = vunpack.c.l.b16 %v1844
        %v1929 = vunpack.c.l.b16 %v1848
        %v1930 = vunpack.c.l.b16 %v1851
        %v1931 = vunpack.c.l.b16 %v1855
        %v1932 = vunpack.c.l.b16 %v1858
        %v1933 = vunpack.c.l.b16 %v1862
        %v1934 = vunpack.c.l.b16 %v1865
        %v1935 = vunpack.c.l.b16 %v1869
        %v1936 = vunpack.c.l.b16 %v1872
        %v1937 = vunpack.c.l.b16 %v1876
        %v1938 = vunpack.c.l.b16 %v1879
        %v1939 = vunpack.c.l.b16 %v1883
        %v1940 = vunpack.c.l.b16 %v1886
        %v1941 = vunpack.c.l.b16 %v1890
        %v1942 = vunpack.c.l.b16 %v1893
        %v1943 = vpack.c.b16 %v1912, %v1911
        %v1944 = vpack.c.b16 %v1914, %v1913
        %v1945 = vpack.c.b16 %v1916, %v1915
        %v1946 = vpack.c.b16 %v1918, %v1917
        %v1947 = vpack.c.b16 %v1920, %v1919
        %v1948 = vpack.c.b16 %v1922, %v1921
        %v1949 = vpack.c.b16 %v1924, %v1923
        %v1950 = vpack.c.b16 %v1926, %v1925
        %v1951 = vpack.c.b16 %v1928, %v1927
        %v1952 = vpack.c.b16 %v1930, %v1929
        %v1953 = vpack.c.b16 %v1932, %v1931
        %v1954 = vpack.c.b16 %v1934, %v1933
        %v1955 = vpack.c.b16 %v1936, %v1935
        %v1956 = vpack.c.b16 %v1938, %v1937
        %v1957 = vpack.c.b16 %v1940, %v1939
        %v1958 = vpack.c.b16 %v1942, %v1941
        %v1991 = vunpack.c.l.b16 %v1895
        %v1992 = vunpack.c.l.b16 %v1896
        %v1993 = vunpack.c.l.b16 %v1897
        %v1994 = vunpack.c.l.b16 %v1898
        %v1995 = vunpack.c.l.b16 %v1899
        %v1996 = vunpack.c.l.b16 %v1900
        %v1997 = vunpack.c.l.b16 %v1901
        %v1998 = vunpack.c.l.b16 %v1902
        %v1999 = vunpack.c.l.b16 %v1903
        %v2000 = vunpack.c.l.b16 %v1904
        %v2001 = vunpack.c.l.b16 %v1905
        %v2002 = vunpack.c.l.b16 %v1906
        %v2003 = vunpack.c.l.b16 %v1907
        %v2004 = vunpack.c.l.b16 %v1908
        %v2005 = vunpack.c.l.b16 %v1909
        %v2006 = vunpack.c.l.b16 %v1910
        %v2007 = vpack.c.b16 %v1992, %v1991
        %v2008 = vpack.c.b16 %v1994, %v1993
        %v2009 = vpack.c.b16 %v1996, %v1995
        %v2010 = vpack.c.b16 %v1998, %v1997
        %v2011 = vpack.c.b16 %v2000, %v1999
        %v2012 = vpack.c.b16 %v2002, %v2001
        %v2013 = vpack.c.b16 %v2004, %v2003
        %v2014 = vpack.c.b16 %v2006, %v2005
        %2023 = vmatpush.bf16.msra.mxu0 %v2014
        %2024 = vmatpush.bf16.msra.mxu0 %v2013
        %2025 = vmatpush.bf16.msra.mxu0 %v2012
        %2026 = vmatpush.bf16.msra.mxu0 %v2011
        %2027 = vmatpush.bf16.msra.mxu0 %v2010
        %2028 = vmatpush.bf16.msra.mxu0 %v2009
        %2029 = vmatpush.bf16.msra.mxu0 %v2008
        %2030 = vmatpush.bf16.msra.mxu0 %v2007
        %2031 = vmatmul.bf16.gmra.mxu0 %v1943
        %v2032 = vpop.f32.mrf.mxu0
        %v2033 = vadd.f32 0.0, %v2032
        %v2034 = vpop.f32.mrf.mxu0
        %v2035 = vadd.f32 0.0, %v2034
        %2036 = vmatmul.bf16.gmra.mxu0 %v1944
        %v2037 = vpop.f32.mrf.mxu0
        %v2038 = vadd.f32 0.0, %v2037
        %v2039 = vpop.f32.mrf.mxu0
        %v2040 = vadd.f32 0.0, %v2039
        %2041 = vmatmul.bf16.gmra.mxu0 %v1945
        %v2042 = vpop.f32.mrf.mxu0
        %v2043 = vadd.f32 0.0, %v2042
        %v2044 = vpop.f32.mrf.mxu0
        %v2045 = vadd.f32 0.0, %v2044
        %2046 = vmatmul.bf16.gmra.mxu0 %v1946
        %v2047 = vpop.f32.mrf.mxu0
        %v2048 = vadd.f32 0.0, %v2047
        %v2049 = vpop.f32.mrf.mxu0
        %v2050 = vadd.f32 0.0, %v2049
        %2051 = vmatmul.bf16.gmra.mxu0 %v1947
        %v2052 = vpop.f32.mrf.mxu0
        %v2053 = vadd.f32 0.0, %v2052
        %v2054 = vpop.f32.mrf.mxu0
        %v2055 = vadd.f32 0.0, %v2054
        %2056 = vmatmul.bf16.gmra.mxu0 %v1948
        %v2057 = vpop.f32.mrf.mxu0
        %v2058 = vadd.f32 0.0, %v2057
        %v2059 = vpop.f32.mrf.mxu0
        %v2060 = vadd.f32 0.0, %v2059
        %2061 = vmatmul.bf16.gmra.mxu0 %v1949
        %v2062 = vpop.f32.mrf.mxu0
        %v2063 = vadd.f32 0.0, %v2062
        %v2064 = vpop.f32.mrf.mxu0
        %v2065 = vadd.f32 0.0, %v2064
        %2066 = vmatmul.bf16.gmra.mxu0 %v1950
        %v2067 = vpop.f32.mrf.mxu0
        %v2068 = vadd.f32 0.0, %v2067
        %v2069 = vpop.f32.mrf.mxu0
        %v2070 = vadd.f32 0.0, %v2069
        %2071 = vmatmul.bf16.gmra.mxu0 %v1951
        %v2072 = vpop.f32.mrf.mxu0
        %v2073 = vadd.f32 0.0, %v2072
        %v2074 = vpop.f32.mrf.mxu0
        %v2075 = vadd.f32 0.0, %v2074
        %2076 = vmatmul.bf16.gmra.mxu0 %v1952
        %v2077 = vpop.f32.mrf.mxu0
        %v2078 = vadd.f32 0.0, %v2077
        %v2079 = vpop.f32.mrf.mxu0
        %v2080 = vadd.f32 0.0, %v2079
        %2081 = vmatmul.bf16.gmra.mxu0 %v1953
        %v2082 = vpop.f32.mrf.mxu0
        %v2083 = vadd.f32 0.0, %v2082
        %v2084 = vpop.f32.mrf.mxu0
        %v2085 = vadd.f32 0.0, %v2084
        %2086 = vmatmul.bf16.gmra.mxu0 %v1954
        %v2087 = vpop.f32.mrf.mxu0
        %v2088 = vadd.f32 0.0, %v2087
        %v2089 = vpop.f32.mrf.mxu0
        %v2090 = vadd.f32 0.0, %v2089
        %2091 = vmatmul.bf16.gmra.mxu0 %v1955
        %v2092 = vpop.f32.mrf.mxu0
        %v2093 = vadd.f32 0.0, %v2092
        %v2094 = vpop.f32.mrf.mxu0
        %v2095 = vadd.f32 0.0, %v2094
        %2096 = vmatmul.bf16.gmra.mxu0 %v1956
        %v2097 = vpop.f32.mrf.mxu0
        %v2098 = vadd.f32 0.0, %v2097
        %v2099 = vpop.f32.mrf.mxu0
        %v2100 = vadd.f32 0.0, %v2099
        %2101 = vmatmul.bf16.gmra.mxu0 %v1957
        %v2102 = vpop.f32.mrf.mxu0
        %v2103 = vadd.f32 0.0, %v2102
        %v2104 = vpop.f32.mrf.mxu0
        %v2105 = vadd.f32 0.0, %v2104
        %2106 = vmatmul.bf16.gmra.mxu0 %v1958
        %v2107 = vpop.f32.mrf.mxu0
        %v2108 = vadd.f32 0.0, %v2107
        %v2109 = vpop.f32.mrf.mxu0
        %v2110 = vadd.f32 0.0, %v2109
        %2111 = vdwg.mxu0
        %v2112 = vadd.f32 %v1652, %v2033
        %v2113 = vadd.f32 %v1654, %v2035
        %v2114 = vadd.f32 %v1657, %v2038
        %v2115 = vadd.f32 %v1659, %v2040
        %v2116 = vadd.f32 %v1662, %v2043
        %v2117 = vadd.f32 %v1664, %v2045
        %v2118 = vadd.f32 %v1667, %v2048
        %v2119 = vadd.f32 %v1669, %v2050
        %v2120 = vadd.f32 %v1672, %v2053
        %v2121 = vadd.f32 %v1674, %v2055
        %v2122 = vadd.f32 %v1677, %v2058
        %v2123 = vadd.f32 %v1679, %v2060
        %v2124 = vadd.f32 %v1682, %v2063
        %v2125 = vadd.f32 %v1684, %v2065
        %v2126 = vadd.f32 %v1687, %v2068
        %v2127 = vadd.f32 %v1689, %v2070
        %v2128 = vadd.f32 %v1692, %v2073
        %v2129 = vadd.f32 %v1694, %v2075
        %v2130 = vadd.f32 %v1697, %v2078
        %v2131 = vadd.f32 %v1699, %v2080
        %v2132 = vadd.f32 %v1702, %v2083
        %v2133 = vadd.f32 %v1704, %v2085
        %v2134 = vadd.f32 %v1707, %v2088
        %v2135 = vadd.f32 %v1709, %v2090
        %v2136 = vadd.f32 %v1712, %v2093
        %v2137 = vadd.f32 %v1714, %v2095
        %v2138 = vadd.f32 %v1717, %v2098
        %v2139 = vadd.f32 %v1719, %v2100
        %v2140 = vadd.f32 %v1722, %v2103
        %v2141 = vadd.f32 %v1724, %v2105
        %v2142 = vadd.f32 %v1727, %v2108
        %v2143 = vadd.f32 %v1729, %v2110
        %v2144 = vld [vmem:[%s259] sm:$0xf]
        %v2145 = vld [vmem:[%s259 + $0x4] sm:$0xf]
        %v2146 = vld [vmem:[%s259 + $0xc] sm:$0xf]
        %v2147 = vld [vmem:[%s259 + $0x10] sm:$0xf]
        %v2148 = vld [vmem:[%s259 + $0x18] sm:$0xf]
        %v2149 = vld [vmem:[%s259 + $0x1c] sm:$0xf]
        %v2150 = vld [vmem:[%s259 + $0x24] sm:$0xf]
        %v2151 = vld [vmem:[%s259 + $0x28] sm:$0xf]
        %v2152 = vld [vmem:[%s259 + $0x30] sm:$0xf]
        %v2153 = vld [vmem:[%s259 + $0x34] sm:$0xf]
        %v2154 = vld [vmem:[%s259 + $0x3c] sm:$0xf]
        %v2155 = vld [vmem:[%s259 + $0x40] sm:$0xf]
        %v2156 = vld [vmem:[%s259 + $0x48] sm:$0xf]
        %v2157 = vld [vmem:[%s259 + $0x4c] sm:$0xf]
        %v2158 = vld [vmem:[%s259 + $0x54] sm:$0xf]
        %v2159 = vld [vmem:[%s259 + $0x58] sm:$0xf]
        %v2160 = vld [vmem:[%s259 + $0x60] sm:$0xf]
        %v2161 = vld [vmem:[%s259 + $0x64] sm:$0xf]
        %v2162 = vld [vmem:[%s259 + $0x6c] sm:$0xf]
        %v2163 = vld [vmem:[%s259 + $0x70] sm:$0xf]
        %v2164 = vld [vmem:[%s259 + $0x78] sm:$0xf]
        %v2165 = vld [vmem:[%s259 + $0x7c] sm:$0xf]
        %v2166 = vld [vmem:[%s259 + $0x84] sm:$0xf]
        %v2167 = vld [vmem:[%s259 + $0x88] sm:$0xf]
        %v2168 = vld [vmem:[%s259 + $0x90] sm:$0xf]
        %v2169 = vld [vmem:[%s259 + $0x94] sm:$0xf]
        %v2170 = vld [vmem:[%s259 + $0x9c] sm:$0xf]
        %v2171 = vld [vmem:[%s259 + $0xa0] sm:$0xf]
        %v2172 = vld [vmem:[%s259 + $0xa8] sm:$0xf]
        %v2173 = vld [vmem:[%s259 + $0xac] sm:$0xf]
        %v2174 = vld [vmem:[%s259 + $0xb4] sm:$0xf]
        %v2175 = vld [vmem:[%s259 + $0xb8] sm:$0xf]
        %s2176 = scalar_lea.vmem [#allocation6], 192
        %v2177 = vld [vmem:[%s2176] sm:$0xf]
        %v2178 = vld [vmem:[%s2176 + $0x4] sm:$0xf]
        %v2179 = vld [vmem:[%s2176 + $0x8] sm:$0xf]
        %v2180 = vld [vmem:[%s2176 + $0xc] sm:$0xf]
        %v2181 = vld [vmem:[%s2176 + $0x10] sm:$0xf]
        %v2182 = vld [vmem:[%s2176 + $0x14] sm:$0xf]
        %v2183 = vld [vmem:[%s2176 + $0x18] sm:$0xf]
        %v2184 = vld [vmem:[%s2176 + $0x1c] sm:$0xf]
        %v2185 = vld [vmem:[%s2176 + $0x20] sm:$0xf]
        %v2186 = vld [vmem:[%s2176 + $0x24] sm:$0xf]
        %v2187 = vld [vmem:[%s2176 + $0x28] sm:$0xf]
        %v2188 = vld [vmem:[%s2176 + $0x2c] sm:$0xf]
        %v2189 = vld [vmem:[%s2176 + $0x30] sm:$0xf]
        %v2190 = vld [vmem:[%s2176 + $0x34] sm:$0xf]
        %v2191 = vld [vmem:[%s2176 + $0x38] sm:$0xf]
        %v2192 = vld [vmem:[%s2176 + $0x3c] sm:$0xf]
        %v2225 = vunpack.c.l.b16 %v2144
        %v2226 = vunpack.c.l.b16 %v2145
        %v2227 = vunpack.c.l.b16 %v2146
        %v2228 = vunpack.c.l.b16 %v2147
        %v2229 = vunpack.c.l.b16 %v2148
        %v2230 = vunpack.c.l.b16 %v2149
        %v2231 = vunpack.c.l.b16 %v2150
        %v2232 = vunpack.c.l.b16 %v2151
        %v2233 = vunpack.c.l.b16 %v2152
        %v2234 = vunpack.c.l.b16 %v2153
        %v2235 = vunpack.c.l.b16 %v2154
        %v2236 = vunpack.c.l.b16 %v2155
        %v2237 = vunpack.c.l.b16 %v2156
        %v2238 = vunpack.c.l.b16 %v2157
        %v2239 = vunpack.c.l.b16 %v2158
        %v2240 = vunpack.c.l.b16 %v2159
        %v2241 = vunpack.c.l.b16 %v2160
        %v2242 = vunpack.c.l.b16 %v2161
        %v2243 = vunpack.c.l.b16 %v2162
        %v2244 = vunpack.c.l.b16 %v2163
        %v2245 = vunpack.c.l.b16 %v2164
        %v2246 = vunpack.c.l.b16 %v2165
        %v2247 = vunpack.c.l.b16 %v2166
        %v2248 = vunpack.c.l.b16 %v2167
        %v2249 = vunpack.c.l.b16 %v2168
        %v2250 = vunpack.c.l.b16 %v2169
        %v2251 = vunpack.c.l.b16 %v2170
        %v2252 = vunpack.c.l.b16 %v2171
        %v2253 = vunpack.c.l.b16 %v2172
        %v2254 = vunpack.c.l.b16 %v2173
        %v2255 = vunpack.c.l.b16 %v2174
        %v2256 = vunpack.c.l.b16 %v2175
        %v2257 = vpack.c.b16 %v2226, %v2225
        %v2258 = vpack.c.b16 %v2228, %v2227
        %v2259 = vpack.c.b16 %v2230, %v2229
        %v2260 = vpack.c.b16 %v2232, %v2231
        %v2261 = vpack.c.b16 %v2234, %v2233
        %v2262 = vpack.c.b16 %v2236, %v2235
        %v2263 = vpack.c.b16 %v2238, %v2237
        %v2264 = vpack.c.b16 %v2240, %v2239
        %v2265 = vpack.c.b16 %v2242, %v2241
        %v2266 = vpack.c.b16 %v2244, %v2243
        %v2267 = vpack.c.b16 %v2246, %v2245
        %v2268 = vpack.c.b16 %v2248, %v2247
        %v2269 = vpack.c.b16 %v2250, %v2249
        %v2270 = vpack.c.b16 %v2252, %v2251
        %v2271 = vpack.c.b16 %v2254, %v2253
        %v2272 = vpack.c.b16 %v2256, %v2255
        %v2305 = vunpack.c.l.b16 %v2177
        %v2306 = vunpack.c.l.b16 %v2178
        %v2307 = vunpack.c.l.b16 %v2179
        %v2308 = vunpack.c.l.b16 %v2180
        %v2309 = vunpack.c.l.b16 %v2181
        %v2310 = vunpack.c.l.b16 %v2182
        %v2311 = vunpack.c.l.b16 %v2183
        %v2312 = vunpack.c.l.b16 %v2184
        %v2313 = vunpack.c.l.b16 %v2185
        %v2314 = vunpack.c.l.b16 %v2186
        %v2315 = vunpack.c.l.b16 %v2187
        %v2316 = vunpack.c.l.b16 %v2188
        %v2317 = vunpack.c.l.b16 %v2189
        %v2318 = vunpack.c.l.b16 %v2190
        %v2319 = vunpack.c.l.b16 %v2191
        %v2320 = vunpack.c.l.b16 %v2192
        %v2321 = vpack.c.b16 %v2306, %v2305
        %v2322 = vpack.c.b16 %v2308, %v2307
        %v2323 = vpack.c.b16 %v2310, %v2309
        %v2324 = vpack.c.b16 %v2312, %v2311
        %v2325 = vpack.c.b16 %v2314, %v2313
        %v2326 = vpack.c.b16 %v2316, %v2315
        %v2327 = vpack.c.b16 %v2318, %v2317
        %v2328 = vpack.c.b16 %v2320, %v2319
        %2337 = vmatpush.bf16.msra.mxu0 %v2328
        %2338 = vmatpush.bf16.msra.mxu0 %v2327
        %2339 = vmatpush.bf16.msra.mxu0 %v2326
        %2340 = vmatpush.bf16.msra.mxu0 %v2325
        %2341 = vmatpush.bf16.msra.mxu0 %v2324
        %2342 = vmatpush.bf16.msra.mxu0 %v2323
        %2343 = vmatpush.bf16.msra.mxu0 %v2322
        %2344 = vmatpush.bf16.msra.mxu0 %v2321
        %2345 = vmatmul.bf16.gmra.mxu0 %v2257
        %v2346 = vpop.f32.mrf.mxu0
        %v2347 = vadd.f32 0.0, %v2346
        %v2348 = vpop.f32.mrf.mxu0
        %v2349 = vadd.f32 0.0, %v2348
        %2350 = vmatmul.bf16.gmra.mxu0 %v2258
        %v2351 = vpop.f32.mrf.mxu0
        %v2352 = vadd.f32 0.0, %v2351
        %v2353 = vpop.f32.mrf.mxu0
        %v2354 = vadd.f32 0.0, %v2353
        %2355 = vmatmul.bf16.gmra.mxu0 %v2259
        %v2356 = vpop.f32.mrf.mxu0
        %v2357 = vadd.f32 0.0, %v2356
        %v2358 = vpop.f32.mrf.mxu0
        %v2359 = vadd.f32 0.0, %v2358
        %2360 = vmatmul.bf16.gmra.mxu0 %v2260
        %v2361 = vpop.f32.mrf.mxu0
        %v2362 = vadd.f32 0.0, %v2361
        %v2363 = vpop.f32.mrf.mxu0
        %v2364 = vadd.f32 0.0, %v2363
        %2365 = vmatmul.bf16.gmra.mxu0 %v2261
        %v2366 = vpop.f32.mrf.mxu0
        %v2367 = vadd.f32 0.0, %v2366
        %v2368 = vpop.f32.mrf.mxu0
        %v2369 = vadd.f32 0.0, %v2368
        %2370 = vmatmul.bf16.gmra.mxu0 %v2262
        %v2371 = vpop.f32.mrf.mxu0
        %v2372 = vadd.f32 0.0, %v2371
        %v2373 = vpop.f32.mrf.mxu0
        %v2374 = vadd.f32 0.0, %v2373
        %2375 = vmatmul.bf16.gmra.mxu0 %v2263
        %v2376 = vpop.f32.mrf.mxu0
        %v2377 = vadd.f32 0.0, %v2376
        %v2378 = vpop.f32.mrf.mxu0
        %v2379 = vadd.f32 0.0, %v2378
        %2380 = vmatmul.bf16.gmra.mxu0 %v2264
        %v2381 = vpop.f32.mrf.mxu0
        %v2382 = vadd.f32 0.0, %v2381
        %v2383 = vpop.f32.mrf.mxu0
        %v2384 = vadd.f32 0.0, %v2383
        %2385 = vmatmul.bf16.gmra.mxu0 %v2265
        %v2386 = vpop.f32.mrf.mxu0
        %v2387 = vadd.f32 0.0, %v2386
        %v2388 = vpop.f32.mrf.mxu0
        %v2389 = vadd.f32 0.0, %v2388
        %2390 = vmatmul.bf16.gmra.mxu0 %v2266
        %v2391 = vpop.f32.mrf.mxu0
        %v2392 = vadd.f32 0.0, %v2391
        %v2393 = vpop.f32.mrf.mxu0
        %v2394 = vadd.f32 0.0, %v2393
        %2395 = vmatmul.bf16.gmra.mxu0 %v2267
        %v2396 = vpop.f32.mrf.mxu0
        %v2397 = vadd.f32 0.0, %v2396
        %v2398 = vpop.f32.mrf.mxu0
        %v2399 = vadd.f32 0.0, %v2398
        %2400 = vmatmul.bf16.gmra.mxu0 %v2268
        %v2401 = vpop.f32.mrf.mxu0
        %v2402 = vadd.f32 0.0, %v2401
        %v2403 = vpop.f32.mrf.mxu0
        %v2404 = vadd.f32 0.0, %v2403
        %2405 = vmatmul.bf16.gmra.mxu0 %v2269
        %v2406 = vpop.f32.mrf.mxu0
        %v2407 = vadd.f32 0.0, %v2406
        %v2408 = vpop.f32.mrf.mxu0
        %v2409 = vadd.f32 0.0, %v2408
        %2410 = vmatmul.bf16.gmra.mxu0 %v2270
        %v2411 = vpop.f32.mrf.mxu0
        %v2412 = vadd.f32 0.0, %v2411
        %v2413 = vpop.f32.mrf.mxu0
        %v2414 = vadd.f32 0.0, %v2413
        %2415 = vmatmul.bf16.gmra.mxu0 %v2271
        %v2416 = vpop.f32.mrf.mxu0
        %v2417 = vadd.f32 0.0, %v2416
        %v2418 = vpop.f32.mrf.mxu0
        %v2419 = vadd.f32 0.0, %v2418
        %2420 = vmatmul.bf16.gmra.mxu0 %v2272
        %v2421 = vpop.f32.mrf.mxu0
        %v2422 = vadd.f32 0.0, %v2421
        %v2423 = vpop.f32.mrf.mxu0
        %v2424 = vadd.f32 0.0, %v2423
        %2425 = vdwg.mxu0
        %v2426 = vadd.f32 %v2112, %v2347
        %v2427 = vadd.f32 %v2113, %v2349
        %v2428 = vadd.f32 %v2114, %v2352
        %v2429 = vadd.f32 %v2115, %v2354
        %v2430 = vadd.f32 %v2116, %v2357
        %v2431 = vadd.f32 %v2117, %v2359
        %v2432 = vadd.f32 %v2118, %v2362
        %v2433 = vadd.f32 %v2119, %v2364
        %v2434 = vadd.f32 %v2120, %v2367
        %v2435 = vadd.f32 %v2121, %v2369
        %v2436 = vadd.f32 %v2122, %v2372
        %v2437 = vadd.f32 %v2123, %v2374
        %v2438 = vadd.f32 %v2124, %v2377
        %v2439 = vadd.f32 %v2125, %v2379
        %v2440 = vadd.f32 %v2126, %v2382
        %v2441 = vadd.f32 %v2127, %v2384
        %v2442 = vadd.f32 %v2128, %v2387
        %v2443 = vadd.f32 %v2129, %v2389
        %v2444 = vadd.f32 %v2130, %v2392
        %v2445 = vadd.f32 %v2131, %v2394
        %v2446 = vadd.f32 %v2132, %v2397
        %v2447 = vadd.f32 %v2133, %v2399
        %v2448 = vadd.f32 %v2134, %v2402
        %v2449 = vadd.f32 %v2135, %v2404
        %v2450 = vadd.f32 %v2136, %v2407
        %v2451 = vadd.f32 %v2137, %v2409
        %v2452 = vadd.f32 %v2138, %v2412
        %v2453 = vadd.f32 %v2139, %v2414
        %v2454 = vadd.f32 %v2140, %v2417
        %v2455 = vadd.f32 %v2141, %v2419
        %v2456 = vadd.f32 %v2142, %v2422
        %v2457 = vadd.f32 %v2143, %v2424
        %v2458 = vld [vmem:[%s259] sm:$0xf]
        %v2459 = vld [vmem:[%s259 + $0x4] sm:$0xf]
        %v2460 = vld [vmem:[%s259 + $0x8] sm:$0x1]
        %v2461 = vld [vmem:[%s259 + $0xc] sm:$0xf]
        %v2462 = vld [vmem:[%s259 + $0x10] sm:$0xf]
        %v2463 = vld [vmem:[%s259 + $0x14] sm:$0x1]
        %v2464 = vld [vmem:[%s259 + $0x18] sm:$0xf]
        %v2465 = vld [vmem:[%s259 + $0x1c] sm:$0xf]
        %v2466 = vld [vmem:[%s259 + $0x20] sm:$0x1]
        %v2467 = vld [vmem:[%s259 + $0x24] sm:$0xf]
        %v2468 = vld [vmem:[%s259 + $0x28] sm:$0xf]
        %v2469 = vld [vmem:[%s259 + $0x2c] sm:$0x1]
        %v2470 = vld [vmem:[%s259 + $0x30] sm:$0xf]
        %v2471 = vld [vmem:[%s259 + $0x34] sm:$0xf]
        %v2472 = vld [vmem:[%s259 + $0x38] sm:$0x1]
        %v2473 = vld [vmem:[%s259 + $0x3c] sm:$0xf]
        %v2474 = vld [vmem:[%s259 + $0x40] sm:$0xf]
        %v2475 = vld [vmem:[%s259 + $0x44] sm:$0x1]
        %v2476 = vld [vmem:[%s259 + $0x48] sm:$0xf]
        %v2477 = vld [vmem:[%s259 + $0x4c] sm:$0xf]
        %v2478 = vld [vmem:[%s259 + $0x50] sm:$0x1]
        %v2479 = vld [vmem:[%s259 + $0x54] sm:$0xf]
        %v2480 = vld [vmem:[%s259 + $0x58] sm:$0xf]
        %v2481 = vld [vmem:[%s259 + $0x5c] sm:$0x1]
        %v2482 = vld [vmem:[%s259 + $0x60] sm:$0xf]
        %v2483 = vld [vmem:[%s259 + $0x64] sm:$0xf]
        %v2484 = vld [vmem:[%s259 + $0x68] sm:$0x1]
        %v2485 = vld [vmem:[%s259 + $0x6c] sm:$0xf]
        %v2486 = vld [vmem:[%s259 + $0x70] sm:$0xf]
        %v2487 = vld [vmem:[%s259 + $0x74] sm:$0x1]
        %v2488 = vld [vmem:[%s259 + $0x78] sm:$0xf]
        %v2489 = vld [vmem:[%s259 + $0x7c] sm:$0xf]
        %v2490 = vld [vmem:[%s259 + $0x80] sm:$0x1]
        %v2491 = vld [vmem:[%s259 + $0x84] sm:$0xf]
        %v2492 = vld [vmem:[%s259 + $0x88] sm:$0xf]
        %v2493 = vld [vmem:[%s259 + $0x8c] sm:$0x1]
        %v2494 = vld [vmem:[%s259 + $0x90] sm:$0xf]
        %v2495 = vld [vmem:[%s259 + $0x94] sm:$0xf]
        %v2496 = vld [vmem:[%s259 + $0x98] sm:$0x1]
        %v2497 = vld [vmem:[%s259 + $0x9c] sm:$0xf]
        %v2498 = vld [vmem:[%s259 + $0xa0] sm:$0xf]
        %v2499 = vld [vmem:[%s259 + $0xa4] sm:$0x1]
        %v2500 = vld [vmem:[%s259 + $0xa8] sm:$0xf]
        %v2501 = vld [vmem:[%s259 + $0xac] sm:$0xf]
        %v2502 = vld [vmem:[%s259 + $0xb0] sm:$0x1]
        %v2503 = vld [vmem:[%s259 + $0xb4] sm:$0xf]
        %v2504 = vld [vmem:[%s259 + $0xb8] sm:$0xf]
        %v2505 = vld [vmem:[%s259 + $0xbc] sm:$0x1]
        %v2507 = vshrl.u32 %v2458, 16
        %v2509 = vrot.slane %v2507, 4
        %v2510 = vshll.u32 %v2458, 16
        %v2512 = vrot.slane %v2510, 5
        %v2513 = vor.u32 %v2509, %v2512
        %v2514 = vrot.slane %v2513, 4
        %v2516 = vshll.u32 %v2459, 16
        %v2518 = vrot.slane %v2516, 5
        %v2519 = vsel %vm895, %v2514, %v2518
        %v2520 = vshrl.u32 %v2459, 16
        %v2522 = vrot.slane %v2520, 4
        %v2523 = vor.u32 %v2522, %v2518
        %v2524 = vrot.slane %v2523, 4
        %v2526 = vshll.u32 %v2460, 16
        %v2528 = vrot.slane %v2526, 5
        %v2529 = vsel %vm895, %v2524, %v2528
        %v2531 = vshrl.u32 %v2461, 16
        %v2533 = vrot.slane %v2531, 4
        %v2534 = vshll.u32 %v2461, 16
        %v2536 = vrot.slane %v2534, 5
        %v2537 = vor.u32 %v2533, %v2536
        %v2538 = vrot.slane %v2537, 4
        %v2540 = vshll.u32 %v2462, 16
        %v2542 = vrot.slane %v2540, 5
        %v2543 = vsel %vm895, %v2538, %v2542
        %v2544 = vshrl.u32 %v2462, 16
        %v2546 = vrot.slane %v2544, 4
        %v2547 = vor.u32 %v2546, %v2542
        %v2548 = vrot.slane %v2547, 4
        %v2550 = vshll.u32 %v2463, 16
        %v2552 = vrot.slane %v2550, 5
        %v2553 = vsel %vm895, %v2548, %v2552
        %v2555 = vshrl.u32 %v2464, 16
        %v2557 = vrot.slane %v2555, 4
        %v2558 = vshll.u32 %v2464, 16
        %v2560 = vrot.slane %v2558, 5
        %v2561 = vor.u32 %v2557, %v2560
        %v2562 = vrot.slane %v2561, 4
        %v2564 = vshll.u32 %v2465, 16
        %v2566 = vrot.slane %v2564, 5
        %v2567 = vsel %vm895, %v2562, %v2566
        %v2568 = vshrl.u32 %v2465, 16
        %v2570 = vrot.slane %v2568, 4
        %v2571 = vor.u32 %v2570, %v2566
        %v2572 = vrot.slane %v2571, 4
        %v2574 = vshll.u32 %v2466, 16
        %v2576 = vrot.slane %v2574, 5
        %v2577 = vsel %vm895, %v2572, %v2576
        %v2579 = vshrl.u32 %v2467, 16
        %v2581 = vrot.slane %v2579, 4
        %v2582 = vshll.u32 %v2467, 16
        %v2584 = vrot.slane %v2582, 5
        %v2585 = vor.u32 %v2581, %v2584
        %v2586 = vrot.slane %v2585, 4
        %v2588 = vshll.u32 %v2468, 16
        %v2590 = vrot.slane %v2588, 5
        %v2591 = vsel %vm895, %v2586, %v2590
        %v2592 = vshrl.u32 %v2468, 16
        %v2594 = vrot.slane %v2592, 4
        %v2595 = vor.u32 %v2594, %v2590
        %v2596 = vrot.slane %v2595, 4
        %v2598 = vshll.u32 %v2469, 16
        %v2600 = vrot.slane %v2598, 5
        %v2601 = vsel %vm895, %v2596, %v2600
        %v2603 = vshrl.u32 %v2470, 16
        %v2605 = vrot.slane %v2603, 4
        %v2606 = vshll.u32 %v2470, 16
        %v2608 = vrot.slane %v2606, 5
        %v2609 = vor.u32 %v2605, %v2608
        %v2610 = vrot.slane %v2609, 4
        %v2612 = vshll.u32 %v2471, 16
        %v2614 = vrot.slane %v2612, 5
        %v2615 = vsel %vm895, %v2610, %v2614
        %v2616 = vshrl.u32 %v2471, 16
        %v2618 = vrot.slane %v2616, 4
        %v2619 = vor.u32 %v2618, %v2614
        %v2620 = vrot.slane %v2619, 4
        %v2622 = vshll.u32 %v2472, 16
        %v2624 = vrot.slane %v2622, 5
        %v2625 = vsel %vm895, %v2620, %v2624
        %v2627 = vshrl.u32 %v2473, 16
        %v2629 = vrot.slane %v2627, 4
        %v2630 = vshll.u32 %v2473, 16
        %v2632 = vrot.slane %v2630, 5
        %v2633 = vor.u32 %v2629, %v2632
        %v2634 = vrot.slane %v2633, 4
        %v2636 = vshll.u32 %v2474, 16
        %v2638 = vrot.slane %v2636, 5
        %v2639 = vsel %vm895, %v2634, %v2638
        %v2640 = vshrl.u32 %v2474, 16
        %v2642 = vrot.slane %v2640, 4
        %v2643 = vor.u32 %v2642, %v2638
        %v2644 = vrot.slane %v2643, 4
        %v2646 = vshll.u32 %v2475, 16
        %v2648 = vrot.slane %v2646, 5
        %v2649 = vsel %vm895, %v2644, %v2648
        %v2651 = vshrl.u32 %v2476, 16
        %v2653 = vrot.slane %v2651, 4
        %v2654 = vshll.u32 %v2476, 16
        %v2656 = vrot.slane %v2654, 5
        %v2657 = vor.u32 %v2653, %v2656
        %v2658 = vrot.slane %v2657, 4
        %v2660 = vshll.u32 %v2477, 16
        %v2662 = vrot.slane %v2660, 5
        %v2663 = vsel %vm895, %v2658, %v2662
        %v2664 = vshrl.u32 %v2477, 16
        %v2666 = vrot.slane %v2664, 4
        %v2667 = vor.u32 %v2666, %v2662
        %v2668 = vrot.slane %v2667, 4
        %v2670 = vshll.u32 %v2478, 16
        %v2672 = vrot.slane %v2670, 5
        %v2673 = vsel %vm895, %v2668, %v2672
        %v2675 = vshrl.u32 %v2479, 16
        %v2677 = vrot.slane %v2675, 4
        %v2678 = vshll.u32 %v2479, 16
        %v2680 = vrot.slane %v2678, 5
        %v2681 = vor.u32 %v2677, %v2680
        %v2682 = vrot.slane %v2681, 4
        %v2684 = vshll.u32 %v2480, 16
        %v2686 = vrot.slane %v2684, 5
        %v2687 = vsel %vm895, %v2682, %v2686
        %v2688 = vshrl.u32 %v2480, 16
        %v2690 = vrot.slane %v2688, 4
        %v2691 = vor.u32 %v2690, %v2686
        %v2692 = vrot.slane %v2691, 4
        %v2694 = vshll.u32 %v2481, 16
        %v2696 = vrot.slane %v2694, 5
        %v2697 = vsel %vm895, %v2692, %v2696
        %v2699 = vshrl.u32 %v2482, 16
        %v2701 = vrot.slane %v2699, 4
        %v2702 = vshll.u32 %v2482, 16
        %v2704 = vrot.slane %v2702, 5
        %v2705 = vor.u32 %v2701, %v2704
        %v2706 = vrot.slane %v2705, 4
        %v2708 = vshll.u32 %v2483, 16
        %v2710 = vrot.slane %v2708, 5
        %v2711 = vsel %vm895, %v2706, %v2710
        %v2712 = vshrl.u32 %v2483, 16
        %v2714 = vrot.slane %v2712, 4
        %v2715 = vor.u32 %v2714, %v2710
        %v2716 = vrot.slane %v2715, 4
        %v2718 = vshll.u32 %v2484, 16
        %v2720 = vrot.slane %v2718, 5
        %v2721 = vsel %vm895, %v2716, %v2720
        %v2723 = vshrl.u32 %v2485, 16
        %v2725 = vrot.slane %v2723, 4
        %v2726 = vshll.u32 %v2485, 16
        %v2728 = vrot.slane %v2726, 5
        %v2729 = vor.u32 %v2725, %v2728
        %v2730 = vrot.slane %v2729, 4
        %v2732 = vshll.u32 %v2486, 16
        %v2734 = vrot.slane %v2732, 5
        %v2735 = vsel %vm895, %v2730, %v2734
        %v2736 = vshrl.u32 %v2486, 16
        %v2738 = vrot.slane %v2736, 4
        %v2739 = vor.u32 %v2738, %v2734
        %v2740 = vrot.slane %v2739, 4
        %v2742 = vshll.u32 %v2487, 16
        %v2744 = vrot.slane %v2742, 5
        %v2745 = vsel %vm895, %v2740, %v2744
        %v2747 = vshrl.u32 %v2488, 16
        %v2749 = vrot.slane %v2747, 4
        %v2750 = vshll.u32 %v2488, 16
        %v2752 = vrot.slane %v2750, 5
        %v2753 = vor.u32 %v2749, %v2752
        %v2754 = vrot.slane %v2753, 4
        %v2756 = vshll.u32 %v2489, 16
        %v2758 = vrot.slane %v2756, 5
        %v2759 = vsel %vm895, %v2754, %v2758
        %v2760 = vshrl.u32 %v2489, 16
        %v2762 = vrot.slane %v2760, 4
        %v2763 = vor.u32 %v2762, %v2758
        %v2764 = vrot.slane %v2763, 4
        %v2766 = vshll.u32 %v2490, 16
        %v2768 = vrot.slane %v2766, 5
        %v2769 = vsel %vm895, %v2764, %v2768
        %v2771 = vshrl.u32 %v2491, 16
        %v2773 = vrot.slane %v2771, 4
        %v2774 = vshll.u32 %v2491, 16
        %v2776 = vrot.slane %v2774, 5
        %v2777 = vor.u32 %v2773, %v2776
        %v2778 = vrot.slane %v2777, 4
        %v2780 = vshll.u32 %v2492, 16
        %v2782 = vrot.slane %v2780, 5
        %v2783 = vsel %vm895, %v2778, %v2782
        %v2784 = vshrl.u32 %v2492, 16
        %v2786 = vrot.slane %v2784, 4
        %v2787 = vor.u32 %v2786, %v2782
        %v2788 = vrot.slane %v2787, 4
        %v2790 = vshll.u32 %v2493, 16
        %v2792 = vrot.slane %v2790, 5
        %v2793 = vsel %vm895, %v2788, %v2792
        %v2795 = vshrl.u32 %v2494, 16
        %v2797 = vrot.slane %v2795, 4
        %v2798 = vshll.u32 %v2494, 16
        %v2800 = vrot.slane %v2798, 5
        %v2801 = vor.u32 %v2797, %v2800
        %v2802 = vrot.slane %v2801, 4
        %v2804 = vshll.u32 %v2495, 16
        %v2806 = vrot.slane %v2804, 5
        %v2807 = vsel %vm895, %v2802, %v2806
        %v2808 = vshrl.u32 %v2495, 16
        %v2810 = vrot.slane %v2808, 4
        %v2811 = vor.u32 %v2810, %v2806
        %v2812 = vrot.slane %v2811, 4
        %v2814 = vshll.u32 %v2496, 16
        %v2816 = vrot.slane %v2814, 5
        %v2817 = vsel %vm895, %v2812, %v2816
        %v2819 = vshrl.u32 %v2497, 16
        %v2821 = vrot.slane %v2819, 4
        %v2822 = vshll.u32 %v2497, 16
        %v2824 = vrot.slane %v2822, 5
        %v2825 = vor.u32 %v2821, %v2824
        %v2826 = vrot.slane %v2825, 4
        %v2828 = vshll.u32 %v2498, 16
        %v2830 = vrot.slane %v2828, 5
        %v2831 = vsel %vm895, %v2826, %v2830
        %v2832 = vshrl.u32 %v2498, 16
        %v2834 = vrot.slane %v2832, 4
        %v2835 = vor.u32 %v2834, %v2830
        %v2836 = vrot.slane %v2835, 4
        %v2838 = vshll.u32 %v2499, 16
        %v2840 = vrot.slane %v2838, 5
        %v2841 = vsel %vm895, %v2836, %v2840
        %v2843 = vshrl.u32 %v2500, 16
        %v2845 = vrot.slane %v2843, 4
        %v2846 = vshll.u32 %v2500, 16
        %v2848 = vrot.slane %v2846, 5
        %v2849 = vor.u32 %v2845, %v2848
        %v2850 = vrot.slane %v2849, 4
        %v2852 = vshll.u32 %v2501, 16
        %v2854 = vrot.slane %v2852, 5
        %v2855 = vsel %vm895, %v2850, %v2854
        %v2856 = vshrl.u32 %v2501, 16
        %v2858 = vrot.slane %v2856, 4
        %v2859 = vor.u32 %v2858, %v2854
        %v2860 = vrot.slane %v2859, 4
        %v2862 = vshll.u32 %v2502, 16
        %v2864 = vrot.slane %v2862, 5
        %v2865 = vsel %vm895, %v2860, %v2864
        %v2867 = vshrl.u32 %v2503, 16
        %v2869 = vrot.slane %v2867, 4
        %v2870 = vshll.u32 %v2503, 16
        %v2872 = vrot.slane %v2870, 5
        %v2873 = vor.u32 %v2869, %v2872
        %v2874 = vrot.slane %v2873, 4
        %v2876 = vshll.u32 %v2504, 16
        %v2878 = vrot.slane %v2876, 5
        %v2879 = vsel %vm895, %v2874, %v2878
        %v2880 = vshrl.u32 %v2504, 16
        %v2882 = vrot.slane %v2880, 4
        %v2883 = vor.u32 %v2882, %v2878
        %v2884 = vrot.slane %v2883, 4
        %v2886 = vshll.u32 %v2505, 16
        %v2888 = vrot.slane %v2886, 5
        %v2889 = vsel %vm895, %v2884, %v2888
        %s2890 = scalar_lea.vmem [#allocation6], 256
        %v2891 = vld [vmem:[%s2890] sm:$0xf]
        %v2892 = vld [vmem:[%s2890 + $0x4] sm:$0xf]
        %v2893 = vld [vmem:[%s2890 + $0x8] sm:$0xf]
        %v2894 = vld [vmem:[%s2890 + $0xc] sm:$0xf]
        %v2895 = vld [vmem:[%s2890 + $0x10] sm:$0xf]
        %v2896 = vld [vmem:[%s2890 + $0x14] sm:$0xf]
        %v2897 = vld [vmem:[%s2890 + $0x18] sm:$0xf]
        %v2898 = vld [vmem:[%s2890 + $0x1c] sm:$0xf]
        %v2899 = vld [vmem:[%s2890 + $0x20] sm:$0xf]
        %v2900 = vld [vmem:[%s2890 + $0x24] sm:$0xf]
        %v2901 = vld [vmem:[%s2890 + $0x28] sm:$0xf]
        %v2902 = vld [vmem:[%s2890 + $0x2c] sm:$0xf]
        %v2903 = vld [vmem:[%s2890 + $0x30] sm:$0xf]
        %v2904 = vld [vmem:[%s2890 + $0x34] sm:$0xf]
        %v2905 = vld [vmem:[%s2890 + $0x38] sm:$0xf]
        %v2906 = vld [vmem:[%s2890 + $0x3c] sm:$0xf]
        %v2907 = vunpack.c.l.b16 %v2519
        %v2908 = vunpack.c.l.b16 %v2529
        %v2909 = vunpack.c.l.b16 %v2543
        %v2910 = vunpack.c.l.b16 %v2553
        %v2911 = vunpack.c.l.b16 %v2567
        %v2912 = vunpack.c.l.b16 %v2577
        %v2913 = vunpack.c.l.b16 %v2591
        %v2914 = vunpack.c.l.b16 %v2601
        %v2915 = vunpack.c.l.b16 %v2615
        %v2916 = vunpack.c.l.b16 %v2625
        %v2917 = vunpack.c.l.b16 %v2639
        %v2918 = vunpack.c.l.b16 %v2649
        %v2919 = vunpack.c.l.b16 %v2663
        %v2920 = vunpack.c.l.b16 %v2673
        %v2921 = vunpack.c.l.b16 %v2687
        %v2922 = vunpack.c.l.b16 %v2697
        %v2923 = vunpack.c.l.b16 %v2711
        %v2924 = vunpack.c.l.b16 %v2721
        %v2925 = vunpack.c.l.b16 %v2735
        %v2926 = vunpack.c.l.b16 %v2745
        %v2927 = vunpack.c.l.b16 %v2759
        %v2928 = vunpack.c.l.b16 %v2769
        %v2929 = vunpack.c.l.b16 %v2783
        %v2930 = vunpack.c.l.b16 %v2793
        %v2931 = vunpack.c.l.b16 %v2807
        %v2932 = vunpack.c.l.b16 %v2817
        %v2933 = vunpack.c.l.b16 %v2831
        %v2934 = vunpack.c.l.b16 %v2841
        %v2935 = vunpack.c.l.b16 %v2855
        %v2936 = vunpack.c.l.b16 %v2865
        %v2937 = vunpack.c.l.b16 %v2879
        %v2938 = vunpack.c.l.b16 %v2889
        %v2939 = vpack.c.b16 %v2908, %v2907
        %v2940 = vpack.c.b16 %v2910, %v2909
        %v2941 = vpack.c.b16 %v2912, %v2911
        %v2942 = vpack.c.b16 %v2914, %v2913
        %v2943 = vpack.c.b16 %v2916, %v2915
        %v2944 = vpack.c.b16 %v2918, %v2917
        %v2945 = vpack.c.b16 %v2920, %v2919
        %v2946 = vpack.c.b16 %v2922, %v2921
        %v2947 = vpack.c.b16 %v2924, %v2923
        %v2948 = vpack.c.b16 %v2926, %v2925
        %v2949 = vpack.c.b16 %v2928, %v2927
        %v2950 = vpack.c.b16 %v2930, %v2929
        %v2951 = vpack.c.b16 %v2932, %v2931
        %v2952 = vpack.c.b16 %v2934, %v2933
        %v2953 = vpack.c.b16 %v2936, %v2935
        %v2954 = vpack.c.b16 %v2938, %v2937
        %v2987 = vunpack.c.l.b16 %v2891
        %v2988 = vunpack.c.l.b16 %v2892
        %v2989 = vunpack.c.l.b16 %v2893
        %v2990 = vunpack.c.l.b16 %v2894
        %v2991 = vunpack.c.l.b16 %v2895
        %v2992 = vunpack.c.l.b16 %v2896
        %v2993 = vunpack.c.l.b16 %v2897
        %v2994 = vunpack.c.l.b16 %v2898
        %v2995 = vunpack.c.l.b16 %v2899
        %v2996 = vunpack.c.l.b16 %v2900
        %v2997 = vunpack.c.l.b16 %v2901
        %v2998 = vunpack.c.l.b16 %v2902
        %v2999 = vunpack.c.l.b16 %v2903
        %v3000 = vunpack.c.l.b16 %v2904
        %v3001 = vunpack.c.l.b16 %v2905
        %v3002 = vunpack.c.l.b16 %v2906
        %v3003 = vpack.c.b16 %v2988, %v2987
        %v3004 = vpack.c.b16 %v2990, %v2989
        %v3005 = vpack.c.b16 %v2992, %v2991
        %v3006 = vpack.c.b16 %v2994, %v2993
        %v3007 = vpack.c.b16 %v2996, %v2995
        %v3008 = vpack.c.b16 %v2998, %v2997
        %v3009 = vpack.c.b16 %v3000, %v2999
        %v3010 = vpack.c.b16 %v3002, %v3001
        %3019 = vmatpush.bf16.msra.mxu0 %v3010
        %3020 = vmatpush.bf16.msra.mxu0 %v3009
        %3021 = vmatpush.bf16.msra.mxu0 %v3008
        %3022 = vmatpush.bf16.msra.mxu0 %v3007
        %3023 = vmatpush.bf16.msra.mxu0 %v3006
        %3024 = vmatpush.bf16.msra.mxu0 %v3005
        %3025 = vmatpush.bf16.msra.mxu0 %v3004
        %3026 = vmatpush.bf16.msra.mxu0 %v3003
        %3027 = vmatmul.bf16.gmra.mxu0 %v2939
        %v3028 = vpop.f32.mrf.mxu0
        %v3029 = vadd.f32 0.0, %v3028
        %v3030 = vpop.f32.mrf.mxu0
        %v3031 = vadd.f32 0.0, %v3030
        %3032 = vmatmul.bf16.gmra.mxu0 %v2940
        %v3033 = vpop.f32.mrf.mxu0
        %v3034 = vadd.f32 0.0, %v3033
        %v3035 = vpop.f32.mrf.mxu0
        %v3036 = vadd.f32 0.0, %v3035
        %3037 = vmatmul.bf16.gmra.mxu0 %v2941
        %v3038 = vpop.f32.mrf.mxu0
        %v3039 = vadd.f32 0.0, %v3038
        %v3040 = vpop.f32.mrf.mxu0
        %v3041 = vadd.f32 0.0, %v3040
        %3042 = vmatmul.bf16.gmra.mxu0 %v2942
        %v3043 = vpop.f32.mrf.mxu0
        %v3044 = vadd.f32 0.0, %v3043
        %v3045 = vpop.f32.mrf.mxu0
        %v3046 = vadd.f32 0.0, %v3045
        %3047 = vmatmul.bf16.gmra.mxu0 %v2943
        %v3048 = vpop.f32.mrf.mxu0
        %v3049 = vadd.f32 0.0, %v3048
        %v3050 = vpop.f32.mrf.mxu0
        %v3051 = vadd.f32 0.0, %v3050
        %3052 = vmatmul.bf16.gmra.mxu0 %v2944
        %v3053 = vpop.f32.mrf.mxu0
        %v3054 = vadd.f32 0.0, %v3053
        %v3055 = vpop.f32.mrf.mxu0
        %v3056 = vadd.f32 0.0, %v3055
        %3057 = vmatmul.bf16.gmra.mxu0 %v2945
        %v3058 = vpop.f32.mrf.mxu0
        %v3059 = vadd.f32 0.0, %v3058
        %v3060 = vpop.f32.mrf.mxu0
        %v3061 = vadd.f32 0.0, %v3060
        %3062 = vmatmul.bf16.gmra.mxu0 %v2946
        %v3063 = vpop.f32.mrf.mxu0
        %v3064 = vadd.f32 0.0, %v3063
        %v3065 = vpop.f32.mrf.mxu0
        %v3066 = vadd.f32 0.0, %v3065
        %3067 = vmatmul.bf16.gmra.mxu0 %v2947
        %v3068 = vpop.f32.mrf.mxu0
        %v3069 = vadd.f32 0.0, %v3068
        %v3070 = vpop.f32.mrf.mxu0
        %v3071 = vadd.f32 0.0, %v3070
        %3072 = vmatmul.bf16.gmra.mxu0 %v2948
        %v3073 = vpop.f32.mrf.mxu0
        %v3074 = vadd.f32 0.0, %v3073
        %v3075 = vpop.f32.mrf.mxu0
        %v3076 = vadd.f32 0.0, %v3075
        %3077 = vmatmul.bf16.gmra.mxu0 %v2949
        %v3078 = vpop.f32.mrf.mxu0
        %v3079 = vadd.f32 0.0, %v3078
        %v3080 = vpop.f32.mrf.mxu0
        %v3081 = vadd.f32 0.0, %v3080
        %3082 = vmatmul.bf16.gmra.mxu0 %v2950
        %v3083 = vpop.f32.mrf.mxu0
        %v3084 = vadd.f32 0.0, %v3083
        %v3085 = vpop.f32.mrf.mxu0
        %v3086 = vadd.f32 0.0, %v3085
        %3087 = vmatmul.bf16.gmra.mxu0 %v2951
        %v3088 = vpop.f32.mrf.mxu0
        %v3089 = vadd.f32 0.0, %v3088
        %v3090 = vpop.f32.mrf.mxu0
        %v3091 = vadd.f32 0.0, %v3090
        %3092 = vmatmul.bf16.gmra.mxu0 %v2952
        %v3093 = vpop.f32.mrf.mxu0
        %v3094 = vadd.f32 0.0, %v3093
        %v3095 = vpop.f32.mrf.mxu0
        %v3096 = vadd.f32 0.0, %v3095
        %3097 = vmatmul.bf16.gmra.mxu0 %v2953
        %v3098 = vpop.f32.mrf.mxu0
        %v3099 = vadd.f32 0.0, %v3098
        %v3100 = vpop.f32.mrf.mxu0
        %v3101 = vadd.f32 0.0, %v3100
        %3102 = vmatmul.bf16.gmra.mxu0 %v2954
        %v3103 = vpop.f32.mrf.mxu0
        %v3104 = vadd.f32 0.0, %v3103
        %v3105 = vpop.f32.mrf.mxu0
        %v3106 = vadd.f32 0.0, %v3105
        %3107 = vdwg.mxu0
        %v3108 = vadd.f32 %v2426, %v3029
        %v3109 = vadd.f32 %v2427, %v3031
        %v3110 = vadd.f32 %v2428, %v3034
        %v3111 = vadd.f32 %v2429, %v3036
        %v3112 = vadd.f32 %v2430, %v3039
        %v3113 = vadd.f32 %v2431, %v3041
        %v3114 = vadd.f32 %v2432, %v3044
        %v3115 = vadd.f32 %v2433, %v3046
        %v3116 = vadd.f32 %v2434, %v3049
        %v3117 = vadd.f32 %v2435, %v3051
        %v3118 = vadd.f32 %v2436, %v3054
        %v3119 = vadd.f32 %v2437, %v3056
        %v3120 = vadd.f32 %v2438, %v3059
        %v3121 = vadd.f32 %v2439, %v3061
        %v3122 = vadd.f32 %v2440, %v3064
        %v3123 = vadd.f32 %v2441, %v3066
        %v3124 = vadd.f32 %v2442, %v3069
        %v3125 = vadd.f32 %v2443, %v3071
        %v3126 = vadd.f32 %v2444, %v3074
        %v3127 = vadd.f32 %v2445, %v3076
        %v3128 = vadd.f32 %v2446, %v3079
        %v3129 = vadd.f32 %v2447, %v3081
        %v3130 = vadd.f32 %v2448, %v3084
        %v3131 = vadd.f32 %v2449, %v3086
        %v3132 = vadd.f32 %v2450, %v3089
        %v3133 = vadd.f32 %v2451, %v3091
        %v3134 = vadd.f32 %v2452, %v3094
        %v3135 = vadd.f32 %v2453, %v3096
        %v3136 = vadd.f32 %v2454, %v3099
        %v3137 = vadd.f32 %v2455, %v3101
        %v3138 = vadd.f32 %v2456, %v3104
        %v3139 = vadd.f32 %v2457, %v3106
        %v3140 = vld [vmem:[%s259] sm:$0xe]
        %v3141 = vld [vmem:[%s259 + $0xc] sm:$0xe]
        %v3142 = vld [vmem:[%s259 + $0x18] sm:$0xe]
        %v3143 = vld [vmem:[%s259 + $0x24] sm:$0xe]
        %v3144 = vld [vmem:[%s259 + $0x30] sm:$0xe]
        %v3145 = vld [vmem:[%s259 + $0x3c] sm:$0xe]
        %v3146 = vld [vmem:[%s259 + $0x48] sm:$0xe]
        %v3147 = vld [vmem:[%s259 + $0x54] sm:$0xe]
        %v3148 = vld [vmem:[%s259 + $0x60] sm:$0xe]
        %v3149 = vld [vmem:[%s259 + $0x6c] sm:$0xe]
        %v3150 = vld [vmem:[%s259 + $0x78] sm:$0xe]
        %v3151 = vld [vmem:[%s259 + $0x84] sm:$0xe]
        %v3152 = vld [vmem:[%s259 + $0x90] sm:$0xe]
        %v3153 = vld [vmem:[%s259 + $0x9c] sm:$0xe]
        %v3154 = vld [vmem:[%s259 + $0xa8] sm:$0xe]
        %v3155 = vld [vmem:[%s259 + $0xb4] sm:$0xe]
        %v3204 = vrot.slane %v3140, 5
        %v3205 = vrot.slane %v3204, 4
        %v3206 = vrot.slane %v2459, 5
        %v3207 = vsel %vm1781, %v3205, %v3206
        %v3208 = vrot.slane %v3206, 4
        %v3209 = vrot.slane %v2460, 5
        %v3210 = vsel %vm1781, %v3208, %v3209
        %v3211 = vrot.slane %v3141, 5
        %v3212 = vrot.slane %v3211, 4
        %v3213 = vrot.slane %v2462, 5
        %v3214 = vsel %vm1781, %v3212, %v3213
        %v3215 = vrot.slane %v3213, 4
        %v3216 = vrot.slane %v2463, 5
        %v3217 = vsel %vm1781, %v3215, %v3216
        %v3218 = vrot.slane %v3142, 5
        %v3219 = vrot.slane %v3218, 4
        %v3220 = vrot.slane %v2465, 5
        %v3221 = vsel %vm1781, %v3219, %v3220
        %v3222 = vrot.slane %v3220, 4
        %v3223 = vrot.slane %v2466, 5
        %v3224 = vsel %vm1781, %v3222, %v3223
        %v3225 = vrot.slane %v3143, 5
        %v3226 = vrot.slane %v3225, 4
        %v3227 = vrot.slane %v2468, 5
        %v3228 = vsel %vm1781, %v3226, %v3227
        %v3229 = vrot.slane %v3227, 4
        %v3230 = vrot.slane %v2469, 5
        %v3231 = vsel %vm1781, %v3229, %v3230
        %v3232 = vrot.slane %v3144, 5
        %v3233 = vrot.slane %v3232, 4
        %v3234 = vrot.slane %v2471, 5
        %v3235 = vsel %vm1781, %v3233, %v3234
        %v3236 = vrot.slane %v3234, 4
        %v3237 = vrot.slane %v2472, 5
        %v3238 = vsel %vm1781, %v3236, %v3237
        %v3239 = vrot.slane %v3145, 5
        %v3240 = vrot.slane %v3239, 4
        %v3241 = vrot.slane %v2474, 5
        %v3242 = vsel %vm1781, %v3240, %v3241
        %v3243 = vrot.slane %v3241, 4
        %v3244 = vrot.slane %v2475, 5
        %v3245 = vsel %vm1781, %v3243, %v3244
        %v3246 = vrot.slane %v3146, 5
        %v3247 = vrot.slane %v3246, 4
        %v3248 = vrot.slane %v2477, 5
        %v3249 = vsel %vm1781, %v3247, %v3248
        %v3250 = vrot.slane %v3248, 4
        %v3251 = vrot.slane %v2478, 5
        %v3252 = vsel %vm1781, %v3250, %v3251
        %v3253 = vrot.slane %v3147, 5
        %v3254 = vrot.slane %v3253, 4
        %v3255 = vrot.slane %v2480, 5
        %v3256 = vsel %vm1781, %v3254, %v3255
        %v3257 = vrot.slane %v3255, 4
        %v3258 = vrot.slane %v2481, 5
        %v3259 = vsel %vm1781, %v3257, %v3258
        %v3260 = vrot.slane %v3148, 5
        %v3261 = vrot.slane %v3260, 4
        %v3262 = vrot.slane %v2483, 5
        %v3263 = vsel %vm1781, %v3261, %v3262
        %v3264 = vrot.slane %v3262, 4
        %v3265 = vrot.slane %v2484, 5
        %v3266 = vsel %vm1781, %v3264, %v3265
        %v3267 = vrot.slane %v3149, 5
        %v3268 = vrot.slane %v3267, 4
        %v3269 = vrot.slane %v2486, 5
        %v3270 = vsel %vm1781, %v3268, %v3269
        %v3271 = vrot.slane %v3269, 4
        %v3272 = vrot.slane %v2487, 5
        %v3273 = vsel %vm1781, %v3271, %v3272
        %v3274 = vrot.slane %v3150, 5
        %v3275 = vrot.slane %v3274, 4
        %v3276 = vrot.slane %v2489, 5
        %v3277 = vsel %vm1781, %v3275, %v3276
        %v3278 = vrot.slane %v3276, 4
        %v3279 = vrot.slane %v2490, 5
        %v3280 = vsel %vm1781, %v3278, %v3279
        %v3281 = vrot.slane %v3151, 5
        %v3282 = vrot.slane %v3281, 4
        %v3283 = vrot.slane %v2492, 5
        %v3284 = vsel %vm1781, %v3282, %v3283
        %v3285 = vrot.slane %v3283, 4
        %v3286 = vrot.slane %v2493, 5
        %v3287 = vsel %vm1781, %v3285, %v3286
        %v3288 = vrot.slane %v3152, 5
        %v3289 = vrot.slane %v3288, 4
        %v3290 = vrot.slane %v2495, 5
        %v3291 = vsel %vm1781, %v3289, %v3290
        %v3292 = vrot.slane %v3290, 4
        %v3293 = vrot.slane %v2496, 5
        %v3294 = vsel %vm1781, %v3292, %v3293
        %v3295 = vrot.slane %v3153, 5
        %v3296 = vrot.slane %v3295, 4
        %v3297 = vrot.slane %v2498, 5
        %v3298 = vsel %vm1781, %v3296, %v3297
        %v3299 = vrot.slane %v3297, 4
        %v3300 = vrot.slane %v2499, 5
        %v3301 = vsel %vm1781, %v3299, %v3300
        %v3302 = vrot.slane %v3154, 5
        %v3303 = vrot.slane %v3302, 4
        %v3304 = vrot.slane %v2501, 5
        %v3305 = vsel %vm1781, %v3303, %v3304
        %v3306 = vrot.slane %v3304, 4
        %v3307 = vrot.slane %v2502, 5
        %v3308 = vsel %vm1781, %v3306, %v3307
        %v3309 = vrot.slane %v3155, 5
        %v3310 = vrot.slane %v3309, 4
        %v3311 = vrot.slane %v2504, 5
        %v3312 = vsel %vm1781, %v3310, %v3311
        %v3313 = vrot.slane %v3311, 4
        %v3314 = vrot.slane %v2505, 5
        %v3315 = vsel %vm1781, %v3313, %v3314
        %s3316 = scalar_lea.vmem [#allocation6], 320
        %v3317 = vld [vmem:[%s3316] sm:$0xf]
        %v3318 = vld [vmem:[%s3316 + $0x4] sm:$0xf]
        %v3319 = vld [vmem:[%s3316 + $0x8] sm:$0xf]
        %v3320 = vld [vmem:[%s3316 + $0xc] sm:$0xf]
        %v3321 = vld [vmem:[%s3316 + $0x10] sm:$0xf]
        %v3322 = vld [vmem:[%s3316 + $0x14] sm:$0xf]
        %v3323 = vld [vmem:[%s3316 + $0x18] sm:$0xf]
        %v3324 = vld [vmem:[%s3316 + $0x1c] sm:$0xf]
        %v3325 = vld [vmem:[%s3316 + $0x20] sm:$0xf]
        %v3326 = vld [vmem:[%s3316 + $0x24] sm:$0xf]
        %v3327 = vld [vmem:[%s3316 + $0x28] sm:$0xf]
        %v3328 = vld [vmem:[%s3316 + $0x2c] sm:$0xf]
        %v3329 = vld [vmem:[%s3316 + $0x30] sm:$0xf]
        %v3330 = vld [vmem:[%s3316 + $0x34] sm:$0xf]
        %v3331 = vld [vmem:[%s3316 + $0x38] sm:$0xf]
        %v3332 = vld [vmem:[%s3316 + $0x3c] sm:$0xf]
        %v3333 = vunpack.c.l.b16 %v3207
        %v3334 = vunpack.c.l.b16 %v3210
        %v3335 = vunpack.c.l.b16 %v3214
        %v3336 = vunpack.c.l.b16 %v3217
        %v3337 = vunpack.c.l.b16 %v3221
        %v3338 = vunpack.c.l.b16 %v3224
        %v3339 = vunpack.c.l.b16 %v3228
        %v3340 = vunpack.c.l.b16 %v3231
        %v3341 = vunpack.c.l.b16 %v3235
        %v3342 = vunpack.c.l.b16 %v3238
        %v3343 = vunpack.c.l.b16 %v3242
        %v3344 = vunpack.c.l.b16 %v3245
        %v3345 = vunpack.c.l.b16 %v3249
        %v3346 = vunpack.c.l.b16 %v3252
        %v3347 = vunpack.c.l.b16 %v3256
        %v3348 = vunpack.c.l.b16 %v3259
        %v3349 = vunpack.c.l.b16 %v3263
        %v3350 = vunpack.c.l.b16 %v3266
        %v3351 = vunpack.c.l.b16 %v3270
        %v3352 = vunpack.c.l.b16 %v3273
        %v3353 = vunpack.c.l.b16 %v3277
        %v3354 = vunpack.c.l.b16 %v3280
        %v3355 = vunpack.c.l.b16 %v3284
        %v3356 = vunpack.c.l.b16 %v3287
        %v3357 = vunpack.c.l.b16 %v3291
        %v3358 = vunpack.c.l.b16 %v3294
        %v3359 = vunpack.c.l.b16 %v3298
        %v3360 = vunpack.c.l.b16 %v3301
        %v3361 = vunpack.c.l.b16 %v3305
        %v3362 = vunpack.c.l.b16 %v3308
        %v3363 = vunpack.c.l.b16 %v3312
        %v3364 = vunpack.c.l.b16 %v3315
        %v3365 = vpack.c.b16 %v3334, %v3333
        %v3366 = vpack.c.b16 %v3336, %v3335
        %v3367 = vpack.c.b16 %v3338, %v3337
        %v3368 = vpack.c.b16 %v3340, %v3339
        %v3369 = vpack.c.b16 %v3342, %v3341
        %v3370 = vpack.c.b16 %v3344, %v3343
        %v3371 = vpack.c.b16 %v3346, %v3345
        %v3372 = vpack.c.b16 %v3348, %v3347
        %v3373 = vpack.c.b16 %v3350, %v3349
        %v3374 = vpack.c.b16 %v3352, %v3351
        %v3375 = vpack.c.b16 %v3354, %v3353
        %v3376 = vpack.c.b16 %v3356, %v3355
        %v3377 = vpack.c.b16 %v3358, %v3357
        %v3378 = vpack.c.b16 %v3360, %v3359
        %v3379 = vpack.c.b16 %v3362, %v3361
        %v3380 = vpack.c.b16 %v3364, %v3363
        %v3413 = vunpack.c.l.b16 %v3317
        %v3414 = vunpack.c.l.b16 %v3318
        %v3415 = vunpack.c.l.b16 %v3319
        %v3416 = vunpack.c.l.b16 %v3320
        %v3417 = vunpack.c.l.b16 %v3321
        %v3418 = vunpack.c.l.b16 %v3322
        %v3419 = vunpack.c.l.b16 %v3323
        %v3420 = vunpack.c.l.b16 %v3324
        %v3421 = vunpack.c.l.b16 %v3325
        %v3422 = vunpack.c.l.b16 %v3326
        %v3423 = vunpack.c.l.b16 %v3327
        %v3424 = vunpack.c.l.b16 %v3328
        %v3425 = vunpack.c.l.b16 %v3329
        %v3426 = vunpack.c.l.b16 %v3330
        %v3427 = vunpack.c.l.b16 %v3331
        %v3428 = vunpack.c.l.b16 %v3332
        %v3429 = vpack.c.b16 %v3414, %v3413
        %v3430 = vpack.c.b16 %v3416, %v3415
        %v3431 = vpack.c.b16 %v3418, %v3417
        %v3432 = vpack.c.b16 %v3420, %v3419
        %v3433 = vpack.c.b16 %v3422, %v3421
        %v3434 = vpack.c.b16 %v3424, %v3423
        %v3435 = vpack.c.b16 %v3426, %v3425
        %v3436 = vpack.c.b16 %v3428, %v3427
        %3445 = vmatpush.bf16.msra.mxu0 %v3436
        %3446 = vmatpush.bf16.msra.mxu0 %v3435
        %3447 = vmatpush.bf16.msra.mxu0 %v3434
        %3448 = vmatpush.bf16.msra.mxu0 %v3433
        %3449 = vmatpush.bf16.msra.mxu0 %v3432
        %3450 = vmatpush.bf16.msra.mxu0 %v3431
        %3451 = vmatpush.bf16.msra.mxu0 %v3430
        %3452 = vmatpush.bf16.msra.mxu0 %v3429
        %3453 = vmatmul.bf16.gmra.mxu0 %v3365
        %v3454 = vpop.f32.mrf.mxu0
        %v3455 = vadd.f32 0.0, %v3454
        %v3456 = vpop.f32.mrf.mxu0
        %v3457 = vadd.f32 0.0, %v3456
        %3458 = vmatmul.bf16.gmra.mxu0 %v3366
        %v3459 = vpop.f32.mrf.mxu0
        %v3460 = vadd.f32 0.0, %v3459
        %v3461 = vpop.f32.mrf.mxu0
        %v3462 = vadd.f32 0.0, %v3461
        %3463 = vmatmul.bf16.gmra.mxu0 %v3367
        %v3464 = vpop.f32.mrf.mxu0
        %v3465 = vadd.f32 0.0, %v3464
        %v3466 = vpop.f32.mrf.mxu0
        %v3467 = vadd.f32 0.0, %v3466
        %3468 = vmatmul.bf16.gmra.mxu0 %v3368
        %v3469 = vpop.f32.mrf.mxu0
        %v3470 = vadd.f32 0.0, %v3469
        %v3471 = vpop.f32.mrf.mxu0
        %v3472 = vadd.f32 0.0, %v3471
        %3473 = vmatmul.bf16.gmra.mxu0 %v3369
        %v3474 = vpop.f32.mrf.mxu0
        %v3475 = vadd.f32 0.0, %v3474
        %v3476 = vpop.f32.mrf.mxu0
        %v3477 = vadd.f32 0.0, %v3476
        %3478 = vmatmul.bf16.gmra.mxu0 %v3370
        %v3479 = vpop.f32.mrf.mxu0
        %v3480 = vadd.f32 0.0, %v3479
        %v3481 = vpop.f32.mrf.mxu0
        %v3482 = vadd.f32 0.0, %v3481
        %3483 = vmatmul.bf16.gmra.mxu0 %v3371
        %v3484 = vpop.f32.mrf.mxu0
        %v3485 = vadd.f32 0.0, %v3484
        %v3486 = vpop.f32.mrf.mxu0
        %v3487 = vadd.f32 0.0, %v3486
        %3488 = vmatmul.bf16.gmra.mxu0 %v3372
        %v3489 = vpop.f32.mrf.mxu0
        %v3490 = vadd.f32 0.0, %v3489
        %v3491 = vpop.f32.mrf.mxu0
        %v3492 = vadd.f32 0.0, %v3491
        %3493 = vmatmul.bf16.gmra.mxu0 %v3373
        %v3494 = vpop.f32.mrf.mxu0
        %v3495 = vadd.f32 0.0, %v3494
        %v3496 = vpop.f32.mrf.mxu0
        %v3497 = vadd.f32 0.0, %v3496
        %3498 = vmatmul.bf16.gmra.mxu0 %v3374
        %v3499 = vpop.f32.mrf.mxu0
        %v3500 = vadd.f32 0.0, %v3499
        %v3501 = vpop.f32.mrf.mxu0
        %v3502 = vadd.f32 0.0, %v3501
        %3503 = vmatmul.bf16.gmra.mxu0 %v3375
        %v3504 = vpop.f32.mrf.mxu0
        %v3505 = vadd.f32 0.0, %v3504
        %v3506 = vpop.f32.mrf.mxu0
        %v3507 = vadd.f32 0.0, %v3506
        %3508 = vmatmul.bf16.gmra.mxu0 %v3376
        %v3509 = vpop.f32.mrf.mxu0
        %v3510 = vadd.f32 0.0, %v3509
        %v3511 = vpop.f32.mrf.mxu0
        %v3512 = vadd.f32 0.0, %v3511
        %3513 = vmatmul.bf16.gmra.mxu0 %v3377
        %v3514 = vpop.f32.mrf.mxu0
        %v3515 = vadd.f32 0.0, %v3514
        %v3516 = vpop.f32.mrf.mxu0
        %v3517 = vadd.f32 0.0, %v3516
        %3518 = vmatmul.bf16.gmra.mxu0 %v3378
        %v3519 = vpop.f32.mrf.mxu0
        %v3520 = vadd.f32 0.0, %v3519
        %v3521 = vpop.f32.mrf.mxu0
        %v3522 = vadd.f32 0.0, %v3521
        %3523 = vmatmul.bf16.gmra.mxu0 %v3379
        %v3524 = vpop.f32.mrf.mxu0
        %v3525 = vadd.f32 0.0, %v3524
        %v3526 = vpop.f32.mrf.mxu0
        %v3527 = vadd.f32 0.0, %v3526
        %3528 = vmatmul.bf16.gmra.mxu0 %v3380
        %v3529 = vpop.f32.mrf.mxu0
        %v3530 = vadd.f32 0.0, %v3529
        %v3531 = vpop.f32.mrf.mxu0
        %v3532 = vadd.f32 0.0, %v3531
        %3533 = vdwg.mxu0
        %v3534 = vadd.f32 %v3108, %v3455
        %v3535 = vadd.f32 %v3109, %v3457
        %v3536 = vadd.f32 %v3110, %v3460
        %v3537 = vadd.f32 %v3111, %v3462
        %v3538 = vadd.f32 %v3112, %v3465
        %v3539 = vadd.f32 %v3113, %v3467
        %v3540 = vadd.f32 %v3114, %v3470
        %v3541 = vadd.f32 %v3115, %v3472
        %v3542 = vadd.f32 %v3116, %v3475
        %v3543 = vadd.f32 %v3117, %v3477
        %v3544 = vadd.f32 %v3118, %v3480
        %v3545 = vadd.f32 %v3119, %v3482
        %v3546 = vadd.f32 %v3120, %v3485
        %v3547 = vadd.f32 %v3121, %v3487
        %v3548 = vadd.f32 %v3122, %v3490
        %v3549 = vadd.f32 %v3123, %v3492
        %v3550 = vadd.f32 %v3124, %v3495
        %v3551 = vadd.f32 %v3125, %v3497
        %v3552 = vadd.f32 %v3126, %v3500
        %v3553 = vadd.f32 %v3127, %v3502
        %v3554 = vadd.f32 %v3128, %v3505
        %v3555 = vadd.f32 %v3129, %v3507
        %v3556 = vadd.f32 %v3130, %v3510
        %v3557 = vadd.f32 %v3131, %v3512
        %v3558 = vadd.f32 %v3132, %v3515
        %v3559 = vadd.f32 %v3133, %v3517
        %v3560 = vadd.f32 %v3134, %v3520
        %v3561 = vadd.f32 %v3135, %v3522
        %v3562 = vadd.f32 %v3136, %v3525
        %v3563 = vadd.f32 %v3137, %v3527
        %v3564 = vadd.f32 %v3138, %v3530
        %v3565 = vadd.f32 %v3139, %v3532
        %s3566 = scalar_lea.vmem [#allocation2], 24
        %v3567 = vld [vmem:[%s3566] sm:$0xf]
        %v3568 = vld [vmem:[%s3566 + $0x4] sm:$0xf]
        %v3569 = vld [vmem:[%s3566 + $0xc] sm:$0xf]
        %v3570 = vld [vmem:[%s3566 + $0x10] sm:$0xf]
        %v3571 = vld [vmem:[%s3566 + $0x18] sm:$0xf]
        %v3572 = vld [vmem:[%s3566 + $0x1c] sm:$0xf]
        %v3573 = vld [vmem:[%s3566 + $0x24] sm:$0xf]
        %v3574 = vld [vmem:[%s3566 + $0x28] sm:$0xf]
        %v3575 = vld [vmem:[%s3566 + $0x30] sm:$0xf]
        %v3576 = vld [vmem:[%s3566 + $0x34] sm:$0xf]
        %v3577 = vld [vmem:[%s3566 + $0x3c] sm:$0xf]
        %v3578 = vld [vmem:[%s3566 + $0x40] sm:$0xf]
        %v3579 = vld [vmem:[%s3566 + $0x48] sm:$0xf]
        %v3580 = vld [vmem:[%s3566 + $0x4c] sm:$0xf]
        %v3581 = vld [vmem:[%s3566 + $0x54] sm:$0xf]
        %v3582 = vld [vmem:[%s3566 + $0x58] sm:$0xf]
        %v3583 = vld [vmem:[%s3566 + $0x60] sm:$0xf]
        %v3584 = vld [vmem:[%s3566 + $0x64] sm:$0xf]
        %v3585 = vld [vmem:[%s3566 + $0x6c] sm:$0xf]
        %v3586 = vld [vmem:[%s3566 + $0x70] sm:$0xf]
        %v3587 = vld [vmem:[%s3566 + $0x78] sm:$0xf]
        %v3588 = vld [vmem:[%s3566 + $0x7c] sm:$0xf]
        %v3589 = vld [vmem:[%s3566 + $0x84] sm:$0xf]
        %v3590 = vld [vmem:[%s3566 + $0x88] sm:$0xf]
        %v3591 = vld [vmem:[%s3566 + $0x90] sm:$0xf]
        %v3592 = vld [vmem:[%s3566 + $0x94] sm:$0xf]
        %v3593 = vld [vmem:[%s3566 + $0x9c] sm:$0xf]
        %v3594 = vld [vmem:[%s3566 + $0xa0] sm:$0xf]
        %v3595 = vld [vmem:[%s3566 + $0xa8] sm:$0xf]
        %v3596 = vld [vmem:[%s3566 + $0xac] sm:$0xf]
        %v3597 = vld [vmem:[%s3566 + $0xb4] sm:$0xf]
        %v3598 = vld [vmem:[%s3566 + $0xb8] sm:$0xf]
        %s3599 = scalar_lea.vmem [#allocation6], 384
        %v3600 = vld [vmem:[%s3599] sm:$0xf]
        %v3601 = vld [vmem:[%s3599 + $0x4] sm:$0xf]
        %v3602 = vld [vmem:[%s3599 + $0x8] sm:$0xf]
        %v3603 = vld [vmem:[%s3599 + $0xc] sm:$0xf]
        %v3604 = vld [vmem:[%s3599 + $0x10] sm:$0xf]
        %v3605 = vld [vmem:[%s3599 + $0x14] sm:$0xf]
        %v3606 = vld [vmem:[%s3599 + $0x18] sm:$0xf]
        %v3607 = vld [vmem:[%s3599 + $0x1c] sm:$0xf]
        %v3608 = vld [vmem:[%s3599 + $0x20] sm:$0xf]
        %v3609 = vld [vmem:[%s3599 + $0x24] sm:$0xf]
        %v3610 = vld [vmem:[%s3599 + $0x28] sm:$0xf]
        %v3611 = vld [vmem:[%s3599 + $0x2c] sm:$0xf]
        %v3612 = vld [vmem:[%s3599 + $0x30] sm:$0xf]
        %v3613 = vld [vmem:[%s3599 + $0x34] sm:$0xf]
        %v3614 = vld [vmem:[%s3599 + $0x38] sm:$0xf]
        %v3615 = vld [vmem:[%s3599 + $0x3c] sm:$0xf]
        %v3648 = vunpack.c.l.b16 %v3567
        %v3649 = vunpack.c.l.b16 %v3568
        %v3650 = vunpack.c.l.b16 %v3569
        %v3651 = vunpack.c.l.b16 %v3570
        %v3652 = vunpack.c.l.b16 %v3571
        %v3653 = vunpack.c.l.b16 %v3572
        %v3654 = vunpack.c.l.b16 %v3573
        %v3655 = vunpack.c.l.b16 %v3574
        %v3656 = vunpack.c.l.b16 %v3575
        %v3657 = vunpack.c.l.b16 %v3576
        %v3658 = vunpack.c.l.b16 %v3577
        %v3659 = vunpack.c.l.b16 %v3578
        %v3660 = vunpack.c.l.b16 %v3579
        %v3661 = vunpack.c.l.b16 %v3580
        %v3662 = vunpack.c.l.b16 %v3581
        %v3663 = vunpack.c.l.b16 %v3582
        %v3664 = vunpack.c.l.b16 %v3583
        %v3665 = vunpack.c.l.b16 %v3584
        %v3666 = vunpack.c.l.b16 %v3585
        %v3667 = vunpack.c.l.b16 %v3586
        %v3668 = vunpack.c.l.b16 %v3587
        %v3669 = vunpack.c.l.b16 %v3588
        %v3670 = vunpack.c.l.b16 %v3589
        %v3671 = vunpack.c.l.b16 %v3590
        %v3672 = vunpack.c.l.b16 %v3591
        %v3673 = vunpack.c.l.b16 %v3592
        %v3674 = vunpack.c.l.b16 %v3593
        %v3675 = vunpack.c.l.b16 %v3594
        %v3676 = vunpack.c.l.b16 %v3595
        %v3677 = vunpack.c.l.b16 %v3596
        %v3678 = vunpack.c.l.b16 %v3597
        %v3679 = vunpack.c.l.b16 %v3598
        %v3680 = vpack.c.b16 %v3649, %v3648
        %v3681 = vpack.c.b16 %v3651, %v3650
        %v3682 = vpack.c.b16 %v3653, %v3652
        %v3683 = vpack.c.b16 %v3655, %v3654
        %v3684 = vpack.c.b16 %v3657, %v3656
        %v3685 = vpack.c.b16 %v3659, %v3658
        %v3686 = vpack.c.b16 %v3661, %v3660
        %v3687 = vpack.c.b16 %v3663, %v3662
        %v3688 = vpack.c.b16 %v3665, %v3664
        %v3689 = vpack.c.b16 %v3667, %v3666
        %v3690 = vpack.c.b16 %v3669, %v3668
        %v3691 = vpack.c.b16 %v3671, %v3670
        %v3692 = vpack.c.b16 %v3673, %v3672
        %v3693 = vpack.c.b16 %v3675, %v3674
        %v3694 = vpack.c.b16 %v3677, %v3676
        %v3695 = vpack.c.b16 %v3679, %v3678
        %v3728 = vunpack.c.l.b16 %v3600
        %v3729 = vunpack.c.l.b16 %v3601
        %v3730 = vunpack.c.l.b16 %v3602
        %v3731 = vunpack.c.l.b16 %v3603
        %v3732 = vunpack.c.l.b16 %v3604
        %v3733 = vunpack.c.l.b16 %v3605
        %v3734 = vunpack.c.l.b16 %v3606
        %v3735 = vunpack.c.l.b16 %v3607
        %v3736 = vunpack.c.l.b16 %v3608
        %v3737 = vunpack.c.l.b16 %v3609
        %v3738 = vunpack.c.l.b16 %v3610
        %v3739 = vunpack.c.l.b16 %v3611
        %v3740 = vunpack.c.l.b16 %v3612
        %v3741 = vunpack.c.l.b16 %v3613
        %v3742 = vunpack.c.l.b16 %v3614
        %v3743 = vunpack.c.l.b16 %v3615
        %v3744 = vpack.c.b16 %v3729, %v3728
        %v3745 = vpack.c.b16 %v3731, %v3730
        %v3746 = vpack.c.b16 %v3733, %v3732
        %v3747 = vpack.c.b16 %v3735, %v3734
        %v3748 = vpack.c.b16 %v3737, %v3736
        %v3749 = vpack.c.b16 %v3739, %v3738
        %v3750 = vpack.c.b16 %v3741, %v3740
        %v3751 = vpack.c.b16 %v3743, %v3742
        %3760 = vmatpush.bf16.msra.mxu0 %v3751
        %3761 = vmatpush.bf16.msra.mxu0 %v3750
        %3762 = vmatpush.bf16.msra.mxu0 %v3749
        %3763 = vmatpush.bf16.msra.mxu0 %v3748
        %3764 = vmatpush.bf16.msra.mxu0 %v3747
        %3765 = vmatpush.bf16.msra.mxu0 %v3746
        %3766 = vmatpush.bf16.msra.mxu0 %v3745
        %3767 = vmatpush.bf16.msra.mxu0 %v3744
        %3768 = vmatmul.bf16.gmra.mxu0 %v3680
        %v3769 = vpop.f32.mrf.mxu0
        %v3770 = vadd.f32 0.0, %v3769
        %v3771 = vpop.f32.mrf.mxu0
        %v3772 = vadd.f32 0.0, %v3771
        %3773 = vmatmul.bf16.gmra.mxu0 %v3681
        %v3774 = vpop.f32.mrf.mxu0
        %v3775 = vadd.f32 0.0, %v3774
        %v3776 = vpop.f32.mrf.mxu0
        %v3777 = vadd.f32 0.0, %v3776
        %3778 = vmatmul.bf16.gmra.mxu0 %v3682
        %v3779 = vpop.f32.mrf.mxu0
        %v3780 = vadd.f32 0.0, %v3779
        %v3781 = vpop.f32.mrf.mxu0
        %v3782 = vadd.f32 0.0, %v3781
        %3783 = vmatmul.bf16.gmra.mxu0 %v3683
        %v3784 = vpop.f32.mrf.mxu0
        %v3785 = vadd.f32 0.0, %v3784
        %v3786 = vpop.f32.mrf.mxu0
        %v3787 = vadd.f32 0.0, %v3786
        %3788 = vmatmul.bf16.gmra.mxu0 %v3684
        %v3789 = vpop.f32.mrf.mxu0
        %v3790 = vadd.f32 0.0, %v3789
        %v3791 = vpop.f32.mrf.mxu0
        %v3792 = vadd.f32 0.0, %v3791
        %3793 = vmatmul.bf16.gmra.mxu0 %v3685
        %v3794 = vpop.f32.mrf.mxu0
        %v3795 = vadd.f32 0.0, %v3794
        %v3796 = vpop.f32.mrf.mxu0
        %v3797 = vadd.f32 0.0, %v3796
        %3798 = vmatmul.bf16.gmra.mxu0 %v3686
        %v3799 = vpop.f32.mrf.mxu0
        %v3800 = vadd.f32 0.0, %v3799
        %v3801 = vpop.f32.mrf.mxu0
        %v3802 = vadd.f32 0.0, %v3801
        %3803 = vmatmul.bf16.gmra.mxu0 %v3687
        %v3804 = vpop.f32.mrf.mxu0
        %v3805 = vadd.f32 0.0, %v3804
        %v3806 = vpop.f32.mrf.mxu0
        %v3807 = vadd.f32 0.0, %v3806
        %3808 = vmatmul.bf16.gmra.mxu0 %v3688
        %v3809 = vpop.f32.mrf.mxu0
        %v3810 = vadd.f32 0.0, %v3809
        %v3811 = vpop.f32.mrf.mxu0
        %v3812 = vadd.f32 0.0, %v3811
        %3813 = vmatmul.bf16.gmra.mxu0 %v3689
        %v3814 = vpop.f32.mrf.mxu0
        %v3815 = vadd.f32 0.0, %v3814
        %v3816 = vpop.f32.mrf.mxu0
        %v3817 = vadd.f32 0.0, %v3816
        %3818 = vmatmul.bf16.gmra.mxu0 %v3690
        %v3819 = vpop.f32.mrf.mxu0
        %v3820 = vadd.f32 0.0, %v3819
        %v3821 = vpop.f32.mrf.mxu0
        %v3822 = vadd.f32 0.0, %v3821
        %3823 = vmatmul.bf16.gmra.mxu0 %v3691
        %v3824 = vpop.f32.mrf.mxu0
        %v3825 = vadd.f32 0.0, %v3824
        %v3826 = vpop.f32.mrf.mxu0
        %v3827 = vadd.f32 0.0, %v3826
        %3828 = vmatmul.bf16.gmra.mxu0 %v3692
        %v3829 = vpop.f32.mrf.mxu0
        %v3830 = vadd.f32 0.0, %v3829
        %v3831 = vpop.f32.mrf.mxu0
        %v3832 = vadd.f32 0.0, %v3831
        %3833 = vmatmul.bf16.gmra.mxu0 %v3693
        %v3834 = vpop.f32.mrf.mxu0
        %v3835 = vadd.f32 0.0, %v3834
        %v3836 = vpop.f32.mrf.mxu0
        %v3837 = vadd.f32 0.0, %v3836
        %3838 = vmatmul.bf16.gmra.mxu0 %v3694
        %v3839 = vpop.f32.mrf.mxu0
        %v3840 = vadd.f32 0.0, %v3839
        %v3841 = vpop.f32.mrf.mxu0
        %v3842 = vadd.f32 0.0, %v3841
        %3843 = vmatmul.bf16.gmra.mxu0 %v3695
        %v3844 = vpop.f32.mrf.mxu0
        %v3845 = vadd.f32 0.0, %v3844
        %v3846 = vpop.f32.mrf.mxu0
        %v3847 = vadd.f32 0.0, %v3846
        %3848 = vdwg.mxu0
        %v3849 = vadd.f32 %v3534, %v3770
        %v3850 = vadd.f32 %v3535, %v3772
        %v3851 = vadd.f32 %v3536, %v3775
        %v3852 = vadd.f32 %v3537, %v3777
        %v3853 = vadd.f32 %v3538, %v3780
        %v3854 = vadd.f32 %v3539, %v3782
        %v3855 = vadd.f32 %v3540, %v3785
        %v3856 = vadd.f32 %v3541, %v3787
        %v3857 = vadd.f32 %v3542, %v3790
        %v3858 = vadd.f32 %v3543, %v3792
        %v3859 = vadd.f32 %v3544, %v3795
        %v3860 = vadd.f32 %v3545, %v3797
        %v3861 = vadd.f32 %v3546, %v3800
        %v3862 = vadd.f32 %v3547, %v3802
        %v3863 = vadd.f32 %v3548, %v3805
        %v3864 = vadd.f32 %v3549, %v3807
        %v3865 = vadd.f32 %v3550, %v3810
        %v3866 = vadd.f32 %v3551, %v3812
        %v3867 = vadd.f32 %v3552, %v3815
        %v3868 = vadd.f32 %v3553, %v3817
        %v3869 = vadd.f32 %v3554, %v3820
        %v3870 = vadd.f32 %v3555, %v3822
        %v3871 = vadd.f32 %v3556, %v3825
        %v3872 = vadd.f32 %v3557, %v3827
        %v3873 = vadd.f32 %v3558, %v3830
        %v3874 = vadd.f32 %v3559, %v3832
        %v3875 = vadd.f32 %v3560, %v3835
        %v3876 = vadd.f32 %v3561, %v3837
        %v3877 = vadd.f32 %v3562, %v3840
        %v3878 = vadd.f32 %v3563, %v3842
        %v3879 = vadd.f32 %v3564, %v3845
        %v3880 = vadd.f32 %v3565, %v3847
        %v3881 = vld [vmem:[%s3566] sm:$0xf]
        %v3882 = vld [vmem:[%s3566 + $0x4] sm:$0xf]
        %v3883 = vld [vmem:[%s3566 + $0x8] sm:$0x1]
        %v3884 = vld [vmem:[%s3566 + $0xc] sm:$0xf]
        %v3885 = vld [vmem:[%s3566 + $0x10] sm:$0xf]
        %v3886 = vld [vmem:[%s3566 + $0x14] sm:$0x1]
        %v3887 = vld [vmem:[%s3566 + $0x18] sm:$0xf]
        %v3888 = vld [vmem:[%s3566 + $0x1c] sm:$0xf]
        %v3889 = vld [vmem:[%s3566 + $0x20] sm:$0x1]
        %v3890 = vld [vmem:[%s3566 + $0x24] sm:$0xf]
        %v3891 = vld [vmem:[%s3566 + $0x28] sm:$0xf]
        %v3892 = vld [vmem:[%s3566 + $0x2c] sm:$0x1]
        %v3893 = vld [vmem:[%s3566 + $0x30] sm:$0xf]
        %v3894 = vld [vmem:[%s3566 + $0x34] sm:$0xf]
        %v3895 = vld [vmem:[%s3566 + $0x38] sm:$0x1]
        %v3896 = vld [vmem:[%s3566 + $0x3c] sm:$0xf]
        %v3897 = vld [vmem:[%s3566 + $0x40] sm:$0xf]
        %v3898 = vld [vmem:[%s3566 + $0x44] sm:$0x1]
        %v3899 = vld [vmem:[%s3566 + $0x48] sm:$0xf]
        %v3900 = vld [vmem:[%s3566 + $0x4c] sm:$0xf]
        %v3901 = vld [vmem:[%s3566 + $0x50] sm:$0x1]
        %v3902 = vld [vmem:[%s3566 + $0x54] sm:$0xf]
        %v3903 = vld [vmem:[%s3566 + $0x58] sm:$0xf]
        %v3904 = vld [vmem:[%s3566 + $0x5c] sm:$0x1]
        %v3905 = vld [vmem:[%s3566 + $0x60] sm:$0xf]
        %v3906 = vld [vmem:[%s3566 + $0x64] sm:$0xf]
        %v3907 = vld [vmem:[%s3566 + $0x68] sm:$0x1]
        %v3908 = vld [vmem:[%s3566 + $0x6c] sm:$0xf]
        %v3909 = vld [vmem:[%s3566 + $0x70] sm:$0xf]
        %v3910 = vld [vmem:[%s3566 + $0x74] sm:$0x1]
        %v3911 = vld [vmem:[%s3566 + $0x78] sm:$0xf]
        %v3912 = vld [vmem:[%s3566 + $0x7c] sm:$0xf]
        %v3913 = vld [vmem:[%s3566 + $0x80] sm:$0x1]
        %v3914 = vld [vmem:[%s3566 + $0x84] sm:$0xf]
        %v3915 = vld [vmem:[%s3566 + $0x88] sm:$0xf]
        %v3916 = vld [vmem:[%s3566 + $0x8c] sm:$0x1]
        %v3917 = vld [vmem:[%s3566 + $0x90] sm:$0xf]
        %v3918 = vld [vmem:[%s3566 + $0x94] sm:$0xf]
        %v3919 = vld [vmem:[%s3566 + $0x98] sm:$0x1]
        %v3920 = vld [vmem:[%s3566 + $0x9c] sm:$0xf]
        %v3921 = vld [vmem:[%s3566 + $0xa0] sm:$0xf]
        %v3922 = vld [vmem:[%s3566 + $0xa4] sm:$0x1]
        %v3923 = vld [vmem:[%s3566 + $0xa8] sm:$0xf]
        %v3924 = vld [vmem:[%s3566 + $0xac] sm:$0xf]
        %v3925 = vld [vmem:[%s3566 + $0xb0] sm:$0x1]
        %v3926 = vld [vmem:[%s3566 + $0xb4] sm:$0xf]
        %v3927 = vld [vmem:[%s3566 + $0xb8] sm:$0xf]
        %v3928 = vld [vmem:[%s3566 + $0xbc] sm:$0x1]
        %v3930 = vshrl.u32 %v3881, 16
        %v3932 = vrot.slane %v3930, 4
        %v3933 = vshll.u32 %v3881, 16
        %v3935 = vrot.slane %v3933, 5
        %v3936 = vor.u32 %v3932, %v3935
        %v3937 = vrot.slane %v3936, 4
        %v3939 = vshll.u32 %v3882, 16
        %v3941 = vrot.slane %v3939, 5
        %v3942 = vsel %vm895, %v3937, %v3941
        %v3943 = vshrl.u32 %v3882, 16
        %v3945 = vrot.slane %v3943, 4
        %v3946 = vor.u32 %v3945, %v3941
        %v3947 = vrot.slane %v3946, 4
        %v3949 = vshll.u32 %v3883, 16
        %v3951 = vrot.slane %v3949, 5
        %v3952 = vsel %vm895, %v3947, %v3951
        %v3954 = vshrl.u32 %v3884, 16
        %v3956 = vrot.slane %v3954, 4
        %v3957 = vshll.u32 %v3884, 16
        %v3959 = vrot.slane %v3957, 5
        %v3960 = vor.u32 %v3956, %v3959
        %v3961 = vrot.slane %v3960, 4
        %v3963 = vshll.u32 %v3885, 16
        %v3965 = vrot.slane %v3963, 5
        %v3966 = vsel %vm895, %v3961, %v3965
        %v3967 = vshrl.u32 %v3885, 16
        %v3969 = vrot.slane %v3967, 4
        %v3970 = vor.u32 %v3969, %v3965
        %v3971 = vrot.slane %v3970, 4
        %v3973 = vshll.u32 %v3886, 16
        %v3975 = vrot.slane %v3973, 5
        %v3976 = vsel %vm895, %v3971, %v3975
        %v3978 = vshrl.u32 %v3887, 16
        %v3980 = vrot.slane %v3978, 4
        %v3981 = vshll.u32 %v3887, 16
        %v3983 = vrot.slane %v3981, 5
        %v3984 = vor.u32 %v3980, %v3983
        %v3985 = vrot.slane %v3984, 4
        %v3987 = vshll.u32 %v3888, 16
        %v3989 = vrot.slane %v3987, 5
        %v3990 = vsel %vm895, %v3985, %v3989
        %v3991 = vshrl.u32 %v3888, 16
        %v3993 = vrot.slane %v3991, 4
        %v3994 = vor.u32 %v3993, %v3989
        %v3995 = vrot.slane %v3994, 4
        %v3997 = vshll.u32 %v3889, 16
        %v3999 = vrot.slane %v3997, 5
        %v4000 = vsel %vm895, %v3995, %v3999
        %v4002 = vshrl.u32 %v3890, 16
        %v4004 = vrot.slane %v4002, 4
        %v4005 = vshll.u32 %v3890, 16
        %v4007 = vrot.slane %v4005, 5
        %v4008 = vor.u32 %v4004, %v4007
        %v4009 = vrot.slane %v4008, 4
        %v4011 = vshll.u32 %v3891, 16
        %v4013 = vrot.slane %v4011, 5
        %v4014 = vsel %vm895, %v4009, %v4013
        %v4015 = vshrl.u32 %v3891, 16
        %v4017 = vrot.slane %v4015, 4
        %v4018 = vor.u32 %v4017, %v4013
        %v4019 = vrot.slane %v4018, 4
        %v4021 = vshll.u32 %v3892, 16
        %v4023 = vrot.slane %v4021, 5
        %v4024 = vsel %vm895, %v4019, %v4023
        %v4026 = vshrl.u32 %v3893, 16
        %v4028 = vrot.slane %v4026, 4
        %v4029 = vshll.u32 %v3893, 16
        %v4031 = vrot.slane %v4029, 5
        %v4032 = vor.u32 %v4028, %v4031
        %v4033 = vrot.slane %v4032, 4
        %v4035 = vshll.u32 %v3894, 16
        %v4037 = vrot.slane %v4035, 5
        %v4038 = vsel %vm895, %v4033, %v4037
        %v4039 = vshrl.u32 %v3894, 16
        %v4041 = vrot.slane %v4039, 4
        %v4042 = vor.u32 %v4041, %v4037
        %v4043 = vrot.slane %v4042, 4
        %v4045 = vshll.u32 %v3895, 16
        %v4047 = vrot.slane %v4045, 5
        %v4048 = vsel %vm895, %v4043, %v4047
        %v4050 = vshrl.u32 %v3896, 16
        %v4052 = vrot.slane %v4050, 4
        %v4053 = vshll.u32 %v3896, 16
        %v4055 = vrot.slane %v4053, 5
        %v4056 = vor.u32 %v4052, %v4055
        %v4057 = vrot.slane %v4056, 4
        %v4059 = vshll.u32 %v3897, 16
        %v4061 = vrot.slane %v4059, 5
        %v4062 = vsel %vm895, %v4057, %v4061
        %v4063 = vshrl.u32 %v3897, 16
        %v4065 = vrot.slane %v4063, 4
        %v4066 = vor.u32 %v4065, %v4061
        %v4067 = vrot.slane %v4066, 4
        %v4069 = vshll.u32 %v3898, 16
        %v4071 = vrot.slane %v4069, 5
        %v4072 = vsel %vm895, %v4067, %v4071
        %v4074 = vshrl.u32 %v3899, 16
        %v4076 = vrot.slane %v4074, 4
        %v4077 = vshll.u32 %v3899, 16
        %v4079 = vrot.slane %v4077, 5
        %v4080 = vor.u32 %v4076, %v4079
        %v4081 = vrot.slane %v4080, 4
        %v4083 = vshll.u32 %v3900, 16
        %v4085 = vrot.slane %v4083, 5
        %v4086 = vsel %vm895, %v4081, %v4085
        %v4087 = vshrl.u32 %v3900, 16
        %v4089 = vrot.slane %v4087, 4
        %v4090 = vor.u32 %v4089, %v4085
        %v4091 = vrot.slane %v4090, 4
        %v4093 = vshll.u32 %v3901, 16
        %v4095 = vrot.slane %v4093, 5
        %v4096 = vsel %vm895, %v4091, %v4095
        %v4098 = vshrl.u32 %v3902, 16
        %v4100 = vrot.slane %v4098, 4
        %v4101 = vshll.u32 %v3902, 16
        %v4103 = vrot.slane %v4101, 5
        %v4104 = vor.u32 %v4100, %v4103
        %v4105 = vrot.slane %v4104, 4
        %v4107 = vshll.u32 %v3903, 16
        %v4109 = vrot.slane %v4107, 5
        %v4110 = vsel %vm895, %v4105, %v4109
        %v4111 = vshrl.u32 %v3903, 16
        %v4113 = vrot.slane %v4111, 4
        %v4114 = vor.u32 %v4113, %v4109
        %v4115 = vrot.slane %v4114, 4
        %v4117 = vshll.u32 %v3904, 16
        %v4119 = vrot.slane %v4117, 5
        %v4120 = vsel %vm895, %v4115, %v4119
        %v4122 = vshrl.u32 %v3905, 16
        %v4124 = vrot.slane %v4122, 4
        %v4125 = vshll.u32 %v3905, 16
        %v4127 = vrot.slane %v4125, 5
        %v4128 = vor.u32 %v4124, %v4127
        %v4129 = vrot.slane %v4128, 4
        %v4131 = vshll.u32 %v3906, 16
        %v4133 = vrot.slane %v4131, 5
        %v4134 = vsel %vm895, %v4129, %v4133
        %v4135 = vshrl.u32 %v3906, 16
        %v4137 = vrot.slane %v4135, 4
        %v4138 = vor.u32 %v4137, %v4133
        %v4139 = vrot.slane %v4138, 4
        %v4141 = vshll.u32 %v3907, 16
        %v4143 = vrot.slane %v4141, 5
        %v4144 = vsel %vm895, %v4139, %v4143
        %v4146 = vshrl.u32 %v3908, 16
        %v4148 = vrot.slane %v4146, 4
        %v4149 = vshll.u32 %v3908, 16
        %v4151 = vrot.slane %v4149, 5
        %v4152 = vor.u32 %v4148, %v4151
        %v4153 = vrot.slane %v4152, 4
        %v4155 = vshll.u32 %v3909, 16
        %v4157 = vrot.slane %v4155, 5
        %v4158 = vsel %vm895, %v4153, %v4157
        %v4159 = vshrl.u32 %v3909, 16
        %v4161 = vrot.slane %v4159, 4
        %v4162 = vor.u32 %v4161, %v4157
        %v4163 = vrot.slane %v4162, 4
        %v4165 = vshll.u32 %v3910, 16
        %v4167 = vrot.slane %v4165, 5
        %v4168 = vsel %vm895, %v4163, %v4167
        %v4170 = vshrl.u32 %v3911, 16
        %v4172 = vrot.slane %v4170, 4
        %v4173 = vshll.u32 %v3911, 16
        %v4175 = vrot.slane %v4173, 5
        %v4176 = vor.u32 %v4172, %v4175
        %v4177 = vrot.slane %v4176, 4
        %v4179 = vshll.u32 %v3912, 16
        %v4181 = vrot.slane %v4179, 5
        %v4182 = vsel %vm895, %v4177, %v4181
        %v4183 = vshrl.u32 %v3912, 16
        %v4185 = vrot.slane %v4183, 4
        %v4186 = vor.u32 %v4185, %v4181
        %v4187 = vrot.slane %v4186, 4
        %v4189 = vshll.u32 %v3913, 16
        %v4191 = vrot.slane %v4189, 5
        %v4192 = vsel %vm895, %v4187, %v4191
        %v4194 = vshrl.u32 %v3914, 16
        %v4196 = vrot.slane %v4194, 4
        %v4197 = vshll.u32 %v3914, 16
        %v4199 = vrot.slane %v4197, 5
        %v4200 = vor.u32 %v4196, %v4199
        %v4201 = vrot.slane %v4200, 4
        %v4203 = vshll.u32 %v3915, 16
        %v4205 = vrot.slane %v4203, 5
        %v4206 = vsel %vm895, %v4201, %v4205
        %v4207 = vshrl.u32 %v3915, 16
        %v4209 = vrot.slane %v4207, 4
        %v4210 = vor.u32 %v4209, %v4205
        %v4211 = vrot.slane %v4210, 4
        %v4213 = vshll.u32 %v3916, 16
        %v4215 = vrot.slane %v4213, 5
        %v4216 = vsel %vm895, %v4211, %v4215
        %v4218 = vshrl.u32 %v3917, 16
        %v4220 = vrot.slane %v4218, 4
        %v4221 = vshll.u32 %v3917, 16
        %v4223 = vrot.slane %v4221, 5
        %v4224 = vor.u32 %v4220, %v4223
        %v4225 = vrot.slane %v4224, 4
        %v4227 = vshll.u32 %v3918, 16
        %v4229 = vrot.slane %v4227, 5
        %v4230 = vsel %vm895, %v4225, %v4229
        %v4231 = vshrl.u32 %v3918, 16
        %v4233 = vrot.slane %v4231, 4
        %v4234 = vor.u32 %v4233, %v4229
        %v4235 = vrot.slane %v4234, 4
        %v4237 = vshll.u32 %v3919, 16
        %v4239 = vrot.slane %v4237, 5
        %v4240 = vsel %vm895, %v4235, %v4239
        %v4242 = vshrl.u32 %v3920, 16
        %v4244 = vrot.slane %v4242, 4
        %v4245 = vshll.u32 %v3920, 16
        %v4247 = vrot.slane %v4245, 5
        %v4248 = vor.u32 %v4244, %v4247
        %v4249 = vrot.slane %v4248, 4
        %v4251 = vshll.u32 %v3921, 16
        %v4253 = vrot.slane %v4251, 5
        %v4254 = vsel %vm895, %v4249, %v4253
        %v4255 = vshrl.u32 %v3921, 16
        %v4257 = vrot.slane %v4255, 4
        %v4258 = vor.u32 %v4257, %v4253
        %v4259 = vrot.slane %v4258, 4
        %v4261 = vshll.u32 %v3922, 16
        %v4263 = vrot.slane %v4261, 5
        %v4264 = vsel %vm895, %v4259, %v4263
        %v4266 = vshrl.u32 %v3923, 16
        %v4268 = vrot.slane %v4266, 4
        %v4269 = vshll.u32 %v3923, 16
        %v4271 = vrot.slane %v4269, 5
        %v4272 = vor.u32 %v4268, %v4271
        %v4273 = vrot.slane %v4272, 4
        %v4275 = vshll.u32 %v3924, 16
        %v4277 = vrot.slane %v4275, 5
        %v4278 = vsel %vm895, %v4273, %v4277
        %v4279 = vshrl.u32 %v3924, 16
        %v4281 = vrot.slane %v4279, 4
        %v4282 = vor.u32 %v4281, %v4277
        %v4283 = vrot.slane %v4282, 4
        %v4285 = vshll.u32 %v3925, 16
        %v4287 = vrot.slane %v4285, 5
        %v4288 = vsel %vm895, %v4283, %v4287
        %v4290 = vshrl.u32 %v3926, 16
        %v4292 = vrot.slane %v4290, 4
        %v4293 = vshll.u32 %v3926, 16
        %v4295 = vrot.slane %v4293, 5
        %v4296 = vor.u32 %v4292, %v4295
        %v4297 = vrot.slane %v4296, 4
        %v4299 = vshll.u32 %v3927, 16
        %v4301 = vrot.slane %v4299, 5
        %v4302 = vsel %vm895, %v4297, %v4301
        %v4303 = vshrl.u32 %v3927, 16
        %v4305 = vrot.slane %v4303, 4
        %v4306 = vor.u32 %v4305, %v4301
        %v4307 = vrot.slane %v4306, 4
        %v4309 = vshll.u32 %v3928, 16
        %v4311 = vrot.slane %v4309, 5
        %v4312 = vsel %vm895, %v4307, %v4311
        %s4313 = scalar_lea.vmem [#allocation6], 448
        %v4314 = vld [vmem:[%s4313] sm:$0xf]
        %v4315 = vld [vmem:[%s4313 + $0x4] sm:$0xf]
        %v4316 = vld [vmem:[%s4313 + $0x8] sm:$0xf]
        %v4317 = vld [vmem:[%s4313 + $0xc] sm:$0xf]
        %v4318 = vld [vmem:[%s4313 + $0x10] sm:$0xf]
        %v4319 = vld [vmem:[%s4313 + $0x14] sm:$0xf]
        %v4320 = vld [vmem:[%s4313 + $0x18] sm:$0xf]
        %v4321 = vld [vmem:[%s4313 + $0x1c] sm:$0xf]
        %v4322 = vld [vmem:[%s4313 + $0x20] sm:$0xf]
        %v4323 = vld [vmem:[%s4313 + $0x24] sm:$0xf]
        %v4324 = vld [vmem:[%s4313 + $0x28] sm:$0xf]
        %v4325 = vld [vmem:[%s4313 + $0x2c] sm:$0xf]
        %v4326 = vld [vmem:[%s4313 + $0x30] sm:$0xf]
        %v4327 = vld [vmem:[%s4313 + $0x34] sm:$0xf]
        %v4328 = vld [vmem:[%s4313 + $0x38] sm:$0xf]
        %v4329 = vld [vmem:[%s4313 + $0x3c] sm:$0xf]
        %v4330 = vunpack.c.l.b16 %v3942
        %v4331 = vunpack.c.l.b16 %v3952
        %v4332 = vunpack.c.l.b16 %v3966
        %v4333 = vunpack.c.l.b16 %v3976
        %v4334 = vunpack.c.l.b16 %v3990
        %v4335 = vunpack.c.l.b16 %v4000
        %v4336 = vunpack.c.l.b16 %v4014
        %v4337 = vunpack.c.l.b16 %v4024
        %v4338 = vunpack.c.l.b16 %v4038
        %v4339 = vunpack.c.l.b16 %v4048
        %v4340 = vunpack.c.l.b16 %v4062
        %v4341 = vunpack.c.l.b16 %v4072
        %v4342 = vunpack.c.l.b16 %v4086
        %v4343 = vunpack.c.l.b16 %v4096
        %v4344 = vunpack.c.l.b16 %v4110
        %v4345 = vunpack.c.l.b16 %v4120
        %v4346 = vunpack.c.l.b16 %v4134
        %v4347 = vunpack.c.l.b16 %v4144
        %v4348 = vunpack.c.l.b16 %v4158
        %v4349 = vunpack.c.l.b16 %v4168
        %v4350 = vunpack.c.l.b16 %v4182
        %v4351 = vunpack.c.l.b16 %v4192
        %v4352 = vunpack.c.l.b16 %v4206
        %v4353 = vunpack.c.l.b16 %v4216
        %v4354 = vunpack.c.l.b16 %v4230
        %v4355 = vunpack.c.l.b16 %v4240
        %v4356 = vunpack.c.l.b16 %v4254
        %v4357 = vunpack.c.l.b16 %v4264
        %v4358 = vunpack.c.l.b16 %v4278
        %v4359 = vunpack.c.l.b16 %v4288
        %v4360 = vunpack.c.l.b16 %v4302
        %v4361 = vunpack.c.l.b16 %v4312
        %v4362 = vpack.c.b16 %v4331, %v4330
        %v4363 = vpack.c.b16 %v4333, %v4332
        %v4364 = vpack.c.b16 %v4335, %v4334
        %v4365 = vpack.c.b16 %v4337, %v4336
        %v4366 = vpack.c.b16 %v4339, %v4338
        %v4367 = vpack.c.b16 %v4341, %v4340
        %v4368 = vpack.c.b16 %v4343, %v4342
        %v4369 = vpack.c.b16 %v4345, %v4344
        %v4370 = vpack.c.b16 %v4347, %v4346
        %v4371 = vpack.c.b16 %v4349, %v4348
        %v4372 = vpack.c.b16 %v4351, %v4350
        %v4373 = vpack.c.b16 %v4353, %v4352
        %v4374 = vpack.c.b16 %v4355, %v4354
        %v4375 = vpack.c.b16 %v4357, %v4356
        %v4376 = vpack.c.b16 %v4359, %v4358
        %v4377 = vpack.c.b16 %v4361, %v4360
        %v4410 = vunpack.c.l.b16 %v4314
        %v4411 = vunpack.c.l.b16 %v4315
        %v4412 = vunpack.c.l.b16 %v4316
        %v4413 = vunpack.c.l.b16 %v4317
        %v4414 = vunpack.c.l.b16 %v4318
        %v4415 = vunpack.c.l.b16 %v4319
        %v4416 = vunpack.c.l.b16 %v4320
        %v4417 = vunpack.c.l.b16 %v4321
        %v4418 = vunpack.c.l.b16 %v4322
        %v4419 = vunpack.c.l.b16 %v4323
        %v4420 = vunpack.c.l.b16 %v4324
        %v4421 = vunpack.c.l.b16 %v4325
        %v4422 = vunpack.c.l.b16 %v4326
        %v4423 = vunpack.c.l.b16 %v4327
        %v4424 = vunpack.c.l.b16 %v4328
        %v4425 = vunpack.c.l.b16 %v4329
        %v4426 = vpack.c.b16 %v4411, %v4410
        %v4427 = vpack.c.b16 %v4413, %v4412
        %v4428 = vpack.c.b16 %v4415, %v4414
        %v4429 = vpack.c.b16 %v4417, %v4416
        %v4430 = vpack.c.b16 %v4419, %v4418
        %v4431 = vpack.c.b16 %v4421, %v4420
        %v4432 = vpack.c.b16 %v4423, %v4422
        %v4433 = vpack.c.b16 %v4425, %v4424
        %4442 = vmatpush.bf16.msra.mxu0 %v4433
        %4443 = vmatpush.bf16.msra.mxu0 %v4432
        %4444 = vmatpush.bf16.msra.mxu0 %v4431
        %4445 = vmatpush.bf16.msra.mxu0 %v4430
        %4446 = vmatpush.bf16.msra.mxu0 %v4429
        %4447 = vmatpush.bf16.msra.mxu0 %v4428
        %4448 = vmatpush.bf16.msra.mxu0 %v4427
        %4449 = vmatpush.bf16.msra.mxu0 %v4426
        %4450 = vmatmul.bf16.gmra.mxu0 %v4362
        %v4451 = vpop.f32.mrf.mxu0
        %v4452 = vadd.f32 0.0, %v4451
        %v4453 = vpop.f32.mrf.mxu0
        %v4454 = vadd.f32 0.0, %v4453
        %4455 = vmatmul.bf16.gmra.mxu0 %v4363
        %v4456 = vpop.f32.mrf.mxu0
        %v4457 = vadd.f32 0.0, %v4456
        %v4458 = vpop.f32.mrf.mxu0
        %v4459 = vadd.f32 0.0, %v4458
        %4460 = vmatmul.bf16.gmra.mxu0 %v4364
        %v4461 = vpop.f32.mrf.mxu0
        %v4462 = vadd.f32 0.0, %v4461
        %v4463 = vpop.f32.mrf.mxu0
        %v4464 = vadd.f32 0.0, %v4463
        %4465 = vmatmul.bf16.gmra.mxu0 %v4365
        %v4466 = vpop.f32.mrf.mxu0
        %v4467 = vadd.f32 0.0, %v4466
        %v4468 = vpop.f32.mrf.mxu0
        %v4469 = vadd.f32 0.0, %v4468
        %4470 = vmatmul.bf16.gmra.mxu0 %v4366
        %v4471 = vpop.f32.mrf.mxu0
        %v4472 = vadd.f32 0.0, %v4471
        %v4473 = vpop.f32.mrf.mxu0
        %v4474 = vadd.f32 0.0, %v4473
        %4475 = vmatmul.bf16.gmra.mxu0 %v4367
        %v4476 = vpop.f32.mrf.mxu0
        %v4477 = vadd.f32 0.0, %v4476
        %v4478 = vpop.f32.mrf.mxu0
        %v4479 = vadd.f32 0.0, %v4478
        %4480 = vmatmul.bf16.gmra.mxu0 %v4368
        %v4481 = vpop.f32.mrf.mxu0
        %v4482 = vadd.f32 0.0, %v4481
        %v4483 = vpop.f32.mrf.mxu0
        %v4484 = vadd.f32 0.0, %v4483
        %4485 = vmatmul.bf16.gmra.mxu0 %v4369
        %v4486 = vpop.f32.mrf.mxu0
        %v4487 = vadd.f32 0.0, %v4486
        %v4488 = vpop.f32.mrf.mxu0
        %v4489 = vadd.f32 0.0, %v4488
        %4490 = vmatmul.bf16.gmra.mxu0 %v4370
        %v4491 = vpop.f32.mrf.mxu0
        %v4492 = vadd.f32 0.0, %v4491
        %v4493 = vpop.f32.mrf.mxu0
        %v4494 = vadd.f32 0.0, %v4493
        %4495 = vmatmul.bf16.gmra.mxu0 %v4371
        %v4496 = vpop.f32.mrf.mxu0
        %v4497 = vadd.f32 0.0, %v4496
        %v4498 = vpop.f32.mrf.mxu0
        %v4499 = vadd.f32 0.0, %v4498
        %4500 = vmatmul.bf16.gmra.mxu0 %v4372
        %v4501 = vpop.f32.mrf.mxu0
        %v4502 = vadd.f32 0.0, %v4501
        %v4503 = vpop.f32.mrf.mxu0
        %v4504 = vadd.f32 0.0, %v4503
        %4505 = vmatmul.bf16.gmra.mxu0 %v4373
        %v4506 = vpop.f32.mrf.mxu0
        %v4507 = vadd.f32 0.0, %v4506
        %v4508 = vpop.f32.mrf.mxu0
        %v4509 = vadd.f32 0.0, %v4508
        %4510 = vmatmul.bf16.gmra.mxu0 %v4374
        %v4511 = vpop.f32.mrf.mxu0
        %v4512 = vadd.f32 0.0, %v4511
        %v4513 = vpop.f32.mrf.mxu0
        %v4514 = vadd.f32 0.0, %v4513
        %4515 = vmatmul.bf16.gmra.mxu0 %v4375
        %v4516 = vpop.f32.mrf.mxu0
        %v4517 = vadd.f32 0.0, %v4516
        %v4518 = vpop.f32.mrf.mxu0
        %v4519 = vadd.f32 0.0, %v4518
        %4520 = vmatmul.bf16.gmra.mxu0 %v4376
        %v4521 = vpop.f32.mrf.mxu0
        %v4522 = vadd.f32 0.0, %v4521
        %v4523 = vpop.f32.mrf.mxu0
        %v4524 = vadd.f32 0.0, %v4523
        %4525 = vmatmul.bf16.gmra.mxu0 %v4377
        %v4526 = vpop.f32.mrf.mxu0
        %v4527 = vadd.f32 0.0, %v4526
        %v4528 = vpop.f32.mrf.mxu0
        %v4529 = vadd.f32 0.0, %v4528
        %4530 = vdwg.mxu0
        %v4531 = vadd.f32 %v3849, %v4452
        %v4532 = vadd.f32 %v3850, %v4454
        %v4533 = vadd.f32 %v3851, %v4457
        %v4534 = vadd.f32 %v3852, %v4459
        %v4535 = vadd.f32 %v3853, %v4462
        %v4536 = vadd.f32 %v3854, %v4464
        %v4537 = vadd.f32 %v3855, %v4467
        %v4538 = vadd.f32 %v3856, %v4469
        %v4539 = vadd.f32 %v3857, %v4472
        %v4540 = vadd.f32 %v3858, %v4474
        %v4541 = vadd.f32 %v3859, %v4477
        %v4542 = vadd.f32 %v3860, %v4479
        %v4543 = vadd.f32 %v3861, %v4482
        %v4544 = vadd.f32 %v3862, %v4484
        %v4545 = vadd.f32 %v3863, %v4487
        %v4546 = vadd.f32 %v3864, %v4489
        %v4547 = vadd.f32 %v3865, %v4492
        %v4548 = vadd.f32 %v3866, %v4494
        %v4549 = vadd.f32 %v3867, %v4497
        %v4550 = vadd.f32 %v3868, %v4499
        %v4551 = vadd.f32 %v3869, %v4502
        %v4552 = vadd.f32 %v3870, %v4504
        %v4553 = vadd.f32 %v3871, %v4507
        %v4554 = vadd.f32 %v3872, %v4509
        %v4555 = vadd.f32 %v3873, %v4512
        %v4556 = vadd.f32 %v3874, %v4514
        %v4557 = vadd.f32 %v3875, %v4517
        %v4558 = vadd.f32 %v3876, %v4519
        %v4559 = vadd.f32 %v3877, %v4522
        %v4560 = vadd.f32 %v3878, %v4524
        %v4561 = vadd.f32 %v3879, %v4527
        %v4562 = vadd.f32 %v3880, %v4529
        %v4563 = vld [vmem:[%s3566] sm:$0xe]
        %v4564 = vld [vmem:[%s3566 + $0xc] sm:$0xe]
        %v4565 = vld [vmem:[%s3566 + $0x18] sm:$0xe]
        %v4566 = vld [vmem:[%s3566 + $0x24] sm:$0xe]
        %v4567 = vld [vmem:[%s3566 + $0x30] sm:$0xe]
        %v4568 = vld [vmem:[%s3566 + $0x3c] sm:$0xe]
        %v4569 = vld [vmem:[%s3566 + $0x48] sm:$0xe]
        %v4570 = vld [vmem:[%s3566 + $0x54] sm:$0xe]
        %v4571 = vld [vmem:[%s3566 + $0x60] sm:$0xe]
        %v4572 = vld [vmem:[%s3566 + $0x6c] sm:$0xe]
        %v4573 = vld [vmem:[%s3566 + $0x78] sm:$0xe]
        %v4574 = vld [vmem:[%s3566 + $0x84] sm:$0xe]
        %v4575 = vld [vmem:[%s3566 + $0x90] sm:$0xe]
        %v4576 = vld [vmem:[%s3566 + $0x9c] sm:$0xe]
        %v4577 = vld [vmem:[%s3566 + $0xa8] sm:$0xe]
        %v4578 = vld [vmem:[%s3566 + $0xb4] sm:$0xe]
        %v4627 = vrot.slane %v4563, 5
        %v4628 = vrot.slane %v4627, 4
        %v4629 = vrot.slane %v3882, 5
        %v4630 = vsel %vm1781, %v4628, %v4629
        %v4631 = vrot.slane %v4629, 4
        %v4632 = vrot.slane %v3883, 5
        %v4633 = vsel %vm1781, %v4631, %v4632
        %v4634 = vrot.slane %v4564, 5
        %v4635 = vrot.slane %v4634, 4
        %v4636 = vrot.slane %v3885, 5
        %v4637 = vsel %vm1781, %v4635, %v4636
        %v4638 = vrot.slane %v4636, 4
        %v4639 = vrot.slane %v3886, 5
        %v4640 = vsel %vm1781, %v4638, %v4639
        %v4641 = vrot.slane %v4565, 5
        %v4642 = vrot.slane %v4641, 4
        %v4643 = vrot.slane %v3888, 5
        %v4644 = vsel %vm1781, %v4642, %v4643
        %v4645 = vrot.slane %v4643, 4
        %v4646 = vrot.slane %v3889, 5
        %v4647 = vsel %vm1781, %v4645, %v4646
        %v4648 = vrot.slane %v4566, 5
        %v4649 = vrot.slane %v4648, 4
        %v4650 = vrot.slane %v3891, 5
        %v4651 = vsel %vm1781, %v4649, %v4650
        %v4652 = vrot.slane %v4650, 4
        %v4653 = vrot.slane %v3892, 5
        %v4654 = vsel %vm1781, %v4652, %v4653
        %v4655 = vrot.slane %v4567, 5
        %v4656 = vrot.slane %v4655, 4
        %v4657 = vrot.slane %v3894, 5
        %v4658 = vsel %vm1781, %v4656, %v4657
        %v4659 = vrot.slane %v4657, 4
        %v4660 = vrot.slane %v3895, 5
        %v4661 = vsel %vm1781, %v4659, %v4660
        %v4662 = vrot.slane %v4568, 5
        %v4663 = vrot.slane %v4662, 4
        %v4664 = vrot.slane %v3897, 5
        %v4665 = vsel %vm1781, %v4663, %v4664
        %v4666 = vrot.slane %v4664, 4
        %v4667 = vrot.slane %v3898, 5
        %v4668 = vsel %vm1781, %v4666, %v4667
        %v4669 = vrot.slane %v4569, 5
        %v4670 = vrot.slane %v4669, 4
        %v4671 = vrot.slane %v3900, 5
        %v4672 = vsel %vm1781, %v4670, %v4671
        %v4673 = vrot.slane %v4671, 4
        %v4674 = vrot.slane %v3901, 5
        %v4675 = vsel %vm1781, %v4673, %v4674
        %v4676 = vrot.slane %v4570, 5
        %v4677 = vrot.slane %v4676, 4
        %v4678 = vrot.slane %v3903, 5
        %v4679 = vsel %vm1781, %v4677, %v4678
        %v4680 = vrot.slane %v4678, 4
        %v4681 = vrot.slane %v3904, 5
        %v4682 = vsel %vm1781, %v4680, %v4681
        %v4683 = vrot.slane %v4571, 5
        %v4684 = vrot.slane %v4683, 4
        %v4685 = vrot.slane %v3906, 5
        %v4686 = vsel %vm1781, %v4684, %v4685
        %v4687 = vrot.slane %v4685, 4
        %v4688 = vrot.slane %v3907, 5
        %v4689 = vsel %vm1781, %v4687, %v4688
        %v4690 = vrot.slane %v4572, 5
        %v4691 = vrot.slane %v4690, 4
        %v4692 = vrot.slane %v3909, 5
        %v4693 = vsel %vm1781, %v4691, %v4692
        %v4694 = vrot.slane %v4692, 4
        %v4695 = vrot.slane %v3910, 5
        %v4696 = vsel %vm1781, %v4694, %v4695
        %v4697 = vrot.slane %v4573, 5
        %v4698 = vrot.slane %v4697, 4
        %v4699 = vrot.slane %v3912, 5
        %v4700 = vsel %vm1781, %v4698, %v4699
        %v4701 = vrot.slane %v4699, 4
        %v4702 = vrot.slane %v3913, 5
        %v4703 = vsel %vm1781, %v4701, %v4702
        %v4704 = vrot.slane %v4574, 5
        %v4705 = vrot.slane %v4704, 4
        %v4706 = vrot.slane %v3915, 5
        %v4707 = vsel %vm1781, %v4705, %v4706
        %v4708 = vrot.slane %v4706, 4
        %v4709 = vrot.slane %v3916, 5
        %v4710 = vsel %vm1781, %v4708, %v4709
        %v4711 = vrot.slane %v4575, 5
        %v4712 = vrot.slane %v4711, 4
        %v4713 = vrot.slane %v3918, 5
        %v4714 = vsel %vm1781, %v4712, %v4713
        %v4715 = vrot.slane %v4713, 4
        %v4716 = vrot.slane %v3919, 5
        %v4717 = vsel %vm1781, %v4715, %v4716
        %v4718 = vrot.slane %v4576, 5
        %v4719 = vrot.slane %v4718, 4
        %v4720 = vrot.slane %v3921, 5
        %v4721 = vsel %vm1781, %v4719, %v4720
        %v4722 = vrot.slane %v4720, 4
        %v4723 = vrot.slane %v3922, 5
        %v4724 = vsel %vm1781, %v4722, %v4723
        %v4725 = vrot.slane %v4577, 5
        %v4726 = vrot.slane %v4725, 4
        %v4727 = vrot.slane %v3924, 5
        %v4728 = vsel %vm1781, %v4726, %v4727
        %v4729 = vrot.slane %v4727, 4
        %v4730 = vrot.slane %v3925, 5
        %v4731 = vsel %vm1781, %v4729, %v4730
        %v4732 = vrot.slane %v4578, 5
        %v4733 = vrot.slane %v4732, 4
        %v4734 = vrot.slane %v3927, 5
        %v4735 = vsel %vm1781, %v4733, %v4734
        %v4736 = vrot.slane %v4734, 4
        %v4737 = vrot.slane %v3928, 5
        %v4738 = vsel %vm1781, %v4736, %v4737
        %s4739 = scalar_lea.vmem [#allocation6], 512
        %v4740 = vld [vmem:[%s4739] sm:$0xf]
        %v4741 = vld [vmem:[%s4739 + $0x4] sm:$0xf]
        %v4742 = vld [vmem:[%s4739 + $0x8] sm:$0xf]
        %v4743 = vld [vmem:[%s4739 + $0xc] sm:$0xf]
        %v4744 = vld [vmem:[%s4739 + $0x10] sm:$0xf]
        %v4745 = vld [vmem:[%s4739 + $0x14] sm:$0xf]
        %v4746 = vld [vmem:[%s4739 + $0x18] sm:$0xf]
        %v4747 = vld [vmem:[%s4739 + $0x1c] sm:$0xf]
        %v4748 = vld [vmem:[%s4739 + $0x20] sm:$0xf]
        %v4749 = vld [vmem:[%s4739 + $0x24] sm:$0xf]
        %v4750 = vld [vmem:[%s4739 + $0x28] sm:$0xf]
        %v4751 = vld [vmem:[%s4739 + $0x2c] sm:$0xf]
        %v4752 = vld [vmem:[%s4739 + $0x30] sm:$0xf]
        %v4753 = vld [vmem:[%s4739 + $0x34] sm:$0xf]
        %v4754 = vld [vmem:[%s4739 + $0x38] sm:$0xf]
        %v4755 = vld [vmem:[%s4739 + $0x3c] sm:$0xf]
        %v4756 = vunpack.c.l.b16 %v4630
        %v4757 = vunpack.c.l.b16 %v4633
        %v4758 = vunpack.c.l.b16 %v4637
        %v4759 = vunpack.c.l.b16 %v4640
        %v4760 = vunpack.c.l.b16 %v4644
        %v4761 = vunpack.c.l.b16 %v4647
        %v4762 = vunpack.c.l.b16 %v4651
        %v4763 = vunpack.c.l.b16 %v4654
        %v4764 = vunpack.c.l.b16 %v4658
        %v4765 = vunpack.c.l.b16 %v4661
        %v4766 = vunpack.c.l.b16 %v4665
        %v4767 = vunpack.c.l.b16 %v4668
        %v4768 = vunpack.c.l.b16 %v4672
        %v4769 = vunpack.c.l.b16 %v4675
        %v4770 = vunpack.c.l.b16 %v4679
        %v4771 = vunpack.c.l.b16 %v4682
        %v4772 = vunpack.c.l.b16 %v4686
        %v4773 = vunpack.c.l.b16 %v4689
        %v4774 = vunpack.c.l.b16 %v4693
        %v4775 = vunpack.c.l.b16 %v4696
        %v4776 = vunpack.c.l.b16 %v4700
        %v4777 = vunpack.c.l.b16 %v4703
        %v4778 = vunpack.c.l.b16 %v4707
        %v4779 = vunpack.c.l.b16 %v4710
        %v4780 = vunpack.c.l.b16 %v4714
        %v4781 = vunpack.c.l.b16 %v4717
        %v4782 = vunpack.c.l.b16 %v4721
        %v4783 = vunpack.c.l.b16 %v4724
        %v4784 = vunpack.c.l.b16 %v4728
        %v4785 = vunpack.c.l.b16 %v4731
        %v4786 = vunpack.c.l.b16 %v4735
        %v4787 = vunpack.c.l.b16 %v4738
        %v4788 = vpack.c.b16 %v4757, %v4756
        %v4789 = vpack.c.b16 %v4759, %v4758
        %v4790 = vpack.c.b16 %v4761, %v4760
        %v4791 = vpack.c.b16 %v4763, %v4762
        %v4792 = vpack.c.b16 %v4765, %v4764
        %v4793 = vpack.c.b16 %v4767, %v4766
        %v4794 = vpack.c.b16 %v4769, %v4768
        %v4795 = vpack.c.b16 %v4771, %v4770
        %v4796 = vpack.c.b16 %v4773, %v4772
        %v4797 = vpack.c.b16 %v4775, %v4774
        %v4798 = vpack.c.b16 %v4777, %v4776
        %v4799 = vpack.c.b16 %v4779, %v4778
        %v4800 = vpack.c.b16 %v4781, %v4780
        %v4801 = vpack.c.b16 %v4783, %v4782
        %v4802 = vpack.c.b16 %v4785, %v4784
        %v4803 = vpack.c.b16 %v4787, %v4786
        %v4836 = vunpack.c.l.b16 %v4740
        %v4837 = vunpack.c.l.b16 %v4741
        %v4838 = vunpack.c.l.b16 %v4742
        %v4839 = vunpack.c.l.b16 %v4743
        %v4840 = vunpack.c.l.b16 %v4744
        %v4841 = vunpack.c.l.b16 %v4745
        %v4842 = vunpack.c.l.b16 %v4746
        %v4843 = vunpack.c.l.b16 %v4747
        %v4844 = vunpack.c.l.b16 %v4748
        %v4845 = vunpack.c.l.b16 %v4749
        %v4846 = vunpack.c.l.b16 %v4750
        %v4847 = vunpack.c.l.b16 %v4751
        %v4848 = vunpack.c.l.b16 %v4752
        %v4849 = vunpack.c.l.b16 %v4753
        %v4850 = vunpack.c.l.b16 %v4754
        %v4851 = vunpack.c.l.b16 %v4755
        %v4852 = vpack.c.b16 %v4837, %v4836
        %v4853 = vpack.c.b16 %v4839, %v4838
        %v4854 = vpack.c.b16 %v4841, %v4840
        %v4855 = vpack.c.b16 %v4843, %v4842
        %v4856 = vpack.c.b16 %v4845, %v4844
        %v4857 = vpack.c.b16 %v4847, %v4846
        %v4858 = vpack.c.b16 %v4849, %v4848
        %v4859 = vpack.c.b16 %v4851, %v4850
        %4868 = vmatpush.bf16.msra.mxu0 %v4859
        %4869 = vmatpush.bf16.msra.mxu0 %v4858
        %4870 = vmatpush.bf16.msra.mxu0 %v4857
        %4871 = vmatpush.bf16.msra.mxu0 %v4856
        %4872 = vmatpush.bf16.msra.mxu0 %v4855
        %4873 = vmatpush.bf16.msra.mxu0 %v4854
        %4874 = vmatpush.bf16.msra.mxu0 %v4853
        %4875 = vmatpush.bf16.msra.mxu0 %v4852
        %4876 = vmatmul.bf16.gmra.mxu0 %v4788
        %v4877 = vpop.f32.mrf.mxu0
        %v4878 = vadd.f32 0.0, %v4877
        %v4879 = vpop.f32.mrf.mxu0
        %v4880 = vadd.f32 0.0, %v4879
        %4881 = vmatmul.bf16.gmra.mxu0 %v4789
        %v4882 = vpop.f32.mrf.mxu0
        %v4883 = vadd.f32 0.0, %v4882
        %v4884 = vpop.f32.mrf.mxu0
        %v4885 = vadd.f32 0.0, %v4884
        %4886 = vmatmul.bf16.gmra.mxu0 %v4790
        %v4887 = vpop.f32.mrf.mxu0
        %v4888 = vadd.f32 0.0, %v4887
        %v4889 = vpop.f32.mrf.mxu0
        %v4890 = vadd.f32 0.0, %v4889
        %4891 = vmatmul.bf16.gmra.mxu0 %v4791
        %v4892 = vpop.f32.mrf.mxu0
        %v4893 = vadd.f32 0.0, %v4892
        %v4894 = vpop.f32.mrf.mxu0
        %v4895 = vadd.f32 0.0, %v4894
        %4896 = vmatmul.bf16.gmra.mxu0 %v4792
        %v4897 = vpop.f32.mrf.mxu0
        %v4898 = vadd.f32 0.0, %v4897
        %v4899 = vpop.f32.mrf.mxu0
        %v4900 = vadd.f32 0.0, %v4899
        %4901 = vmatmul.bf16.gmra.mxu0 %v4793
        %v4902 = vpop.f32.mrf.mxu0
        %v4903 = vadd.f32 0.0, %v4902
        %v4904 = vpop.f32.mrf.mxu0
        %v4905 = vadd.f32 0.0, %v4904
        %4906 = vmatmul.bf16.gmra.mxu0 %v4794
        %v4907 = vpop.f32.mrf.mxu0
        %v4908 = vadd.f32 0.0, %v4907
        %v4909 = vpop.f32.mrf.mxu0
        %v4910 = vadd.f32 0.0, %v4909
        %4911 = vmatmul.bf16.gmra.mxu0 %v4795
        %v4912 = vpop.f32.mrf.mxu0
        %v4913 = vadd.f32 0.0, %v4912
        %v4914 = vpop.f32.mrf.mxu0
        %v4915 = vadd.f32 0.0, %v4914
        %4916 = vmatmul.bf16.gmra.mxu0 %v4796
        %v4917 = vpop.f32.mrf.mxu0
        %v4918 = vadd.f32 0.0, %v4917
        %v4919 = vpop.f32.mrf.mxu0
        %v4920 = vadd.f32 0.0, %v4919
        %4921 = vmatmul.bf16.gmra.mxu0 %v4797
        %v4922 = vpop.f32.mrf.mxu0
        %v4923 = vadd.f32 0.0, %v4922
        %v4924 = vpop.f32.mrf.mxu0
        %v4925 = vadd.f32 0.0, %v4924
        %4926 = vmatmul.bf16.gmra.mxu0 %v4798
        %v4927 = vpop.f32.mrf.mxu0
        %v4928 = vadd.f32 0.0, %v4927
        %v4929 = vpop.f32.mrf.mxu0
        %v4930 = vadd.f32 0.0, %v4929
        %4931 = vmatmul.bf16.gmra.mxu0 %v4799
        %v4932 = vpop.f32.mrf.mxu0
        %v4933 = vadd.f32 0.0, %v4932
        %v4934 = vpop.f32.mrf.mxu0
        %v4935 = vadd.f32 0.0, %v4934
        %4936 = vmatmul.bf16.gmra.mxu0 %v4800
        %v4937 = vpop.f32.mrf.mxu0
        %v4938 = vadd.f32 0.0, %v4937
        %v4939 = vpop.f32.mrf.mxu0
        %v4940 = vadd.f32 0.0, %v4939
        %4941 = vmatmul.bf16.gmra.mxu0 %v4801
        %v4942 = vpop.f32.mrf.mxu0
        %v4943 = vadd.f32 0.0, %v4942
        %v4944 = vpop.f32.mrf.mxu0
        %v4945 = vadd.f32 0.0, %v4944
        %4946 = vmatmul.bf16.gmra.mxu0 %v4802
        %v4947 = vpop.f32.mrf.mxu0
        %v4948 = vadd.f32 0.0, %v4947
        %v4949 = vpop.f32.mrf.mxu0
        %v4950 = vadd.f32 0.0, %v4949
        %4951 = vmatmul.bf16.gmra.mxu0 %v4803
        %v4952 = vpop.f32.mrf.mxu0
        %v4953 = vadd.f32 0.0, %v4952
        %v4954 = vpop.f32.mrf.mxu0
        %v4955 = vadd.f32 0.0, %v4954
        %4956 = vdwg.mxu0
        %v4957 = vadd.f32 %v4531, %v4878
        %v4958 = vadd.f32 %v4532, %v4880
        %v4959 = vadd.f32 %v4533, %v4883
        %v4960 = vadd.f32 %v4534, %v4885
        %v4961 = vadd.f32 %v4535, %v4888
        %v4962 = vadd.f32 %v4536, %v4890
        %v4963 = vadd.f32 %v4537, %v4893
        %v4964 = vadd.f32 %v4538, %v4895
        %v4965 = vadd.f32 %v4539, %v4898
        %v4966 = vadd.f32 %v4540, %v4900
        %v4967 = vadd.f32 %v4541, %v4903
        %v4968 = vadd.f32 %v4542, %v4905
        %v4969 = vadd.f32 %v4543, %v4908
        %v4970 = vadd.f32 %v4544, %v4910
        %v4971 = vadd.f32 %v4545, %v4913
        %v4972 = vadd.f32 %v4546, %v4915
        %v4973 = vadd.f32 %v4547, %v4918
        %v4974 = vadd.f32 %v4548, %v4920
        %v4975 = vadd.f32 %v4549, %v4923
        %v4976 = vadd.f32 %v4550, %v4925
        %v4977 = vadd.f32 %v4551, %v4928
        %v4978 = vadd.f32 %v4552, %v4930
        %v4979 = vadd.f32 %v4553, %v4933
        %v4980 = vadd.f32 %v4554, %v4935
        %v4981 = vadd.f32 %v4555, %v4938
        %v4982 = vadd.f32 %v4556, %v4940
        %v4983 = vadd.f32 %v4557, %v4943
        %v4984 = vadd.f32 %v4558, %v4945
        %v4985 = vadd.f32 %v4559, %v4948
        %v4986 = vadd.f32 %v4560, %v4950
        %v4987 = vadd.f32 %v4561, %v4953
        %v4988 = vadd.f32 %v4562, %v4955
        %v4989 = vld [vmem:[%s3] sm:$0x1]
        %v4990 = vperm.slane %v4989, 0
        %v4991 = vadd.f32 %v4957, %v4990
        %v4992 = vadd.f32 %v4958, %v4990
        %v4993 = vadd.f32 %v4959, %v4990
        %v4994 = vadd.f32 %v4960, %v4990
        %v4995 = vadd.f32 %v4961, %v4990
        %v4996 = vadd.f32 %v4962, %v4990
        %v4997 = vadd.f32 %v4963, %v4990
        %v4998 = vadd.f32 %v4964, %v4990
        %v4999 = vadd.f32 %v4965, %v4990
        %v5000 = vadd.f32 %v4966, %v4990
        %v5001 = vadd.f32 %v4967, %v4990
        %v5002 = vadd.f32 %v4968, %v4990
        %v5003 = vadd.f32 %v4969, %v4990
        %v5004 = vadd.f32 %v4970, %v4990
        %v5005 = vadd.f32 %v4971, %v4990
        %v5006 = vadd.f32 %v4972, %v4990
        %v5007 = vadd.f32 %v4973, %v4990
        %v5008 = vadd.f32 %v4974, %v4990
        %v5009 = vadd.f32 %v4975, %v4990
        %v5010 = vadd.f32 %v4976, %v4990
        %v5011 = vadd.f32 %v4977, %v4990
        %v5012 = vadd.f32 %v4978, %v4990
        %v5013 = vadd.f32 %v4979, %v4990
        %v5014 = vadd.f32 %v4980, %v4990
        %v5015 = vadd.f32 %v4981, %v4990
        %v5016 = vadd.f32 %v4982, %v4990
        %v5017 = vadd.f32 %v4983, %v4990
        %v5018 = vadd.f32 %v4984, %v4990
        %v5019 = vadd.f32 %v4985, %v4990
        %v5020 = vadd.f32 %v4986, %v4990
        %v5021 = vadd.f32 %v4987, %v4990
        %v5022 = vadd.f32 %v4988, %v4990
        %v5023 = vmax.f32 %v4991, 0.0
        %v5024 = vmax.f32 %v4992, 0.0
        %v5025 = vmax.f32 %v4993, 0.0
        %v5026 = vmax.f32 %v4994, 0.0
        %v5027 = vmax.f32 %v4995, 0.0
        %v5028 = vmax.f32 %v4996, 0.0
        %v5029 = vmax.f32 %v4997, 0.0
        %v5030 = vmax.f32 %v4998, 0.0
        %v5031 = vmax.f32 %v4999, 0.0
        %v5032 = vmax.f32 %v5000, 0.0
        %v5033 = vmax.f32 %v5001, 0.0
        %v5034 = vmax.f32 %v5002, 0.0
        %v5035 = vmax.f32 %v5003, 0.0
        %v5036 = vmax.f32 %v5004, 0.0
        %v5037 = vmax.f32 %v5005, 0.0
        %v5038 = vmax.f32 %v5006, 0.0
        %v5039 = vmax.f32 %v5007, 0.0
        %v5040 = vmax.f32 %v5008, 0.0
        %v5041 = vmax.f32 %v5009, 0.0
        %v5042 = vmax.f32 %v5010, 0.0
        %v5043 = vmax.f32 %v5011, 0.0
        %v5044 = vmax.f32 %v5012, 0.0
        %v5045 = vmax.f32 %v5013, 0.0
        %v5046 = vmax.f32 %v5014, 0.0
        %v5047 = vmax.f32 %v5015, 0.0
        %v5048 = vmax.f32 %v5016, 0.0
        %v5049 = vmax.f32 %v5017, 0.0
        %v5050 = vmax.f32 %v5018, 0.0
        %v5051 = vmax.f32 %v5019, 0.0
        %v5052 = vmax.f32 %v5020, 0.0
        %v5053 = vmax.f32 %v5021, 0.0
        %v5054 = vmax.f32 %v5022, 0.0
        %v5055 = vpack.c.bf16 %v5023, %v5023
        %v5056 = vpack.c.bf16 %v5024, %v5024
        %v5057 = vpack.c.bf16 %v5025, %v5025
        %v5058 = vpack.c.bf16 %v5026, %v5026
        %v5059 = vpack.c.bf16 %v5027, %v5027
        %v5060 = vpack.c.bf16 %v5028, %v5028
        %v5061 = vpack.c.bf16 %v5029, %v5029
        %v5062 = vpack.c.bf16 %v5030, %v5030
        %v5063 = vpack.c.bf16 %v5031, %v5031
        %v5064 = vpack.c.bf16 %v5032, %v5032
        %v5065 = vpack.c.bf16 %v5033, %v5033
        %v5066 = vpack.c.bf16 %v5034, %v5034
        %v5067 = vpack.c.bf16 %v5035, %v5035
        %v5068 = vpack.c.bf16 %v5036, %v5036
        %v5069 = vpack.c.bf16 %v5037, %v5037
        %v5070 = vpack.c.bf16 %v5038, %v5038
        %v5071 = vpack.c.bf16 %v5039, %v5039
        %v5072 = vpack.c.bf16 %v5040, %v5040
        %v5073 = vpack.c.bf16 %v5041, %v5041
        %v5074 = vpack.c.bf16 %v5042, %v5042
        %v5075 = vpack.c.bf16 %v5043, %v5043
        %v5076 = vpack.c.bf16 %v5044, %v5044
        %v5077 = vpack.c.bf16 %v5045, %v5045
        %v5078 = vpack.c.bf16 %v5046, %v5046
        %v5079 = vpack.c.bf16 %v5047, %v5047
        %v5080 = vpack.c.bf16 %v5048, %v5048
        %v5081 = vpack.c.bf16 %v5049, %v5049
        %v5082 = vpack.c.bf16 %v5050, %v5050
        %v5083 = vpack.c.bf16 %v5051, %v5051
        %v5084 = vpack.c.bf16 %v5052, %v5052
        %v5085 = vpack.c.bf16 %v5053, %v5053
        %v5086 = vpack.c.bf16 %v5054, %v5054
        %v5088 = vshrl.u32 %v5055, 16
        %v5090 = vrot.slane %v5088, 7
        %v5091 = vshll.u32 %v5055, 16
        %v5093 = vor.u32 %v5090, %v5091
        %v5094 = vrot.slane %v5090, 4
        %v5096 = vshrl.u32 %v5056, 16
        %v5098 = vrot.slane %v5096, 7
        %v5099 = vshll.u32 %v5056, 16
        %v5101 = vor.u32 %v5098, %v5099
        %v5102 = vsel %vm394, %v5094, %v5101
        %v5103 = vrot.slane %v5098, 4
        %v5105 = vshrl.u32 %v5057, 16
        %v5107 = vrot.slane %v5105, 7
        %v5108 = vshll.u32 %v5057, 16
        %v5110 = vor.u32 %v5107, %v5108
        %v5111 = vrot.slane %v5107, 4
        %v5113 = vshrl.u32 %v5058, 16
        %v5115 = vrot.slane %v5113, 7
        %v5116 = vshll.u32 %v5058, 16
        %v5118 = vor.u32 %v5115, %v5116
        %v5119 = vsel %vm394, %v5111, %v5118
        %v5120 = vrot.slane %v5115, 4
        %v5122 = vshrl.u32 %v5059, 16
        %v5124 = vrot.slane %v5122, 7
        %v5125 = vshll.u32 %v5059, 16
        %v5127 = vor.u32 %v5124, %v5125
        %v5128 = vrot.slane %v5124, 4
        %v5130 = vshrl.u32 %v5060, 16
        %v5132 = vrot.slane %v5130, 7
        %v5133 = vshll.u32 %v5060, 16
        %v5135 = vor.u32 %v5132, %v5133
        %v5136 = vsel %vm394, %v5128, %v5135
        %v5137 = vrot.slane %v5132, 4
        %v5139 = vshrl.u32 %v5061, 16
        %v5141 = vrot.slane %v5139, 7
        %v5142 = vshll.u32 %v5061, 16
        %v5144 = vor.u32 %v5141, %v5142
        %v5145 = vrot.slane %v5141, 4
        %v5147 = vshrl.u32 %v5062, 16
        %v5149 = vrot.slane %v5147, 7
        %v5150 = vshll.u32 %v5062, 16
        %v5152 = vor.u32 %v5149, %v5150
        %v5153 = vsel %vm394, %v5145, %v5152
        %v5154 = vrot.slane %v5149, 4
        %v5156 = vshrl.u32 %v5063, 16
        %v5158 = vrot.slane %v5156, 7
        %v5159 = vshll.u32 %v5063, 16
        %v5161 = vor.u32 %v5158, %v5159
        %v5162 = vrot.slane %v5158, 4
        %v5164 = vshrl.u32 %v5064, 16
        %v5166 = vrot.slane %v5164, 7
        %v5167 = vshll.u32 %v5064, 16
        %v5169 = vor.u32 %v5166, %v5167
        %v5170 = vsel %vm394, %v5162, %v5169
        %v5171 = vrot.slane %v5166, 4
        %v5173 = vshrl.u32 %v5065, 16
        %v5175 = vrot.slane %v5173, 7
        %v5176 = vshll.u32 %v5065, 16
        %v5178 = vor.u32 %v5175, %v5176
        %v5179 = vrot.slane %v5175, 4
        %v5181 = vshrl.u32 %v5066, 16
        %v5183 = vrot.slane %v5181, 7
        %v5184 = vshll.u32 %v5066, 16
        %v5186 = vor.u32 %v5183, %v5184
        %v5187 = vsel %vm394, %v5179, %v5186
        %v5188 = vrot.slane %v5183, 4
        %v5190 = vshrl.u32 %v5067, 16
        %v5192 = vrot.slane %v5190, 7
        %v5193 = vshll.u32 %v5067, 16
        %v5195 = vor.u32 %v5192, %v5193
        %v5196 = vrot.slane %v5192, 4
        %v5198 = vshrl.u32 %v5068, 16
        %v5200 = vrot.slane %v5198, 7
        %v5201 = vshll.u32 %v5068, 16
        %v5203 = vor.u32 %v5200, %v5201
        %v5204 = vsel %vm394, %v5196, %v5203
        %v5205 = vrot.slane %v5200, 4
        %v5207 = vshrl.u32 %v5069, 16
        %v5209 = vrot.slane %v5207, 7
        %v5210 = vshll.u32 %v5069, 16
        %v5212 = vor.u32 %v5209, %v5210
        %v5213 = vrot.slane %v5209, 4
        %v5215 = vshrl.u32 %v5070, 16
        %v5217 = vrot.slane %v5215, 7
        %v5218 = vshll.u32 %v5070, 16
        %v5220 = vor.u32 %v5217, %v5218
        %v5221 = vsel %vm394, %v5213, %v5220
        %v5222 = vrot.slane %v5217, 4
        %v5224 = vshrl.u32 %v5071, 16
        %v5226 = vrot.slane %v5224, 7
        %v5227 = vshll.u32 %v5071, 16
        %v5229 = vor.u32 %v5226, %v5227
        %v5230 = vrot.slane %v5226, 4
        %v5232 = vshrl.u32 %v5072, 16
        %v5234 = vrot.slane %v5232, 7
        %v5235 = vshll.u32 %v5072, 16
        %v5237 = vor.u32 %v5234, %v5235
        %v5238 = vsel %vm394, %v5230, %v5237
        %v5239 = vrot.slane %v5234, 4
        %v5241 = vshrl.u32 %v5073, 16
        %v5243 = vrot.slane %v5241, 7
        %v5244 = vshll.u32 %v5073, 16
        %v5246 = vor.u32 %v5243, %v5244
        %v5247 = vrot.slane %v5243, 4
        %v5249 = vshrl.u32 %v5074, 16
        %v5251 = vrot.slane %v5249, 7
        %v5252 = vshll.u32 %v5074, 16
        %v5254 = vor.u32 %v5251, %v5252
        %v5255 = vsel %vm394, %v5247, %v5254
        %v5256 = vrot.slane %v5251, 4
        %v5258 = vshrl.u32 %v5075, 16
        %v5260 = vrot.slane %v5258, 7
        %v5261 = vshll.u32 %v5075, 16
        %v5263 = vor.u32 %v5260, %v5261
        %v5264 = vrot.slane %v5260, 4
        %v5266 = vshrl.u32 %v5076, 16
        %v5268 = vrot.slane %v5266, 7
        %v5269 = vshll.u32 %v5076, 16
        %v5271 = vor.u32 %v5268, %v5269
        %v5272 = vsel %vm394, %v5264, %v5271
        %v5273 = vrot.slane %v5268, 4
        %v5275 = vshrl.u32 %v5077, 16
        %v5277 = vrot.slane %v5275, 7
        %v5278 = vshll.u32 %v5077, 16
        %v5280 = vor.u32 %v5277, %v5278
        %v5281 = vrot.slane %v5277, 4
        %v5283 = vshrl.u32 %v5078, 16
        %v5285 = vrot.slane %v5283, 7
        %v5286 = vshll.u32 %v5078, 16
        %v5288 = vor.u32 %v5285, %v5286
        %v5289 = vsel %vm394, %v5281, %v5288
        %v5290 = vrot.slane %v5285, 4
        %v5292 = vshrl.u32 %v5079, 16
        %v5294 = vrot.slane %v5292, 7
        %v5295 = vshll.u32 %v5079, 16
        %v5297 = vor.u32 %v5294, %v5295
        %v5298 = vrot.slane %v5294, 4
        %v5300 = vshrl.u32 %v5080, 16
        %v5302 = vrot.slane %v5300, 7
        %v5303 = vshll.u32 %v5080, 16
        %v5305 = vor.u32 %v5302, %v5303
        %v5306 = vsel %vm394, %v5298, %v5305
        %v5307 = vrot.slane %v5302, 4
        %v5309 = vshrl.u32 %v5081, 16
        %v5311 = vrot.slane %v5309, 7
        %v5312 = vshll.u32 %v5081, 16
        %v5314 = vor.u32 %v5311, %v5312
        %v5315 = vrot.slane %v5311, 4
        %v5317 = vshrl.u32 %v5082, 16
        %v5319 = vrot.slane %v5317, 7
        %v5320 = vshll.u32 %v5082, 16
        %v5322 = vor.u32 %v5319, %v5320
        %v5323 = vsel %vm394, %v5315, %v5322
        %v5324 = vrot.slane %v5319, 4
        %v5326 = vshrl.u32 %v5083, 16
        %v5328 = vrot.slane %v5326, 7
        %v5329 = vshll.u32 %v5083, 16
        %v5331 = vor.u32 %v5328, %v5329
        %v5332 = vrot.slane %v5328, 4
        %v5334 = vshrl.u32 %v5084, 16
        %v5336 = vrot.slane %v5334, 7
        %v5337 = vshll.u32 %v5084, 16
        %v5339 = vor.u32 %v5336, %v5337
        %v5340 = vsel %vm394, %v5332, %v5339
        %v5341 = vrot.slane %v5336, 4
        %v5343 = vshrl.u32 %v5085, 16
        %v5345 = vrot.slane %v5343, 7
        %v5346 = vshll.u32 %v5085, 16
        %v5348 = vor.u32 %v5345, %v5346
        %v5349 = vrot.slane %v5345, 4
        %v5351 = vshrl.u32 %v5086, 16
        %v5353 = vrot.slane %v5351, 7
        %v5354 = vshll.u32 %v5086, 16
        %v5356 = vor.u32 %v5353, %v5354
        %v5357 = vsel %vm394, %v5349, %v5356
        %v5358 = vrot.slane %v5353, 4
        %v5407 = vsel %vm716, %v5093, %v2458
        %5408 = vst [vmem:[%s259] sm:$0xf] %v5407
        %5409 = vst [vmem:[%s259 + $0x4] sm:$0xf] %v5102
        %v5410 = vld [vmem:[%s259 + $0x8] sm:$0x1]
        %v5411 = vsel %vm262, %v5103, %v5410
        %5412 = vst [vmem:[%s259 + $0x8] sm:$0x1] %v5411
        %v5413 = vld [vmem:[%s259 + $0xc] sm:$0xf]
        %v5414 = vsel %vm716, %v5110, %v5413
        %5415 = vst [vmem:[%s259 + $0xc] sm:$0xf] %v5414
        %5416 = vst [vmem:[%s259 + $0x10] sm:$0xf] %v5119
        %v5417 = vld [vmem:[%s259 + $0x14] sm:$0x1]
        %v5418 = vsel %vm262, %v5120, %v5417
        %5419 = vst [vmem:[%s259 + $0x14] sm:$0x1] %v5418
        %v5420 = vld [vmem:[%s259 + $0x18] sm:$0xf]
        %v5421 = vsel %vm716, %v5127, %v5420
        %5422 = vst [vmem:[%s259 + $0x18] sm:$0xf] %v5421
        %5423 = vst [vmem:[%s259 + $0x1c] sm:$0xf] %v5136
        %v5424 = vld [vmem:[%s259 + $0x20] sm:$0x1]
        %v5425 = vsel %vm262, %v5137, %v5424
        %5426 = vst [vmem:[%s259 + $0x20] sm:$0x1] %v5425
        %v5427 = vld [vmem:[%s259 + $0x24] sm:$0xf]
        %v5428 = vsel %vm716, %v5144, %v5427
        %5429 = vst [vmem:[%s259 + $0x24] sm:$0xf] %v5428
        %5430 = vst [vmem:[%s259 + $0x28] sm:$0xf] %v5153
        %v5431 = vld [vmem:[%s259 + $0x2c] sm:$0x1]
        %v5432 = vsel %vm262, %v5154, %v5431
        %5433 = vst [vmem:[%s259 + $0x2c] sm:$0x1] %v5432
        %v5434 = vld [vmem:[%s259 + $0x30] sm:$0xf]
        %v5435 = vsel %vm716, %v5161, %v5434
        %5436 = vst [vmem:[%s259 + $0x30] sm:$0xf] %v5435
        %5437 = vst [vmem:[%s259 + $0x34] sm:$0xf] %v5170
        %v5438 = vld [vmem:[%s259 + $0x38] sm:$0x1]
        %v5439 = vsel %vm262, %v5171, %v5438
        %5440 = vst [vmem:[%s259 + $0x38] sm:$0x1] %v5439
        %v5441 = vld [vmem:[%s259 + $0x3c] sm:$0xf]
        %v5442 = vsel %vm716, %v5178, %v5441
        %5443 = vst [vmem:[%s259 + $0x3c] sm:$0xf] %v5442
        %5444 = vst [vmem:[%s259 + $0x40] sm:$0xf] %v5187
        %v5445 = vld [vmem:[%s259 + $0x44] sm:$0x1]
        %v5446 = vsel %vm262, %v5188, %v5445
        %5447 = vst [vmem:[%s259 + $0x44] sm:$0x1] %v5446
        %v5448 = vld [vmem:[%s259 + $0x48] sm:$0xf]
        %v5449 = vsel %vm716, %v5195, %v5448
        %5450 = vst [vmem:[%s259 + $0x48] sm:$0xf] %v5449
        %5451 = vst [vmem:[%s259 + $0x4c] sm:$0xf] %v5204
        %v5452 = vld [vmem:[%s259 + $0x50] sm:$0x1]
        %v5453 = vsel %vm262, %v5205, %v5452
        %5454 = vst [vmem:[%s259 + $0x50] sm:$0x1] %v5453
        %v5455 = vld [vmem:[%s259 + $0x54] sm:$0xf]
        %v5456 = vsel %vm716, %v5212, %v5455
        %5457 = vst [vmem:[%s259 + $0x54] sm:$0xf] %v5456
        %5458 = vst [vmem:[%s259 + $0x58] sm:$0xf] %v5221
        %v5459 = vld [vmem:[%s259 + $0x5c] sm:$0x1]
        %v5460 = vsel %vm262, %v5222, %v5459
        %5461 = vst [vmem:[%s259 + $0x5c] sm:$0x1] %v5460
        %v5462 = vld [vmem:[%s259 + $0x60] sm:$0xf]
        %v5463 = vsel %vm716, %v5229, %v5462
        %5464 = vst [vmem:[%s259 + $0x60] sm:$0xf] %v5463
        %5465 = vst [vmem:[%s259 + $0x64] sm:$0xf] %v5238
        %v5466 = vld [vmem:[%s259 + $0x68] sm:$0x1]
        %v5467 = vsel %vm262, %v5239, %v5466
        %5468 = vst [vmem:[%s259 + $0x68] sm:$0x1] %v5467
        %v5469 = vld [vmem:[%s259 + $0x6c] sm:$0xf]
        %v5470 = vsel %vm716, %v5246, %v5469
        %5471 = vst [vmem:[%s259 + $0x6c] sm:$0xf] %v5470
        %5472 = vst [vmem:[%s259 + $0x70] sm:$0xf] %v5255
        %v5473 = vld [vmem:[%s259 + $0x74] sm:$0x1]
        %v5474 = vsel %vm262, %v5256, %v5473
        %5475 = vst [vmem:[%s259 + $0x74] sm:$0x1] %v5474
        %v5476 = vld [vmem:[%s259 + $0x78] sm:$0xf]
        %v5477 = vsel %vm716, %v5263, %v5476
        %5478 = vst [vmem:[%s259 + $0x78] sm:$0xf] %v5477
        %5479 = vst [vmem:[%s259 + $0x7c] sm:$0xf] %v5272
        %v5480 = vld [vmem:[%s259 + $0x80] sm:$0x1]
        %v5481 = vsel %vm262, %v5273, %v5480
        %5482 = vst [vmem:[%s259 + $0x80] sm:$0x1] %v5481
        %v5483 = vld [vmem:[%s259 + $0x84] sm:$0xf]
        %v5484 = vsel %vm716, %v5280, %v5483
        %5485 = vst [vmem:[%s259 + $0x84] sm:$0xf] %v5484
        %5486 = vst [vmem:[%s259 + $0x88] sm:$0xf] %v5289
        %v5487 = vld [vmem:[%s259 + $0x8c] sm:$0x1]
        %v5488 = vsel %vm262, %v5290, %v5487
        %5489 = vst [vmem:[%s259 + $0x8c] sm:$0x1] %v5488
        %v5490 = vld [vmem:[%s259 + $0x90] sm:$0xf]
        %v5491 = vsel %vm716, %v5297, %v5490
        %5492 = vst [vmem:[%s259 + $0x90] sm:$0xf] %v5491
        %5493 = vst [vmem:[%s259 + $0x94] sm:$0xf] %v5306
        %v5494 = vld [vmem:[%s259 + $0x98] sm:$0x1]
        %v5495 = vsel %vm262, %v5307, %v5494
        %5496 = vst [vmem:[%s259 + $0x98] sm:$0x1] %v5495
        %v5497 = vld [vmem:[%s259 + $0x9c] sm:$0xf]
        %v5498 = vsel %vm716, %v5314, %v5497
        %5499 = vst [vmem:[%s259 + $0x9c] sm:$0xf] %v5498
        %5500 = vst [vmem:[%s259 + $0xa0] sm:$0xf] %v5323
        %v5501 = vld [vmem:[%s259 + $0xa4] sm:$0x1]
        %v5502 = vsel %vm262, %v5324, %v5501
        %5503 = vst [vmem:[%s259 + $0xa4] sm:$0x1] %v5502
        %v5504 = vld [vmem:[%s259 + $0xa8] sm:$0xf]
        %v5505 = vsel %vm716, %v5331, %v5504
        %5506 = vst [vmem:[%s259 + $0xa8] sm:$0xf] %v5505
        %5507 = vst [vmem:[%s259 + $0xac] sm:$0xf] %v5340
        %v5508 = vld [vmem:[%s259 + $0xb0] sm:$0x1]
        %v5509 = vsel %vm262, %v5341, %v5508
        %5510 = vst [vmem:[%s259 + $0xb0] sm:$0x1] %v5509
        %v5511 = vld [vmem:[%s259 + $0xb4] sm:$0xf]
        %v5512 = vsel %vm716, %v5348, %v5511
        %5513 = vst [vmem:[%s259 + $0xb4] sm:$0xf] %v5512
        %5514 = vst [vmem:[%s259 + $0xb8] sm:$0xf] %v5357
        %v5515 = vld [vmem:[%s259 + $0xbc] sm:$0x1]
        %v5516 = vsel %vm262, %v5358, %v5515
        %5517 = vst [vmem:[%s259 + $0xbc] sm:$0x1] %v5516
        %v5518 = vld [vmem:[#allocation2] sm:$0xf]
        %v5519 = vld [vmem:[#allocation2 + $0x4] sm:$0xf]
        %v5520 = vld [vmem:[#allocation2 + $0xc] sm:$0xf]
        %v5521 = vld [vmem:[#allocation2 + $0x10] sm:$0xf]
        %v5522 = vld [vmem:[#allocation2 + $0x18] sm:$0xf]
        %v5523 = vld [vmem:[#allocation2 + $0x1c] sm:$0xf]
        %v5524 = vld [vmem:[#allocation2 + $0x24] sm:$0xf]
        %v5525 = vld [vmem:[#allocation2 + $0x28] sm:$0xf]
        %v5526 = vld [vmem:[#allocation2 + $0x30] sm:$0xf]
        %v5527 = vld [vmem:[#allocation2 + $0x34] sm:$0xf]
        %v5528 = vld [vmem:[#allocation2 + $0x3c] sm:$0xf]
        %v5529 = vld [vmem:[#allocation2 + $0x40] sm:$0xf]
        %v5530 = vld [vmem:[#allocation2 + $0x48] sm:$0xf]
        %v5531 = vld [vmem:[#allocation2 + $0x4c] sm:$0xf]
        %v5532 = vld [vmem:[#allocation2 + $0x54] sm:$0xf]
        %v5533 = vld [vmem:[#allocation2 + $0x58] sm:$0xf]
        %v5534 = vld [vmem:[#allocation2 + $0x60] sm:$0xf]
        %v5535 = vld [vmem:[#allocation2 + $0x64] sm:$0xf]
        %v5536 = vld [vmem:[#allocation2 + $0x6c] sm:$0xf]
        %v5537 = vld [vmem:[#allocation2 + $0x70] sm:$0xf]
        %v5538 = vld [vmem:[#allocation2 + $0x78] sm:$0xf]
        %v5539 = vld [vmem:[#allocation2 + $0x7c] sm:$0xf]
        %v5540 = vld [vmem:[#allocation2 + $0x84] sm:$0xf]
        %v5541 = vld [vmem:[#allocation2 + $0x88] sm:$0xf]
        %v5542 = vld [vmem:[#allocation2 + $0x90] sm:$0xf]
        %v5543 = vld [vmem:[#allocation2 + $0x94] sm:$0xf]
        %v5544 = vld [vmem:[#allocation2 + $0x9c] sm:$0xf]
        %v5545 = vld [vmem:[#allocation2 + $0xa0] sm:$0xf]
        %v5546 = vld [vmem:[#allocation2 + $0xa8] sm:$0xf]
        %v5547 = vld [vmem:[#allocation2 + $0xac] sm:$0xf]
        %v5548 = vld [vmem:[#allocation2 + $0xb4] sm:$0xf]
        %v5549 = vld [vmem:[#allocation2 + $0xb8] sm:$0xf]
        %v5550 = vld [vmem:[#allocation8] sm:$0xf]
        %v5551 = vld [vmem:[#allocation8 + $0x4] sm:$0xf]
        %v5552 = vld [vmem:[#allocation8 + $0x8] sm:$0xf]
        %v5553 = vld [vmem:[#allocation8 + $0xc] sm:$0xf]
        %v5554 = vld [vmem:[#allocation8 + $0x10] sm:$0xf]
        %v5555 = vld [vmem:[#allocation8 + $0x14] sm:$0xf]
        %v5556 = vld [vmem:[#allocation8 + $0x18] sm:$0xf]
        %v5557 = vld [vmem:[#allocation8 + $0x1c] sm:$0xf]
        %v5558 = vld [vmem:[#allocation8 + $0x20] sm:$0xf]
        %v5559 = vld [vmem:[#allocation8 + $0x24] sm:$0xf]
        %v5560 = vld [vmem:[#allocation8 + $0x28] sm:$0xf]
        %v5561 = vld [vmem:[#allocation8 + $0x2c] sm:$0xf]
        %v5562 = vld [vmem:[#allocation8 + $0x30] sm:$0xf]
        %v5563 = vld [vmem:[#allocation8 + $0x34] sm:$0xf]
        %v5564 = vld [vmem:[#allocation8 + $0x38] sm:$0xf]
        %v5565 = vld [vmem:[#allocation8 + $0x3c] sm:$0xf]
        %v5566 = vld [vmem:[#allocation2 + $0x8] sm:$0x1]
        %v5567 = vld [vmem:[#allocation2 + $0x14] sm:$0x1]
        %v5568 = vld [vmem:[#allocation2 + $0x20] sm:$0x1]
        %v5569 = vld [vmem:[#allocation2 + $0x2c] sm:$0x1]
        %v5570 = vld [vmem:[#allocation2 + $0x38] sm:$0x1]
        %v5571 = vld [vmem:[#allocation2 + $0x44] sm:$0x1]
        %v5572 = vld [vmem:[#allocation2 + $0x50] sm:$0x1]
        %v5573 = vld [vmem:[#allocation2 + $0x5c] sm:$0x1]
        %v5574 = vld [vmem:[#allocation2 + $0x68] sm:$0x1]
        %v5575 = vld [vmem:[#allocation2 + $0x74] sm:$0x1]
        %v5576 = vld [vmem:[#allocation2 + $0x80] sm:$0x1]
        %v5577 = vld [vmem:[#allocation2 + $0x8c] sm:$0x1]
        %v5578 = vld [vmem:[#allocation2 + $0x98] sm:$0x1]
        %v5579 = vld [vmem:[#allocation2 + $0xa4] sm:$0x1]
        %v5580 = vld [vmem:[#allocation2 + $0xb0] sm:$0x1]
        %v5581 = vld [vmem:[#allocation2 + $0xbc] sm:$0x1]
        %v5583 = vshrl.u32 %v5518, 16
        %v5585 = vrot.slane %v5583, 4
        %v5586 = vshll.u32 %v5518, 16
        %v5588 = vrot.slane %v5586, 5
        %v5589 = vor.u32 %v5585, %v5588
        %v5590 = vrot.slane %v5589, 4
        %v5592 = vshll.u32 %v5519, 16
        %v5594 = vrot.slane %v5592, 5
        %v5595 = vsel %vm895, %v5590, %v5594
        %v5596 = vshrl.u32 %v5519, 16
        %v5598 = vrot.slane %v5596, 4
        %v5599 = vor.u32 %v5598, %v5594
        %v5600 = vrot.slane %v5599, 4
        %v5602 = vshll.u32 %v5566, 16
        %v5604 = vrot.slane %v5602, 5
        %v5605 = vsel %vm895, %v5600, %v5604
        %v5607 = vshrl.u32 %v5520, 16
        %v5609 = vrot.slane %v5607, 4
        %v5610 = vshll.u32 %v5520, 16
        %v5612 = vrot.slane %v5610, 5
        %v5613 = vor.u32 %v5609, %v5612
        %v5614 = vrot.slane %v5613, 4
        %v5616 = vshll.u32 %v5521, 16
        %v5618 = vrot.slane %v5616, 5
        %v5619 = vsel %vm895, %v5614, %v5618
        %v5620 = vshrl.u32 %v5521, 16
        %v5622 = vrot.slane %v5620, 4
        %v5623 = vor.u32 %v5622, %v5618
        %v5624 = vrot.slane %v5623, 4
        %v5626 = vshll.u32 %v5567, 16
        %v5628 = vrot.slane %v5626, 5
        %v5629 = vsel %vm895, %v5624, %v5628
        %v5631 = vshrl.u32 %v5522, 16
        %v5633 = vrot.slane %v5631, 4
        %v5634 = vshll.u32 %v5522, 16
        %v5636 = vrot.slane %v5634, 5
        %v5637 = vor.u32 %v5633, %v5636
        %v5638 = vrot.slane %v5637, 4
        %v5640 = vshll.u32 %v5523, 16
        %v5642 = vrot.slane %v5640, 5
        %v5643 = vsel %vm895, %v5638, %v5642
        %v5644 = vshrl.u32 %v5523, 16
        %v5646 = vrot.slane %v5644, 4
        %v5647 = vor.u32 %v5646, %v5642
        %v5648 = vrot.slane %v5647, 4
        %v5650 = vshll.u32 %v5568, 16
        %v5652 = vrot.slane %v5650, 5
        %v5653 = vsel %vm895, %v5648, %v5652
        %v5655 = vshrl.u32 %v5524, 16
        %v5657 = vrot.slane %v5655, 4
        %v5658 = vshll.u32 %v5524, 16
        %v5660 = vrot.slane %v5658, 5
        %v5661 = vor.u32 %v5657, %v5660
        %v5662 = vrot.slane %v5661, 4
        %v5664 = vshll.u32 %v5525, 16
        %v5666 = vrot.slane %v5664, 5
        %v5667 = vsel %vm895, %v5662, %v5666
        %v5668 = vshrl.u32 %v5525, 16
        %v5670 = vrot.slane %v5668, 4
        %v5671 = vor.u32 %v5670, %v5666
        %v5672 = vrot.slane %v5671, 4
        %v5674 = vshll.u32 %v5569, 16
        %v5676 = vrot.slane %v5674, 5
        %v5677 = vsel %vm895, %v5672, %v5676
        %v5679 = vshrl.u32 %v5526, 16
        %v5681 = vrot.slane %v5679, 4
        %v5682 = vshll.u32 %v5526, 16
        %v5684 = vrot.slane %v5682, 5
        %v5685 = vor.u32 %v5681, %v5684
        %v5686 = vrot.slane %v5685, 4
        %v5688 = vshll.u32 %v5527, 16
        %v5690 = vrot.slane %v5688, 5
        %v5691 = vsel %vm895, %v5686, %v5690
        %v5692 = vshrl.u32 %v5527, 16
        %v5694 = vrot.slane %v5692, 4
        %v5695 = vor.u32 %v5694, %v5690
        %v5696 = vrot.slane %v5695, 4
        %v5698 = vshll.u32 %v5570, 16
        %v5700 = vrot.slane %v5698, 5
        %v5701 = vsel %vm895, %v5696, %v5700
        %v5703 = vshrl.u32 %v5528, 16
        %v5705 = vrot.slane %v5703, 4
        %v5706 = vshll.u32 %v5528, 16
        %v5708 = vrot.slane %v5706, 5
        %v5709 = vor.u32 %v5705, %v5708
        %v5710 = vrot.slane %v5709, 4
        %v5712 = vshll.u32 %v5529, 16
        %v5714 = vrot.slane %v5712, 5
        %v5715 = vsel %vm895, %v5710, %v5714
        %v5716 = vshrl.u32 %v5529, 16
        %v5718 = vrot.slane %v5716, 4
        %v5719 = vor.u32 %v5718, %v5714
        %v5720 = vrot.slane %v5719, 4
        %v5722 = vshll.u32 %v5571, 16
        %v5724 = vrot.slane %v5722, 5
        %v5725 = vsel %vm895, %v5720, %v5724
        %v5727 = vshrl.u32 %v5530, 16
        %v5729 = vrot.slane %v5727, 4
        %v5730 = vshll.u32 %v5530, 16
        %v5732 = vrot.slane %v5730, 5
        %v5733 = vor.u32 %v5729, %v5732
        %v5734 = vrot.slane %v5733, 4
        %v5736 = vshll.u32 %v5531, 16
        %v5738 = vrot.slane %v5736, 5
        %v5739 = vsel %vm895, %v5734, %v5738
        %v5740 = vshrl.u32 %v5531, 16
        %v5742 = vrot.slane %v5740, 4
        %v5743 = vor.u32 %v5742, %v5738
        %v5744 = vrot.slane %v5743, 4
        %v5746 = vshll.u32 %v5572, 16
        %v5748 = vrot.slane %v5746, 5
        %v5749 = vsel %vm895, %v5744, %v5748
        %v5751 = vshrl.u32 %v5532, 16
        %v5753 = vrot.slane %v5751, 4
        %v5754 = vshll.u32 %v5532, 16
        %v5756 = vrot.slane %v5754, 5
        %v5757 = vor.u32 %v5753, %v5756
        %v5758 = vrot.slane %v5757, 4
        %v5760 = vshll.u32 %v5533, 16
        %v5762 = vrot.slane %v5760, 5
        %v5763 = vsel %vm895, %v5758, %v5762
        %v5764 = vshrl.u32 %v5533, 16
        %v5766 = vrot.slane %v5764, 4
        %v5767 = vor.u32 %v5766, %v5762
        %v5768 = vrot.slane %v5767, 4
        %v5770 = vshll.u32 %v5573, 16
        %v5772 = vrot.slane %v5770, 5
        %v5773 = vsel %vm895, %v5768, %v5772
        %v5775 = vshrl.u32 %v5534, 16
        %v5777 = vrot.slane %v5775, 4
        %v5778 = vshll.u32 %v5534, 16
        %v5780 = vrot.slane %v5778, 5
        %v5781 = vor.u32 %v5777, %v5780
        %v5782 = vrot.slane %v5781, 4
        %v5784 = vshll.u32 %v5535, 16
        %v5786 = vrot.slane %v5784, 5
        %v5787 = vsel %vm895, %v5782, %v5786
        %v5788 = vshrl.u32 %v5535, 16
        %v5790 = vrot.slane %v5788, 4
        %v5791 = vor.u32 %v5790, %v5786
        %v5792 = vrot.slane %v5791, 4
        %v5794 = vshll.u32 %v5574, 16
        %v5796 = vrot.slane %v5794, 5
        %v5797 = vsel %vm895, %v5792, %v5796
        %v5799 = vshrl.u32 %v5536, 16
        %v5801 = vrot.slane %v5799, 4
        %v5802 = vshll.u32 %v5536, 16
        %v5804 = vrot.slane %v5802, 5
        %v5805 = vor.u32 %v5801, %v5804
        %v5806 = vrot.slane %v5805, 4
        %v5808 = vshll.u32 %v5537, 16
        %v5810 = vrot.slane %v5808, 5
        %v5811 = vsel %vm895, %v5806, %v5810
        %v5812 = vshrl.u32 %v5537, 16
        %v5814 = vrot.slane %v5812, 4
        %v5815 = vor.u32 %v5814, %v5810
        %v5816 = vrot.slane %v5815, 4
        %v5818 = vshll.u32 %v5575, 16
        %v5820 = vrot.slane %v5818, 5
        %v5821 = vsel %vm895, %v5816, %v5820
        %v5823 = vshrl.u32 %v5538, 16
        %v5825 = vrot.slane %v5823, 4
        %v5826 = vshll.u32 %v5538, 16
        %v5828 = vrot.slane %v5826, 5
        %v5829 = vor.u32 %v5825, %v5828
        %v5830 = vrot.slane %v5829, 4
        %v5832 = vshll.u32 %v5539, 16
        %v5834 = vrot.slane %v5832, 5
        %v5835 = vsel %vm895, %v5830, %v5834
        %v5836 = vshrl.u32 %v5539, 16
        %v5838 = vrot.slane %v5836, 4
        %v5839 = vor.u32 %v5838, %v5834
        %v5840 = vrot.slane %v5839, 4
        %v5842 = vshll.u32 %v5576, 16
        %v5844 = vrot.slane %v5842, 5
        %v5845 = vsel %vm895, %v5840, %v5844
        %v5847 = vshrl.u32 %v5540, 16
        %v5849 = vrot.slane %v5847, 4
        %v5850 = vshll.u32 %v5540, 16
        %v5852 = vrot.slane %v5850, 5
        %v5853 = vor.u32 %v5849, %v5852
        %v5854 = vrot.slane %v5853, 4
        %v5856 = vshll.u32 %v5541, 16
        %v5858 = vrot.slane %v5856, 5
        %v5859 = vsel %vm895, %v5854, %v5858
        %v5860 = vshrl.u32 %v5541, 16
        %v5862 = vrot.slane %v5860, 4
        %v5863 = vor.u32 %v5862, %v5858
        %v5864 = vrot.slane %v5863, 4
        %v5866 = vshll.u32 %v5577, 16
        %v5868 = vrot.slane %v5866, 5
        %v5869 = vsel %vm895, %v5864, %v5868
        %v5871 = vshrl.u32 %v5542, 16
        %v5873 = vrot.slane %v5871, 4
        %v5874 = vshll.u32 %v5542, 16
        %v5876 = vrot.slane %v5874, 5
        %v5877 = vor.u32 %v5873, %v5876
        %v5878 = vrot.slane %v5877, 4
        %v5880 = vshll.u32 %v5543, 16
        %v5882 = vrot.slane %v5880, 5
        %v5883 = vsel %vm895, %v5878, %v5882
        %v5884 = vshrl.u32 %v5543, 16
        %v5886 = vrot.slane %v5884, 4
        %v5887 = vor.u32 %v5886, %v5882
        %v5888 = vrot.slane %v5887, 4
        %v5890 = vshll.u32 %v5578, 16
        %v5892 = vrot.slane %v5890, 5
        %v5893 = vsel %vm895, %v5888, %v5892
        %v5895 = vshrl.u32 %v5544, 16
        %v5897 = vrot.slane %v5895, 4
        %v5898 = vshll.u32 %v5544, 16
        %v5900 = vrot.slane %v5898, 5
        %v5901 = vor.u32 %v5897, %v5900
        %v5902 = vrot.slane %v5901, 4
        %v5904 = vshll.u32 %v5545, 16
        %v5906 = vrot.slane %v5904, 5
        %v5907 = vsel %vm895, %v5902, %v5906
        %v5908 = vshrl.u32 %v5545, 16
        %v5910 = vrot.slane %v5908, 4
        %v5911 = vor.u32 %v5910, %v5906
        %v5912 = vrot.slane %v5911, 4
        %v5914 = vshll.u32 %v5579, 16
        %v5916 = vrot.slane %v5914, 5
        %v5917 = vsel %vm895, %v5912, %v5916
        %v5919 = vshrl.u32 %v5546, 16
        %v5921 = vrot.slane %v5919, 4
        %v5922 = vshll.u32 %v5546, 16
        %v5924 = vrot.slane %v5922, 5
        %v5925 = vor.u32 %v5921, %v5924
        %v5926 = vrot.slane %v5925, 4
        %v5928 = vshll.u32 %v5547, 16
        %v5930 = vrot.slane %v5928, 5
        %v5931 = vsel %vm895, %v5926, %v5930
        %v5932 = vshrl.u32 %v5547, 16
        %v5934 = vrot.slane %v5932, 4
        %v5935 = vor.u32 %v5934, %v5930
        %v5936 = vrot.slane %v5935, 4
        %v5938 = vshll.u32 %v5580, 16
        %v5940 = vrot.slane %v5938, 5
        %v5941 = vsel %vm895, %v5936, %v5940
        %v5943 = vshrl.u32 %v5548, 16
        %v5945 = vrot.slane %v5943, 4
        %v5946 = vshll.u32 %v5548, 16
        %v5948 = vrot.slane %v5946, 5
        %v5949 = vor.u32 %v5945, %v5948
        %v5950 = vrot.slane %v5949, 4
        %v5952 = vshll.u32 %v5549, 16
        %v5954 = vrot.slane %v5952, 5
        %v5955 = vsel %vm895, %v5950, %v5954
        %v5956 = vshrl.u32 %v5549, 16
        %v5958 = vrot.slane %v5956, 4
        %v5959 = vor.u32 %v5958, %v5954
        %v5960 = vrot.slane %v5959, 4
        %v5962 = vshll.u32 %v5581, 16
        %v5964 = vrot.slane %v5962, 5
        %v5965 = vsel %vm895, %v5960, %v5964
        %s5966 = scalar_lea.vmem [#allocation8], 64
        %v5967 = vld [vmem:[%s5966] sm:$0xf]
        %v5968 = vld [vmem:[%s5966 + $0x4] sm:$0xf]
        %v5969 = vld [vmem:[%s5966 + $0x8] sm:$0xf]
        %v5970 = vld [vmem:[%s5966 + $0xc] sm:$0xf]
        %v5971 = vld [vmem:[%s5966 + $0x10] sm:$0xf]
        %v5972 = vld [vmem:[%s5966 + $0x14] sm:$0xf]
        %v5973 = vld [vmem:[%s5966 + $0x18] sm:$0xf]
        %v5974 = vld [vmem:[%s5966 + $0x1c] sm:$0xf]
        %v5975 = vld [vmem:[%s5966 + $0x20] sm:$0xf]
        %v5976 = vld [vmem:[%s5966 + $0x24] sm:$0xf]
        %v5977 = vld [vmem:[%s5966 + $0x28] sm:$0xf]
        %v5978 = vld [vmem:[%s5966 + $0x2c] sm:$0xf]
        %v5979 = vld [vmem:[%s5966 + $0x30] sm:$0xf]
        %v5980 = vld [vmem:[%s5966 + $0x34] sm:$0xf]
        %v5981 = vld [vmem:[%s5966 + $0x38] sm:$0xf]
        %v5982 = vld [vmem:[%s5966 + $0x3c] sm:$0xf]
        %v5983 = vunpack.c.l.b16 %v5595
        %v5984 = vunpack.c.l.b16 %v5605
        %v5985 = vunpack.c.l.b16 %v5619
        %v5986 = vunpack.c.l.b16 %v5629
        %v5987 = vunpack.c.l.b16 %v5643
        %v5988 = vunpack.c.l.b16 %v5653
        %v5989 = vunpack.c.l.b16 %v5667
        %v5990 = vunpack.c.l.b16 %v5677
        %v5991 = vunpack.c.l.b16 %v5691
        %v5992 = vunpack.c.l.b16 %v5701
        %v5993 = vunpack.c.l.b16 %v5715
        %v5994 = vunpack.c.l.b16 %v5725
        %v5995 = vunpack.c.l.b16 %v5739
        %v5996 = vunpack.c.l.b16 %v5749
        %v5997 = vunpack.c.l.b16 %v5763
        %v5998 = vunpack.c.l.b16 %v5773
        %v5999 = vunpack.c.l.b16 %v5787
        %v6000 = vunpack.c.l.b16 %v5797
        %v6001 = vunpack.c.l.b16 %v5811
        %v6002 = vunpack.c.l.b16 %v5821
        %v6003 = vunpack.c.l.b16 %v5835
        %v6004 = vunpack.c.l.b16 %v5845
        %v6005 = vunpack.c.l.b16 %v5859
        %v6006 = vunpack.c.l.b16 %v5869
        %v6007 = vunpack.c.l.b16 %v5883
        %v6008 = vunpack.c.l.b16 %v5893
        %v6009 = vunpack.c.l.b16 %v5907
        %v6010 = vunpack.c.l.b16 %v5917
        %v6011 = vunpack.c.l.b16 %v5931
        %v6012 = vunpack.c.l.b16 %v5941
        %v6013 = vunpack.c.l.b16 %v5955
        %v6014 = vunpack.c.l.b16 %v5965
        %v6015 = vpack.c.b16 %v5984, %v5983
        %v6016 = vpack.c.b16 %v5986, %v5985
        %v6017 = vpack.c.b16 %v5988, %v5987
        %v6018 = vpack.c.b16 %v5990, %v5989
        %v6019 = vpack.c.b16 %v5992, %v5991
        %v6020 = vpack.c.b16 %v5994, %v5993
        %v6021 = vpack.c.b16 %v5996, %v5995
        %v6022 = vpack.c.b16 %v5998, %v5997
        %v6023 = vpack.c.b16 %v6000, %v5999
        %v6024 = vpack.c.b16 %v6002, %v6001
        %v6025 = vpack.c.b16 %v6004, %v6003
        %v6026 = vpack.c.b16 %v6006, %v6005
        %v6027 = vpack.c.b16 %v6008, %v6007
        %v6028 = vpack.c.b16 %v6010, %v6009
        %v6029 = vpack.c.b16 %v6012, %v6011
        %v6030 = vpack.c.b16 %v6014, %v6013
        %v6063 = vunpack.c.l.b16 %v5967
        %v6064 = vunpack.c.l.b16 %v5968
        %v6065 = vunpack.c.l.b16 %v5969
        %v6066 = vunpack.c.l.b16 %v5970
        %v6067 = vunpack.c.l.b16 %v5971
        %v6068 = vunpack.c.l.b16 %v5972
        %v6069 = vunpack.c.l.b16 %v5973
        %v6070 = vunpack.c.l.b16 %v5974
        %v6071 = vunpack.c.l.b16 %v5975
        %v6072 = vunpack.c.l.b16 %v5976
        %v6073 = vunpack.c.l.b16 %v5977
        %v6074 = vunpack.c.l.b16 %v5978
        %v6075 = vunpack.c.l.b16 %v5979
        %v6076 = vunpack.c.l.b16 %v5980
        %v6077 = vunpack.c.l.b16 %v5981
        %v6078 = vunpack.c.l.b16 %v5982
        %v6079 = vpack.c.b16 %v6064, %v6063
        %v6080 = vpack.c.b16 %v6066, %v6065
        %v6081 = vpack.c.b16 %v6068, %v6067
        %v6082 = vpack.c.b16 %v6070, %v6069
        %v6083 = vpack.c.b16 %v6072, %v6071
        %v6084 = vpack.c.b16 %v6074, %v6073
        %v6085 = vpack.c.b16 %v6076, %v6075
        %v6086 = vpack.c.b16 %v6078, %v6077
        %6095 = vmatpush.bf16.msra.mxu0 %v6086
        %6096 = vmatpush.bf16.msra.mxu0 %v6085
        %6097 = vmatpush.bf16.msra.mxu0 %v6084
        %6098 = vmatpush.bf16.msra.mxu0 %v6083
        %6099 = vmatpush.bf16.msra.mxu0 %v6082
        %6100 = vmatpush.bf16.msra.mxu0 %v6081
        %6101 = vmatpush.bf16.msra.mxu0 %v6080
        %6102 = vmatpush.bf16.msra.mxu0 %v6079
        %6103 = vmatmul.bf16.gmra.mxu0 %v6015
        %v6104 = vpop.f32.mrf.mxu0
        %v6105 = vadd.f32 0.0, %v6104
        %v6106 = vpop.f32.mrf.mxu0
        %v6107 = vadd.f32 0.0, %v6106
        %6108 = vmatmul.bf16.gmra.mxu0 %v6016
        %v6109 = vpop.f32.mrf.mxu0
        %v6110 = vadd.f32 0.0, %v6109
        %v6111 = vpop.f32.mrf.mxu0
        %v6112 = vadd.f32 0.0, %v6111
        %6113 = vmatmul.bf16.gmra.mxu0 %v6017
        %v6114 = vpop.f32.mrf.mxu0
        %v6115 = vadd.f32 0.0, %v6114
        %v6116 = vpop.f32.mrf.mxu0
        %v6117 = vadd.f32 0.0, %v6116
        %6118 = vmatmul.bf16.gmra.mxu0 %v6018
        %v6119 = vpop.f32.mrf.mxu0
        %v6120 = vadd.f32 0.0, %v6119
        %v6121 = vpop.f32.mrf.mxu0
        %v6122 = vadd.f32 0.0, %v6121
        %6123 = vmatmul.bf16.gmra.mxu0 %v6019
        %v6124 = vpop.f32.mrf.mxu0
        %v6125 = vadd.f32 0.0, %v6124
        %v6126 = vpop.f32.mrf.mxu0
        %v6127 = vadd.f32 0.0, %v6126
        %6128 = vmatmul.bf16.gmra.mxu0 %v6020
        %v6129 = vpop.f32.mrf.mxu0
        %v6130 = vadd.f32 0.0, %v6129
        %v6131 = vpop.f32.mrf.mxu0
        %v6132 = vadd.f32 0.0, %v6131
        %6133 = vmatmul.bf16.gmra.mxu0 %v6021
        %v6134 = vpop.f32.mrf.mxu0
        %v6135 = vadd.f32 0.0, %v6134
        %v6136 = vpop.f32.mrf.mxu0
        %v6137 = vadd.f32 0.0, %v6136
        %6138 = vmatmul.bf16.gmra.mxu0 %v6022
        %v6139 = vpop.f32.mrf.mxu0
        %v6140 = vadd.f32 0.0, %v6139
        %v6141 = vpop.f32.mrf.mxu0
        %v6142 = vadd.f32 0.0, %v6141
        %6143 = vmatmul.bf16.gmra.mxu0 %v6023
        %v6144 = vpop.f32.mrf.mxu0
        %v6145 = vadd.f32 0.0, %v6144
        %v6146 = vpop.f32.mrf.mxu0
        %v6147 = vadd.f32 0.0, %v6146
        %6148 = vmatmul.bf16.gmra.mxu0 %v6024
        %v6149 = vpop.f32.mrf.mxu0
        %v6150 = vadd.f32 0.0, %v6149
        %v6151 = vpop.f32.mrf.mxu0
        %v6152 = vadd.f32 0.0, %v6151
        %6153 = vmatmul.bf16.gmra.mxu0 %v6025
        %v6154 = vpop.f32.mrf.mxu0
        %v6155 = vadd.f32 0.0, %v6154
        %v6156 = vpop.f32.mrf.mxu0
        %v6157 = vadd.f32 0.0, %v6156
        %6158 = vmatmul.bf16.gmra.mxu0 %v6026
        %v6159 = vpop.f32.mrf.mxu0
        %v6160 = vadd.f32 0.0, %v6159
        %v6161 = vpop.f32.mrf.mxu0
        %v6162 = vadd.f32 0.0, %v6161
        %6163 = vmatmul.bf16.gmra.mxu0 %v6027
        %v6164 = vpop.f32.mrf.mxu0
        %v6165 = vadd.f32 0.0, %v6164
        %v6166 = vpop.f32.mrf.mxu0
        %v6167 = vadd.f32 0.0, %v6166
        %6168 = vmatmul.bf16.gmra.mxu0 %v6028
        %v6169 = vpop.f32.mrf.mxu0
        %v6170 = vadd.f32 0.0, %v6169
        %v6171 = vpop.f32.mrf.mxu0
        %v6172 = vadd.f32 0.0, %v6171
        %6173 = vmatmul.bf16.gmra.mxu0 %v6029
        %v6174 = vpop.f32.mrf.mxu0
        %v6175 = vadd.f32 0.0, %v6174
        %v6176 = vpop.f32.mrf.mxu0
        %v6177 = vadd.f32 0.0, %v6176
        %6178 = vmatmul.bf16.gmra.mxu0 %v6030
        %v6179 = vpop.f32.mrf.mxu0
        %v6180 = vadd.f32 0.0, %v6179
        %v6181 = vpop.f32.mrf.mxu0
        %v6182 = vadd.f32 0.0, %v6181
        %6183 = vdwg.mxu0
        %v6216 = vunpack.c.l.b16 %v5518
        %v6217 = vunpack.c.l.b16 %v5519
        %v6218 = vunpack.c.l.b16 %v5520
        %v6219 = vunpack.c.l.b16 %v5521
        %v6220 = vunpack.c.l.b16 %v5522
        %v6221 = vunpack.c.l.b16 %v5523
        %v6222 = vunpack.c.l.b16 %v5524
        %v6223 = vunpack.c.l.b16 %v5525
        %v6224 = vunpack.c.l.b16 %v5526
        %v6225 = vunpack.c.l.b16 %v5527
        %v6226 = vunpack.c.l.b16 %v5528
        %v6227 = vunpack.c.l.b16 %v5529
        %v6228 = vunpack.c.l.b16 %v5530
        %v6229 = vunpack.c.l.b16 %v5531
        %v6230 = vunpack.c.l.b16 %v5532
        %v6231 = vunpack.c.l.b16 %v5533
        %v6232 = vunpack.c.l.b16 %v5534
        %v6233 = vunpack.c.l.b16 %v5535
        %v6234 = vunpack.c.l.b16 %v5536
        %v6235 = vunpack.c.l.b16 %v5537
        %v6236 = vunpack.c.l.b16 %v5538
        %v6237 = vunpack.c.l.b16 %v5539
        %v6238 = vunpack.c.l.b16 %v5540
        %v6239 = vunpack.c.l.b16 %v5541
        %v6240 = vunpack.c.l.b16 %v5542
        %v6241 = vunpack.c.l.b16 %v5543
        %v6242 = vunpack.c.l.b16 %v5544
        %v6243 = vunpack.c.l.b16 %v5545
        %v6244 = vunpack.c.l.b16 %v5546
        %v6245 = vunpack.c.l.b16 %v5547
        %v6246 = vunpack.c.l.b16 %v5548
        %v6247 = vunpack.c.l.b16 %v5549
        %v6248 = vpack.c.b16 %v6217, %v6216
        %v6249 = vpack.c.b16 %v6219, %v6218
        %v6250 = vpack.c.b16 %v6221, %v6220
        %v6251 = vpack.c.b16 %v6223, %v6222
        %v6252 = vpack.c.b16 %v6225, %v6224
        %v6253 = vpack.c.b16 %v6227, %v6226
        %v6254 = vpack.c.b16 %v6229, %v6228
        %v6255 = vpack.c.b16 %v6231, %v6230
        %v6256 = vpack.c.b16 %v6233, %v6232
        %v6257 = vpack.c.b16 %v6235, %v6234
        %v6258 = vpack.c.b16 %v6237, %v6236
        %v6259 = vpack.c.b16 %v6239, %v6238
        %v6260 = vpack.c.b16 %v6241, %v6240
        %v6261 = vpack.c.b16 %v6243, %v6242
        %v6262 = vpack.c.b16 %v6245, %v6244
        %v6263 = vpack.c.b16 %v6247, %v6246
        %v6296 = vunpack.c.l.b16 %v5550
        %v6297 = vunpack.c.l.b16 %v5551
        %v6298 = vunpack.c.l.b16 %v5552
        %v6299 = vunpack.c.l.b16 %v5553
        %v6300 = vunpack.c.l.b16 %v5554
        %v6301 = vunpack.c.l.b16 %v5555
        %v6302 = vunpack.c.l.b16 %v5556
        %v6303 = vunpack.c.l.b16 %v5557
        %v6304 = vunpack.c.l.b16 %v5558
        %v6305 = vunpack.c.l.b16 %v5559
        %v6306 = vunpack.c.l.b16 %v5560
        %v6307 = vunpack.c.l.b16 %v5561
        %v6308 = vunpack.c.l.b16 %v5562
        %v6309 = vunpack.c.l.b16 %v5563
        %v6310 = vunpack.c.l.b16 %v5564
        %v6311 = vunpack.c.l.b16 %v5565
        %v6312 = vpack.c.b16 %v6297, %v6296
        %v6313 = vpack.c.b16 %v6299, %v6298
        %v6314 = vpack.c.b16 %v6301, %v6300
        %v6315 = vpack.c.b16 %v6303, %v6302
        %v6316 = vpack.c.b16 %v6305, %v6304
        %v6317 = vpack.c.b16 %v6307, %v6306
        %v6318 = vpack.c.b16 %v6309, %v6308
        %v6319 = vpack.c.b16 %v6311, %v6310
        %6328 = vmatpush.bf16.msra.mxu0 %v6319
        %6329 = vmatpush.bf16.msra.mxu0 %v6318
        %6330 = vmatpush.bf16.msra.mxu0 %v6317
        %6331 = vmatpush.bf16.msra.mxu0 %v6316
        %6332 = vmatpush.bf16.msra.mxu0 %v6315
        %6333 = vmatpush.bf16.msra.mxu0 %v6314
        %6334 = vmatpush.bf16.msra.mxu0 %v6313
        %6335 = vmatpush.bf16.msra.mxu0 %v6312
        %6336 = vmatmul.bf16.gmra.mxu0 %v6248
        %v6337 = vpop.f32.mrf.mxu0
        %v6338 = vadd.f32 %v6105, %v6337
        %v6339 = vpop.f32.mrf.mxu0
        %v6340 = vadd.f32 %v6107, %v6339
        %6341 = vmatmul.bf16.gmra.mxu0 %v6249
        %v6342 = vpop.f32.mrf.mxu0
        %v6343 = vadd.f32 %v6110, %v6342
        %v6344 = vpop.f32.mrf.mxu0
        %v6345 = vadd.f32 %v6112, %v6344
        %6346 = vmatmul.bf16.gmra.mxu0 %v6250
        %v6347 = vpop.f32.mrf.mxu0
        %v6348 = vadd.f32 %v6115, %v6347
        %v6349 = vpop.f32.mrf.mxu0
        %v6350 = vadd.f32 %v6117, %v6349
        %6351 = vmatmul.bf16.gmra.mxu0 %v6251
        %v6352 = vpop.f32.mrf.mxu0
        %v6353 = vadd.f32 %v6120, %v6352
        %v6354 = vpop.f32.mrf.mxu0
        %v6355 = vadd.f32 %v6122, %v6354
        %6356 = vmatmul.bf16.gmra.mxu0 %v6252
        %v6357 = vpop.f32.mrf.mxu0
        %v6358 = vadd.f32 %v6125, %v6357
        %v6359 = vpop.f32.mrf.mxu0
        %v6360 = vadd.f32 %v6127, %v6359
        %6361 = vmatmul.bf16.gmra.mxu0 %v6253
        %v6362 = vpop.f32.mrf.mxu0
        %v6363 = vadd.f32 %v6130, %v6362
        %v6364 = vpop.f32.mrf.mxu0
        %v6365 = vadd.f32 %v6132, %v6364
        %6366 = vmatmul.bf16.gmra.mxu0 %v6254
        %v6367 = vpop.f32.mrf.mxu0
        %v6368 = vadd.f32 %v6135, %v6367
        %v6369 = vpop.f32.mrf.mxu0
        %v6370 = vadd.f32 %v6137, %v6369
        %6371 = vmatmul.bf16.gmra.mxu0 %v6255
        %v6372 = vpop.f32.mrf.mxu0
        %v6373 = vadd.f32 %v6140, %v6372
        %v6374 = vpop.f32.mrf.mxu0
        %v6375 = vadd.f32 %v6142, %v6374
        %6376 = vmatmul.bf16.gmra.mxu0 %v6256
        %v6377 = vpop.f32.mrf.mxu0
        %v6378 = vadd.f32 %v6145, %v6377
        %v6379 = vpop.f32.mrf.mxu0
        %v6380 = vadd.f32 %v6147, %v6379
        %6381 = vmatmul.bf16.gmra.mxu0 %v6257
        %v6382 = vpop.f32.mrf.mxu0
        %v6383 = vadd.f32 %v6150, %v6382
        %v6384 = vpop.f32.mrf.mxu0
        %v6385 = vadd.f32 %v6152, %v6384
        %6386 = vmatmul.bf16.gmra.mxu0 %v6258
        %v6387 = vpop.f32.mrf.mxu0
        %v6388 = vadd.f32 %v6155, %v6387
        %v6389 = vpop.f32.mrf.mxu0
        %v6390 = vadd.f32 %v6157, %v6389
        %6391 = vmatmul.bf16.gmra.mxu0 %v6259
        %v6392 = vpop.f32.mrf.mxu0
        %v6393 = vadd.f32 %v6160, %v6392
        %v6394 = vpop.f32.mrf.mxu0
        %v6395 = vadd.f32 %v6162, %v6394
        %6396 = vmatmul.bf16.gmra.mxu0 %v6260
        %v6397 = vpop.f32.mrf.mxu0
        %v6398 = vadd.f32 %v6165, %v6397
        %v6399 = vpop.f32.mrf.mxu0
        %v6400 = vadd.f32 %v6167, %v6399
        %6401 = vmatmul.bf16.gmra.mxu0 %v6261
        %v6402 = vpop.f32.mrf.mxu0
        %v6403 = vadd.f32 %v6170, %v6402
        %v6404 = vpop.f32.mrf.mxu0
        %v6405 = vadd.f32 %v6172, %v6404
        %6406 = vmatmul.bf16.gmra.mxu0 %v6262
        %v6407 = vpop.f32.mrf.mxu0
        %v6408 = vadd.f32 %v6175, %v6407
        %v6409 = vpop.f32.mrf.mxu0
        %v6410 = vadd.f32 %v6177, %v6409
        %6411 = vmatmul.bf16.gmra.mxu0 %v6263
        %v6412 = vpop.f32.mrf.mxu0
        %v6413 = vadd.f32 %v6180, %v6412
        %v6414 = vpop.f32.mrf.mxu0
        %v6415 = vadd.f32 %v6182, %v6414
        %6416 = vdwg.mxu0
        %v6417 = vld [vmem:[#allocation2] sm:$0xe]
        %v6418 = vld [vmem:[#allocation2 + $0xc] sm:$0xe]
        %v6419 = vld [vmem:[#allocation2 + $0x18] sm:$0xe]
        %v6420 = vld [vmem:[#allocation2 + $0x24] sm:$0xe]
        %v6421 = vld [vmem:[#allocation2 + $0x30] sm:$0xe]
        %v6422 = vld [vmem:[#allocation2 + $0x3c] sm:$0xe]
        %v6423 = vld [vmem:[#allocation2 + $0x48] sm:$0xe]
        %v6424 = vld [vmem:[#allocation2 + $0x54] sm:$0xe]
        %v6425 = vld [vmem:[#allocation2 + $0x60] sm:$0xe]
        %v6426 = vld [vmem:[#allocation2 + $0x6c] sm:$0xe]
        %v6427 = vld [vmem:[#allocation2 + $0x78] sm:$0xe]
        %v6428 = vld [vmem:[#allocation2 + $0x84] sm:$0xe]
        %v6429 = vld [vmem:[#allocation2 + $0x90] sm:$0xe]
        %v6430 = vld [vmem:[#allocation2 + $0x9c] sm:$0xe]
        %v6431 = vld [vmem:[#allocation2 + $0xa8] sm:$0xe]
        %v6432 = vld [vmem:[#allocation2 + $0xb4] sm:$0xe]
        %v6465 = vrot.slane %v6417, 5
        %v6466 = vrot.slane %v6465, 4
        %v6467 = vrot.slane %v5519, 5
        %v6468 = vsel %vm1781, %v6466, %v6467
        %v6469 = vrot.slane %v6467, 4
        %v6470 = vrot.slane %v5566, 5
        %v6471 = vsel %vm1781, %v6469, %v6470
        %v6472 = vrot.slane %v6418, 5
        %v6473 = vrot.slane %v6472, 4
        %v6474 = vrot.slane %v5521, 5
        %v6475 = vsel %vm1781, %v6473, %v6474
        %v6476 = vrot.slane %v6474, 4
        %v6477 = vrot.slane %v5567, 5
        %v6478 = vsel %vm1781, %v6476, %v6477
        %v6479 = vrot.slane %v6419, 5
        %v6480 = vrot.slane %v6479, 4
        %v6481 = vrot.slane %v5523, 5
        %v6482 = vsel %vm1781, %v6480, %v6481
        %v6483 = vrot.slane %v6481, 4
        %v6484 = vrot.slane %v5568, 5
        %v6485 = vsel %vm1781, %v6483, %v6484
        %v6486 = vrot.slane %v6420, 5
        %v6487 = vrot.slane %v6486, 4
        %v6488 = vrot.slane %v5525, 5
        %v6489 = vsel %vm1781, %v6487, %v6488
        %v6490 = vrot.slane %v6488, 4
        %v6491 = vrot.slane %v5569, 5
        %v6492 = vsel %vm1781, %v6490, %v6491
        %v6493 = vrot.slane %v6421, 5
        %v6494 = vrot.slane %v6493, 4
        %v6495 = vrot.slane %v5527, 5
        %v6496 = vsel %vm1781, %v6494, %v6495
        %v6497 = vrot.slane %v6495, 4
        %v6498 = vrot.slane %v5570, 5
        %v6499 = vsel %vm1781, %v6497, %v6498
        %v6500 = vrot.slane %v6422, 5
        %v6501 = vrot.slane %v6500, 4
        %v6502 = vrot.slane %v5529, 5
        %v6503 = vsel %vm1781, %v6501, %v6502
        %v6504 = vrot.slane %v6502, 4
        %v6505 = vrot.slane %v5571, 5
        %v6506 = vsel %vm1781, %v6504, %v6505
        %v6507 = vrot.slane %v6423, 5
        %v6508 = vrot.slane %v6507, 4
        %v6509 = vrot.slane %v5531, 5
        %v6510 = vsel %vm1781, %v6508, %v6509
        %v6511 = vrot.slane %v6509, 4
        %v6512 = vrot.slane %v5572, 5
        %v6513 = vsel %vm1781, %v6511, %v6512
        %v6514 = vrot.slane %v6424, 5
        %v6515 = vrot.slane %v6514, 4
        %v6516 = vrot.slane %v5533, 5
        %v6517 = vsel %vm1781, %v6515, %v6516
        %v6518 = vrot.slane %v6516, 4
        %v6519 = vrot.slane %v5573, 5
        %v6520 = vsel %vm1781, %v6518, %v6519
        %v6521 = vrot.slane %v6425, 5
        %v6522 = vrot.slane %v6521, 4
        %v6523 = vrot.slane %v5535, 5
        %v6524 = vsel %vm1781, %v6522, %v6523
        %v6525 = vrot.slane %v6523, 4
        %v6526 = vrot.slane %v5574, 5
        %v6527 = vsel %vm1781, %v6525, %v6526
        %v6528 = vrot.slane %v6426, 5
        %v6529 = vrot.slane %v6528, 4
        %v6530 = vrot.slane %v5537, 5
        %v6531 = vsel %vm1781, %v6529, %v6530
        %v6532 = vrot.slane %v6530, 4
        %v6533 = vrot.slane %v5575, 5
        %v6534 = vsel %vm1781, %v6532, %v6533
        %v6535 = vrot.slane %v6427, 5
        %v6536 = vrot.slane %v6535, 4
        %v6537 = vrot.slane %v5539, 5
        %v6538 = vsel %vm1781, %v6536, %v6537
        %v6539 = vrot.slane %v6537, 4
        %v6540 = vrot.slane %v5576, 5
        %v6541 = vsel %vm1781, %v6539, %v6540
        %v6542 = vrot.slane %v6428, 5
        %v6543 = vrot.slane %v6542, 4
        %v6544 = vrot.slane %v5541, 5
        %v6545 = vsel %vm1781, %v6543, %v6544
        %v6546 = vrot.slane %v6544, 4
        %v6547 = vrot.slane %v5577, 5
        %v6548 = vsel %vm1781, %v6546, %v6547
        %v6549 = vrot.slane %v6429, 5
        %v6550 = vrot.slane %v6549, 4
        %v6551 = vrot.slane %v5543, 5
        %v6552 = vsel %vm1781, %v6550, %v6551
        %v6553 = vrot.slane %v6551, 4
        %v6554 = vrot.slane %v5578, 5
        %v6555 = vsel %vm1781, %v6553, %v6554
        %v6556 = vrot.slane %v6430, 5
        %v6557 = vrot.slane %v6556, 4
        %v6558 = vrot.slane %v5545, 5
        %v6559 = vsel %vm1781, %v6557, %v6558
        %v6560 = vrot.slane %v6558, 4
        %v6561 = vrot.slane %v5579, 5
        %v6562 = vsel %vm1781, %v6560, %v6561
        %v6563 = vrot.slane %v6431, 5
        %v6564 = vrot.slane %v6563, 4
        %v6565 = vrot.slane %v5547, 5
        %v6566 = vsel %vm1781, %v6564, %v6565
        %v6567 = vrot.slane %v6565, 4
        %v6568 = vrot.slane %v5580, 5
        %v6569 = vsel %vm1781, %v6567, %v6568
        %v6570 = vrot.slane %v6432, 5
        %v6571 = vrot.slane %v6570, 4
        %v6572 = vrot.slane %v5549, 5
        %v6573 = vsel %vm1781, %v6571, %v6572
        %v6574 = vrot.slane %v6572, 4
        %v6575 = vrot.slane %v5581, 5
        %v6576 = vsel %vm1781, %v6574, %v6575
        %s6577 = scalar_lea.vmem [#allocation8], 128
        %v6578 = vld [vmem:[%s6577] sm:$0xf]
        %v6579 = vld [vmem:[%s6577 + $0x4] sm:$0xf]
        %v6580 = vld [vmem:[%s6577 + $0x8] sm:$0xf]
        %v6581 = vld [vmem:[%s6577 + $0xc] sm:$0xf]
        %v6582 = vld [vmem:[%s6577 + $0x10] sm:$0xf]
        %v6583 = vld [vmem:[%s6577 + $0x14] sm:$0xf]
        %v6584 = vld [vmem:[%s6577 + $0x18] sm:$0xf]
        %v6585 = vld [vmem:[%s6577 + $0x1c] sm:$0xf]
        %v6586 = vld [vmem:[%s6577 + $0x20] sm:$0xf]
        %v6587 = vld [vmem:[%s6577 + $0x24] sm:$0xf]
        %v6588 = vld [vmem:[%s6577 + $0x28] sm:$0xf]
        %v6589 = vld [vmem:[%s6577 + $0x2c] sm:$0xf]
        %v6590 = vld [vmem:[%s6577 + $0x30] sm:$0xf]
        %v6591 = vld [vmem:[%s6577 + $0x34] sm:$0xf]
        %v6592 = vld [vmem:[%s6577 + $0x38] sm:$0xf]
        %v6593 = vld [vmem:[%s6577 + $0x3c] sm:$0xf]
        %v6594 = vunpack.c.l.b16 %v6468
        %v6595 = vunpack.c.l.b16 %v6471
        %v6596 = vunpack.c.l.b16 %v6475
        %v6597 = vunpack.c.l.b16 %v6478
        %v6598 = vunpack.c.l.b16 %v6482
        %v6599 = vunpack.c.l.b16 %v6485
        %v6600 = vunpack.c.l.b16 %v6489
        %v6601 = vunpack.c.l.b16 %v6492
        %v6602 = vunpack.c.l.b16 %v6496
        %v6603 = vunpack.c.l.b16 %v6499
        %v6604 = vunpack.c.l.b16 %v6503
        %v6605 = vunpack.c.l.b16 %v6506
        %v6606 = vunpack.c.l.b16 %v6510
        %v6607 = vunpack.c.l.b16 %v6513
        %v6608 = vunpack.c.l.b16 %v6517
        %v6609 = vunpack.c.l.b16 %v6520
        %v6610 = vunpack.c.l.b16 %v6524
        %v6611 = vunpack.c.l.b16 %v6527
        %v6612 = vunpack.c.l.b16 %v6531
        %v6613 = vunpack.c.l.b16 %v6534
        %v6614 = vunpack.c.l.b16 %v6538
        %v6615 = vunpack.c.l.b16 %v6541
        %v6616 = vunpack.c.l.b16 %v6545
        %v6617 = vunpack.c.l.b16 %v6548
        %v6618 = vunpack.c.l.b16 %v6552
        %v6619 = vunpack.c.l.b16 %v6555
        %v6620 = vunpack.c.l.b16 %v6559
        %v6621 = vunpack.c.l.b16 %v6562
        %v6622 = vunpack.c.l.b16 %v6566
        %v6623 = vunpack.c.l.b16 %v6569
        %v6624 = vunpack.c.l.b16 %v6573
        %v6625 = vunpack.c.l.b16 %v6576
        %v6626 = vpack.c.b16 %v6595, %v6594
        %v6627 = vpack.c.b16 %v6597, %v6596
        %v6628 = vpack.c.b16 %v6599, %v6598
        %v6629 = vpack.c.b16 %v6601, %v6600
        %v6630 = vpack.c.b16 %v6603, %v6602
        %v6631 = vpack.c.b16 %v6605, %v6604
        %v6632 = vpack.c.b16 %v6607, %v6606
        %v6633 = vpack.c.b16 %v6609, %v6608
        %v6634 = vpack.c.b16 %v6611, %v6610
        %v6635 = vpack.c.b16 %v6613, %v6612
        %v6636 = vpack.c.b16 %v6615, %v6614
        %v6637 = vpack.c.b16 %v6617, %v6616
        %v6638 = vpack.c.b16 %v6619, %v6618
        %v6639 = vpack.c.b16 %v6621, %v6620
        %v6640 = vpack.c.b16 %v6623, %v6622
        %v6641 = vpack.c.b16 %v6625, %v6624
        %v6674 = vunpack.c.l.b16 %v6578
        %v6675 = vunpack.c.l.b16 %v6579
        %v6676 = vunpack.c.l.b16 %v6580
        %v6677 = vunpack.c.l.b16 %v6581
        %v6678 = vunpack.c.l.b16 %v6582
        %v6679 = vunpack.c.l.b16 %v6583
        %v6680 = vunpack.c.l.b16 %v6584
        %v6681 = vunpack.c.l.b16 %v6585
        %v6682 = vunpack.c.l.b16 %v6586
        %v6683 = vunpack.c.l.b16 %v6587
        %v6684 = vunpack.c.l.b16 %v6588
        %v6685 = vunpack.c.l.b16 %v6589
        %v6686 = vunpack.c.l.b16 %v6590
        %v6687 = vunpack.c.l.b16 %v6591
        %v6688 = vunpack.c.l.b16 %v6592
        %v6689 = vunpack.c.l.b16 %v6593
        %v6690 = vpack.c.b16 %v6675, %v6674
        %v6691 = vpack.c.b16 %v6677, %v6676
        %v6692 = vpack.c.b16 %v6679, %v6678
        %v6693 = vpack.c.b16 %v6681, %v6680
        %v6694 = vpack.c.b16 %v6683, %v6682
        %v6695 = vpack.c.b16 %v6685, %v6684
        %v6696 = vpack.c.b16 %v6687, %v6686
        %v6697 = vpack.c.b16 %v6689, %v6688
        %6706 = vmatpush.bf16.msra.mxu0 %v6697
        %6707 = vmatpush.bf16.msra.mxu0 %v6696
        %6708 = vmatpush.bf16.msra.mxu0 %v6695
        %6709 = vmatpush.bf16.msra.mxu0 %v6694
        %6710 = vmatpush.bf16.msra.mxu0 %v6693
        %6711 = vmatpush.bf16.msra.mxu0 %v6692
        %6712 = vmatpush.bf16.msra.mxu0 %v6691
        %6713 = vmatpush.bf16.msra.mxu0 %v6690
        %6714 = vmatmul.bf16.gmra.mxu0 %v6626
        %v6715 = vpop.f32.mrf.mxu0
        %v6716 = vadd.f32 0.0, %v6715
        %v6717 = vpop.f32.mrf.mxu0
        %v6718 = vadd.f32 0.0, %v6717
        %6719 = vmatmul.bf16.gmra.mxu0 %v6627
        %v6720 = vpop.f32.mrf.mxu0
        %v6721 = vadd.f32 0.0, %v6720
        %v6722 = vpop.f32.mrf.mxu0
        %v6723 = vadd.f32 0.0, %v6722
        %6724 = vmatmul.bf16.gmra.mxu0 %v6628
        %v6725 = vpop.f32.mrf.mxu0
        %v6726 = vadd.f32 0.0, %v6725
        %v6727 = vpop.f32.mrf.mxu0
        %v6728 = vadd.f32 0.0, %v6727
        %6729 = vmatmul.bf16.gmra.mxu0 %v6629
        %v6730 = vpop.f32.mrf.mxu0
        %v6731 = vadd.f32 0.0, %v6730
        %v6732 = vpop.f32.mrf.mxu0
        %v6733 = vadd.f32 0.0, %v6732
        %6734 = vmatmul.bf16.gmra.mxu0 %v6630
        %v6735 = vpop.f32.mrf.mxu0
        %v6736 = vadd.f32 0.0, %v6735
        %v6737 = vpop.f32.mrf.mxu0
        %v6738 = vadd.f32 0.0, %v6737
        %6739 = vmatmul.bf16.gmra.mxu0 %v6631
        %v6740 = vpop.f32.mrf.mxu0
        %v6741 = vadd.f32 0.0, %v6740
        %v6742 = vpop.f32.mrf.mxu0
        %v6743 = vadd.f32 0.0, %v6742
        %6744 = vmatmul.bf16.gmra.mxu0 %v6632
        %v6745 = vpop.f32.mrf.mxu0
        %v6746 = vadd.f32 0.0, %v6745
        %v6747 = vpop.f32.mrf.mxu0
        %v6748 = vadd.f32 0.0, %v6747
        %6749 = vmatmul.bf16.gmra.mxu0 %v6633
        %v6750 = vpop.f32.mrf.mxu0
        %v6751 = vadd.f32 0.0, %v6750
        %v6752 = vpop.f32.mrf.mxu0
        %v6753 = vadd.f32 0.0, %v6752
        %6754 = vmatmul.bf16.gmra.mxu0 %v6634
        %v6755 = vpop.f32.mrf.mxu0
        %v6756 = vadd.f32 0.0, %v6755
        %v6757 = vpop.f32.mrf.mxu0
        %v6758 = vadd.f32 0.0, %v6757
        %6759 = vmatmul.bf16.gmra.mxu0 %v6635
        %v6760 = vpop.f32.mrf.mxu0
        %v6761 = vadd.f32 0.0, %v6760
        %v6762 = vpop.f32.mrf.mxu0
        %v6763 = vadd.f32 0.0, %v6762
        %6764 = vmatmul.bf16.gmra.mxu0 %v6636
        %v6765 = vpop.f32.mrf.mxu0
        %v6766 = vadd.f32 0.0, %v6765
        %v6767 = vpop.f32.mrf.mxu0
        %v6768 = vadd.f32 0.0, %v6767
        %6769 = vmatmul.bf16.gmra.mxu0 %v6637
        %v6770 = vpop.f32.mrf.mxu0
        %v6771 = vadd.f32 0.0, %v6770
        %v6772 = vpop.f32.mrf.mxu0
        %v6773 = vadd.f32 0.0, %v6772
        %6774 = vmatmul.bf16.gmra.mxu0 %v6638
        %v6775 = vpop.f32.mrf.mxu0
        %v6776 = vadd.f32 0.0, %v6775
        %v6777 = vpop.f32.mrf.mxu0
        %v6778 = vadd.f32 0.0, %v6777
        %6779 = vmatmul.bf16.gmra.mxu0 %v6639
        %v6780 = vpop.f32.mrf.mxu0
        %v6781 = vadd.f32 0.0, %v6780
        %v6782 = vpop.f32.mrf.mxu0
        %v6783 = vadd.f32 0.0, %v6782
        %6784 = vmatmul.bf16.gmra.mxu0 %v6640
        %v6785 = vpop.f32.mrf.mxu0
        %v6786 = vadd.f32 0.0, %v6785
        %v6787 = vpop.f32.mrf.mxu0
        %v6788 = vadd.f32 0.0, %v6787
        %6789 = vmatmul.bf16.gmra.mxu0 %v6641
        %v6790 = vpop.f32.mrf.mxu0
        %v6791 = vadd.f32 0.0, %v6790
        %v6792 = vpop.f32.mrf.mxu0
        %v6793 = vadd.f32 0.0, %v6792
        %6794 = vdwg.mxu0
        %v6795 = vadd.f32 %v6338, %v6716
        %v6796 = vadd.f32 %v6340, %v6718
        %v6797 = vadd.f32 %v6343, %v6721
        %v6798 = vadd.f32 %v6345, %v6723
        %v6799 = vadd.f32 %v6348, %v6726
        %v6800 = vadd.f32 %v6350, %v6728
        %v6801 = vadd.f32 %v6353, %v6731
        %v6802 = vadd.f32 %v6355, %v6733
        %v6803 = vadd.f32 %v6358, %v6736
        %v6804 = vadd.f32 %v6360, %v6738
        %v6805 = vadd.f32 %v6363, %v6741
        %v6806 = vadd.f32 %v6365, %v6743
        %v6807 = vadd.f32 %v6368, %v6746
        %v6808 = vadd.f32 %v6370, %v6748
        %v6809 = vadd.f32 %v6373, %v6751
        %v6810 = vadd.f32 %v6375, %v6753
        %v6811 = vadd.f32 %v6378, %v6756
        %v6812 = vadd.f32 %v6380, %v6758
        %v6813 = vadd.f32 %v6383, %v6761
        %v6814 = vadd.f32 %v6385, %v6763
        %v6815 = vadd.f32 %v6388, %v6766
        %v6816 = vadd.f32 %v6390, %v6768
        %v6817 = vadd.f32 %v6393, %v6771
        %v6818 = vadd.f32 %v6395, %v6773
        %v6819 = vadd.f32 %v6398, %v6776
        %v6820 = vadd.f32 %v6400, %v6778
        %v6821 = vadd.f32 %v6403, %v6781
        %v6822 = vadd.f32 %v6405, %v6783
        %v6823 = vadd.f32 %v6408, %v6786
        %v6824 = vadd.f32 %v6410, %v6788
        %v6825 = vadd.f32 %v6413, %v6791
        %v6826 = vadd.f32 %v6415, %v6793
        %v6827 = vld [vmem:[%s259] sm:$0xf]
        %v6828 = vld [vmem:[%s259 + $0x4] sm:$0xf]
        %v6829 = vld [vmem:[%s259 + $0xc] sm:$0xf]
        %v6830 = vld [vmem:[%s259 + $0x10] sm:$0xf]
        %v6831 = vld [vmem:[%s259 + $0x18] sm:$0xf]
        %v6832 = vld [vmem:[%s259 + $0x1c] sm:$0xf]
        %v6833 = vld [vmem:[%s259 + $0x24] sm:$0xf]
        %v6834 = vld [vmem:[%s259 + $0x28] sm:$0xf]
        %v6835 = vld [vmem:[%s259 + $0x30] sm:$0xf]
        %v6836 = vld [vmem:[%s259 + $0x34] sm:$0xf]
        %v6837 = vld [vmem:[%s259 + $0x3c] sm:$0xf]
        %v6838 = vld [vmem:[%s259 + $0x40] sm:$0xf]
        %v6839 = vld [vmem:[%s259 + $0x48] sm:$0xf]
        %v6840 = vld [vmem:[%s259 + $0x4c] sm:$0xf]
        %v6841 = vld [vmem:[%s259 + $0x54] sm:$0xf]
        %v6842 = vld [vmem:[%s259 + $0x58] sm:$0xf]
        %v6843 = vld [vmem:[%s259 + $0x60] sm:$0xf]
        %v6844 = vld [vmem:[%s259 + $0x64] sm:$0xf]
        %v6845 = vld [vmem:[%s259 + $0x6c] sm:$0xf]
        %v6846 = vld [vmem:[%s259 + $0x70] sm:$0xf]
        %v6847 = vld [vmem:[%s259 + $0x78] sm:$0xf]
        %v6848 = vld [vmem:[%s259 + $0x7c] sm:$0xf]
        %v6849 = vld [vmem:[%s259 + $0x84] sm:$0xf]
        %v6850 = vld [vmem:[%s259 + $0x88] sm:$0xf]
        %v6851 = vld [vmem:[%s259 + $0x90] sm:$0xf]
        %v6852 = vld [vmem:[%s259 + $0x94] sm:$0xf]
        %v6853 = vld [vmem:[%s259 + $0x9c] sm:$0xf]
        %v6854 = vld [vmem:[%s259 + $0xa0] sm:$0xf]
        %v6855 = vld [vmem:[%s259 + $0xa8] sm:$0xf]
        %v6856 = vld [vmem:[%s259 + $0xac] sm:$0xf]
        %v6857 = vld [vmem:[%s259 + $0xb4] sm:$0xf]
        %v6858 = vld [vmem:[%s259 + $0xb8] sm:$0xf]
        %s6859 = scalar_lea.vmem [#allocation8], 192
        %v6860 = vld [vmem:[%s6859] sm:$0xf]
        %v6861 = vld [vmem:[%s6859 + $0x4] sm:$0xf]
        %v6862 = vld [vmem:[%s6859 + $0x8] sm:$0xf]
        %v6863 = vld [vmem:[%s6859 + $0xc] sm:$0xf]
        %v6864 = vld [vmem:[%s6859 + $0x10] sm:$0xf]
        %v6865 = vld [vmem:[%s6859 + $0x14] sm:$0xf]
        %v6866 = vld [vmem:[%s6859 + $0x18] sm:$0xf]
        %v6867 = vld [vmem:[%s6859 + $0x1c] sm:$0xf]
        %v6868 = vld [vmem:[%s6859 + $0x20] sm:$0xf]
        %v6869 = vld [vmem:[%s6859 + $0x24] sm:$0xf]
        %v6870 = vld [vmem:[%s6859 + $0x28] sm:$0xf]
        %v6871 = vld [vmem:[%s6859 + $0x2c] sm:$0xf]
        %v6872 = vld [vmem:[%s6859 + $0x30] sm:$0xf]
        %v6873 = vld [vmem:[%s6859 + $0x34] sm:$0xf]
        %v6874 = vld [vmem:[%s6859 + $0x38] sm:$0xf]
        %v6875 = vld [vmem:[%s6859 + $0x3c] sm:$0xf]
        %v6908 = vunpack.c.l.b16 %v6827
        %v6909 = vunpack.c.l.b16 %v6828
        %v6910 = vunpack.c.l.b16 %v6829
        %v6911 = vunpack.c.l.b16 %v6830
        %v6912 = vunpack.c.l.b16 %v6831
        %v6913 = vunpack.c.l.b16 %v6832
        %v6914 = vunpack.c.l.b16 %v6833
        %v6915 = vunpack.c.l.b16 %v6834
        %v6916 = vunpack.c.l.b16 %v6835
        %v6917 = vunpack.c.l.b16 %v6836
        %v6918 = vunpack.c.l.b16 %v6837
        %v6919 = vunpack.c.l.b16 %v6838
        %v6920 = vunpack.c.l.b16 %v6839
        %v6921 = vunpack.c.l.b16 %v6840
        %v6922 = vunpack.c.l.b16 %v6841
        %v6923 = vunpack.c.l.b16 %v6842
        %v6924 = vunpack.c.l.b16 %v6843
        %v6925 = vunpack.c.l.b16 %v6844
        %v6926 = vunpack.c.l.b16 %v6845
        %v6927 = vunpack.c.l.b16 %v6846
        %v6928 = vunpack.c.l.b16 %v6847
        %v6929 = vunpack.c.l.b16 %v6848
        %v6930 = vunpack.c.l.b16 %v6849
        %v6931 = vunpack.c.l.b16 %v6850
        %v6932 = vunpack.c.l.b16 %v6851
        %v6933 = vunpack.c.l.b16 %v6852
        %v6934 = vunpack.c.l.b16 %v6853
        %v6935 = vunpack.c.l.b16 %v6854
        %v6936 = vunpack.c.l.b16 %v6855
        %v6937 = vunpack.c.l.b16 %v6856
        %v6938 = vunpack.c.l.b16 %v6857
        %v6939 = vunpack.c.l.b16 %v6858
        %v6940 = vpack.c.b16 %v6909, %v6908
        %v6941 = vpack.c.b16 %v6911, %v6910
        %v6942 = vpack.c.b16 %v6913, %v6912
        %v6943 = vpack.c.b16 %v6915, %v6914
        %v6944 = vpack.c.b16 %v6917, %v6916
        %v6945 = vpack.c.b16 %v6919, %v6918
        %v6946 = vpack.c.b16 %v6921, %v6920
        %v6947 = vpack.c.b16 %v6923, %v6922
        %v6948 = vpack.c.b16 %v6925, %v6924
        %v6949 = vpack.c.b16 %v6927, %v6926
        %v6950 = vpack.c.b16 %v6929, %v6928
        %v6951 = vpack.c.b16 %v6931, %v6930
        %v6952 = vpack.c.b16 %v6933, %v6932
        %v6953 = vpack.c.b16 %v6935, %v6934
        %v6954 = vpack.c.b16 %v6937, %v6936
        %v6955 = vpack.c.b16 %v6939, %v6938
        %v6988 = vunpack.c.l.b16 %v6860
        %v6989 = vunpack.c.l.b16 %v6861
        %v6990 = vunpack.c.l.b16 %v6862
        %v6991 = vunpack.c.l.b16 %v6863
        %v6992 = vunpack.c.l.b16 %v6864
        %v6993 = vunpack.c.l.b16 %v6865
        %v6994 = vunpack.c.l.b16 %v6866
        %v6995 = vunpack.c.l.b16 %v6867
        %v6996 = vunpack.c.l.b16 %v6868
        %v6997 = vunpack.c.l.b16 %v6869
        %v6998 = vunpack.c.l.b16 %v6870
        %v6999 = vunpack.c.l.b16 %v6871
        %v7000 = vunpack.c.l.b16 %v6872
        %v7001 = vunpack.c.l.b16 %v6873
        %v7002 = vunpack.c.l.b16 %v6874
        %v7003 = vunpack.c.l.b16 %v6875
        %v7004 = vpack.c.b16 %v6989, %v6988
        %v7005 = vpack.c.b16 %v6991, %v6990
        %v7006 = vpack.c.b16 %v6993, %v6992
        %v7007 = vpack.c.b16 %v6995, %v6994
        %v7008 = vpack.c.b16 %v6997, %v6996
        %v7009 = vpack.c.b16 %v6999, %v6998
        %v7010 = vpack.c.b16 %v7001, %v7000
        %v7011 = vpack.c.b16 %v7003, %v7002
        %7020 = vmatpush.bf16.msra.mxu0 %v7011
        %7021 = vmatpush.bf16.msra.mxu0 %v7010
        %7022 = vmatpush.bf16.msra.mxu0 %v7009
        %7023 = vmatpush.bf16.msra.mxu0 %v7008
        %7024 = vmatpush.bf16.msra.mxu0 %v7007
        %7025 = vmatpush.bf16.msra.mxu0 %v7006
        %7026 = vmatpush.bf16.msra.mxu0 %v7005
        %7027 = vmatpush.bf16.msra.mxu0 %v7004
        %7028 = vmatmul.bf16.gmra.mxu0 %v6940
        %v7029 = vpop.f32.mrf.mxu0
        %v7030 = vadd.f32 0.0, %v7029
        %v7031 = vpop.f32.mrf.mxu0
        %v7032 = vadd.f32 0.0, %v7031
        %7033 = vmatmul.bf16.gmra.mxu0 %v6941
        %v7034 = vpop.f32.mrf.mxu0
        %v7035 = vadd.f32 0.0, %v7034
        %v7036 = vpop.f32.mrf.mxu0
        %v7037 = vadd.f32 0.0, %v7036
        %7038 = vmatmul.bf16.gmra.mxu0 %v6942
        %v7039 = vpop.f32.mrf.mxu0
        %v7040 = vadd.f32 0.0, %v7039
        %v7041 = vpop.f32.mrf.mxu0
        %v7042 = vadd.f32 0.0, %v7041
        %7043 = vmatmul.bf16.gmra.mxu0 %v6943
        %v7044 = vpop.f32.mrf.mxu0
        %v7045 = vadd.f32 0.0, %v7044
        %v7046 = vpop.f32.mrf.mxu0
        %v7047 = vadd.f32 0.0, %v7046
        %7048 = vmatmul.bf16.gmra.mxu0 %v6944
        %v7049 = vpop.f32.mrf.mxu0
        %v7050 = vadd.f32 0.0, %v7049
        %v7051 = vpop.f32.mrf.mxu0
        %v7052 = vadd.f32 0.0, %v7051
        %7053 = vmatmul.bf16.gmra.mxu0 %v6945
        %v7054 = vpop.f32.mrf.mxu0
        %v7055 = vadd.f32 0.0, %v7054
        %v7056 = vpop.f32.mrf.mxu0
        %v7057 = vadd.f32 0.0, %v7056
        %7058 = vmatmul.bf16.gmra.mxu0 %v6946
        %v7059 = vpop.f32.mrf.mxu0
        %v7060 = vadd.f32 0.0, %v7059
        %v7061 = vpop.f32.mrf.mxu0
        %v7062 = vadd.f32 0.0, %v7061
        %7063 = vmatmul.bf16.gmra.mxu0 %v6947
        %v7064 = vpop.f32.mrf.mxu0
        %v7065 = vadd.f32 0.0, %v7064
        %v7066 = vpop.f32.mrf.mxu0
        %v7067 = vadd.f32 0.0, %v7066
        %7068 = vmatmul.bf16.gmra.mxu0 %v6948
        %v7069 = vpop.f32.mrf.mxu0
        %v7070 = vadd.f32 0.0, %v7069
        %v7071 = vpop.f32.mrf.mxu0
        %v7072 = vadd.f32 0.0, %v7071
        %7073 = vmatmul.bf16.gmra.mxu0 %v6949
        %v7074 = vpop.f32.mrf.mxu0
        %v7075 = vadd.f32 0.0, %v7074
        %v7076 = vpop.f32.mrf.mxu0
        %v7077 = vadd.f32 0.0, %v7076
        %7078 = vmatmul.bf16.gmra.mxu0 %v6950
        %v7079 = vpop.f32.mrf.mxu0
        %v7080 = vadd.f32 0.0, %v7079
        %v7081 = vpop.f32.mrf.mxu0
        %v7082 = vadd.f32 0.0, %v7081
        %7083 = vmatmul.bf16.gmra.mxu0 %v6951
        %v7084 = vpop.f32.mrf.mxu0
        %v7085 = vadd.f32 0.0, %v7084
        %v7086 = vpop.f32.mrf.mxu0
        %v7087 = vadd.f32 0.0, %v7086
        %7088 = vmatmul.bf16.gmra.mxu0 %v6952
        %v7089 = vpop.f32.mrf.mxu0
        %v7090 = vadd.f32 0.0, %v7089
        %v7091 = vpop.f32.mrf.mxu0
        %v7092 = vadd.f32 0.0, %v7091
        %7093 = vmatmul.bf16.gmra.mxu0 %v6953
        %v7094 = vpop.f32.mrf.mxu0
        %v7095 = vadd.f32 0.0, %v7094
        %v7096 = vpop.f32.mrf.mxu0
        %v7097 = vadd.f32 0.0, %v7096
        %7098 = vmatmul.bf16.gmra.mxu0 %v6954
        %v7099 = vpop.f32.mrf.mxu0
        %v7100 = vadd.f32 0.0, %v7099
        %v7101 = vpop.f32.mrf.mxu0
        %v7102 = vadd.f32 0.0, %v7101
        %7103 = vmatmul.bf16.gmra.mxu0 %v6955
        %v7104 = vpop.f32.mrf.mxu0
        %v7105 = vadd.f32 0.0, %v7104
        %v7106 = vpop.f32.mrf.mxu0
        %v7107 = vadd.f32 0.0, %v7106
        %7108 = vdwg.mxu0
        %v7109 = vadd.f32 %v6795, %v7030
        %v7110 = vadd.f32 %v6796, %v7032
        %v7111 = vadd.f32 %v6797, %v7035
        %v7112 = vadd.f32 %v6798, %v7037
        %v7113 = vadd.f32 %v6799, %v7040
        %v7114 = vadd.f32 %v6800, %v7042
        %v7115 = vadd.f32 %v6801, %v7045
        %v7116 = vadd.f32 %v6802, %v7047
        %v7117 = vadd.f32 %v6803, %v7050
        %v7118 = vadd.f32 %v6804, %v7052
        %v7119 = vadd.f32 %v6805, %v7055
        %v7120 = vadd.f32 %v6806, %v7057
        %v7121 = vadd.f32 %v6807, %v7060
        %v7122 = vadd.f32 %v6808, %v7062
        %v7123 = vadd.f32 %v6809, %v7065
        %v7124 = vadd.f32 %v6810, %v7067
        %v7125 = vadd.f32 %v6811, %v7070
        %v7126 = vadd.f32 %v6812, %v7072
        %v7127 = vadd.f32 %v6813, %v7075
        %v7128 = vadd.f32 %v6814, %v7077
        %v7129 = vadd.f32 %v6815, %v7080
        %v7130 = vadd.f32 %v6816, %v7082
        %v7131 = vadd.f32 %v6817, %v7085
        %v7132 = vadd.f32 %v6818, %v7087
        %v7133 = vadd.f32 %v6819, %v7090
        %v7134 = vadd.f32 %v6820, %v7092
        %v7135 = vadd.f32 %v6821, %v7095
        %v7136 = vadd.f32 %v6822, %v7097
        %v7137 = vadd.f32 %v6823, %v7100
        %v7138 = vadd.f32 %v6824, %v7102
        %v7139 = vadd.f32 %v6825, %v7105
        %v7140 = vadd.f32 %v6826, %v7107
        %v7141 = vld [vmem:[%s259] sm:$0xf]
        %v7142 = vld [vmem:[%s259 + $0x4] sm:$0xf]
        %v7143 = vld [vmem:[%s259 + $0x8] sm:$0x1]
        %v7144 = vld [vmem:[%s259 + $0xc] sm:$0xf]
        %v7145 = vld [vmem:[%s259 + $0x10] sm:$0xf]
        %v7146 = vld [vmem:[%s259 + $0x14] sm:$0x1]
        %v7147 = vld [vmem:[%s259 + $0x18] sm:$0xf]
        %v7148 = vld [vmem:[%s259 + $0x1c] sm:$0xf]
        %v7149 = vld [vmem:[%s259 + $0x20] sm:$0x1]
        %v7150 = vld [vmem:[%s259 + $0x24] sm:$0xf]
        %v7151 = vld [vmem:[%s259 + $0x28] sm:$0xf]
        %v7152 = vld [vmem:[%s259 + $0x2c] sm:$0x1]
        %v7153 = vld [vmem:[%s259 + $0x30] sm:$0xf]
        %v7154 = vld [vmem:[%s259 + $0x34] sm:$0xf]
        %v7155 = vld [vmem:[%s259 + $0x38] sm:$0x1]
        %v7156 = vld [vmem:[%s259 + $0x3c] sm:$0xf]
        %v7157 = vld [vmem:[%s259 + $0x40] sm:$0xf]
        %v7158 = vld [vmem:[%s259 + $0x44] sm:$0x1]
        %v7159 = vld [vmem:[%s259 + $0x48] sm:$0xf]
        %v7160 = vld [vmem:[%s259 + $0x4c] sm:$0xf]
        %v7161 = vld [vmem:[%s259 + $0x50] sm:$0x1]
        %v7162 = vld [vmem:[%s259 + $0x54] sm:$0xf]
        %v7163 = vld [vmem:[%s259 + $0x58] sm:$0xf]
        %v7164 = vld [vmem:[%s259 + $0x5c] sm:$0x1]
        %v7165 = vld [vmem:[%s259 + $0x60] sm:$0xf]
        %v7166 = vld [vmem:[%s259 + $0x64] sm:$0xf]
        %v7167 = vld [vmem:[%s259 + $0x68] sm:$0x1]
        %v7168 = vld [vmem:[%s259 + $0x6c] sm:$0xf]
        %v7169 = vld [vmem:[%s259 + $0x70] sm:$0xf]
        %v7170 = vld [vmem:[%s259 + $0x74] sm:$0x1]
        %v7171 = vld [vmem:[%s259 + $0x78] sm:$0xf]
        %v7172 = vld [vmem:[%s259 + $0x7c] sm:$0xf]
        %v7173 = vld [vmem:[%s259 + $0x80] sm:$0x1]
        %v7174 = vld [vmem:[%s259 + $0x84] sm:$0xf]
        %v7175 = vld [vmem:[%s259 + $0x88] sm:$0xf]
        %v7176 = vld [vmem:[%s259 + $0x8c] sm:$0x1]
        %v7177 = vld [vmem:[%s259 + $0x90] sm:$0xf]
        %v7178 = vld [vmem:[%s259 + $0x94] sm:$0xf]
        %v7179 = vld [vmem:[%s259 + $0x98] sm:$0x1]
        %v7180 = vld [vmem:[%s259 + $0x9c] sm:$0xf]
        %v7181 = vld [vmem:[%s259 + $0xa0] sm:$0xf]
        %v7182 = vld [vmem:[%s259 + $0xa4] sm:$0x1]
        %v7183 = vld [vmem:[%s259 + $0xa8] sm:$0xf]
        %v7184 = vld [vmem:[%s259 + $0xac] sm:$0xf]
        %v7185 = vld [vmem:[%s259 + $0xb0] sm:$0x1]
        %v7186 = vld [vmem:[%s259 + $0xb4] sm:$0xf]
        %v7187 = vld [vmem:[%s259 + $0xb8] sm:$0xf]
        %v7188 = vld [vmem:[%s259 + $0xbc] sm:$0x1]
        %v7190 = vshrl.u32 %v7141, 16
        %v7192 = vrot.slane %v7190, 4
        %v7193 = vshll.u32 %v7141, 16
        %v7195 = vrot.slane %v7193, 5
        %v7196 = vor.u32 %v7192, %v7195
        %v7197 = vrot.slane %v7196, 4
        %v7199 = vshll.u32 %v7142, 16
        %v7201 = vrot.slane %v7199, 5
        %v7202 = vsel %vm895, %v7197, %v7201
        %v7203 = vshrl.u32 %v7142, 16
        %v7205 = vrot.slane %v7203, 4
        %v7206 = vor.u32 %v7205, %v7201
        %v7207 = vrot.slane %v7206, 4
        %v7209 = vshll.u32 %v7143, 16
        %v7211 = vrot.slane %v7209, 5
        %v7212 = vsel %vm895, %v7207, %v7211
        %v7214 = vshrl.u32 %v7144, 16
        %v7216 = vrot.slane %v7214, 4
        %v7217 = vshll.u32 %v7144, 16
        %v7219 = vrot.slane %v7217, 5
        %v7220 = vor.u32 %v7216, %v7219
        %v7221 = vrot.slane %v7220, 4
        %v7223 = vshll.u32 %v7145, 16
        %v7225 = vrot.slane %v7223, 5
        %v7226 = vsel %vm895, %v7221, %v7225
        %v7227 = vshrl.u32 %v7145, 16
        %v7229 = vrot.slane %v7227, 4
        %v7230 = vor.u32 %v7229, %v7225
        %v7231 = vrot.slane %v7230, 4
        %v7233 = vshll.u32 %v7146, 16
        %v7235 = vrot.slane %v7233, 5
        %v7236 = vsel %vm895, %v7231, %v7235
        %v7238 = vshrl.u32 %v7147, 16
        %v7240 = vrot.slane %v7238, 4
        %v7241 = vshll.u32 %v7147, 16
        %v7243 = vrot.slane %v7241, 5
        %v7244 = vor.u32 %v7240, %v7243
        %v7245 = vrot.slane %v7244, 4
        %v7247 = vshll.u32 %v7148, 16
        %v7249 = vrot.slane %v7247, 5
        %v7250 = vsel %vm895, %v7245, %v7249
        %v7251 = vshrl.u32 %v7148, 16
        %v7253 = vrot.slane %v7251, 4
        %v7254 = vor.u32 %v7253, %v7249
        %v7255 = vrot.slane %v7254, 4
        %v7257 = vshll.u32 %v7149, 16
        %v7259 = vrot.slane %v7257, 5
        %v7260 = vsel %vm895, %v7255, %v7259
        %v7262 = vshrl.u32 %v7150, 16
        %v7264 = vrot.slane %v7262, 4
        %v7265 = vshll.u32 %v7150, 16
        %v7267 = vrot.slane %v7265, 5
        %v7268 = vor.u32 %v7264, %v7267
        %v7269 = vrot.slane %v7268, 4
        %v7271 = vshll.u32 %v7151, 16
        %v7273 = vrot.slane %v7271, 5
        %v7274 = vsel %vm895, %v7269, %v7273
        %v7275 = vshrl.u32 %v7151, 16
        %v7277 = vrot.slane %v7275, 4
        %v7278 = vor.u32 %v7277, %v7273
        %v7279 = vrot.slane %v7278, 4
        %v7281 = vshll.u32 %v7152, 16
        %v7283 = vrot.slane %v7281, 5
        %v7284 = vsel %vm895, %v7279, %v7283
        %v7286 = vshrl.u32 %v7153, 16
        %v7288 = vrot.slane %v7286, 4
        %v7289 = vshll.u32 %v7153, 16
        %v7291 = vrot.slane %v7289, 5
        %v7292 = vor.u32 %v7288, %v7291
        %v7293 = vrot.slane %v7292, 4
        %v7295 = vshll.u32 %v7154, 16
        %v7297 = vrot.slane %v7295, 5
        %v7298 = vsel %vm895, %v7293, %v7297
        %v7299 = vshrl.u32 %v7154, 16
        %v7301 = vrot.slane %v7299, 4
        %v7302 = vor.u32 %v7301, %v7297
        %v7303 = vrot.slane %v7302, 4
        %v7305 = vshll.u32 %v7155, 16
        %v7307 = vrot.slane %v7305, 5
        %v7308 = vsel %vm895, %v7303, %v7307
        %v7310 = vshrl.u32 %v7156, 16
        %v7312 = vrot.slane %v7310, 4
        %v7313 = vshll.u32 %v7156, 16
        %v7315 = vrot.slane %v7313, 5
        %v7316 = vor.u32 %v7312, %v7315
        %v7317 = vrot.slane %v7316, 4
        %v7319 = vshll.u32 %v7157, 16
        %v7321 = vrot.slane %v7319, 5
        %v7322 = vsel %vm895, %v7317, %v7321
        %v7323 = vshrl.u32 %v7157, 16
        %v7325 = vrot.slane %v7323, 4
        %v7326 = vor.u32 %v7325, %v7321
        %v7327 = vrot.slane %v7326, 4
        %v7329 = vshll.u32 %v7158, 16
        %v7331 = vrot.slane %v7329, 5
        %v7332 = vsel %vm895, %v7327, %v7331
        %v7334 = vshrl.u32 %v7159, 16
        %v7336 = vrot.slane %v7334, 4
        %v7337 = vshll.u32 %v7159, 16
        %v7339 = vrot.slane %v7337, 5
        %v7340 = vor.u32 %v7336, %v7339
        %v7341 = vrot.slane %v7340, 4
        %v7343 = vshll.u32 %v7160, 16
        %v7345 = vrot.slane %v7343, 5
        %v7346 = vsel %vm895, %v7341, %v7345
        %v7347 = vshrl.u32 %v7160, 16
        %v7349 = vrot.slane %v7347, 4
        %v7350 = vor.u32 %v7349, %v7345
        %v7351 = vrot.slane %v7350, 4
        %v7353 = vshll.u32 %v7161, 16
        %v7355 = vrot.slane %v7353, 5
        %v7356 = vsel %vm895, %v7351, %v7355
        %v7358 = vshrl.u32 %v7162, 16
        %v7360 = vrot.slane %v7358, 4
        %v7361 = vshll.u32 %v7162, 16
        %v7363 = vrot.slane %v7361, 5
        %v7364 = vor.u32 %v7360, %v7363
        %v7365 = vrot.slane %v7364, 4
        %v7367 = vshll.u32 %v7163, 16
        %v7369 = vrot.slane %v7367, 5
        %v7370 = vsel %vm895, %v7365, %v7369
        %v7371 = vshrl.u32 %v7163, 16
        %v7373 = vrot.slane %v7371, 4
        %v7374 = vor.u32 %v7373, %v7369
        %v7375 = vrot.slane %v7374, 4
        %v7377 = vshll.u32 %v7164, 16
        %v7379 = vrot.slane %v7377, 5
        %v7380 = vsel %vm895, %v7375, %v7379
        %v7382 = vshrl.u32 %v7165, 16
        %v7384 = vrot.slane %v7382, 4
        %v7385 = vshll.u32 %v7165, 16
        %v7387 = vrot.slane %v7385, 5
        %v7388 = vor.u32 %v7384, %v7387
        %v7389 = vrot.slane %v7388, 4
        %v7391 = vshll.u32 %v7166, 16
        %v7393 = vrot.slane %v7391, 5
        %v7394 = vsel %vm895, %v7389, %v7393
        %v7395 = vshrl.u32 %v7166, 16
        %v7397 = vrot.slane %v7395, 4
        %v7398 = vor.u32 %v7397, %v7393
        %v7399 = vrot.slane %v7398, 4
        %v7401 = vshll.u32 %v7167, 16
        %v7403 = vrot.slane %v7401, 5
        %v7404 = vsel %vm895, %v7399, %v7403
        %v7406 = vshrl.u32 %v7168, 16
        %v7408 = vrot.slane %v7406, 4
        %v7409 = vshll.u32 %v7168, 16
        %v7411 = vrot.slane %v7409, 5
        %v7412 = vor.u32 %v7408, %v7411
        %v7413 = vrot.slane %v7412, 4
        %v7415 = vshll.u32 %v7169, 16
        %v7417 = vrot.slane %v7415, 5
        %v7418 = vsel %vm895, %v7413, %v7417
        %v7419 = vshrl.u32 %v7169, 16
        %v7421 = vrot.slane %v7419, 4
        %v7422 = vor.u32 %v7421, %v7417
        %v7423 = vrot.slane %v7422, 4
        %v7425 = vshll.u32 %v7170, 16
        %v7427 = vrot.slane %v7425, 5
        %v7428 = vsel %vm895, %v7423, %v7427
        %v7430 = vshrl.u32 %v7171, 16
        %v7432 = vrot.slane %v7430, 4
        %v7433 = vshll.u32 %v7171, 16
        %v7435 = vrot.slane %v7433, 5
        %v7436 = vor.u32 %v7432, %v7435
        %v7437 = vrot.slane %v7436, 4
        %v7439 = vshll.u32 %v7172, 16
        %v7441 = vrot.slane %v7439, 5
        %v7442 = vsel %vm895, %v7437, %v7441
        %v7443 = vshrl.u32 %v7172, 16
        %v7445 = vrot.slane %v7443, 4
        %v7446 = vor.u32 %v7445, %v7441
        %v7447 = vrot.slane %v7446, 4
        %v7449 = vshll.u32 %v7173, 16
        %v7451 = vrot.slane %v7449, 5
        %v7452 = vsel %vm895, %v7447, %v7451
        %v7454 = vshrl.u32 %v7174, 16
        %v7456 = vrot.slane %v7454, 4
        %v7457 = vshll.u32 %v7174, 16
        %v7459 = vrot.slane %v7457, 5
        %v7460 = vor.u32 %v7456, %v7459
        %v7461 = vrot.slane %v7460, 4
        %v7463 = vshll.u32 %v7175, 16
        %v7465 = vrot.slane %v7463, 5
        %v7466 = vsel %vm895, %v7461, %v7465
        %v7467 = vshrl.u32 %v7175, 16
        %v7469 = vrot.slane %v7467, 4
        %v7470 = vor.u32 %v7469, %v7465
        %v7471 = vrot.slane %v7470, 4
        %v7473 = vshll.u32 %v7176, 16
        %v7475 = vrot.slane %v7473, 5
        %v7476 = vsel %vm895, %v7471, %v7475
        %v7478 = vshrl.u32 %v7177, 16
        %v7480 = vrot.slane %v7478, 4
        %v7481 = vshll.u32 %v7177, 16
        %v7483 = vrot.slane %v7481, 5
        %v7484 = vor.u32 %v7480, %v7483
        %v7485 = vrot.slane %v7484, 4
        %v7487 = vshll.u32 %v7178, 16
        %v7489 = vrot.slane %v7487, 5
        %v7490 = vsel %vm895, %v7485, %v7489
        %v7491 = vshrl.u32 %v7178, 16
        %v7493 = vrot.slane %v7491, 4
        %v7494 = vor.u32 %v7493, %v7489
        %v7495 = vrot.slane %v7494, 4
        %v7497 = vshll.u32 %v7179, 16
        %v7499 = vrot.slane %v7497, 5
        %v7500 = vsel %vm895, %v7495, %v7499
        %v7502 = vshrl.u32 %v7180, 16
        %v7504 = vrot.slane %v7502, 4
        %v7505 = vshll.u32 %v7180, 16
        %v7507 = vrot.slane %v7505, 5
        %v7508 = vor.u32 %v7504, %v7507
        %v7509 = vrot.slane %v7508, 4
        %v7511 = vshll.u32 %v7181, 16
        %v7513 = vrot.slane %v7511, 5
        %v7514 = vsel %vm895, %v7509, %v7513
        %v7515 = vshrl.u32 %v7181, 16
        %v7517 = vrot.slane %v7515, 4
        %v7518 = vor.u32 %v7517, %v7513
        %v7519 = vrot.slane %v7518, 4
        %v7521 = vshll.u32 %v7182, 16
        %v7523 = vrot.slane %v7521, 5
        %v7524 = vsel %vm895, %v7519, %v7523
        %v7526 = vshrl.u32 %v7183, 16
        %v7528 = vrot.slane %v7526, 4
        %v7529 = vshll.u32 %v7183, 16
        %v7531 = vrot.slane %v7529, 5
        %v7532 = vor.u32 %v7528, %v7531
        %v7533 = vrot.slane %v7532, 4
        %v7535 = vshll.u32 %v7184, 16
        %v7537 = vrot.slane %v7535, 5
        %v7538 = vsel %vm895, %v7533, %v7537
        %v7539 = vshrl.u32 %v7184, 16
        %v7541 = vrot.slane %v7539, 4
        %v7542 = vor.u32 %v7541, %v7537
        %v7543 = vrot.slane %v7542, 4
        %v7545 = vshll.u32 %v7185, 16
        %v7547 = vrot.slane %v7545, 5
        %v7548 = vsel %vm895, %v7543, %v7547
        %v7550 = vshrl.u32 %v7186, 16
        %v7552 = vrot.slane %v7550, 4
        %v7553 = vshll.u32 %v7186, 16
        %v7555 = vrot.slane %v7553, 5
        %v7556 = vor.u32 %v7552, %v7555
        %v7557 = vrot.slane %v7556, 4
        %v7559 = vshll.u32 %v7187, 16
        %v7561 = vrot.slane %v7559, 5
        %v7562 = vsel %vm895, %v7557, %v7561
        %v7563 = vshrl.u32 %v7187, 16
        %v7565 = vrot.slane %v7563, 4
        %v7566 = vor.u32 %v7565, %v7561
        %v7567 = vrot.slane %v7566, 4
        %v7569 = vshll.u32 %v7188, 16
        %v7571 = vrot.slane %v7569, 5
        %v7572 = vsel %vm895, %v7567, %v7571
        %s7573 = scalar_lea.vmem [#allocation8], 256
        %v7574 = vld [vmem:[%s7573] sm:$0xf]
        %v7575 = vld [vmem:[%s7573 + $0x4] sm:$0xf]
        %v7576 = vld [vmem:[%s7573 + $0x8] sm:$0xf]
        %v7577 = vld [vmem:[%s7573 + $0xc] sm:$0xf]
        %v7578 = vld [vmem:[%s7573 + $0x10] sm:$0xf]
        %v7579 = vld [vmem:[%s7573 + $0x14] sm:$0xf]
        %v7580 = vld [vmem:[%s7573 + $0x18] sm:$0xf]
        %v7581 = vld [vmem:[%s7573 + $0x1c] sm:$0xf]
        %v7582 = vld [vmem:[%s7573 + $0x20] sm:$0xf]
        %v7583 = vld [vmem:[%s7573 + $0x24] sm:$0xf]
        %v7584 = vld [vmem:[%s7573 + $0x28] sm:$0xf]
        %v7585 = vld [vmem:[%s7573 + $0x2c] sm:$0xf]
        %v7586 = vld [vmem:[%s7573 + $0x30] sm:$0xf]
        %v7587 = vld [vmem:[%s7573 + $0x34] sm:$0xf]
        %v7588 = vld [vmem:[%s7573 + $0x38] sm:$0xf]
        %v7589 = vld [vmem:[%s7573 + $0x3c] sm:$0xf]
        %v7590 = vunpack.c.l.b16 %v7202
        %v7591 = vunpack.c.l.b16 %v7212
        %v7592 = vunpack.c.l.b16 %v7226
        %v7593 = vunpack.c.l.b16 %v7236
        %v7594 = vunpack.c.l.b16 %v7250
        %v7595 = vunpack.c.l.b16 %v7260
        %v7596 = vunpack.c.l.b16 %v7274
        %v7597 = vunpack.c.l.b16 %v7284
        %v7598 = vunpack.c.l.b16 %v7298
        %v7599 = vunpack.c.l.b16 %v7308
        %v7600 = vunpack.c.l.b16 %v7322
        %v7601 = vunpack.c.l.b16 %v7332
        %v7602 = vunpack.c.l.b16 %v7346
        %v7603 = vunpack.c.l.b16 %v7356
        %v7604 = vunpack.c.l.b16 %v7370
        %v7605 = vunpack.c.l.b16 %v7380
        %v7606 = vunpack.c.l.b16 %v7394
        %v7607 = vunpack.c.l.b16 %v7404
        %v7608 = vunpack.c.l.b16 %v7418
        %v7609 = vunpack.c.l.b16 %v7428
        %v7610 = vunpack.c.l.b16 %v7442
        %v7611 = vunpack.c.l.b16 %v7452
        %v7612 = vunpack.c.l.b16 %v7466
        %v7613 = vunpack.c.l.b16 %v7476
        %v7614 = vunpack.c.l.b16 %v7490
        %v7615 = vunpack.c.l.b16 %v7500
        %v7616 = vunpack.c.l.b16 %v7514
        %v7617 = vunpack.c.l.b16 %v7524
        %v7618 = vunpack.c.l.b16 %v7538
        %v7619 = vunpack.c.l.b16 %v7548
        %v7620 = vunpack.c.l.b16 %v7562
        %v7621 = vunpack.c.l.b16 %v7572
        %v7622 = vpack.c.b16 %v7591, %v7590
        %v7623 = vpack.c.b16 %v7593, %v7592
        %v7624 = vpack.c.b16 %v7595, %v7594
        %v7625 = vpack.c.b16 %v7597, %v7596
        %v7626 = vpack.c.b16 %v7599, %v7598
        %v7627 = vpack.c.b16 %v7601, %v7600
        %v7628 = vpack.c.b16 %v7603, %v7602
        %v7629 = vpack.c.b16 %v7605, %v7604
        %v7630 = vpack.c.b16 %v7607, %v7606
        %v7631 = vpack.c.b16 %v7609, %v7608
        %v7632 = vpack.c.b16 %v7611, %v7610
        %v7633 = vpack.c.b16 %v7613, %v7612
        %v7634 = vpack.c.b16 %v7615, %v7614
        %v7635 = vpack.c.b16 %v7617, %v7616
        %v7636 = vpack.c.b16 %v7619, %v7618
        %v7637 = vpack.c.b16 %v7621, %v7620
        %v7670 = vunpack.c.l.b16 %v7574
        %v7671 = vunpack.c.l.b16 %v7575
        %v7672 = vunpack.c.l.b16 %v7576
        %v7673 = vunpack.c.l.b16 %v7577
        %v7674 = vunpack.c.l.b16 %v7578
        %v7675 = vunpack.c.l.b16 %v7579
        %v7676 = vunpack.c.l.b16 %v7580
        %v7677 = vunpack.c.l.b16 %v7581
        %v7678 = vunpack.c.l.b16 %v7582
        %v7679 = vunpack.c.l.b16 %v7583
        %v7680 = vunpack.c.l.b16 %v7584
        %v7681 = vunpack.c.l.b16 %v7585
        %v7682 = vunpack.c.l.b16 %v7586
        %v7683 = vunpack.c.l.b16 %v7587
        %v7684 = vunpack.c.l.b16 %v7588
        %v7685 = vunpack.c.l.b16 %v7589
        %v7686 = vpack.c.b16 %v7671, %v7670
        %v7687 = vpack.c.b16 %v7673, %v7672
        %v7688 = vpack.c.b16 %v7675, %v7674
        %v7689 = vpack.c.b16 %v7677, %v7676
        %v7690 = vpack.c.b16 %v7679, %v7678
        %v7691 = vpack.c.b16 %v7681, %v7680
        %v7692 = vpack.c.b16 %v7683, %v7682
        %v7693 = vpack.c.b16 %v7685, %v7684
        %7702 = vmatpush.bf16.msra.mxu0 %v7693
        %7703 = vmatpush.bf16.msra.mxu0 %v7692
        %7704 = vmatpush.bf16.msra.mxu0 %v7691
        %7705 = vmatpush.bf16.msra.mxu0 %v7690
        %7706 = vmatpush.bf16.msra.mxu0 %v7689
        %7707 = vmatpush.bf16.msra.mxu0 %v7688
        %7708 = vmatpush.bf16.msra.mxu0 %v7687
        %7709 = vmatpush.bf16.msra.mxu0 %v7686
        %7710 = vmatmul.bf16.gmra.mxu0 %v7622
        %v7711 = vpop.f32.mrf.mxu0
        %v7712 = vadd.f32 0.0, %v7711
        %v7713 = vpop.f32.mrf.mxu0
        %v7714 = vadd.f32 0.0, %v7713
        %7715 = vmatmul.bf16.gmra.mxu0 %v7623
        %v7716 = vpop.f32.mrf.mxu0
        %v7717 = vadd.f32 0.0, %v7716
        %v7718 = vpop.f32.mrf.mxu0
        %v7719 = vadd.f32 0.0, %v7718
        %7720 = vmatmul.bf16.gmra.mxu0 %v7624
        %v7721 = vpop.f32.mrf.mxu0
        %v7722 = vadd.f32 0.0, %v7721
        %v7723 = vpop.f32.mrf.mxu0
        %v7724 = vadd.f32 0.0, %v7723
        %7725 = vmatmul.bf16.gmra.mxu0 %v7625
        %v7726 = vpop.f32.mrf.mxu0
        %v7727 = vadd.f32 0.0, %v7726
        %v7728 = vpop.f32.mrf.mxu0
        %v7729 = vadd.f32 0.0, %v7728
        %7730 = vmatmul.bf16.gmra.mxu0 %v7626
        %v7731 = vpop.f32.mrf.mxu0
        %v7732 = vadd.f32 0.0, %v7731
        %v7733 = vpop.f32.mrf.mxu0
        %v7734 = vadd.f32 0.0, %v7733
        %7735 = vmatmul.bf16.gmra.mxu0 %v7627
        %v7736 = vpop.f32.mrf.mxu0
        %v7737 = vadd.f32 0.0, %v7736
        %v7738 = vpop.f32.mrf.mxu0
        %v7739 = vadd.f32 0.0, %v7738
        %7740 = vmatmul.bf16.gmra.mxu0 %v7628
        %v7741 = vpop.f32.mrf.mxu0
        %v7742 = vadd.f32 0.0, %v7741
        %v7743 = vpop.f32.mrf.mxu0
        %v7744 = vadd.f32 0.0, %v7743
        %7745 = vmatmul.bf16.gmra.mxu0 %v7629
        %v7746 = vpop.f32.mrf.mxu0
        %v7747 = vadd.f32 0.0, %v7746
        %v7748 = vpop.f32.mrf.mxu0
        %v7749 = vadd.f32 0.0, %v7748
        %7750 = vmatmul.bf16.gmra.mxu0 %v7630
        %v7751 = vpop.f32.mrf.mxu0
        %v7752 = vadd.f32 0.0, %v7751
        %v7753 = vpop.f32.mrf.mxu0
        %v7754 = vadd.f32 0.0, %v7753
        %7755 = vmatmul.bf16.gmra.mxu0 %v7631
        %v7756 = vpop.f32.mrf.mxu0
        %v7757 = vadd.f32 0.0, %v7756
        %v7758 = vpop.f32.mrf.mxu0
        %v7759 = vadd.f32 0.0, %v7758
        %7760 = vmatmul.bf16.gmra.mxu0 %v7632
        %v7761 = vpop.f32.mrf.mxu0
        %v7762 = vadd.f32 0.0, %v7761
        %v7763 = vpop.f32.mrf.mxu0
        %v7764 = vadd.f32 0.0, %v7763
        %7765 = vmatmul.bf16.gmra.mxu0 %v7633
        %v7766 = vpop.f32.mrf.mxu0
        %v7767 = vadd.f32 0.0, %v7766
        %v7768 = vpop.f32.mrf.mxu0
        %v7769 = vadd.f32 0.0, %v7768
        %7770 = vmatmul.bf16.gmra.mxu0 %v7634
        %v7771 = vpop.f32.mrf.mxu0
        %v7772 = vadd.f32 0.0, %v7771
        %v7773 = vpop.f32.mrf.mxu0
        %v7774 = vadd.f32 0.0, %v7773
        %7775 = vmatmul.bf16.gmra.mxu0 %v7635
        %v7776 = vpop.f32.mrf.mxu0
        %v7777 = vadd.f32 0.0, %v7776
        %v7778 = vpop.f32.mrf.mxu0
        %v7779 = vadd.f32 0.0, %v7778
        %7780 = vmatmul.bf16.gmra.mxu0 %v7636
        %v7781 = vpop.f32.mrf.mxu0
        %v7782 = vadd.f32 0.0, %v7781
        %v7783 = vpop.f32.mrf.mxu0
        %v7784 = vadd.f32 0.0, %v7783
        %7785 = vmatmul.bf16.gmra.mxu0 %v7637
        %v7786 = vpop.f32.mrf.mxu0
        %v7787 = vadd.f32 0.0, %v7786
        %v7788 = vpop.f32.mrf.mxu0
        %v7789 = vadd.f32 0.0, %v7788
        %7790 = vdwg.mxu0
        %v7791 = vadd.f32 %v7109, %v7712
        %v7792 = vadd.f32 %v7110, %v7714
        %v7793 = vadd.f32 %v7111, %v7717
        %v7794 = vadd.f32 %v7112, %v7719
        %v7795 = vadd.f32 %v7113, %v7722
        %v7796 = vadd.f32 %v7114, %v7724
        %v7797 = vadd.f32 %v7115, %v7727
        %v7798 = vadd.f32 %v7116, %v7729
        %v7799 = vadd.f32 %v7117, %v7732
        %v7800 = vadd.f32 %v7118, %v7734
        %v7801 = vadd.f32 %v7119, %v7737
        %v7802 = vadd.f32 %v7120, %v7739
        %v7803 = vadd.f32 %v7121, %v7742
        %v7804 = vadd.f32 %v7122, %v7744
        %v7805 = vadd.f32 %v7123, %v7747
        %v7806 = vadd.f32 %v7124, %v7749
        %v7807 = vadd.f32 %v7125, %v7752
        %v7808 = vadd.f32 %v7126, %v7754
        %v7809 = vadd.f32 %v7127, %v7757
        %v7810 = vadd.f32 %v7128, %v7759
        %v7811 = vadd.f32 %v7129, %v7762
        %v7812 = vadd.f32 %v7130, %v7764
        %v7813 = vadd.f32 %v7131, %v7767
        %v7814 = vadd.f32 %v7132, %v7769
        %v7815 = vadd.f32 %v7133, %v7772
        %v7816 = vadd.f32 %v7134, %v7774
        %v7817 = vadd.f32 %v7135, %v7777
        %v7818 = vadd.f32 %v7136, %v7779
        %v7819 = vadd.f32 %v7137, %v7782
        %v7820 = vadd.f32 %v7138, %v7784
        %v7821 = vadd.f32 %v7139, %v7787
        %v7822 = vadd.f32 %v7140, %v7789
        %v7823 = vld [vmem:[%s259] sm:$0xe]
        %v7824 = vld [vmem:[%s259 + $0xc] sm:$0xe]
        %v7825 = vld [vmem:[%s259 + $0x18] sm:$0xe]
        %v7826 = vld [vmem:[%s259 + $0x24] sm:$0xe]
        %v7827 = vld [vmem:[%s259 + $0x30] sm:$0xe]
        %v7828 = vld [vmem:[%s259 + $0x3c] sm:$0xe]
        %v7829 = vld [vmem:[%s259 + $0x48] sm:$0xe]
        %v7830 = vld [vmem:[%s259 + $0x54] sm:$0xe]
        %v7831 = vld [vmem:[%s259 + $0x60] sm:$0xe]
        %v7832 = vld [vmem:[%s259 + $0x6c] sm:$0xe]
        %v7833 = vld [vmem:[%s259 + $0x78] sm:$0xe]
        %v7834 = vld [vmem:[%s259 + $0x84] sm:$0xe]
        %v7835 = vld [vmem:[%s259 + $0x90] sm:$0xe]
        %v7836 = vld [vmem:[%s259 + $0x9c] sm:$0xe]
        %v7837 = vld [vmem:[%s259 + $0xa8] sm:$0xe]
        %v7838 = vld [vmem:[%s259 + $0xb4] sm:$0xe]
        %v7887 = vrot.slane %v7823, 5
        %v7888 = vrot.slane %v7887, 4
        %v7889 = vrot.slane %v7142, 5
        %v7890 = vsel %vm1781, %v7888, %v7889
        %v7891 = vrot.slane %v7889, 4
        %v7892 = vrot.slane %v7143, 5
        %v7893 = vsel %vm1781, %v7891, %v7892
        %v7894 = vrot.slane %v7824, 5
        %v7895 = vrot.slane %v7894, 4
        %v7896 = vrot.slane %v7145, 5
        %v7897 = vsel %vm1781, %v7895, %v7896
        %v7898 = vrot.slane %v7896, 4
        %v7899 = vrot.slane %v7146, 5
        %v7900 = vsel %vm1781, %v7898, %v7899
        %v7901 = vrot.slane %v7825, 5
        %v7902 = vrot.slane %v7901, 4
        %v7903 = vrot.slane %v7148, 5
        %v7904 = vsel %vm1781, %v7902, %v7903
        %v7905 = vrot.slane %v7903, 4
        %v7906 = vrot.slane %v7149, 5
        %v7907 = vsel %vm1781, %v7905, %v7906
        %v7908 = vrot.slane %v7826, 5
        %v7909 = vrot.slane %v7908, 4
        %v7910 = vrot.slane %v7151, 5
        %v7911 = vsel %vm1781, %v7909, %v7910
        %v7912 = vrot.slane %v7910, 4
        %v7913 = vrot.slane %v7152, 5
        %v7914 = vsel %vm1781, %v7912, %v7913
        %v7915 = vrot.slane %v7827, 5
        %v7916 = vrot.slane %v7915, 4
        %v7917 = vrot.slane %v7154, 5
        %v7918 = vsel %vm1781, %v7916, %v7917
        %v7919 = vrot.slane %v7917, 4
        %v7920 = vrot.slane %v7155, 5
        %v7921 = vsel %vm1781, %v7919, %v7920
        %v7922 = vrot.slane %v7828, 5
        %v7923 = vrot.slane %v7922, 4
        %v7924 = vrot.slane %v7157, 5
        %v7925 = vsel %vm1781, %v7923, %v7924
        %v7926 = vrot.slane %v7924, 4
        %v7927 = vrot.slane %v7158, 5
        %v7928 = vsel %vm1781, %v7926, %v7927
        %v7929 = vrot.slane %v7829, 5
        %v7930 = vrot.slane %v7929, 4
        %v7931 = vrot.slane %v7160, 5
        %v7932 = vsel %vm1781, %v7930, %v7931
        %v7933 = vrot.slane %v7931, 4
        %v7934 = vrot.slane %v7161, 5
        %v7935 = vsel %vm1781, %v7933, %v7934
        %v7936 = vrot.slane %v7830, 5
        %v7937 = vrot.slane %v7936, 4
        %v7938 = vrot.slane %v7163, 5
        %v7939 = vsel %vm1781, %v7937, %v7938
        %v7940 = vrot.slane %v7938, 4
        %v7941 = vrot.slane %v7164, 5
        %v7942 = vsel %vm1781, %v7940, %v7941
        %v7943 = vrot.slane %v7831, 5
        %v7944 = vrot.slane %v7943, 4
        %v7945 = vrot.slane %v7166, 5
        %v7946 = vsel %vm1781, %v7944, %v7945
        %v7947 = vrot.slane %v7945, 4
        %v7948 = vrot.slane %v7167, 5
        %v7949 = vsel %vm1781, %v7947, %v7948
        %v7950 = vrot.slane %v7832, 5
        %v7951 = vrot.slane %v7950, 4
        %v7952 = vrot.slane %v7169, 5
        %v7953 = vsel %vm1781, %v7951, %v7952
        %v7954 = vrot.slane %v7952, 4
        %v7955 = vrot.slane %v7170, 5
        %v7956 = vsel %vm1781, %v7954, %v7955
        %v7957 = vrot.slane %v7833, 5
        %v7958 = vrot.slane %v7957, 4
        %v7959 = vrot.slane %v7172, 5
        %v7960 = vsel %vm1781, %v7958, %v7959
        %v7961 = vrot.slane %v7959, 4
        %v7962 = vrot.slane %v7173, 5
        %v7963 = vsel %vm1781, %v7961, %v7962
        %v7964 = vrot.slane %v7834, 5
        %v7965 = vrot.slane %v7964, 4
        %v7966 = vrot.slane %v7175, 5
        %v7967 = vsel %vm1781, %v7965, %v7966
        %v7968 = vrot.slane %v7966, 4
        %v7969 = vrot.slane %v7176, 5
        %v7970 = vsel %vm1781, %v7968, %v7969
        %v7971 = vrot.slane %v7835, 5
        %v7972 = vrot.slane %v7971, 4
        %v7973 = vrot.slane %v7178, 5
        %v7974 = vsel %vm1781, %v7972, %v7973
        %v7975 = vrot.slane %v7973, 4
        %v7976 = vrot.slane %v7179, 5
        %v7977 = vsel %vm1781, %v7975, %v7976
        %v7978 = vrot.slane %v7836, 5
        %v7979 = vrot.slane %v7978, 4
        %v7980 = vrot.slane %v7181, 5
        %v7981 = vsel %vm1781, %v7979, %v7980
        %v7982 = vrot.slane %v7980, 4
        %v7983 = vrot.slane %v7182, 5
        %v7984 = vsel %vm1781, %v7982, %v7983
        %v7985 = vrot.slane %v7837, 5
        %v7986 = vrot.slane %v7985, 4
        %v7987 = vrot.slane %v7184, 5
        %v7988 = vsel %vm1781, %v7986, %v7987
        %v7989 = vrot.slane %v7987, 4
        %v7990 = vrot.slane %v7185, 5
        %v7991 = vsel %vm1781, %v7989, %v7990
        %v7992 = vrot.slane %v7838, 5
        %v7993 = vrot.slane %v7992, 4
        %v7994 = vrot.slane %v7187, 5
        %v7995 = vsel %vm1781, %v7993, %v7994
        %v7996 = vrot.slane %v7994, 4
        %v7997 = vrot.slane %v7188, 5
        %v7998 = vsel %vm1781, %v7996, %v7997
        %s7999 = scalar_lea.vmem [#allocation8], 320
        %v8000 = vld [vmem:[%s7999] sm:$0xf]
        %v8001 = vld [vmem:[%s7999 + $0x4] sm:$0xf]
        %v8002 = vld [vmem:[%s7999 + $0x8] sm:$0xf]
        %v8003 = vld [vmem:[%s7999 + $0xc] sm:$0xf]
        %v8004 = vld [vmem:[%s7999 + $0x10] sm:$0xf]
        %v8005 = vld [vmem:[%s7999 + $0x14] sm:$0xf]
        %v8006 = vld [vmem:[%s7999 + $0x18] sm:$0xf]
        %v8007 = vld [vmem:[%s7999 + $0x1c] sm:$0xf]
        %v8008 = vld [vmem:[%s7999 + $0x20] sm:$0xf]
        %v8009 = vld [vmem:[%s7999 + $0x24] sm:$0xf]
        %v8010 = vld [vmem:[%s7999 + $0x28] sm:$0xf]
        %v8011 = vld [vmem:[%s7999 + $0x2c] sm:$0xf]
        %v8012 = vld [vmem:[%s7999 + $0x30] sm:$0xf]
        %v8013 = vld [vmem:[%s7999 + $0x34] sm:$0xf]
        %v8014 = vld [vmem:[%s7999 + $0x38] sm:$0xf]
        %v8015 = vld [vmem:[%s7999 + $0x3c] sm:$0xf]
        %v8016 = vunpack.c.l.b16 %v7890
        %v8017 = vunpack.c.l.b16 %v7893
        %v8018 = vunpack.c.l.b16 %v7897
        %v8019 = vunpack.c.l.b16 %v7900
        %v8020 = vunpack.c.l.b16 %v7904
        %v8021 = vunpack.c.l.b16 %v7907
        %v8022 = vunpack.c.l.b16 %v7911
        %v8023 = vunpack.c.l.b16 %v7914
        %v8024 = vunpack.c.l.b16 %v7918
        %v8025 = vunpack.c.l.b16 %v7921
        %v8026 = vunpack.c.l.b16 %v7925
        %v8027 = vunpack.c.l.b16 %v7928
        %v8028 = vunpack.c.l.b16 %v7932
        %v8029 = vunpack.c.l.b16 %v7935
        %v8030 = vunpack.c.l.b16 %v7939
        %v8031 = vunpack.c.l.b16 %v7942
        %v8032 = vunpack.c.l.b16 %v7946
        %v8033 = vunpack.c.l.b16 %v7949
        %v8034 = vunpack.c.l.b16 %v7953
        %v8035 = vunpack.c.l.b16 %v7956
        %v8036 = vunpack.c.l.b16 %v7960
        %v8037 = vunpack.c.l.b16 %v7963
        %v8038 = vunpack.c.l.b16 %v7967
        %v8039 = vunpack.c.l.b16 %v7970
        %v8040 = vunpack.c.l.b16 %v7974
        %v8041 = vunpack.c.l.b16 %v7977
        %v8042 = vunpack.c.l.b16 %v7981
        %v8043 = vunpack.c.l.b16 %v7984
        %v8044 = vunpack.c.l.b16 %v7988
        %v8045 = vunpack.c.l.b16 %v7991
        %v8046 = vunpack.c.l.b16 %v7995
        %v8047 = vunpack.c.l.b16 %v7998
        %v8048 = vpack.c.b16 %v8017, %v8016
        %v8049 = vpack.c.b16 %v8019, %v8018
        %v8050 = vpack.c.b16 %v8021, %v8020
        %v8051 = vpack.c.b16 %v8023, %v8022
        %v8052 = vpack.c.b16 %v8025, %v8024
        %v8053 = vpack.c.b16 %v8027, %v8026
        %v8054 = vpack.c.b16 %v8029, %v8028
        %v8055 = vpack.c.b16 %v8031, %v8030
        %v8056 = vpack.c.b16 %v8033, %v8032
        %v8057 = vpack.c.b16 %v8035, %v8034
        %v8058 = vpack.c.b16 %v8037, %v8036
        %v8059 = vpack.c.b16 %v8039, %v8038
        %v8060 = vpack.c.b16 %v8041, %v8040
        %v8061 = vpack.c.b16 %v8043, %v8042
        %v8062 = vpack.c.b16 %v8045, %v8044
        %v8063 = vpack.c.b16 %v8047, %v8046
        %v8096 = vunpack.c.l.b16 %v8000
        %v8097 = vunpack.c.l.b16 %v8001
        %v8098 = vunpack.c.l.b16 %v8002
        %v8099 = vunpack.c.l.b16 %v8003
        %v8100 = vunpack.c.l.b16 %v8004
        %v8101 = vunpack.c.l.b16 %v8005
        %v8102 = vunpack.c.l.b16 %v8006
        %v8103 = vunpack.c.l.b16 %v8007
        %v8104 = vunpack.c.l.b16 %v8008
        %v8105 = vunpack.c.l.b16 %v8009
        %v8106 = vunpack.c.l.b16 %v8010
        %v8107 = vunpack.c.l.b16 %v8011
        %v8108 = vunpack.c.l.b16 %v8012
        %v8109 = vunpack.c.l.b16 %v8013
        %v8110 = vunpack.c.l.b16 %v8014
        %v8111 = vunpack.c.l.b16 %v8015
        %v8112 = vpack.c.b16 %v8097, %v8096
        %v8113 = vpack.c.b16 %v8099, %v8098
        %v8114 = vpack.c.b16 %v8101, %v8100
        %v8115 = vpack.c.b16 %v8103, %v8102
        %v8116 = vpack.c.b16 %v8105, %v8104
        %v8117 = vpack.c.b16 %v8107, %v8106
        %v8118 = vpack.c.b16 %v8109, %v8108
        %v8119 = vpack.c.b16 %v8111, %v8110
        %8128 = vmatpush.bf16.msra.mxu0 %v8119
        %8129 = vmatpush.bf16.msra.mxu0 %v8118
        %8130 = vmatpush.bf16.msra.mxu0 %v8117
        %8131 = vmatpush.bf16.msra.mxu0 %v8116
        %8132 = vmatpush.bf16.msra.mxu0 %v8115
        %8133 = vmatpush.bf16.msra.mxu0 %v8114
        %8134 = vmatpush.bf16.msra.mxu0 %v8113
        %8135 = vmatpush.bf16.msra.mxu0 %v8112
        %8136 = vmatmul.bf16.gmra.mxu0 %v8048
        %v8137 = vpop.f32.mrf.mxu0
        %v8138 = vadd.f32 0.0, %v8137
        %v8139 = vpop.f32.mrf.mxu0
        %v8140 = vadd.f32 0.0, %v8139
        %8141 = vmatmul.bf16.gmra.mxu0 %v8049
        %v8142 = vpop.f32.mrf.mxu0
        %v8143 = vadd.f32 0.0, %v8142
        %v8144 = vpop.f32.mrf.mxu0
        %v8145 = vadd.f32 0.0, %v8144
        %8146 = vmatmul.bf16.gmra.mxu0 %v8050
        %v8147 = vpop.f32.mrf.mxu0
        %v8148 = vadd.f32 0.0, %v8147
        %v8149 = vpop.f32.mrf.mxu0
        %v8150 = vadd.f32 0.0, %v8149
        %8151 = vmatmul.bf16.gmra.mxu0 %v8051
        %v8152 = vpop.f32.mrf.mxu0
        %v8153 = vadd.f32 0.0, %v8152
        %v8154 = vpop.f32.mrf.mxu0
        %v8155 = vadd.f32 0.0, %v8154
        %8156 = vmatmul.bf16.gmra.mxu0 %v8052
        %v8157 = vpop.f32.mrf.mxu0
        %v8158 = vadd.f32 0.0, %v8157
        %v8159 = vpop.f32.mrf.mxu0
        %v8160 = vadd.f32 0.0, %v8159
        %8161 = vmatmul.bf16.gmra.mxu0 %v8053
        %v8162 = vpop.f32.mrf.mxu0
        %v8163 = vadd.f32 0.0, %v8162
        %v8164 = vpop.f32.mrf.mxu0
        %v8165 = vadd.f32 0.0, %v8164
        %8166 = vmatmul.bf16.gmra.mxu0 %v8054
        %v8167 = vpop.f32.mrf.mxu0
        %v8168 = vadd.f32 0.0, %v8167
        %v8169 = vpop.f32.mrf.mxu0
        %v8170 = vadd.f32 0.0, %v8169
        %8171 = vmatmul.bf16.gmra.mxu0 %v8055
        %v8172 = vpop.f32.mrf.mxu0
        %v8173 = vadd.f32 0.0, %v8172
        %v8174 = vpop.f32.mrf.mxu0
        %v8175 = vadd.f32 0.0, %v8174
        %8176 = vmatmul.bf16.gmra.mxu0 %v8056
        %v8177 = vpop.f32.mrf.mxu0
        %v8178 = vadd.f32 0.0, %v8177
        %v8179 = vpop.f32.mrf.mxu0
        %v8180 = vadd.f32 0.0, %v8179
        %8181 = vmatmul.bf16.gmra.mxu0 %v8057
        %v8182 = vpop.f32.mrf.mxu0
        %v8183 = vadd.f32 0.0, %v8182
        %v8184 = vpop.f32.mrf.mxu0
        %v8185 = vadd.f32 0.0, %v8184
        %8186 = vmatmul.bf16.gmra.mxu0 %v8058
        %v8187 = vpop.f32.mrf.mxu0
        %v8188 = vadd.f32 0.0, %v8187
        %v8189 = vpop.f32.mrf.mxu0
        %v8190 = vadd.f32 0.0, %v8189
        %8191 = vmatmul.bf16.gmra.mxu0 %v8059
        %v8192 = vpop.f32.mrf.mxu0
        %v8193 = vadd.f32 0.0, %v8192
        %v8194 = vpop.f32.mrf.mxu0
        %v8195 = vadd.f32 0.0, %v8194
        %8196 = vmatmul.bf16.gmra.mxu0 %v8060
        %v8197 = vpop.f32.mrf.mxu0
        %v8198 = vadd.f32 0.0, %v8197
        %v8199 = vpop.f32.mrf.mxu0
        %v8200 = vadd.f32 0.0, %v8199
        %8201 = vmatmul.bf16.gmra.mxu0 %v8061
        %v8202 = vpop.f32.mrf.mxu0
        %v8203 = vadd.f32 0.0, %v8202
        %v8204 = vpop.f32.mrf.mxu0
        %v8205 = vadd.f32 0.0, %v8204
        %8206 = vmatmul.bf16.gmra.mxu0 %v8062
        %v8207 = vpop.f32.mrf.mxu0
        %v8208 = vadd.f32 0.0, %v8207
        %v8209 = vpop.f32.mrf.mxu0
        %v8210 = vadd.f32 0.0, %v8209
        %8211 = vmatmul.bf16.gmra.mxu0 %v8063
        %v8212 = vpop.f32.mrf.mxu0
        %v8213 = vadd.f32 0.0, %v8212
        %v8214 = vpop.f32.mrf.mxu0
        %v8215 = vadd.f32 0.0, %v8214
        %8216 = vdwg.mxu0
        %v8217 = vadd.f32 %v7791, %v8138
        %v8218 = vadd.f32 %v7792, %v8140
        %v8219 = vadd.f32 %v7793, %v8143
        %v8220 = vadd.f32 %v7794, %v8145
        %v8221 = vadd.f32 %v7795, %v8148
        %v8222 = vadd.f32 %v7796, %v8150
        %v8223 = vadd.f32 %v7797, %v8153
        %v8224 = vadd.f32 %v7798, %v8155
        %v8225 = vadd.f32 %v7799, %v8158
        %v8226 = vadd.f32 %v7800, %v8160
        %v8227 = vadd.f32 %v7801, %v8163
        %v8228 = vadd.f32 %v7802, %v8165
        %v8229 = vadd.f32 %v7803, %v8168
        %v8230 = vadd.f32 %v7804, %v8170
        %v8231 = vadd.f32 %v7805, %v8173
        %v8232 = vadd.f32 %v7806, %v8175
        %v8233 = vadd.f32 %v7807, %v8178
        %v8234 = vadd.f32 %v7808, %v8180
        %v8235 = vadd.f32 %v7809, %v8183
        %v8236 = vadd.f32 %v7810, %v8185
        %v8237 = vadd.f32 %v7811, %v8188
        %v8238 = vadd.f32 %v7812, %v8190
        %v8239 = vadd.f32 %v7813, %v8193
        %v8240 = vadd.f32 %v7814, %v8195
        %v8241 = vadd.f32 %v7815, %v8198
        %v8242 = vadd.f32 %v7816, %v8200
        %v8243 = vadd.f32 %v7817, %v8203
        %v8244 = vadd.f32 %v7818, %v8205
        %v8245 = vadd.f32 %v7819, %v8208
        %v8246 = vadd.f32 %v7820, %v8210
        %v8247 = vadd.f32 %v7821, %v8213
        %v8248 = vadd.f32 %v7822, %v8215
        %v8249 = vld [vmem:[%s3566] sm:$0xf]
        %v8250 = vld [vmem:[%s3566 + $0x4] sm:$0xf]
        %v8251 = vld [vmem:[%s3566 + $0xc] sm:$0xf]
        %v8252 = vld [vmem:[%s3566 + $0x10] sm:$0xf]
        %v8253 = vld [vmem:[%s3566 + $0x18] sm:$0xf]
        %v8254 = vld [vmem:[%s3566 + $0x1c] sm:$0xf]
        %v8255 = vld [vmem:[%s3566 + $0x24] sm:$0xf]
        %v8256 = vld [vmem:[%s3566 + $0x28] sm:$0xf]
        %v8257 = vld [vmem:[%s3566 + $0x30] sm:$0xf]
        %v8258 = vld [vmem:[%s3566 + $0x34] sm:$0xf]
        %v8259 = vld [vmem:[%s3566 + $0x3c] sm:$0xf]
        %v8260 = vld [vmem:[%s3566 + $0x40] sm:$0xf]
        %v8261 = vld [vmem:[%s3566 + $0x48] sm:$0xf]
        %v8262 = vld [vmem:[%s3566 + $0x4c] sm:$0xf]
        %v8263 = vld [vmem:[%s3566 + $0x54] sm:$0xf]
        %v8264 = vld [vmem:[%s3566 + $0x58] sm:$0xf]
        %v8265 = vld [vmem:[%s3566 + $0x60] sm:$0xf]
        %v8266 = vld [vmem:[%s3566 + $0x64] sm:$0xf]
        %v8267 = vld [vmem:[%s3566 + $0x6c] sm:$0xf]
        %v8268 = vld [vmem:[%s3566 + $0x70] sm:$0xf]
        %v8269 = vld [vmem:[%s3566 + $0x78] sm:$0xf]
        %v8270 = vld [vmem:[%s3566 + $0x7c] sm:$0xf]
        %v8271 = vld [vmem:[%s3566 + $0x84] sm:$0xf]
        %v8272 = vld [vmem:[%s3566 + $0x88] sm:$0xf]
        %v8273 = vld [vmem:[%s3566 + $0x90] sm:$0xf]
        %v8274 = vld [vmem:[%s3566 + $0x94] sm:$0xf]
        %v8275 = vld [vmem:[%s3566 + $0x9c] sm:$0xf]
        %v8276 = vld [vmem:[%s3566 + $0xa0] sm:$0xf]
        %v8277 = vld [vmem:[%s3566 + $0xa8] sm:$0xf]
        %v8278 = vld [vmem:[%s3566 + $0xac] sm:$0xf]
        %v8279 = vld [vmem:[%s3566 + $0xb4] sm:$0xf]
        %v8280 = vld [vmem:[%s3566 + $0xb8] sm:$0xf]
        %s8281 = scalar_lea.vmem [#allocation8], 384
        %v8282 = vld [vmem:[%s8281] sm:$0xf]
        %v8283 = vld [vmem:[%s8281 + $0x4] sm:$0xf]
        %v8284 = vld [vmem:[%s8281 + $0x8] sm:$0xf]
        %v8285 = vld [vmem:[%s8281 + $0xc] sm:$0xf]
        %v8286 = vld [vmem:[%s8281 + $0x10] sm:$0xf]
        %v8287 = vld [vmem:[%s8281 + $0x14] sm:$0xf]
        %v8288 = vld [vmem:[%s8281 + $0x18] sm:$0xf]
        %v8289 = vld [vmem:[%s8281 + $0x1c] sm:$0xf]
        %v8290 = vld [vmem:[%s8281 + $0x20] sm:$0xf]
        %v8291 = vld [vmem:[%s8281 + $0x24] sm:$0xf]
        %v8292 = vld [vmem:[%s8281 + $0x28] sm:$0xf]
        %v8293 = vld [vmem:[%s8281 + $0x2c] sm:$0xf]
        %v8294 = vld [vmem:[%s8281 + $0x30] sm:$0xf]
        %v8295 = vld [vmem:[%s8281 + $0x34] sm:$0xf]
        %v8296 = vld [vmem:[%s8281 + $0x38] sm:$0xf]
        %v8297 = vld [vmem:[%s8281 + $0x3c] sm:$0xf]
        %v8330 = vunpack.c.l.b16 %v8249
        %v8331 = vunpack.c.l.b16 %v8250
        %v8332 = vunpack.c.l.b16 %v8251
        %v8333 = vunpack.c.l.b16 %v8252
        %v8334 = vunpack.c.l.b16 %v8253
        %v8335 = vunpack.c.l.b16 %v8254
        %v8336 = vunpack.c.l.b16 %v8255
        %v8337 = vunpack.c.l.b16 %v8256
        %v8338 = vunpack.c.l.b16 %v8257
        %v8339 = vunpack.c.l.b16 %v8258
        %v8340 = vunpack.c.l.b16 %v8259
        %v8341 = vunpack.c.l.b16 %v8260
        %v8342 = vunpack.c.l.b16 %v8261
        %v8343 = vunpack.c.l.b16 %v8262
        %v8344 = vunpack.c.l.b16 %v8263
        %v8345 = vunpack.c.l.b16 %v8264
        %v8346 = vunpack.c.l.b16 %v8265
        %v8347 = vunpack.c.l.b16 %v8266
        %v8348 = vunpack.c.l.b16 %v8267
        %v8349 = vunpack.c.l.b16 %v8268
        %v8350 = vunpack.c.l.b16 %v8269
        %v8351 = vunpack.c.l.b16 %v8270
        %v8352 = vunpack.c.l.b16 %v8271
        %v8353 = vunpack.c.l.b16 %v8272
        %v8354 = vunpack.c.l.b16 %v8273
        %v8355 = vunpack.c.l.b16 %v8274
        %v8356 = vunpack.c.l.b16 %v8275
        %v8357 = vunpack.c.l.b16 %v8276
        %v8358 = vunpack.c.l.b16 %v8277
        %v8359 = vunpack.c.l.b16 %v8278
        %v8360 = vunpack.c.l.b16 %v8279
        %v8361 = vunpack.c.l.b16 %v8280
        %v8362 = vpack.c.b16 %v8331, %v8330
        %v8363 = vpack.c.b16 %v8333, %v8332
        %v8364 = vpack.c.b16 %v8335, %v8334
        %v8365 = vpack.c.b16 %v8337, %v8336
        %v8366 = vpack.c.b16 %v8339, %v8338
        %v8367 = vpack.c.b16 %v8341, %v8340
        %v8368 = vpack.c.b16 %v8343, %v8342
        %v8369 = vpack.c.b16 %v8345, %v8344
        %v8370 = vpack.c.b16 %v8347, %v8346
        %v8371 = vpack.c.b16 %v8349, %v8348
        %v8372 = vpack.c.b16 %v8351, %v8350
        %v8373 = vpack.c.b16 %v8353, %v8352
        %v8374 = vpack.c.b16 %v8355, %v8354
        %v8375 = vpack.c.b16 %v8357, %v8356
        %v8376 = vpack.c.b16 %v8359, %v8358
        %v8377 = vpack.c.b16 %v8361, %v8360
        %v8410 = vunpack.c.l.b16 %v8282
        %v8411 = vunpack.c.l.b16 %v8283
        %v8412 = vunpack.c.l.b16 %v8284
        %v8413 = vunpack.c.l.b16 %v8285
        %v8414 = vunpack.c.l.b16 %v8286
        %v8415 = vunpack.c.l.b16 %v8287
        %v8416 = vunpack.c.l.b16 %v8288
        %v8417 = vunpack.c.l.b16 %v8289
        %v8418 = vunpack.c.l.b16 %v8290
        %v8419 = vunpack.c.l.b16 %v8291
        %v8420 = vunpack.c.l.b16 %v8292
        %v8421 = vunpack.c.l.b16 %v8293
        %v8422 = vunpack.c.l.b16 %v8294
        %v8423 = vunpack.c.l.b16 %v8295
        %v8424 = vunpack.c.l.b16 %v8296
        %v8425 = vunpack.c.l.b16 %v8297
        %v8426 = vpack.c.b16 %v8411, %v8410
        %v8427 = vpack.c.b16 %v8413, %v8412
        %v8428 = vpack.c.b16 %v8415, %v8414
        %v8429 = vpack.c.b16 %v8417, %v8416
        %v8430 = vpack.c.b16 %v8419, %v8418
        %v8431 = vpack.c.b16 %v8421, %v8420
        %v8432 = vpack.c.b16 %v8423, %v8422
        %v8433 = vpack.c.b16 %v8425, %v8424
        %8442 = vmatpush.bf16.msra.mxu0 %v8433
        %8443 = vmatpush.bf16.msra.mxu0 %v8432
        %8444 = vmatpush.bf16.msra.mxu0 %v8431
        %8445 = vmatpush.bf16.msra.mxu0 %v8430
        %8446 = vmatpush.bf16.msra.mxu0 %v8429
        %8447 = vmatpush.bf16.msra.mxu0 %v8428
        %8448 = vmatpush.bf16.msra.mxu0 %v8427
        %8449 = vmatpush.bf16.msra.mxu0 %v8426
        %8450 = vmatmul.bf16.gmra.mxu0 %v8362
        %v8451 = vpop.f32.mrf.mxu0
        %v8452 = vadd.f32 0.0, %v8451
        %v8453 = vpop.f32.mrf.mxu0
        %v8454 = vadd.f32 0.0, %v8453
        %8455 = vmatmul.bf16.gmra.mxu0 %v8363
        %v8456 = vpop.f32.mrf.mxu0
        %v8457 = vadd.f32 0.0, %v8456
        %v8458 = vpop.f32.mrf.mxu0
        %v8459 = vadd.f32 0.0, %v8458
        %8460 = vmatmul.bf16.gmra.mxu0 %v8364
        %v8461 = vpop.f32.mrf.mxu0
        %v8462 = vadd.f32 0.0, %v8461
        %v8463 = vpop.f32.mrf.mxu0
        %v8464 = vadd.f32 0.0, %v8463
        %8465 = vmatmul.bf16.gmra.mxu0 %v8365
        %v8466 = vpop.f32.mrf.mxu0
        %v8467 = vadd.f32 0.0, %v8466
        %v8468 = vpop.f32.mrf.mxu0
        %v8469 = vadd.f32 0.0, %v8468
        %8470 = vmatmul.bf16.gmra.mxu0 %v8366
        %v8471 = vpop.f32.mrf.mxu0
        %v8472 = vadd.f32 0.0, %v8471
        %v8473 = vpop.f32.mrf.mxu0
        %v8474 = vadd.f32 0.0, %v8473
        %8475 = vmatmul.bf16.gmra.mxu0 %v8367
        %v8476 = vpop.f32.mrf.mxu0
        %v8477 = vadd.f32 0.0, %v8476
        %v8478 = vpop.f32.mrf.mxu0
        %v8479 = vadd.f32 0.0, %v8478
        %8480 = vmatmul.bf16.gmra.mxu0 %v8368
        %v8481 = vpop.f32.mrf.mxu0
        %v8482 = vadd.f32 0.0, %v8481
        %v8483 = vpop.f32.mrf.mxu0
        %v8484 = vadd.f32 0.0, %v8483
        %8485 = vmatmul.bf16.gmra.mxu0 %v8369
        %v8486 = vpop.f32.mrf.mxu0
        %v8487 = vadd.f32 0.0, %v8486
        %v8488 = vpop.f32.mrf.mxu0
        %v8489 = vadd.f32 0.0, %v8488
        %8490 = vmatmul.bf16.gmra.mxu0 %v8370
        %v8491 = vpop.f32.mrf.mxu0
        %v8492 = vadd.f32 0.0, %v8491
        %v8493 = vpop.f32.mrf.mxu0
        %v8494 = vadd.f32 0.0, %v8493
        %8495 = vmatmul.bf16.gmra.mxu0 %v8371
        %v8496 = vpop.f32.mrf.mxu0
        %v8497 = vadd.f32 0.0, %v8496
        %v8498 = vpop.f32.mrf.mxu0
        %v8499 = vadd.f32 0.0, %v8498
        %8500 = vmatmul.bf16.gmra.mxu0 %v8372
        %v8501 = vpop.f32.mrf.mxu0
        %v8502 = vadd.f32 0.0, %v8501
        %v8503 = vpop.f32.mrf.mxu0
        %v8504 = vadd.f32 0.0, %v8503
        %8505 = vmatmul.bf16.gmra.mxu0 %v8373
        %v8506 = vpop.f32.mrf.mxu0
        %v8507 = vadd.f32 0.0, %v8506
        %v8508 = vpop.f32.mrf.mxu0
        %v8509 = vadd.f32 0.0, %v8508
        %8510 = vmatmul.bf16.gmra.mxu0 %v8374
        %v8511 = vpop.f32.mrf.mxu0
        %v8512 = vadd.f32 0.0, %v8511
        %v8513 = vpop.f32.mrf.mxu0
        %v8514 = vadd.f32 0.0, %v8513
        %8515 = vmatmul.bf16.gmra.mxu0 %v8375
        %v8516 = vpop.f32.mrf.mxu0
        %v8517 = vadd.f32 0.0, %v8516
        %v8518 = vpop.f32.mrf.mxu0
        %v8519 = vadd.f32 0.0, %v8518
        %8520 = vmatmul.bf16.gmra.mxu0 %v8376
        %v8521 = vpop.f32.mrf.mxu0
        %v8522 = vadd.f32 0.0, %v8521
        %v8523 = vpop.f32.mrf.mxu0
        %v8524 = vadd.f32 0.0, %v8523
        %8525 = vmatmul.bf16.gmra.mxu0 %v8377
        %v8526 = vpop.f32.mrf.mxu0
        %v8527 = vadd.f32 0.0, %v8526
        %v8528 = vpop.f32.mrf.mxu0
        %v8529 = vadd.f32 0.0, %v8528
        %8530 = vdwg.mxu0
        %v8531 = vadd.f32 %v8217, %v8452
        %v8532 = vadd.f32 %v8218, %v8454
        %v8533 = vadd.f32 %v8219, %v8457
        %v8534 = vadd.f32 %v8220, %v8459
        %v8535 = vadd.f32 %v8221, %v8462
        %v8536 = vadd.f32 %v8222, %v8464
        %v8537 = vadd.f32 %v8223, %v8467
        %v8538 = vadd.f32 %v8224, %v8469
        %v8539 = vadd.f32 %v8225, %v8472
        %v8540 = vadd.f32 %v8226, %v8474
        %v8541 = vadd.f32 %v8227, %v8477
        %v8542 = vadd.f32 %v8228, %v8479
        %v8543 = vadd.f32 %v8229, %v8482
        %v8544 = vadd.f32 %v8230, %v8484
        %v8545 = vadd.f32 %v8231, %v8487
        %v8546 = vadd.f32 %v8232, %v8489
        %v8547 = vadd.f32 %v8233, %v8492
        %v8548 = vadd.f32 %v8234, %v8494
        %v8549 = vadd.f32 %v8235, %v8497
        %v8550 = vadd.f32 %v8236, %v8499
        %v8551 = vadd.f32 %v8237, %v8502
        %v8552 = vadd.f32 %v8238, %v8504
        %v8553 = vadd.f32 %v8239, %v8507
        %v8554 = vadd.f32 %v8240, %v8509
        %v8555 = vadd.f32 %v8241, %v8512
        %v8556 = vadd.f32 %v8242, %v8514
        %v8557 = vadd.f32 %v8243, %v8517
        %v8558 = vadd.f32 %v8244, %v8519
        %v8559 = vadd.f32 %v8245, %v8522
        %v8560 = vadd.f32 %v8246, %v8524
        %v8561 = vadd.f32 %v8247, %v8527
        %v8562 = vadd.f32 %v8248, %v8529
        %v8563 = vld [vmem:[%s3566] sm:$0xf]
        %v8564 = vld [vmem:[%s3566 + $0x4] sm:$0xf]
        %v8565 = vld [vmem:[%s3566 + $0x8] sm:$0x1]
        %v8566 = vld [vmem:[%s3566 + $0xc] sm:$0xf]
        %v8567 = vld [vmem:[%s3566 + $0x10] sm:$0xf]
        %v8568 = vld [vmem:[%s3566 + $0x14] sm:$0x1]
        %v8569 = vld [vmem:[%s3566 + $0x18] sm:$0xf]
        %v8570 = vld [vmem:[%s3566 + $0x1c] sm:$0xf]
        %v8571 = vld [vmem:[%s3566 + $0x20] sm:$0x1]
        %v8572 = vld [vmem:[%s3566 + $0x24] sm:$0xf]
        %v8573 = vld [vmem:[%s3566 + $0x28] sm:$0xf]
        %v8574 = vld [vmem:[%s3566 + $0x2c] sm:$0x1]
        %v8575 = vld [vmem:[%s3566 + $0x30] sm:$0xf]
        %v8576 = vld [vmem:[%s3566 + $0x34] sm:$0xf]
        %v8577 = vld [vmem:[%s3566 + $0x38] sm:$0x1]
        %v8578 = vld [vmem:[%s3566 + $0x3c] sm:$0xf]
        %v8579 = vld [vmem:[%s3566 + $0x40] sm:$0xf]
        %v8580 = vld [vmem:[%s3566 + $0x44] sm:$0x1]
        %v8581 = vld [vmem:[%s3566 + $0x48] sm:$0xf]
        %v8582 = vld [vmem:[%s3566 + $0x4c] sm:$0xf]
        %v8583 = vld [vmem:[%s3566 + $0x50] sm:$0x1]
        %v8584 = vld [vmem:[%s3566 + $0x54] sm:$0xf]
        %v8585 = vld [vmem:[%s3566 + $0x58] sm:$0xf]
        %v8586 = vld [vmem:[%s3566 + $0x5c] sm:$0x1]
        %v8587 = vld [vmem:[%s3566 + $0x60] sm:$0xf]
        %v8588 = vld [vmem:[%s3566 + $0x64] sm:$0xf]
        %v8589 = vld [vmem:[%s3566 + $0x68] sm:$0x1]
        %v8590 = vld [vmem:[%s3566 + $0x6c] sm:$0xf]
        %v8591 = vld [vmem:[%s3566 + $0x70] sm:$0xf]
        %v8592 = vld [vmem:[%s3566 + $0x74] sm:$0x1]
        %v8593 = vld [vmem:[%s3566 + $0x78] sm:$0xf]
        %v8594 = vld [vmem:[%s3566 + $0x7c] sm:$0xf]
        %v8595 = vld [vmem:[%s3566 + $0x80] sm:$0x1]
        %v8596 = vld [vmem:[%s3566 + $0x84] sm:$0xf]
        %v8597 = vld [vmem:[%s3566 + $0x88] sm:$0xf]
        %v8598 = vld [vmem:[%s3566 + $0x8c] sm:$0x1]
        %v8599 = vld [vmem:[%s3566 + $0x90] sm:$0xf]
        %v8600 = vld [vmem:[%s3566 + $0x94] sm:$0xf]
        %v8601 = vld [vmem:[%s3566 + $0x98] sm:$0x1]
        %v8602 = vld [vmem:[%s3566 + $0x9c] sm:$0xf]
        %v8603 = vld [vmem:[%s3566 + $0xa0] sm:$0xf]
        %v8604 = vld [vmem:[%s3566 + $0xa4] sm:$0x1]
        %v8605 = vld [vmem:[%s3566 + $0xa8] sm:$0xf]
        %v8606 = vld [vmem:[%s3566 + $0xac] sm:$0xf]
        %v8607 = vld [vmem:[%s3566 + $0xb0] sm:$0x1]
        %v8608 = vld [vmem:[%s3566 + $0xb4] sm:$0xf]
        %v8609 = vld [vmem:[%s3566 + $0xb8] sm:$0xf]
        %v8610 = vld [vmem:[%s3566 + $0xbc] sm:$0x1]
        %v8612 = vshrl.u32 %v8563, 16
        %v8614 = vrot.slane %v8612, 4
        %v8615 = vshll.u32 %v8563, 16
        %v8617 = vrot.slane %v8615, 5
        %v8618 = vor.u32 %v8614, %v8617
        %v8619 = vrot.slane %v8618, 4
        %v8621 = vshll.u32 %v8564, 16
        %v8623 = vrot.slane %v8621, 5
        %v8624 = vsel %vm895, %v8619, %v8623
        %v8625 = vshrl.u32 %v8564, 16
        %v8627 = vrot.slane %v8625, 4
        %v8628 = vor.u32 %v8627, %v8623
        %v8629 = vrot.slane %v8628, 4
        %v8631 = vshll.u32 %v8565, 16
        %v8633 = vrot.slane %v8631, 5
        %v8634 = vsel %vm895, %v8629, %v8633
        %v8636 = vshrl.u32 %v8566, 16
        %v8638 = vrot.slane %v8636, 4
        %v8639 = vshll.u32 %v8566, 16
        %v8641 = vrot.slane %v8639, 5
        %v8642 = vor.u32 %v8638, %v8641
        %v8643 = vrot.slane %v8642, 4
        %v8645 = vshll.u32 %v8567, 16
        %v8647 = vrot.slane %v8645, 5
        %v8648 = vsel %vm895, %v8643, %v8647
        %v8649 = vshrl.u32 %v8567, 16
        %v8651 = vrot.slane %v8649, 4
        %v8652 = vor.u32 %v8651, %v8647
        %v8653 = vrot.slane %v8652, 4
        %v8655 = vshll.u32 %v8568, 16
        %v8657 = vrot.slane %v8655, 5
        %v8658 = vsel %vm895, %v8653, %v8657
        %v8660 = vshrl.u32 %v8569, 16
        %v8662 = vrot.slane %v8660, 4
        %v8663 = vshll.u32 %v8569, 16
        %v8665 = vrot.slane %v8663, 5
        %v8666 = vor.u32 %v8662, %v8665
        %v8667 = vrot.slane %v8666, 4
        %v8669 = vshll.u32 %v8570, 16
        %v8671 = vrot.slane %v8669, 5
        %v8672 = vsel %vm895, %v8667, %v8671
        %v8673 = vshrl.u32 %v8570, 16
        %v8675 = vrot.slane %v8673, 4
        %v8676 = vor.u32 %v8675, %v8671
        %v8677 = vrot.slane %v8676, 4
        %v8679 = vshll.u32 %v8571, 16
        %v8681 = vrot.slane %v8679, 5
        %v8682 = vsel %vm895, %v8677, %v8681
        %v8684 = vshrl.u32 %v8572, 16
        %v8686 = vrot.slane %v8684, 4
        %v8687 = vshll.u32 %v8572, 16
        %v8689 = vrot.slane %v8687, 5
        %v8690 = vor.u32 %v8686, %v8689
        %v8691 = vrot.slane %v8690, 4
        %v8693 = vshll.u32 %v8573, 16
        %v8695 = vrot.slane %v8693, 5
        %v8696 = vsel %vm895, %v8691, %v8695
        %v8697 = vshrl.u32 %v8573, 16
        %v8699 = vrot.slane %v8697, 4
        %v8700 = vor.u32 %v8699, %v8695
        %v8701 = vrot.slane %v8700, 4
        %v8703 = vshll.u32 %v8574, 16
        %v8705 = vrot.slane %v8703, 5
        %v8706 = vsel %vm895, %v8701, %v8705
        %v8708 = vshrl.u32 %v8575, 16
        %v8710 = vrot.slane %v8708, 4
        %v8711 = vshll.u32 %v8575, 16
        %v8713 = vrot.slane %v8711, 5
        %v8714 = vor.u32 %v8710, %v8713
        %v8715 = vrot.slane %v8714, 4
        %v8717 = vshll.u32 %v8576, 16
        %v8719 = vrot.slane %v8717, 5
        %v8720 = vsel %vm895, %v8715, %v8719
        %v8721 = vshrl.u32 %v8576, 16
        %v8723 = vrot.slane %v8721, 4
        %v8724 = vor.u32 %v8723, %v8719
        %v8725 = vrot.slane %v8724, 4
        %v8727 = vshll.u32 %v8577, 16
        %v8729 = vrot.slane %v8727, 5
        %v8730 = vsel %vm895, %v8725, %v8729
        %v8732 = vshrl.u32 %v8578, 16
        %v8734 = vrot.slane %v8732, 4
        %v8735 = vshll.u32 %v8578, 16
        %v8737 = vrot.slane %v8735, 5
        %v8738 = vor.u32 %v8734, %v8737
        %v8739 = vrot.slane %v8738, 4
        %v8741 = vshll.u32 %v8579, 16
        %v8743 = vrot.slane %v8741, 5
        %v8744 = vsel %vm895, %v8739, %v8743
        %v8745 = vshrl.u32 %v8579, 16
        %v8747 = vrot.slane %v8745, 4
        %v8748 = vor.u32 %v8747, %v8743
        %v8749 = vrot.slane %v8748, 4
        %v8751 = vshll.u32 %v8580, 16
        %v8753 = vrot.slane %v8751, 5
        %v8754 = vsel %vm895, %v8749, %v8753
        %v8756 = vshrl.u32 %v8581, 16
        %v8758 = vrot.slane %v8756, 4
        %v8759 = vshll.u32 %v8581, 16
        %v8761 = vrot.slane %v8759, 5
        %v8762 = vor.u32 %v8758, %v8761
        %v8763 = vrot.slane %v8762, 4
        %v8765 = vshll.u32 %v8582, 16
        %v8767 = vrot.slane %v8765, 5
        %v8768 = vsel %vm895, %v8763, %v8767
        %v8769 = vshrl.u32 %v8582, 16
        %v8771 = vrot.slane %v8769, 4
        %v8772 = vor.u32 %v8771, %v8767
        %v8773 = vrot.slane %v8772, 4
        %v8775 = vshll.u32 %v8583, 16
        %v8777 = vrot.slane %v8775, 5
        %v8778 = vsel %vm895, %v8773, %v8777
        %v8780 = vshrl.u32 %v8584, 16
        %v8782 = vrot.slane %v8780, 4
        %v8783 = vshll.u32 %v8584, 16
        %v8785 = vrot.slane %v8783, 5
        %v8786 = vor.u32 %v8782, %v8785
        %v8787 = vrot.slane %v8786, 4
        %v8789 = vshll.u32 %v8585, 16
        %v8791 = vrot.slane %v8789, 5
        %v8792 = vsel %vm895, %v8787, %v8791
        %v8793 = vshrl.u32 %v8585, 16
        %v8795 = vrot.slane %v8793, 4
        %v8796 = vor.u32 %v8795, %v8791
        %v8797 = vrot.slane %v8796, 4
        %v8799 = vshll.u32 %v8586, 16
        %v8801 = vrot.slane %v8799, 5
        %v8802 = vsel %vm895, %v8797, %v8801
        %v8804 = vshrl.u32 %v8587, 16
        %v8806 = vrot.slane %v8804, 4
        %v8807 = vshll.u32 %v8587, 16
        %v8809 = vrot.slane %v8807, 5
        %v8810 = vor.u32 %v8806, %v8809
        %v8811 = vrot.slane %v8810, 4
        %v8813 = vshll.u32 %v8588, 16
        %v8815 = vrot.slane %v8813, 5
        %v8816 = vsel %vm895, %v8811, %v8815
        %v8817 = vshrl.u32 %v8588, 16
        %v8819 = vrot.slane %v8817, 4
        %v8820 = vor.u32 %v8819, %v8815
        %v8821 = vrot.slane %v8820, 4
        %v8823 = vshll.u32 %v8589, 16
        %v8825 = vrot.slane %v8823, 5
        %v8826 = vsel %vm895, %v8821, %v8825
        %v8828 = vshrl.u32 %v8590, 16
        %v8830 = vrot.slane %v8828, 4
        %v8831 = vshll.u32 %v8590, 16
        %v8833 = vrot.slane %v8831, 5
        %v8834 = vor.u32 %v8830, %v8833
        %v8835 = vrot.slane %v8834, 4
        %v8837 = vshll.u32 %v8591, 16
        %v8839 = vrot.slane %v8837, 5
        %v8840 = vsel %vm895, %v8835, %v8839
        %v8841 = vshrl.u32 %v8591, 16
        %v8843 = vrot.slane %v8841, 4
        %v8844 = vor.u32 %v8843, %v8839
        %v8845 = vrot.slane %v8844, 4
        %v8847 = vshll.u32 %v8592, 16
        %v8849 = vrot.slane %v8847, 5
        %v8850 = vsel %vm895, %v8845, %v8849
        %v8852 = vshrl.u32 %v8593, 16
        %v8854 = vrot.slane %v8852, 4
        %v8855 = vshll.u32 %v8593, 16
        %v8857 = vrot.slane %v8855, 5
        %v8858 = vor.u32 %v8854, %v8857
        %v8859 = vrot.slane %v8858, 4
        %v8861 = vshll.u32 %v8594, 16
        %v8863 = vrot.slane %v8861, 5
        %v8864 = vsel %vm895, %v8859, %v8863
        %v8865 = vshrl.u32 %v8594, 16
        %v8867 = vrot.slane %v8865, 4
        %v8868 = vor.u32 %v8867, %v8863
        %v8869 = vrot.slane %v8868, 4
        %v8871 = vshll.u32 %v8595, 16
        %v8873 = vrot.slane %v8871, 5
        %v8874 = vsel %vm895, %v8869, %v8873
        %v8876 = vshrl.u32 %v8596, 16
        %v8878 = vrot.slane %v8876, 4
        %v8879 = vshll.u32 %v8596, 16
        %v8881 = vrot.slane %v8879, 5
        %v8882 = vor.u32 %v8878, %v8881
        %v8883 = vrot.slane %v8882, 4
        %v8885 = vshll.u32 %v8597, 16
        %v8887 = vrot.slane %v8885, 5
        %v8888 = vsel %vm895, %v8883, %v8887
        %v8889 = vshrl.u32 %v8597, 16
        %v8891 = vrot.slane %v8889, 4
        %v8892 = vor.u32 %v8891, %v8887
        %v8893 = vrot.slane %v8892, 4
        %v8895 = vshll.u32 %v8598, 16
        %v8897 = vrot.slane %v8895, 5
        %v8898 = vsel %vm895, %v8893, %v8897
        %v8900 = vshrl.u32 %v8599, 16
        %v8902 = vrot.slane %v8900, 4
        %v8903 = vshll.u32 %v8599, 16
        %v8905 = vrot.slane %v8903, 5
        %v8906 = vor.u32 %v8902, %v8905
        %v8907 = vrot.slane %v8906, 4
        %v8909 = vshll.u32 %v8600, 16
        %v8911 = vrot.slane %v8909, 5
        %v8912 = vsel %vm895, %v8907, %v8911
        %v8913 = vshrl.u32 %v8600, 16
        %v8915 = vrot.slane %v8913, 4
        %v8916 = vor.u32 %v8915, %v8911
        %v8917 = vrot.slane %v8916, 4
        %v8919 = vshll.u32 %v8601, 16
        %v8921 = vrot.slane %v8919, 5
        %v8922 = vsel %vm895, %v8917, %v8921
        %v8924 = vshrl.u32 %v8602, 16
        %v8926 = vrot.slane %v8924, 4
        %v8927 = vshll.u32 %v8602, 16
        %v8929 = vrot.slane %v8927, 5
        %v8930 = vor.u32 %v8926, %v8929
        %v8931 = vrot.slane %v8930, 4
        %v8933 = vshll.u32 %v8603, 16
        %v8935 = vrot.slane %v8933, 5
        %v8936 = vsel %vm895, %v8931, %v8935
        %v8937 = vshrl.u32 %v8603, 16
        %v8939 = vrot.slane %v8937, 4
        %v8940 = vor.u32 %v8939, %v8935
        %v8941 = vrot.slane %v8940, 4
        %v8943 = vshll.u32 %v8604, 16
        %v8945 = vrot.slane %v8943, 5
        %v8946 = vsel %vm895, %v8941, %v8945
        %v8948 = vshrl.u32 %v8605, 16
        %v8950 = vrot.slane %v8948, 4
        %v8951 = vshll.u32 %v8605, 16
        %v8953 = vrot.slane %v8951, 5
        %v8954 = vor.u32 %v8950, %v8953
        %v8955 = vrot.slane %v8954, 4
        %v8957 = vshll.u32 %v8606, 16
        %v8959 = vrot.slane %v8957, 5
        %v8960 = vsel %vm895, %v8955, %v8959
        %v8961 = vshrl.u32 %v8606, 16
        %v8963 = vrot.slane %v8961, 4
        %v8964 = vor.u32 %v8963, %v8959
        %v8965 = vrot.slane %v8964, 4
        %v8967 = vshll.u32 %v8607, 16
        %v8969 = vrot.slane %v8967, 5
        %v8970 = vsel %vm895, %v8965, %v8969
        %v8972 = vshrl.u32 %v8608, 16
        %v8974 = vrot.slane %v8972, 4
        %v8975 = vshll.u32 %v8608, 16
        %v8977 = vrot.slane %v8975, 5
        %v8978 = vor.u32 %v8974, %v8977
        %v8979 = vrot.slane %v8978, 4
        %v8981 = vshll.u32 %v8609, 16
        %v8983 = vrot.slane %v8981, 5
        %v8984 = vsel %vm895, %v8979, %v8983
        %v8985 = vshrl.u32 %v8609, 16
        %v8987 = vrot.slane %v8985, 4
        %v8988 = vor.u32 %v8987, %v8983
        %v8989 = vrot.slane %v8988, 4
        %v8991 = vshll.u32 %v8610, 16
        %v8993 = vrot.slane %v8991, 5
        %v8994 = vsel %vm895, %v8989, %v8993
        %s8995 = scalar_lea.vmem [#allocation8], 448
        %v8996 = vld [vmem:[%s8995] sm:$0xf]
        %v8997 = vld [vmem:[%s8995 + $0x4] sm:$0xf]
        %v8998 = vld [vmem:[%s8995 + $0x8] sm:$0xf]
        %v8999 = vld [vmem:[%s8995 + $0xc] sm:$0xf]
        %v9000 = vld [vmem:[%s8995 + $0x10] sm:$0xf]
        %v9001 = vld [vmem:[%s8995 + $0x14] sm:$0xf]
        %v9002 = vld [vmem:[%s8995 + $0x18] sm:$0xf]
        %v9003 = vld [vmem:[%s8995 + $0x1c] sm:$0xf]
        %v9004 = vld [vmem:[%s8995 + $0x20] sm:$0xf]
        %v9005 = vld [vmem:[%s8995 + $0x24] sm:$0xf]
        %v9006 = vld [vmem:[%s8995 + $0x28] sm:$0xf]
        %v9007 = vld [vmem:[%s8995 + $0x2c] sm:$0xf]
        %v9008 = vld [vmem:[%s8995 + $0x30] sm:$0xf]
        %v9009 = vld [vmem:[%s8995 + $0x34] sm:$0xf]
        %v9010 = vld [vmem:[%s8995 + $0x38] sm:$0xf]
        %v9011 = vld [vmem:[%s8995 + $0x3c] sm:$0xf]
        %v9012 = vunpack.c.l.b16 %v8624
        %v9013 = vunpack.c.l.b16 %v8634
        %v9014 = vunpack.c.l.b16 %v8648
        %v9015 = vunpack.c.l.b16 %v8658
        %v9016 = vunpack.c.l.b16 %v8672
        %v9017 = vunpack.c.l.b16 %v8682
        %v9018 = vunpack.c.l.b16 %v8696
        %v9019 = vunpack.c.l.b16 %v8706
        %v9020 = vunpack.c.l.b16 %v8720
        %v9021 = vunpack.c.l.b16 %v8730
        %v9022 = vunpack.c.l.b16 %v8744
        %v9023 = vunpack.c.l.b16 %v8754
        %v9024 = vunpack.c.l.b16 %v8768
        %v9025 = vunpack.c.l.b16 %v8778
        %v9026 = vunpack.c.l.b16 %v8792
        %v9027 = vunpack.c.l.b16 %v8802
        %v9028 = vunpack.c.l.b16 %v8816
        %v9029 = vunpack.c.l.b16 %v8826
        %v9030 = vunpack.c.l.b16 %v8840
        %v9031 = vunpack.c.l.b16 %v8850
        %v9032 = vunpack.c.l.b16 %v8864
        %v9033 = vunpack.c.l.b16 %v8874
        %v9034 = vunpack.c.l.b16 %v8888
        %v9035 = vunpack.c.l.b16 %v8898
        %v9036 = vunpack.c.l.b16 %v8912
        %v9037 = vunpack.c.l.b16 %v8922
        %v9038 = vunpack.c.l.b16 %v8936
        %v9039 = vunpack.c.l.b16 %v8946
        %v9040 = vunpack.c.l.b16 %v8960
        %v9041 = vunpack.c.l.b16 %v8970
        %v9042 = vunpack.c.l.b16 %v8984
        %v9043 = vunpack.c.l.b16 %v8994
        %v9044 = vpack.c.b16 %v9013, %v9012
        %v9045 = vpack.c.b16 %v9015, %v9014
        %v9046 = vpack.c.b16 %v9017, %v9016
        %v9047 = vpack.c.b16 %v9019, %v9018
        %v9048 = vpack.c.b16 %v9021, %v9020
        %v9049 = vpack.c.b16 %v9023, %v9022
        %v9050 = vpack.c.b16 %v9025, %v9024
        %v9051 = vpack.c.b16 %v9027, %v9026
        %v9052 = vpack.c.b16 %v9029, %v9028
        %v9053 = vpack.c.b16 %v9031, %v9030
        %v9054 = vpack.c.b16 %v9033, %v9032
        %v9055 = vpack.c.b16 %v9035, %v9034
        %v9056 = vpack.c.b16 %v9037, %v9036
        %v9057 = vpack.c.b16 %v9039, %v9038
        %v9058 = vpack.c.b16 %v9041, %v9040
        %v9059 = vpack.c.b16 %v9043, %v9042
        %v9092 = vunpack.c.l.b16 %v8996
        %v9093 = vunpack.c.l.b16 %v8997
        %v9094 = vunpack.c.l.b16 %v8998
        %v9095 = vunpack.c.l.b16 %v8999
        %v9096 = vunpack.c.l.b16 %v9000
        %v9097 = vunpack.c.l.b16 %v9001
        %v9098 = vunpack.c.l.b16 %v9002
        %v9099 = vunpack.c.l.b16 %v9003
        %v9100 = vunpack.c.l.b16 %v9004
        %v9101 = vunpack.c.l.b16 %v9005
        %v9102 = vunpack.c.l.b16 %v9006
        %v9103 = vunpack.c.l.b16 %v9007
        %v9104 = vunpack.c.l.b16 %v9008
        %v9105 = vunpack.c.l.b16 %v9009
        %v9106 = vunpack.c.l.b16 %v9010
        %v9107 = vunpack.c.l.b16 %v9011
        %v9108 = vpack.c.b16 %v9093, %v9092
        %v9109 = vpack.c.b16 %v9095, %v9094
        %v9110 = vpack.c.b16 %v9097, %v9096
        %v9111 = vpack.c.b16 %v9099, %v9098
        %v9112 = vpack.c.b16 %v9101, %v9100
        %v9113 = vpack.c.b16 %v9103, %v9102
        %v9114 = vpack.c.b16 %v9105, %v9104
        %v9115 = vpack.c.b16 %v9107, %v9106
        %9124 = vmatpush.bf16.msra.mxu0 %v9115
        %9125 = vmatpush.bf16.msra.mxu0 %v9114
        %9126 = vmatpush.bf16.msra.mxu0 %v9113
        %9127 = vmatpush.bf16.msra.mxu0 %v9112
        %9128 = vmatpush.bf16.msra.mxu0 %v9111
        %9129 = vmatpush.bf16.msra.mxu0 %v9110
        %9130 = vmatpush.bf16.msra.mxu0 %v9109
        %9131 = vmatpush.bf16.msra.mxu0 %v9108
        %9132 = vmatmul.bf16.gmra.mxu0 %v9044
        %v9133 = vpop.f32.mrf.mxu0
        %v9134 = vadd.f32 0.0, %v9133
        %v9135 = vpop.f32.mrf.mxu0
        %v9136 = vadd.f32 0.0, %v9135
        %9137 = vmatmul.bf16.gmra.mxu0 %v9045
        %v9138 = vpop.f32.mrf.mxu0
        %v9139 = vadd.f32 0.0, %v9138
        %v9140 = vpop.f32.mrf.mxu0
        %v9141 = vadd.f32 0.0, %v9140
        %9142 = vmatmul.bf16.gmra.mxu0 %v9046
        %v9143 = vpop.f32.mrf.mxu0
        %v9144 = vadd.f32 0.0, %v9143
        %v9145 = vpop.f32.mrf.mxu0
        %v9146 = vadd.f32 0.0, %v9145
        %9147 = vmatmul.bf16.gmra.mxu0 %v9047
        %v9148 = vpop.f32.mrf.mxu0
        %v9149 = vadd.f32 0.0, %v9148
        %v9150 = vpop.f32.mrf.mxu0
        %v9151 = vadd.f32 0.0, %v9150
        %9152 = vmatmul.bf16.gmra.mxu0 %v9048
        %v9153 = vpop.f32.mrf.mxu0
        %v9154 = vadd.f32 0.0, %v9153
        %v9155 = vpop.f32.mrf.mxu0
        %v9156 = vadd.f32 0.0, %v9155
        %9157 = vmatmul.bf16.gmra.mxu0 %v9049
        %v9158 = vpop.f32.mrf.mxu0
        %v9159 = vadd.f32 0.0, %v9158
        %v9160 = vpop.f32.mrf.mxu0
        %v9161 = vadd.f32 0.0, %v9160
        %9162 = vmatmul.bf16.gmra.mxu0 %v9050
        %v9163 = vpop.f32.mrf.mxu0
        %v9164 = vadd.f32 0.0, %v9163
        %v9165 = vpop.f32.mrf.mxu0
        %v9166 = vadd.f32 0.0, %v9165
        %9167 = vmatmul.bf16.gmra.mxu0 %v9051
        %v9168 = vpop.f32.mrf.mxu0
        %v9169 = vadd.f32 0.0, %v9168
        %v9170 = vpop.f32.mrf.mxu0
        %v9171 = vadd.f32 0.0, %v9170
        %9172 = vmatmul.bf16.gmra.mxu0 %v9052
        %v9173 = vpop.f32.mrf.mxu0
        %v9174 = vadd.f32 0.0, %v9173
        %v9175 = vpop.f32.mrf.mxu0
        %v9176 = vadd.f32 0.0, %v9175
        %9177 = vmatmul.bf16.gmra.mxu0 %v9053
        %v9178 = vpop.f32.mrf.mxu0
        %v9179 = vadd.f32 0.0, %v9178
        %v9180 = vpop.f32.mrf.mxu0
        %v9181 = vadd.f32 0.0, %v9180
        %9182 = vmatmul.bf16.gmra.mxu0 %v9054
        %v9183 = vpop.f32.mrf.mxu0
        %v9184 = vadd.f32 0.0, %v9183
        %v9185 = vpop.f32.mrf.mxu0
        %v9186 = vadd.f32 0.0, %v9185
        %9187 = vmatmul.bf16.gmra.mxu0 %v9055
        %v9188 = vpop.f32.mrf.mxu0
        %v9189 = vadd.f32 0.0, %v9188
        %v9190 = vpop.f32.mrf.mxu0
        %v9191 = vadd.f32 0.0, %v9190
        %9192 = vmatmul.bf16.gmra.mxu0 %v9056
        %v9193 = vpop.f32.mrf.mxu0
        %v9194 = vadd.f32 0.0, %v9193
        %v9195 = vpop.f32.mrf.mxu0
        %v9196 = vadd.f32 0.0, %v9195
        %9197 = vmatmul.bf16.gmra.mxu0 %v9057
        %v9198 = vpop.f32.mrf.mxu0
        %v9199 = vadd.f32 0.0, %v9198
        %v9200 = vpop.f32.mrf.mxu0
        %v9201 = vadd.f32 0.0, %v9200
        %9202 = vmatmul.bf16.gmra.mxu0 %v9058
        %v9203 = vpop.f32.mrf.mxu0
        %v9204 = vadd.f32 0.0, %v9203
        %v9205 = vpop.f32.mrf.mxu0
        %v9206 = vadd.f32 0.0, %v9205
        %9207 = vmatmul.bf16.gmra.mxu0 %v9059
        %v9208 = vpop.f32.mrf.mxu0
        %v9209 = vadd.f32 0.0, %v9208
        %v9210 = vpop.f32.mrf.mxu0
        %v9211 = vadd.f32 0.0, %v9210
        %9212 = vdwg.mxu0
        %v9213 = vadd.f32 %v8531, %v9134
        %v9214 = vadd.f32 %v8532, %v9136
        %v9215 = vadd.f32 %v8533, %v9139
        %v9216 = vadd.f32 %v8534, %v9141
        %v9217 = vadd.f32 %v8535, %v9144
        %v9218 = vadd.f32 %v8536, %v9146
        %v9219 = vadd.f32 %v8537, %v9149
        %v9220 = vadd.f32 %v8538, %v9151
        %v9221 = vadd.f32 %v8539, %v9154
        %v9222 = vadd.f32 %v8540, %v9156
        %v9223 = vadd.f32 %v8541, %v9159
        %v9224 = vadd.f32 %v8542, %v9161
        %v9225 = vadd.f32 %v8543, %v9164
        %v9226 = vadd.f32 %v8544, %v9166
        %v9227 = vadd.f32 %v8545, %v9169
        %v9228 = vadd.f32 %v8546, %v9171
        %v9229 = vadd.f32 %v8547, %v9174
        %v9230 = vadd.f32 %v8548, %v9176
        %v9231 = vadd.f32 %v8549, %v9179
        %v9232 = vadd.f32 %v8550, %v9181
        %v9233 = vadd.f32 %v8551, %v9184
        %v9234 = vadd.f32 %v8552, %v9186
        %v9235 = vadd.f32 %v8553, %v9189
        %v9236 = vadd.f32 %v8554, %v9191
        %v9237 = vadd.f32 %v8555, %v9194
        %v9238 = vadd.f32 %v8556, %v9196
        %v9239 = vadd.f32 %v8557, %v9199
        %v9240 = vadd.f32 %v8558, %v9201
        %v9241 = vadd.f32 %v8559, %v9204
        %v9242 = vadd.f32 %v8560, %v9206
        %v9243 = vadd.f32 %v8561, %v9209
        %v9244 = vadd.f32 %v8562, %v9211
        %v9245 = vld [vmem:[%s3566] sm:$0xe]
        %v9246 = vld [vmem:[%s3566 + $0xc] sm:$0xe]
        %v9247 = vld [vmem:[%s3566 + $0x18] sm:$0xe]
        %v9248 = vld [vmem:[%s3566 + $0x24] sm:$0xe]
        %v9249 = vld [vmem:[%s3566 + $0x30] sm:$0xe]
        %v9250 = vld [vmem:[%s3566 + $0x3c] sm:$0xe]
        %v9251 = vld [vmem:[%s3566 + $0x48] sm:$0xe]
        %v9252 = vld [vmem:[%s3566 + $0x54] sm:$0xe]
        %v9253 = vld [vmem:[%s3566 + $0x60] sm:$0xe]
        %v9254 = vld [vmem:[%s3566 + $0x6c] sm:$0xe]
        %v9255 = vld [vmem:[%s3566 + $0x78] sm:$0xe]
        %v9256 = vld [vmem:[%s3566 + $0x84] sm:$0xe]
        %v9257 = vld [vmem:[%s3566 + $0x90] sm:$0xe]
        %v9258 = vld [vmem:[%s3566 + $0x9c] sm:$0xe]
        %v9259 = vld [vmem:[%s3566 + $0xa8] sm:$0xe]
        %v9260 = vld [vmem:[%s3566 + $0xb4] sm:$0xe]
        %v9309 = vrot.slane %v9245, 5
        %v9310 = vrot.slane %v9309, 4
        %v9311 = vrot.slane %v8564, 5
        %v9312 = vsel %vm1781, %v9310, %v9311
        %v9313 = vrot.slane %v9311, 4
        %v9314 = vrot.slane %v8565, 5
        %v9315 = vsel %vm1781, %v9313, %v9314
        %v9316 = vrot.slane %v9246, 5
        %v9317 = vrot.slane %v9316, 4
        %v9318 = vrot.slane %v8567, 5
        %v9319 = vsel %vm1781, %v9317, %v9318
        %v9320 = vrot.slane %v9318, 4
        %v9321 = vrot.slane %v8568, 5
        %v9322 = vsel %vm1781, %v9320, %v9321
        %v9323 = vrot.slane %v9247, 5
        %v9324 = vrot.slane %v9323, 4
        %v9325 = vrot.slane %v8570, 5
        %v9326 = vsel %vm1781, %v9324, %v9325
        %v9327 = vrot.slane %v9325, 4
        %v9328 = vrot.slane %v8571, 5
        %v9329 = vsel %vm1781, %v9327, %v9328
        %v9330 = vrot.slane %v9248, 5
        %v9331 = vrot.slane %v9330, 4
        %v9332 = vrot.slane %v8573, 5
        %v9333 = vsel %vm1781, %v9331, %v9332
        %v9334 = vrot.slane %v9332, 4
        %v9335 = vrot.slane %v8574, 5
        %v9336 = vsel %vm1781, %v9334, %v9335
        %v9337 = vrot.slane %v9249, 5
        %v9338 = vrot.slane %v9337, 4
        %v9339 = vrot.slane %v8576, 5
        %v9340 = vsel %vm1781, %v9338, %v9339
        %v9341 = vrot.slane %v9339, 4
        %v9342 = vrot.slane %v8577, 5
        %v9343 = vsel %vm1781, %v9341, %v9342
        %v9344 = vrot.slane %v9250, 5
        %v9345 = vrot.slane %v9344, 4
        %v9346 = vrot.slane %v8579, 5
        %v9347 = vsel %vm1781, %v9345, %v9346
        %v9348 = vrot.slane %v9346, 4
        %v9349 = vrot.slane %v8580, 5
        %v9350 = vsel %vm1781, %v9348, %v9349
        %v9351 = vrot.slane %v9251, 5
        %v9352 = vrot.slane %v9351, 4
        %v9353 = vrot.slane %v8582, 5
        %v9354 = vsel %vm1781, %v9352, %v9353
        %v9355 = vrot.slane %v9353, 4
        %v9356 = vrot.slane %v8583, 5
        %v9357 = vsel %vm1781, %v9355, %v9356
        %v9358 = vrot.slane %v9252, 5
        %v9359 = vrot.slane %v9358, 4
        %v9360 = vrot.slane %v8585, 5
        %v9361 = vsel %vm1781, %v9359, %v9360
        %v9362 = vrot.slane %v9360, 4
        %v9363 = vrot.slane %v8586, 5
        %v9364 = vsel %vm1781, %v9362, %v9363
        %v9365 = vrot.slane %v9253, 5
        %v9366 = vrot.slane %v9365, 4
        %v9367 = vrot.slane %v8588, 5
        %v9368 = vsel %vm1781, %v9366, %v9367
        %v9369 = vrot.slane %v9367, 4
        %v9370 = vrot.slane %v8589, 5
        %v9371 = vsel %vm1781, %v9369, %v9370
        %v9372 = vrot.slane %v9254, 5
        %v9373 = vrot.slane %v9372, 4
        %v9374 = vrot.slane %v8591, 5
        %v9375 = vsel %vm1781, %v9373, %v9374
        %v9376 = vrot.slane %v9374, 4
        %v9377 = vrot.slane %v8592, 5
        %v9378 = vsel %vm1781, %v9376, %v9377
        %v9379 = vrot.slane %v9255, 5
        %v9380 = vrot.slane %v9379, 4
        %v9381 = vrot.slane %v8594, 5
        %v9382 = vsel %vm1781, %v9380, %v9381
        %v9383 = vrot.slane %v9381, 4
        %v9384 = vrot.slane %v8595, 5
        %v9385 = vsel %vm1781, %v9383, %v9384
        %v9386 = vrot.slane %v9256, 5
        %v9387 = vrot.slane %v9386, 4
        %v9388 = vrot.slane %v8597, 5
        %v9389 = vsel %vm1781, %v9387, %v9388
        %v9390 = vrot.slane %v9388, 4
        %v9391 = vrot.slane %v8598, 5
        %v9392 = vsel %vm1781, %v9390, %v9391
        %v9393 = vrot.slane %v9257, 5
        %v9394 = vrot.slane %v9393, 4
        %v9395 = vrot.slane %v8600, 5
        %v9396 = vsel %vm1781, %v9394, %v9395
        %v9397 = vrot.slane %v9395, 4
        %v9398 = vrot.slane %v8601, 5
        %v9399 = vsel %vm1781, %v9397, %v9398
        %v9400 = vrot.slane %v9258, 5
        %v9401 = vrot.slane %v9400, 4
        %v9402 = vrot.slane %v8603, 5
        %v9403 = vsel %vm1781, %v9401, %v9402
        %v9404 = vrot.slane %v9402, 4
        %v9405 = vrot.slane %v8604, 5
        %v9406 = vsel %vm1781, %v9404, %v9405
        %v9407 = vrot.slane %v9259, 5
        %v9408 = vrot.slane %v9407, 4
        %v9409 = vrot.slane %v8606, 5
        %v9410 = vsel %vm1781, %v9408, %v9409
        %v9411 = vrot.slane %v9409, 4
        %v9412 = vrot.slane %v8607, 5
        %v9413 = vsel %vm1781, %v9411, %v9412
        %v9414 = vrot.slane %v9260, 5
        %v9415 = vrot.slane %v9414, 4
        %v9416 = vrot.slane %v8609, 5
        %v9417 = vsel %vm1781, %v9415, %v9416
        %v9418 = vrot.slane %v9416, 4
        %v9419 = vrot.slane %v8610, 5
        %v9420 = vsel %vm1781, %v9418, %v9419
        %s9421 = scalar_lea.vmem [#allocation8], 512
        %v9422 = vld [vmem:[%s9421] sm:$0xf]
        %v9423 = vld [vmem:[%s9421 + $0x4] sm:$0xf]
        %v9424 = vld [vmem:[%s9421 + $0x8] sm:$0xf]
        %v9425 = vld [vmem:[%s9421 + $0xc] sm:$0xf]
        %v9426 = vld [vmem:[%s9421 + $0x10] sm:$0xf]
        %v9427 = vld [vmem:[%s9421 + $0x14] sm:$0xf]
        %v9428 = vld [vmem:[%s9421 + $0x18] sm:$0xf]
        %v9429 = vld [vmem:[%s9421 + $0x1c] sm:$0xf]
        %v9430 = vld [vmem:[%s9421 + $0x20] sm:$0xf]
        %v9431 = vld [vmem:[%s9421 + $0x24] sm:$0xf]
        %v9432 = vld [vmem:[%s9421 + $0x28] sm:$0xf]
        %v9433 = vld [vmem:[%s9421 + $0x2c] sm:$0xf]
        %v9434 = vld [vmem:[%s9421 + $0x30] sm:$0xf]
        %v9435 = vld [vmem:[%s9421 + $0x34] sm:$0xf]
        %v9436 = vld [vmem:[%s9421 + $0x38] sm:$0xf]
        %v9437 = vld [vmem:[%s9421 + $0x3c] sm:$0xf]
        %v9438 = vunpack.c.l.b16 %v9312
        %v9439 = vunpack.c.l.b16 %v9315
        %v9440 = vunpack.c.l.b16 %v9319
        %v9441 = vunpack.c.l.b16 %v9322
        %v9442 = vunpack.c.l.b16 %v9326
        %v9443 = vunpack.c.l.b16 %v9329
        %v9444 = vunpack.c.l.b16 %v9333
        %v9445 = vunpack.c.l.b16 %v9336
        %v9446 = vunpack.c.l.b16 %v9340
        %v9447 = vunpack.c.l.b16 %v9343
        %v9448 = vunpack.c.l.b16 %v9347
        %v9449 = vunpack.c.l.b16 %v9350
        %v9450 = vunpack.c.l.b16 %v9354
        %v9451 = vunpack.c.l.b16 %v9357
        %v9452 = vunpack.c.l.b16 %v9361
        %v9453 = vunpack.c.l.b16 %v9364
        %v9454 = vunpack.c.l.b16 %v9368
        %v9455 = vunpack.c.l.b16 %v9371
        %v9456 = vunpack.c.l.b16 %v9375
        %v9457 = vunpack.c.l.b16 %v9378
        %v9458 = vunpack.c.l.b16 %v9382
        %v9459 = vunpack.c.l.b16 %v9385
        %v9460 = vunpack.c.l.b16 %v9389
        %v9461 = vunpack.c.l.b16 %v9392
        %v9462 = vunpack.c.l.b16 %v9396
        %v9463 = vunpack.c.l.b16 %v9399
        %v9464 = vunpack.c.l.b16 %v9403
        %v9465 = vunpack.c.l.b16 %v9406
        %v9466 = vunpack.c.l.b16 %v9410
        %v9467 = vunpack.c.l.b16 %v9413
        %v9468 = vunpack.c.l.b16 %v9417
        %v9469 = vunpack.c.l.b16 %v9420
        %v9470 = vpack.c.b16 %v9439, %v9438
        %v9471 = vpack.c.b16 %v9441, %v9440
        %v9472 = vpack.c.b16 %v9443, %v9442
        %v9473 = vpack.c.b16 %v9445, %v9444
        %v9474 = vpack.c.b16 %v9447, %v9446
        %v9475 = vpack.c.b16 %v9449, %v9448
        %v9476 = vpack.c.b16 %v9451, %v9450
        %v9477 = vpack.c.b16 %v9453, %v9452
        %v9478 = vpack.c.b16 %v9455, %v9454
        %v9479 = vpack.c.b16 %v9457, %v9456
        %v9480 = vpack.c.b16 %v9459, %v9458
        %v9481 = vpack.c.b16 %v9461, %v9460
        %v9482 = vpack.c.b16 %v9463, %v9462
        %v9483 = vpack.c.b16 %v9465, %v9464
        %v9484 = vpack.c.b16 %v9467, %v9466
        %v9485 = vpack.c.b16 %v9469, %v9468
        %v9518 = vunpack.c.l.b16 %v9422
        %v9519 = vunpack.c.l.b16 %v9423
        %v9520 = vunpack.c.l.b16 %v9424
        %v9521 = vunpack.c.l.b16 %v9425
        %v9522 = vunpack.c.l.b16 %v9426
        %v9523 = vunpack.c.l.b16 %v9427
        %v9524 = vunpack.c.l.b16 %v9428
        %v9525 = vunpack.c.l.b16 %v9429
        %v9526 = vunpack.c.l.b16 %v9430
        %v9527 = vunpack.c.l.b16 %v9431
        %v9528 = vunpack.c.l.b16 %v9432
        %v9529 = vunpack.c.l.b16 %v9433
        %v9530 = vunpack.c.l.b16 %v9434
        %v9531 = vunpack.c.l.b16 %v9435
        %v9532 = vunpack.c.l.b16 %v9436
        %v9533 = vunpack.c.l.b16 %v9437
        %v9534 = vpack.c.b16 %v9519, %v9518
        %v9535 = vpack.c.b16 %v9521, %v9520
        %v9536 = vpack.c.b16 %v9523, %v9522
        %v9537 = vpack.c.b16 %v9525, %v9524
        %v9538 = vpack.c.b16 %v9527, %v9526
        %v9539 = vpack.c.b16 %v9529, %v9528
        %v9540 = vpack.c.b16 %v9531, %v9530
        %v9541 = vpack.c.b16 %v9533, %v9532
        %9550 = vmatpush.bf16.msra.mxu0 %v9541
        %9551 = vmatpush.bf16.msra.mxu0 %v9540
        %9552 = vmatpush.bf16.msra.mxu0 %v9539
        %9553 = vmatpush.bf16.msra.mxu0 %v9538
        %9554 = vmatpush.bf16.msra.mxu0 %v9537
        %9555 = vmatpush.bf16.msra.mxu0 %v9536
        %9556 = vmatpush.bf16.msra.mxu0 %v9535
        %9557 = vmatpush.bf16.msra.mxu0 %v9534
        %9558 = vmatmul.bf16.gmra.mxu0 %v9470
        %v9559 = vpop.f32.mrf.mxu0
        %v9560 = vadd.f32 0.0, %v9559
        %v9561 = vpop.f32.mrf.mxu0
        %v9562 = vadd.f32 0.0, %v9561
        %9563 = vmatmul.bf16.gmra.mxu0 %v9471
        %v9564 = vpop.f32.mrf.mxu0
        %v9565 = vadd.f32 0.0, %v9564
        %v9566 = vpop.f32.mrf.mxu0
        %v9567 = vadd.f32 0.0, %v9566
        %9568 = vmatmul.bf16.gmra.mxu0 %v9472
        %v9569 = vpop.f32.mrf.mxu0
        %v9570 = vadd.f32 0.0, %v9569
        %v9571 = vpop.f32.mrf.mxu0
        %v9572 = vadd.f32 0.0, %v9571
        %9573 = vmatmul.bf16.gmra.mxu0 %v9473
        %v9574 = vpop.f32.mrf.mxu0
        %v9575 = vadd.f32 0.0, %v9574
        %v9576 = vpop.f32.mrf.mxu0
        %v9577 = vadd.f32 0.0, %v9576
        %9578 = vmatmul.bf16.gmra.mxu0 %v9474
        %v9579 = vpop.f32.mrf.mxu0
        %v9580 = vadd.f32 0.0, %v9579
        %v9581 = vpop.f32.mrf.mxu0
        %v9582 = vadd.f32 0.0, %v9581
        %9583 = vmatmul.bf16.gmra.mxu0 %v9475
        %v9584 = vpop.f32.mrf.mxu0
        %v9585 = vadd.f32 0.0, %v9584
        %v9586 = vpop.f32.mrf.mxu0
        %v9587 = vadd.f32 0.0, %v9586
        %9588 = vmatmul.bf16.gmra.mxu0 %v9476
        %v9589 = vpop.f32.mrf.mxu0
        %v9590 = vadd.f32 0.0, %v9589
        %v9591 = vpop.f32.mrf.mxu0
        %v9592 = vadd.f32 0.0, %v9591
        %9593 = vmatmul.bf16.gmra.mxu0 %v9477
        %v9594 = vpop.f32.mrf.mxu0
        %v9595 = vadd.f32 0.0, %v9594
        %v9596 = vpop.f32.mrf.mxu0
        %v9597 = vadd.f32 0.0, %v9596
        %9598 = vmatmul.bf16.gmra.mxu0 %v9478
        %v9599 = vpop.f32.mrf.mxu0
        %v9600 = vadd.f32 0.0, %v9599
        %v9601 = vpop.f32.mrf.mxu0
        %v9602 = vadd.f32 0.0, %v9601
        %9603 = vmatmul.bf16.gmra.mxu0 %v9479
        %v9604 = vpop.f32.mrf.mxu0
        %v9605 = vadd.f32 0.0, %v9604
        %v9606 = vpop.f32.mrf.mxu0
        %v9607 = vadd.f32 0.0, %v9606
        %9608 = vmatmul.bf16.gmra.mxu0 %v9480
        %v9609 = vpop.f32.mrf.mxu0
        %v9610 = vadd.f32 0.0, %v9609
        %v9611 = vpop.f32.mrf.mxu0
        %v9612 = vadd.f32 0.0, %v9611
        %9613 = vmatmul.bf16.gmra.mxu0 %v9481
        %v9614 = vpop.f32.mrf.mxu0
        %v9615 = vadd.f32 0.0, %v9614
        %v9616 = vpop.f32.mrf.mxu0
        %v9617 = vadd.f32 0.0, %v9616
        %9618 = vmatmul.bf16.gmra.mxu0 %v9482
        %v9619 = vpop.f32.mrf.mxu0
        %v9620 = vadd.f32 0.0, %v9619
        %v9621 = vpop.f32.mrf.mxu0
        %v9622 = vadd.f32 0.0, %v9621
        %9623 = vmatmul.bf16.gmra.mxu0 %v9483
        %v9624 = vpop.f32.mrf.mxu0
        %v9625 = vadd.f32 0.0, %v9624
        %v9626 = vpop.f32.mrf.mxu0
        %v9627 = vadd.f32 0.0, %v9626
        %9628 = vmatmul.bf16.gmra.mxu0 %v9484
        %v9629 = vpop.f32.mrf.mxu0
        %v9630 = vadd.f32 0.0, %v9629
        %v9631 = vpop.f32.mrf.mxu0
        %v9632 = vadd.f32 0.0, %v9631
        %9633 = vmatmul.bf16.gmra.mxu0 %v9485
        %v9634 = vpop.f32.mrf.mxu0
        %v9635 = vadd.f32 0.0, %v9634
        %v9636 = vpop.f32.mrf.mxu0
        %v9637 = vadd.f32 0.0, %v9636
        %9638 = vdwg.mxu0
        %v9639 = vadd.f32 %v9213, %v9560
        %v9640 = vadd.f32 %v9214, %v9562
        %v9641 = vadd.f32 %v9215, %v9565
        %v9642 = vadd.f32 %v9216, %v9567
        %v9643 = vadd.f32 %v9217, %v9570
        %v9644 = vadd.f32 %v9218, %v9572
        %v9645 = vadd.f32 %v9219, %v9575
        %v9646 = vadd.f32 %v9220, %v9577
        %v9647 = vadd.f32 %v9221, %v9580
        %v9648 = vadd.f32 %v9222, %v9582
        %v9649 = vadd.f32 %v9223, %v9585
        %v9650 = vadd.f32 %v9224, %v9587
        %v9651 = vadd.f32 %v9225, %v9590
        %v9652 = vadd.f32 %v9226, %v9592
        %v9653 = vadd.f32 %v9227, %v9595
        %v9654 = vadd.f32 %v9228, %v9597
        %v9655 = vadd.f32 %v9229, %v9600
        %v9656 = vadd.f32 %v9230, %v9602
        %v9657 = vadd.f32 %v9231, %v9605
        %v9658 = vadd.f32 %v9232, %v9607
        %v9659 = vadd.f32 %v9233, %v9610
        %v9660 = vadd.f32 %v9234, %v9612
        %v9661 = vadd.f32 %v9235, %v9615
        %v9662 = vadd.f32 %v9236, %v9617
        %v9663 = vadd.f32 %v9237, %v9620
        %v9664 = vadd.f32 %v9238, %v9622
        %v9665 = vadd.f32 %v9239, %v9625
        %v9666 = vadd.f32 %v9240, %v9627
        %v9667 = vadd.f32 %v9241, %v9630
        %v9668 = vadd.f32 %v9242, %v9632
        %v9669 = vadd.f32 %v9243, %v9635
        %v9670 = vadd.f32 %v9244, %v9637
        %v9671 = vld [vmem:[%s3 + $0x1] sm:$0x1]
        %v9672 = vperm.slane %v9671, 0
        %v9673 = vadd.f32 %v9639, %v9672
        %v9674 = vadd.f32 %v9640, %v9672
        %v9675 = vadd.f32 %v9641, %v9672
        %v9676 = vadd.f32 %v9642, %v9672
        %v9677 = vadd.f32 %v9643, %v9672
        %v9678 = vadd.f32 %v9644, %v9672
        %v9679 = vadd.f32 %v9645, %v9672
        %v9680 = vadd.f32 %v9646, %v9672
        %v9681 = vadd.f32 %v9647, %v9672
        %v9682 = vadd.f32 %v9648, %v9672
        %v9683 = vadd.f32 %v9649, %v9672
        %v9684 = vadd.f32 %v9650, %v9672
        %v9685 = vadd.f32 %v9651, %v9672
        %v9686 = vadd.f32 %v9652, %v9672
        %v9687 = vadd.f32 %v9653, %v9672
        %v9688 = vadd.f32 %v9654, %v9672
        %v9689 = vadd.f32 %v9655, %v9672
        %v9690 = vadd.f32 %v9656, %v9672
        %v9691 = vadd.f32 %v9657, %v9672
        %v9692 = vadd.f32 %v9658, %v9672
        %v9693 = vadd.f32 %v9659, %v9672
        %v9694 = vadd.f32 %v9660, %v9672
        %v9695 = vadd.f32 %v9661, %v9672
        %v9696 = vadd.f32 %v9662, %v9672
        %v9697 = vadd.f32 %v9663, %v9672
        %v9698 = vadd.f32 %v9664, %v9672
        %v9699 = vadd.f32 %v9665, %v9672
        %v9700 = vadd.f32 %v9666, %v9672
        %v9701 = vadd.f32 %v9667, %v9672
        %v9702 = vadd.f32 %v9668, %v9672
        %v9703 = vadd.f32 %v9669, %v9672
        %v9704 = vadd.f32 %v9670, %v9672
        %v9705 = vunpack.c.l.bf16 %v361
        %v9706 = vunpack.c.l.bf16 %v362
        %v9707 = vunpack.c.l.bf16 %v363
        %v9708 = vunpack.c.l.bf16 %v364
        %v9709 = vunpack.c.l.bf16 %v365
        %v9710 = vunpack.c.l.bf16 %v366
        %v9711 = vunpack.c.l.bf16 %v367
        %v9712 = vunpack.c.l.bf16 %v368
        %v9713 = vunpack.c.l.bf16 %v369
        %v9714 = vunpack.c.l.bf16 %v370
        %v9715 = vunpack.c.l.bf16 %v371
        %v9716 = vunpack.c.l.bf16 %v372
        %v9717 = vunpack.c.l.bf16 %v373
        %v9718 = vunpack.c.l.bf16 %v374
        %v9719 = vunpack.c.l.bf16 %v375
        %v9720 = vunpack.c.l.bf16 %v376
        %v9721 = vunpack.c.l.bf16 %v377
        %v9722 = vunpack.c.l.bf16 %v378
        %v9723 = vunpack.c.l.bf16 %v379
        %v9724 = vunpack.c.l.bf16 %v380
        %v9725 = vunpack.c.l.bf16 %v381
        %v9726 = vunpack.c.l.bf16 %v382
        %v9727 = vunpack.c.l.bf16 %v383
        %v9728 = vunpack.c.l.bf16 %v384
        %v9729 = vunpack.c.l.bf16 %v385
        %v9730 = vunpack.c.l.bf16 %v386
        %v9731 = vunpack.c.l.bf16 %v387
        %v9732 = vunpack.c.l.bf16 %v388
        %v9733 = vunpack.c.l.bf16 %v389
        %v9734 = vunpack.c.l.bf16 %v390
        %v9735 = vunpack.c.l.bf16 %v391
        %v9736 = vunpack.c.l.bf16 %v392
        %v9737 = vadd.f32 %v9673, %v9705
        %v9738 = vadd.f32 %v9674, %v9706
        %v9739 = vadd.f32 %v9675, %v9707
        %v9740 = vadd.f32 %v9676, %v9708
        %v9741 = vadd.f32 %v9677, %v9709
        %v9742 = vadd.f32 %v9678, %v9710
        %v9743 = vadd.f32 %v9679, %v9711
        %v9744 = vadd.f32 %v9680, %v9712
        %v9745 = vadd.f32 %v9681, %v9713
        %v9746 = vadd.f32 %v9682, %v9714
        %v9747 = vadd.f32 %v9683, %v9715
        %v9748 = vadd.f32 %v9684, %v9716
        %v9749 = vadd.f32 %v9685, %v9717
        %v9750 = vadd.f32 %v9686, %v9718
        %v9751 = vadd.f32 %v9687, %v9719
        %v9752 = vadd.f32 %v9688, %v9720
        %v9753 = vadd.f32 %v9689, %v9721
        %v9754 = vadd.f32 %v9690, %v9722
        %v9755 = vadd.f32 %v9691, %v9723
        %v9756 = vadd.f32 %v9692, %v9724
        %v9757 = vadd.f32 %v9693, %v9725
        %v9758 = vadd.f32 %v9694, %v9726
        %v9759 = vadd.f32 %v9695, %v9727
        %v9760 = vadd.f32 %v9696, %v9728
        %v9761 = vadd.f32 %v9697, %v9729
        %v9762 = vadd.f32 %v9698, %v9730
        %v9763 = vadd.f32 %v9699, %v9731
        %v9764 = vadd.f32 %v9700, %v9732
        %v9765 = vadd.f32 %v9701, %v9733
        %v9766 = vadd.f32 %v9702, %v9734
        %v9767 = vadd.f32 %v9703, %v9735
        %v9768 = vadd.f32 %v9704, %v9736
        %v9769 = vmax.f32 %v9737, 0.0
        %v9770 = vmax.f32 %v9738, 0.0
        %v9771 = vmax.f32 %v9739, 0.0
        %v9772 = vmax.f32 %v9740, 0.0
        %v9773 = vmax.f32 %v9741, 0.0
        %v9774 = vmax.f32 %v9742, 0.0
        %v9775 = vmax.f32 %v9743, 0.0
        %v9776 = vmax.f32 %v9744, 0.0
        %v9777 = vmax.f32 %v9745, 0.0
        %v9778 = vmax.f32 %v9746, 0.0
        %v9779 = vmax.f32 %v9747, 0.0
        %v9780 = vmax.f32 %v9748, 0.0
        %v9781 = vmax.f32 %v9749, 0.0
        %v9782 = vmax.f32 %v9750, 0.0
        %v9783 = vmax.f32 %v9751, 0.0
        %v9784 = vmax.f32 %v9752, 0.0
        %v9785 = vmax.f32 %v9753, 0.0
        %v9786 = vmax.f32 %v9754, 0.0
        %v9787 = vmax.f32 %v9755, 0.0
        %v9788 = vmax.f32 %v9756, 0.0
        %v9789 = vmax.f32 %v9757, 0.0
        %v9790 = vmax.f32 %v9758, 0.0
        %v9791 = vmax.f32 %v9759, 0.0
        %v9792 = vmax.f32 %v9760, 0.0
        %v9793 = vmax.f32 %v9761, 0.0
        %v9794 = vmax.f32 %v9762, 0.0
        %v9795 = vmax.f32 %v9763, 0.0
        %v9796 = vmax.f32 %v9764, 0.0
        %v9797 = vmax.f32 %v9765, 0.0
        %v9798 = vmax.f32 %v9766, 0.0
        %v9799 = vmax.f32 %v9767, 0.0
        %v9800 = vmax.f32 %v9768, 0.0
        %v9801 = vpack.c.bf16 %v9769, %v9769
        %v9802 = vpack.c.bf16 %v9770, %v9770
        %v9803 = vpack.c.bf16 %v9771, %v9771
        %v9804 = vpack.c.bf16 %v9772, %v9772
        %v9805 = vpack.c.bf16 %v9773, %v9773
        %v9806 = vpack.c.bf16 %v9774, %v9774
        %v9807 = vpack.c.bf16 %v9775, %v9775
        %v9808 = vpack.c.bf16 %v9776, %v9776
        %v9809 = vpack.c.bf16 %v9777, %v9777
        %v9810 = vpack.c.bf16 %v9778, %v9778
        %v9811 = vpack.c.bf16 %v9779, %v9779
        %v9812 = vpack.c.bf16 %v9780, %v9780
        %v9813 = vpack.c.bf16 %v9781, %v9781
        %v9814 = vpack.c.bf16 %v9782, %v9782
        %v9815 = vpack.c.bf16 %v9783, %v9783
        %v9816 = vpack.c.bf16 %v9784, %v9784
        %v9817 = vpack.c.bf16 %v9785, %v9785
        %v9818 = vpack.c.bf16 %v9786, %v9786
        %v9819 = vpack.c.bf16 %v9787, %v9787
        %v9820 = vpack.c.bf16 %v9788, %v9788
        %v9821 = vpack.c.bf16 %v9789, %v9789
        %v9822 = vpack.c.bf16 %v9790, %v9790
        %v9823 = vpack.c.bf16 %v9791, %v9791
        %v9824 = vpack.c.bf16 %v9792, %v9792
        %v9825 = vpack.c.bf16 %v9793, %v9793
        %v9826 = vpack.c.bf16 %v9794, %v9794
        %v9827 = vpack.c.bf16 %v9795, %v9795
        %v9828 = vpack.c.bf16 %v9796, %v9796
        %v9829 = vpack.c.bf16 %v9797, %v9797
        %v9830 = vpack.c.bf16 %v9798, %v9798
        %v9831 = vpack.c.bf16 %v9799, %v9799
        %v9832 = vpack.c.bf16 %v9800, %v9800
        %9833 = vst [vmem:[%s250] sm:$0xf] %v9801
        %9834 = vst [vmem:[%s250 + $0x4] sm:$0xf] %v9802
        %9835 = vst [vmem:[%s250 + $0x8] sm:$0xf] %v9803
        %9836 = vst [vmem:[%s250 + $0xc] sm:$0xf] %v9804
        %9837 = vst [vmem:[%s250 + $0x10] sm:$0xf] %v9805
        %9838 = vst [vmem:[%s250 + $0x14] sm:$0xf] %v9806
        %9839 = vst [vmem:[%s250 + $0x18] sm:$0xf] %v9807
        %9840 = vst [vmem:[%s250 + $0x1c] sm:$0xf] %v9808
        %9841 = vst [vmem:[%s250 + $0x20] sm:$0xf] %v9809
        %9842 = vst [vmem:[%s250 + $0x24] sm:$0xf] %v9810
        %9843 = vst [vmem:[%s250 + $0x28] sm:$0xf] %v9811
        %9844 = vst [vmem:[%s250 + $0x2c] sm:$0xf] %v9812
        %9845 = vst [vmem:[%s250 + $0x30] sm:$0xf] %v9813
        %9846 = vst [vmem:[%s250 + $0x34] sm:$0xf] %v9814
        %9847 = vst [vmem:[%s250 + $0x38] sm:$0xf] %v9815
        %9848 = vst [vmem:[%s250 + $0x3c] sm:$0xf] %v9816
        %9849 = vst [vmem:[%s250 + $0x40] sm:$0xf] %v9817
        %9850 = vst [vmem:[%s250 + $0x44] sm:$0xf] %v9818
        %9851 = vst [vmem:[%s250 + $0x48] sm:$0xf] %v9819
        %9852 = vst [vmem:[%s250 + $0x4c] sm:$0xf] %v9820
        %9853 = vst [vmem:[%s250 + $0x50] sm:$0xf] %v9821
        %9854 = vst [vmem:[%s250 + $0x54] sm:$0xf] %v9822
        %9855 = vst [vmem:[%s250 + $0x58] sm:$0xf] %v9823
        %9856 = vst [vmem:[%s250 + $0x5c] sm:$0xf] %v9824
        %9857 = vst [vmem:[%s250 + $0x60] sm:$0xf] %v9825
        %9858 = vst [vmem:[%s250 + $0x64] sm:$0xf] %v9826
        %9859 = vst [vmem:[%s250 + $0x68] sm:$0xf] %v9827
        %9860 = vst [vmem:[%s250 + $0x6c] sm:$0xf] %v9828
        %9861 = vst [vmem:[%s250 + $0x70] sm:$0xf] %v9829
        %9862 = vst [vmem:[%s250 + $0x74] sm:$0xf] %v9830
        %9863 = vst [vmem:[%s250 + $0x78] sm:$0xf] %v9831
        %9864 = vst [vmem:[%s250 + $0x7c] sm:$0xf] %v9832
        %s9865 = sand.u32 %s119, 1
        %s9866 = scalar_lea.sflag [#allocation5], %s9865
        %s9867 = sand.u32 %s119, 1
        %s9868 = smul.addr %s9867, 128
        %s9869 = scalar_lea.vmem [#allocation9], %s9868
        // Predicated region
        $region49: #{tpu_custom_call.1} parent=35 // pred_check
          %p9870 = pneg %p129
        $region50: #{tpu_custom_call.1} parent=35 // pred_check_branch
          %9872 = sbr.rel (%p9870) target = $region52
        $region51: #{tpu_custom_call.1} parent=35 // pred_region
          %9874 = vsyncadd %s9866, 0
          %s9875 = smul.addr %s22, 32
          %s9876 = smul.addr %s9875, 4
          %s9877 = scalar_lea.hbm %s4, %s9876
          %s9878 = sshll.u32 %s9869, 4
          %s9879 = int_to_ptr.vmem [resolvable:$true] %s9878
          %s9880 = sshll.u32 %s9877, 4
          %s9881 = int_to_ptr.hbm [resolvable:$true] %s9880
          %9886 = dma.vmem_to_hbm [thread:$0]  %s9879, 2048, %s9881, %s9866, 64, 64, 4
        $region52: #{tpu_custom_call.1} parent=35 // pred_fallthru
          _
      $region36: #{tpu_custom_call.1} parent=5 // pred_fallthru
        _
      %p9887 = scmp.le.s32.totalorder 2, %s17
      // Predicated region
      $region53: #{tpu_custom_call.1} parent=5 // pred_check
        %p9888 = pneg %p9887
      $region54: #{tpu_custom_call.1} parent=5 // pred_check_branch
        %9890 = sbr.rel (%p9888) target = $region56
      $region55: #{tpu_custom_call.1} parent=5 // pred_region
        %s9891 = ssub.s32 %s17, 2
        // Predicated region
        $region57: #{tpu_custom_call.1} parent=55 // pred_check
          %p9892 = pneg %p135
        $region58: #{tpu_custom_call.1} parent=55 // pred_check_branch
          %9894 = sbr.rel (%p9892) target = $region60
        $region59: #{tpu_custom_call.1} parent=55 // pred_region
          %s9895 = sand.u32 %s120, 1
          %s9896 = scalar_lea.sflag [#allocation5], %s9895
          %s9897 = sand.u32 %s120, 1
          %s9898 = smul.addr %s9897, 128
          %s9899 = scalar_lea.vmem [#allocation9], %s9898
          %9901 = dma.done %s9896, 2048
        $region60: #{tpu_custom_call.1} parent=55 // pred_fallthru
          _
      $region56: #{tpu_custom_call.1} parent=5 // pred_fallthru
        _
    $region6: #{tpu_custom_call.1} parent=1 // loop_footer
      %s21 = sadd.s32 1, %s17
    $region7: #{tpu_custom_call.1} parent=1 // loop_footer_branch
      %16 = sbr.rel target = $region3
    $region8: #{tpu_custom_call.1} parent=1 // loop_exit
      _
    %9902 = vsyncpa [#allocation4], 1
    %s9903 = scalar_lea.sflag [#allocation4], 1
    %9904 = vsyncpa %s9903, 1
    %9905 = vsyncpa [#allocation7], 1
    %9906 = vsyncpa [#allocation5], 1
    %s9907 = scalar_lea.sflag [#allocation5], 1
    %9908 = vsyncpa %s9907, 1

</llo_original>
